<compile_context>
chip_gen: v7x
topology: tpu7x:2x2x1
jax: 0.10.0
libtpu: 0.0.40
codegen_flags: <defaults>
</compile_context>

<pallas_src>
import numpy as np

import jax
import jax.numpy as jnp
from jax.experimental import pallas as pl
from jax.experimental.pallas import tpu as pltpu

LEAKY_SLOPE = 0.1
KSIZE = 4
N_TAPS = 4            # one GEMM tap per kernel row index kh
N_LAYERS = 8
ROWS = 32             # uniform padded GEMM row count  (= max spatial H)
COLS = 192            # uniform padded GEMM lane count (= max W*C over layers)

ENC_CH = [(3, 12), (12, 24), (24, 48), (48, 96)]
DEC_CH = [(96, 48), (48, 24), (24, 12), (12, 3)]


# ------------------------------ Pallas kernel --------------------------------

def _conv_ae_kernel(x_ref, s_ref, w_ref, b_ref, o_ref):
    """Whole ConvAE forward for one image, fully VMEM-resident.

    x_ref: [ROWS, COLS]            bf16  input rows ([h, w*C+c], zero padded)
    s_ref: [8, 4, ROWS, ROWS]      bf16  per-layer/tap 0/1 row gather/scatter
    w_ref: [8, 4, COLS, COLS]      bf16  per-layer/tap banded column weights
    b_ref: [8, 1, COLS]            f32   per-layer bias rows
    o_ref: [ROWS, COLS]            f32   output rows
    """
    h = x_ref[...]                                       # bf16 [32, 192]
    for l in range(N_LAYERS):
        acc = None
        for t in range(N_TAPS):
            # Exact 0/1 row gather/scatter: handles stride-2 (enc) / 2x
            # upsample (dec) and the H zero padding.  Values are unchanged, so
            # the bf16 cast below is lossless.
            g = jnp.dot(s_ref[l, t], h,
                        preferred_element_type=jnp.float32).astype(jnp.bfloat16)
            # Banded weight matrix: kw taps + W stride/upsample + W padding.
            y = jnp.dot(g, w_ref[l, t], preferred_element_type=jnp.float32)
            acc = y if acc is None else acc + y
        acc = acc + b_ref[l]                             # f32 bias row broadcast
        if l < N_LAYERS - 1:
            # LeakyReLU(0.1) == max(x, 0.1*x); keep activations bf16 between layers.
            h = jnp.maximum(acc, LEAKY_SLOPE * acc).astype(jnp.bfloat16)
        else:
            o_ref[...] = jnp.tanh(acc)


def conv_ae_forward(packed, x):
    """x: [N, 3, 32, 32] NCHW (PyTorch layout) -> [N, 3, 32, 32]."""
    s_all, w_all, b_all = packed
    n, c, hh, ww = x.shape
    assert (c, hh, ww) == (3, 32, 32), (c, hh, ww)
    # Row layout: row h holds (w, c) interleaved with w major -> [N, H, W*C].
    xr = x.transpose(0, 2, 3, 1).reshape(n, hh, ww * c)
    xr = jnp.pad(xr, ((0, 0), (0, ROWS - hh), (0, COLS - ww * c)))
    xr = xr.astype(jnp.bfloat16)

    out = pl.pallas_call(
        _conv_ae_kernel,
        out_shape=jax.ShapeDtypeStruct((n, ROWS, COLS), jnp.float32),
        grid=(n,),
        in_specs=[
            pl.BlockSpec((None, ROWS, COLS), lambda i: (i, 0, 0)),
            pl.BlockSpec(s_all.shape, lambda i: (0, 0, 0, 0)),
            pl.BlockSpec(w_all.shape, lambda i: (0, 0, 0, 0)),
            pl.BlockSpec(b_all.shape, lambda i: (0, 0, 0)),
        ],
        out_specs=pl.BlockSpec((None, ROWS, COLS), lambda i: (i, 0, 0)),
        compiler_params=pltpu.CompilerParams(
            dimension_semantics=("parallel",)),
    )(xr, s_all, w_all, b_all)

    out = out[:, :hh, :ww * c]
    return out.reshape(n, hh, ww, c).transpose(0, 3, 1, 2)


# ---------------------- init-time weight repacking ---------------------------

def _conv_row_gemm(w, H, W):
    """Conv2d(k=4, s=2, p=1) as 4 row-GEMM taps on a [H, W*Cin] layout.

    Returns S : [4, H//2, H]            0/1 row-gather matrices
            Wm: [4, W*Cin, (W//2)*Cout] banded column-weight matrices
    """
    cout, cin, k, _ = w.shape
    ho, wo = H // 2, W // 2
    S = np.zeros((k, ho, H), np.float32)
    Wm = np.zeros((k, W * cin, wo * cout), np.float32)
    for kh in range(k):
        for r in range(ho):
            h_in = 2 * r + kh - 1
            if 0 <= h_in < H:
                S[kh, r, h_in] = 1.0
        for cc in range(wo):
            for kw in range(k):
                w_in = 2 * cc + kw - 1
                if 0 <= w_in < W:
                    Wm[kh, w_in * cin:(w_in + 1) * cin,
                       cc * cout:(cc + 1) * cout] = w[:, :, kh, kw].T
    return S, Wm


def _convt_row_gemm(w, H, W):
    """ConvTranspose2d(k=4, s=2, p=1) as 4 row-GEMM taps on [H, W*Cin].

    Returns S : [4, 2H, H]          0/1 row-scatter matrices
            Wm: [4, W*Cin, 2W*Cout] banded column-weight matrices
    """
    cin, cout, k, _ = w.shape
    ho, wo = 2 * H, 2 * W
    S = np.zeros((k, ho, H), np.float32)
    Wm = np.zeros((k, W * cin, wo * cout), np.float32)
    for kh in range(k):
        for i_in in range(H):
            i_out = 2 * i_in + kh - 1
            if 0 <= i_out < ho:
                S[kh, i_out, i_in] = 1.0
        for j_in in range(W):
            for kw in range(k):
                j_out = 2 * j_in + kw - 1
                if 0 <= j_out < wo:
                    Wm[kh, j_in * cin:(j_in + 1) * cin,
                       j_out * cout:(j_out + 1) * cout] = w[:, :, kh, kw]
    return S, Wm


def pack_params(params):
    """Precompute GEMM-ready bf16 weights once at init (hoisted out of forward)."""
    s_all = np.zeros((N_LAYERS, N_TAPS, ROWS, ROWS), np.float32)
    w_all = np.zeros((N_LAYERS, N_TAPS, COLS, COLS), np.float32)
    b_all = np.zeros((N_LAYERS, 1, COLS), np.float32)
    h = ROWS
    layer = 0
    for i, (cin, cout) in enumerate(ENC_CH):
        w = np.asarray(params[f"enc{i}_w"], np.float32)
        b = np.asarray(params[f"enc{i}_b"], np.float32)
        S, Wm = _conv_row_gemm(w, h, h)
        ho = h // 2
        s_all[layer, :, :ho, :h] = S
        w_all[layer, :, :h * cin, :ho * cout] = Wm
        b_all[layer, 0, :ho * cout] = np.tile(b, ho)
        h = ho
        layer += 1
    for i, (cin, cout) in enumerate(DEC_CH):
        w = np.asarray(params[f"dec{i}_w"], np.float32)
        b = np.asarray(params[f"dec{i}_b"], np.float32)
        S, Wm = _convt_row_gemm(w, h, h)
        ho = 2 * h
        s_all[layer, :, :ho, :h] = S
        w_all[layer, :, :h * cin, :ho * cout] = Wm
        b_all[layer, 0, :ho * cout] = np.tile(b, ho)
        h = ho
        layer += 1
    return (jnp.asarray(s_all, jnp.bfloat16),
            jnp.asarray(w_all, jnp.bfloat16),
            jnp.asarray(b_all, jnp.float32))


# ------------------------------ parameters -----------------------------------

def init_params(key):
    params = {}
    for i, (cin, cout) in enumerate(ENC_CH):
        key, kw, kb = jax.random.split(key, 3)
        bound = 1.0 / jnp.sqrt(cin * KSIZE * KSIZE)
        params[f"enc{i}_w"] = jax.random.uniform(
            kw, (cout, cin, KSIZE, KSIZE), jnp.float32, -bound, bound)
        params[f"enc{i}_b"] = jax.random.uniform(
            kb, (cout,), jnp.float32, -bound, bound)
    for i, (cin, cout) in enumerate(DEC_CH):
        key, kw, kb = jax.random.split(key, 3)
        bound = 1.0 / jnp.sqrt(cin * KSIZE * KSIZE)
        params[f"dec{i}_w"] = jax.random.uniform(
            kw, (cin, cout, KSIZE, KSIZE), jnp.float32, -bound, bound)
        params[f"dec{i}_b"] = jax.random.uniform(
            kb, (cout,), jnp.float32, -bound, bound)
    return params


# --------------------------- pure-JAX reference -------------------------------

def _bf16_round(a):
    return a.astype(jnp.bfloat16).astype(jnp.float32)


def reference_forward(params, x):
    """lax-conv reference in f32 with bf16-rounded operands (matches the
    kernel's bf16-in / f32-accumulate numerics up to summation order)."""
    hp = jax.lax.Precision.HIGHEST
    h = x
    for i in range(4):
        w = _bf16_round(params[f"enc{i}_w"])
        b = params[f"enc{i}_b"]
        h = jax.lax.conv_general_dilated(
            _bf16_round(h), w, window_strides=(2, 2), padding=[(1, 1), (1, 1)],
            dimension_numbers=("NCHW", "OIHW", "NCHW"), precision=hp)
        h = h + b[None, :, None, None]
        h = jnp.maximum(h, LEAKY_SLOPE * h)
    for i in range(4):
        w = _bf16_round(params[f"dec{i}_w"])
        b = params[f"dec{i}_b"]
        w_conv = jnp.flip(w, (2, 3)).transpose(1, 0, 2, 3)   # zero-dilation form
        h = jax.lax.conv_general_dilated(
            _bf16_round(h), w_conv, window_strides=(1, 1),
            padding=[(2, 2), (2, 2)], lhs_dilation=(2, 2),
            dimension_numbers=("NCHW", "OIHW", "NCHW"), precision=hp)
        h = h + b[None, :, None, None]
        h = jnp.tanh(h) if i == 3 else jnp.maximum(h, LEAKY_SLOPE * h)
    return h


if __name__ == "__main__":
    key = jax.random.PRNGKey(0)
    kx, kp = jax.random.split(key)
    # batch=2, channels=3, spatial=32 (divisible by 2**4 as the encoder needs)
    x = jax.random.normal(kx, (2, 3, 32, 32), jnp.float32)
    params = init_params(kp)
    packed = pack_params(params)          # weight repacking hoisted to init

    fwd = jax.jit(conv_ae_forward)
    out = jax.block_until_ready(fwd(packed, x))

    assert out.shape == x.shape, out.shape
    assert bool(jnp.all(jnp.isfinite(out)))
    assert bool(jnp.all(jnp.abs(out) <= 1.0 + 1e-6))   # final Tanh range

    ref = jax.block_until_ready(jax.jit(reference_forward)(params, x))
    err = float(jnp.max(jnp.abs(out - ref)))
    assert err < 1e-2, f"mismatch vs pure-JAX reference: {err}"
    print("KERNEL_OK")
</pallas_src>

<mosaic_0001>
module attributes {stable_mosaic.version = 11 : i64} {
  func.func @_conv_ae_kernel(%arg0: i32, %arg1: memref<1x32x192xbf16, #tpu.memory_space<vmem>>, %arg2: memref<8x4x32x32xbf16, #tpu.memory_space<vmem>>, %arg3: memref<8x4x192x192xbf16, #tpu.memory_space<vmem>>, %arg4: memref<8x1x192xf32, #tpu.memory_space<vmem>>, %arg5: memref<1x32x192xf32, #tpu.memory_space<vmem>>) attributes {dimension_semantics = [#tpu.dimension_semantics<parallel>], iteration_bounds = array<i64: 2>, scalar_prefetch = 0 : i64, scratch_operands = 0 : i64, tpu.core_type = #tpu.core_type<tc>, window_params = [{transform_indices = @transform_0, window_bounds = array<i64: 1, 32, 192>}, {pipeline_mode = #tpu.pipeline_mode<synchronous>, transform_indices = @transform_1, window_bounds = array<i64: 8, 4, 32, 32>}, {pipeline_mode = #tpu.pipeline_mode<synchronous>, transform_indices = @transform_2, window_bounds = array<i64: 8, 4, 192, 192>}, {pipeline_mode = #tpu.pipeline_mode<synchronous>, transform_indices = @transform_3, window_bounds = array<i64: 8, 1, 192>}, {transform_indices = @transform_4, window_bounds = array<i64: 1, 32, 192>}]} {
    %c0 = arith.constant 0 : index
    %c0_0 = arith.constant 0 : index
    %c0_1 = arith.constant 0 : index
    %0 = vector.load %arg1[%c0, %c0_0, %c0_1] : memref<1x32x192xbf16, #tpu.memory_space<vmem>>, vector<1x32x192xbf16>
    %1 = vector.shape_cast %0 : vector<1x32x192xbf16> to vector<32x192xbf16>
    %c0_2 = arith.constant 0 : index
    %c0_3 = arith.constant 0 : index
    %c0_4 = arith.constant 0 : index
    %c0_5 = arith.constant 0 : index
    %2 = vector.load %arg2[%c0_2, %c0_3, %c0_4, %c0_5] : memref<8x4x32x32xbf16, #tpu.memory_space<vmem>>, vector<1x1x32x32xbf16>
    %3 = vector.shape_cast %2 : vector<1x1x32x32xbf16> to vector<32x32xbf16>
    %cst = arith.constant dense<0.000000e+00> : vector<32x192xf32>
    %4 = tpu.matmul %3, %1, %cst {dimension_numbers = #tpu.dot_dimension_numbers<[1], [0], [0], [1], [0, 0, 1, 1], [], []>} : vector<32x32xbf16>, vector<32x192xbf16>, vector<32x192xf32> -> vector<32x192xf32>
    %5 = arith.truncf %4 : vector<32x192xf32> to vector<32x192xbf16>
    %c0_6 = arith.constant 0 : index
    %c0_7 = arith.constant 0 : index
    %c0_8 = arith.constant 0 : index
    %c0_9 = arith.constant 0 : index
    %6 = vector.load %arg3[%c0_6, %c0_7, %c0_8, %c0_9] : memref<8x4x192x192xbf16, #tpu.memory_space<vmem>>, vector<1x1x192x192xbf16>
    %7 = vector.shape_cast %6 : vector<1x1x192x192xbf16> to vector<192x192xbf16>
    %cst_10 = arith.constant dense<0.000000e+00> : vector<32x192xf32>
    %8 = tpu.matmul %5, %7, %cst_10 {dimension_numbers = #tpu.dot_dimension_numbers<[1], [0], [0], [1], [0, 0, 1, 1], [], []>} : vector<32x192xbf16>, vector<192x192xbf16>, vector<32x192xf32> -> vector<32x192xf32>
    %c0_11 = arith.constant 0 : index
    %c1 = arith.constant 1 : index
    %c0_12 = arith.constant 0 : index
    %c0_13 = arith.constant 0 : index
    %9 = vector.load %arg2[%c0_11, %c1, %c0_12, %c0_13] : memref<8x4x32x32xbf16, #tpu.memory_space<vmem>>, vector<1x1x32x32xbf16>
    %10 = vector.shape_cast %9 : vector<1x1x32x32xbf16> to vector<32x32xbf16>
    %cst_14 = arith.constant dense<0.000000e+00> : vector<32x192xf32>
    %11 = tpu.matmul %10, %1, %cst_14 {dimension_numbers = #tpu.dot_dimension_numbers<[1], [0], [0], [1], [0, 0, 1, 1], [], []>} : vector<32x32xbf16>, vector<32x192xbf16>, vector<32x192xf32> -> vector<32x192xf32>
    %12 = arith.truncf %11 : vector<32x192xf32> to vector<32x192xbf16>
    %c0_15 = arith.constant 0 : index
    %c1_16 = arith.constant 1 : index
    %c0_17 = arith.constant 0 : index
    %c0_18 = arith.constant 0 : index
    %13 = vector.load %arg3[%c0_15, %c1_16, %c0_17, %c0_18] : memref<8x4x192x192xbf16, #tpu.memory_space<vmem>>, vector<1x1x192x192xbf16>
    %14 = vector.shape_cast %13 : vector<1x1x192x192xbf16> to vector<192x192xbf16>
    %cst_19 = arith.constant dense<0.000000e+00> : vector<32x192xf32>
    %15 = tpu.matmul %12, %14, %cst_19 {dimension_numbers = #tpu.dot_dimension_numbers<[1], [0], [0], [1], [0, 0, 1, 1], [], []>} : vector<32x192xbf16>, vector<192x192xbf16>, vector<32x192xf32> -> vector<32x192xf32>
    %16 = arith.addf %8, %15 : vector<32x192xf32>
    %c0_20 = arith.constant 0 : index
    %c2 = arith.constant 2 : index
    %c0_21 = arith.constant 0 : index
    %c0_22 = arith.constant 0 : index
    %17 = vector.load %arg2[%c0_20, %c2, %c0_21, %c0_22] : memref<8x4x32x32xbf16, #tpu.memory_space<vmem>>, vector<1x1x32x32xbf16>
    %18 = vector.shape_cast %17 : vector<1x1x32x32xbf16> to vector<32x32xbf16>
    %cst_23 = arith.constant dense<0.000000e+00> : vector<32x192xf32>
    %19 = tpu.matmul %18, %1, %cst_23 {dimension_numbers = #tpu.dot_dimension_numbers<[1], [0], [0], [1], [0, 0, 1, 1], [], []>} : vector<32x32xbf16>, vector<32x192xbf16>, vector<32x192xf32> -> vector<32x192xf32>
    %20 = arith.truncf %19 : vector<32x192xf32> to vector<32x192xbf16>
    %c0_24 = arith.constant 0 : index
    %c2_25 = arith.constant 2 : index
    %c0_26 = arith.constant 0 : index
    %c0_27 = arith.constant 0 : index
    %21 = vector.load %arg3[%c0_24, %c2_25, %c0_26, %c0_27] : memref<8x4x192x192xbf16, #tpu.memory_space<vmem>>, vector<1x1x192x192xbf16>
    %22 = vector.shape_cast %21 : vector<1x1x192x192xbf16> to vector<192x192xbf16>
    %cst_28 = arith.constant dense<0.000000e+00> : vector<32x192xf32>
    %23 = tpu.matmul %20, %22, %cst_28 {dimension_numbers = #tpu.dot_dimension_numbers<[1], [0], [0], [1], [0, 0, 1, 1], [], []>} : vector<32x192xbf16>, vector<192x192xbf16>, vector<32x192xf32> -> vector<32x192xf32>
    %24 = arith.addf %16, %23 : vector<32x192xf32>
    %c0_29 = arith.constant 0 : index
    %c3 = arith.constant 3 : index
    %c0_30 = arith.constant 0 : index
    %c0_31 = arith.constant 0 : index
    %25 = vector.load %arg2[%c0_29, %c3, %c0_30, %c0_31] : memref<8x4x32x32xbf16, #tpu.memory_space<vmem>>, vector<1x1x32x32xbf16>
    %26 = vector.shape_cast %25 : vector<1x1x32x32xbf16> to vector<32x32xbf16>
    %cst_32 = arith.constant dense<0.000000e+00> : vector<32x192xf32>
    %27 = tpu.matmul %26, %1, %cst_32 {dimension_numbers = #tpu.dot_dimension_numbers<[1], [0], [0], [1], [0, 0, 1, 1], [], []>} : vector<32x32xbf16>, vector<32x192xbf16>, vector<32x192xf32> -> vector<32x192xf32>
    %28 = arith.truncf %27 : vector<32x192xf32> to vector<32x192xbf16>
    %c0_33 = arith.constant 0 : index
    %c3_34 = arith.constant 3 : index
    %c0_35 = arith.constant 0 : index
    %c0_36 = arith.constant 0 : index
    %29 = vector.load %arg3[%c0_33, %c3_34, %c0_35, %c0_36] : memref<8x4x192x192xbf16, #tpu.memory_space<vmem>>, vector<1x1x192x192xbf16>
    %30 = vector.shape_cast %29 : vector<1x1x192x192xbf16> to vector<192x192xbf16>
    %cst_37 = arith.constant dense<0.000000e+00> : vector<32x192xf32>
    %31 = tpu.matmul %28, %30, %cst_37 {dimension_numbers = #tpu.dot_dimension_numbers<[1], [0], [0], [1], [0, 0, 1, 1], [], []>} : vector<32x192xbf16>, vector<192x192xbf16>, vector<32x192xf32> -> vector<32x192xf32>
    %32 = arith.addf %24, %31 : vector<32x192xf32>
    %c0_38 = arith.constant 0 : index
    %c0_39 = arith.constant 0 : index
    %c0_40 = arith.constant 0 : index
    %33 = vector.load %arg4[%c0_38, %c0_39, %c0_40] : memref<8x1x192xf32, #tpu.memory_space<vmem>>, vector<1x1x192xf32>
    %34 = vector.shape_cast %33 : vector<1x1x192xf32> to vector<1x192xf32>
    %35 = vector.broadcast %34 : vector<1x192xf32> to vector<32x192xf32>
    %36 = arith.addf %32, %35 : vector<32x192xf32>
    %cst_41 = arith.constant 1.000000e-01 : f32
    %37 = vector.broadcast %cst_41 : f32 to vector<32x192xf32>
    %38 = arith.mulf %37, %36 : vector<32x192xf32>
    %39 = arith.maximumf %36, %38 : vector<32x192xf32>
    %40 = arith.truncf %39 : vector<32x192xf32> to vector<32x192xbf16>
    %c1_42 = arith.constant 1 : index
    %c0_43 = arith.constant 0 : index
    %c0_44 = arith.constant 0 : index
    %c0_45 = arith.constant 0 : index
    %41 = vector.load %arg2[%c1_42, %c0_43, %c0_44, %c0_45] : memref<8x4x32x32xbf16, #tpu.memory_space<vmem>>, vector<1x1x32x32xbf16>
    %42 = vector.shape_cast %41 : vector<1x1x32x32xbf16> to vector<32x32xbf16>
    %cst_46 = arith.constant dense<0.000000e+00> : vector<32x192xf32>
    %43 = tpu.matmul %42, %40, %cst_46 {dimension_numbers = #tpu.dot_dimension_numbers<[1], [0], [0], [1], [0, 0, 1, 1], [], []>} : vector<32x32xbf16>, vector<32x192xbf16>, vector<32x192xf32> -> vector<32x192xf32>
    %44 = arith.truncf %43 : vector<32x192xf32> to vector<32x192xbf16>
    %c1_47 = arith.constant 1 : index
    %c0_48 = arith.constant 0 : index
    %c0_49 = arith.constant 0 : index
    %c0_50 = arith.constant 0 : index
    %45 = vector.load %arg3[%c1_47, %c0_48, %c0_49, %c0_50] : memref<8x4x192x192xbf16, #tpu.memory_space<vmem>>, vector<1x1x192x192xbf16>
    %46 = vector.shape_cast %45 : vector<1x1x192x192xbf16> to vector<192x192xbf16>
    %cst_51 = arith.constant dense<0.000000e+00> : vector<32x192xf32>
    %47 = tpu.matmul %44, %46, %cst_51 {dimension_numbers = #tpu.dot_dimension_numbers<[1], [0], [0], [1], [0, 0, 1, 1], [], []>} : vector<32x192xbf16>, vector<192x192xbf16>, vector<32x192xf32> -> vector<32x192xf32>
    %c1_52 = arith.constant 1 : index
    %c1_53 = arith.constant 1 : index
    %c0_54 = arith.constant 0 : index
    %c0_55 = arith.constant 0 : index
    %48 = vector.load %arg2[%c1_52, %c1_53, %c0_54, %c0_55] : memref<8x4x32x32xbf16, #tpu.memory_space<vmem>>, vector<1x1x32x32xbf16>
    %49 = vector.shape_cast %48 : vector<1x1x32x32xbf16> to vector<32x32xbf16>
    %cst_56 = arith.constant dense<0.000000e+00> : vector<32x192xf32>
    %50 = tpu.matmul %49, %40, %cst_56 {dimension_numbers = #tpu.dot_dimension_numbers<[1], [0], [0], [1], [0, 0, 1, 1], [], []>} : vector<32x32xbf16>, vector<32x192xbf16>, vector<32x192xf32> -> vector<32x192xf32>
    %51 = arith.truncf %50 : vector<32x192xf32> to vector<32x192xbf16>
    %c1_57 = arith.constant 1 : index
    %c1_58 = arith.constant 1 : index
    %c0_59 = arith.constant 0 : index
    %c0_60 = arith.constant 0 : index
    %52 = vector.load %arg3[%c1_57, %c1_58, %c0_59, %c0_60] : memref<8x4x192x192xbf16, #tpu.memory_space<vmem>>, vector<1x1x192x192xbf16>
    %53 = vector.shape_cast %52 : vector<1x1x192x192xbf16> to vector<192x192xbf16>
    %cst_61 = arith.constant dense<0.000000e+00> : vector<32x192xf32>
    %54 = tpu.matmul %51, %53, %cst_61 {dimension_numbers = #tpu.dot_dimension_numbers<[1], [0], [0], [1], [0, 0, 1, 1], [], []>} : vector<32x192xbf16>, vector<192x192xbf16>, vector<32x192xf32> -> vector<32x192xf32>
    %55 = arith.addf %47, %54 : vector<32x192xf32>
    %c1_62 = arith.constant 1 : index
    %c2_63 = arith.constant 2 : index
    %c0_64 = arith.constant 0 : index
    %c0_65 = arith.constant 0 : index
    %56 = vector.load %arg2[%c1_62, %c2_63, %c0_64, %c0_65] : memref<8x4x32x32xbf16, #tpu.memory_space<vmem>>, vector<1x1x32x32xbf16>
    %57 = vector.shape_cast %56 : vector<1x1x32x32xbf16> to vector<32x32xbf16>
    %cst_66 = arith.constant dense<0.000000e+00> : vector<32x192xf32>
    %58 = tpu.matmul %57, %40, %cst_66 {dimension_numbers = #tpu.dot_dimension_numbers<[1], [0], [0], [1], [0, 0, 1, 1], [], []>} : vector<32x32xbf16>, vector<32x192xbf16>, vector<32x192xf32> -> vector<32x192xf32>
    %59 = arith.truncf %58 : vector<32x192xf32> to vector<32x192xbf16>
    %c1_67 = arith.constant 1 : index
    %c2_68 = arith.constant 2 : index
    %c0_69 = arith.constant 0 : index
    %c0_70 = arith.constant 0 : index
    %60 = vector.load %arg3[%c1_67, %c2_68, %c0_69, %c0_70] : memref<8x4x192x192xbf16, #tpu.memory_space<vmem>>, vector<1x1x192x192xbf16>
    %61 = vector.shape_cast %60 : vector<1x1x192x192xbf16> to vector<192x192xbf16>
    %cst_71 = arith.constant dense<0.000000e+00> : vector<32x192xf32>
    %62 = tpu.matmul %59, %61, %cst_71 {dimension_numbers = #tpu.dot_dimension_numbers<[1], [0], [0], [1], [0, 0, 1, 1], [], []>} : vector<32x192xbf16>, vector<192x192xbf16>, vector<32x192xf32> -> vector<32x192xf32>
    %63 = arith.addf %55, %62 : vector<32x192xf32>
    %c1_72 = arith.constant 1 : index
    %c3_73 = arith.constant 3 : index
    %c0_74 = arith.constant 0 : index
    %c0_75 = arith.constant 0 : index
    %64 = vector.load %arg2[%c1_72, %c3_73, %c0_74, %c0_75] : memref<8x4x32x32xbf16, #tpu.memory_space<vmem>>, vector<1x1x32x32xbf16>
    %65 = vector.shape_cast %64 : vector<1x1x32x32xbf16> to vector<32x32xbf16>
    %cst_76 = arith.constant dense<0.000000e+00> : vector<32x192xf32>
    %66 = tpu.matmul %65, %40, %cst_76 {dimension_numbers = #tpu.dot_dimension_numbers<[1], [0], [0], [1], [0, 0, 1, 1], [], []>} : vector<32x32xbf16>, vector<32x192xbf16>, vector<32x192xf32> -> vector<32x192xf32>
    %67 = arith.truncf %66 : vector<32x192xf32> to vector<32x192xbf16>
    %c1_77 = arith.constant 1 : index
    %c3_78 = arith.constant 3 : index
    %c0_79 = arith.constant 0 : index
    %c0_80 = arith.constant 0 : index
    %68 = vector.load %arg3[%c1_77, %c3_78, %c0_79, %c0_80] : memref<8x4x192x192xbf16, #tpu.memory_space<vmem>>, vector<1x1x192x192xbf16>
    %69 = vector.shape_cast %68 : vector<1x1x192x192xbf16> to vector<192x192xbf16>
    %cst_81 = arith.constant dense<0.000000e+00> : vector<32x192xf32>
    %70 = tpu.matmul %67, %69, %cst_81 {dimension_numbers = #tpu.dot_dimension_numbers<[1], [0], [0], [1], [0, 0, 1, 1], [], []>} : vector<32x192xbf16>, vector<192x192xbf16>, vector<32x192xf32> -> vector<32x192xf32>
    %71 = arith.addf %63, %70 : vector<32x192xf32>
    %c1_82 = arith.constant 1 : index
    %c0_83 = arith.constant 0 : index
    %c0_84 = arith.constant 0 : index
    %72 = vector.load %arg4[%c1_82, %c0_83, %c0_84] : memref<8x1x192xf32, #tpu.memory_space<vmem>>, vector<1x1x192xf32>
    %73 = vector.shape_cast %72 : vector<1x1x192xf32> to vector<1x192xf32>
    %74 = vector.broadcast %73 : vector<1x192xf32> to vector<32x192xf32>
    %75 = arith.addf %71, %74 : vector<32x192xf32>
    %cst_85 = arith.constant 1.000000e-01 : f32
    %76 = vector.broadcast %cst_85 : f32 to vector<32x192xf32>
    %77 = arith.mulf %76, %75 : vector<32x192xf32>
    %78 = arith.maximumf %75, %77 : vector<32x192xf32>
    %79 = arith.truncf %78 : vector<32x192xf32> to vector<32x192xbf16>
    %c2_86 = arith.constant 2 : index
    %c0_87 = arith.constant 0 : index
    %c0_88 = arith.constant 0 : index
    %c0_89 = arith.constant 0 : index
    %80 = vector.load %arg2[%c2_86, %c0_87, %c0_88, %c0_89] : memref<8x4x32x32xbf16, #tpu.memory_space<vmem>>, vector<1x1x32x32xbf16>
    %81 = vector.shape_cast %80 : vector<1x1x32x32xbf16> to vector<32x32xbf16>
    %cst_90 = arith.constant dense<0.000000e+00> : vector<32x192xf32>
    %82 = tpu.matmul %81, %79, %cst_90 {dimension_numbers = #tpu.dot_dimension_numbers<[1], [0], [0], [1], [0, 0, 1, 1], [], []>} : vector<32x32xbf16>, vector<32x192xbf16>, vector<32x192xf32> -> vector<32x192xf32>
    %83 = arith.truncf %82 : vector<32x192xf32> to vector<32x192xbf16>
    %c2_91 = arith.constant 2 : index
    %c0_92 = arith.constant 0 : index
    %c0_93 = arith.constant 0 : index
    %c0_94 = arith.constant 0 : index
    %84 = vector.load %arg3[%c2_91, %c0_92, %c0_93, %c0_94] : memref<8x4x192x192xbf16, #tpu.memory_space<vmem>>, vector<1x1x192x192xbf16>
    %85 = vector.shape_cast %84 : vector<1x1x192x192xbf16> to vector<192x192xbf16>
    %cst_95 = arith.constant dense<0.000000e+00> : vector<32x192xf32>
    %86 = tpu.matmul %83, %85, %cst_95 {dimension_numbers = #tpu.dot_dimension_numbers<[1], [0], [0], [1], [0, 0, 1, 1], [], []>} : vector<32x192xbf16>, vector<192x192xbf16>, vector<32x192xf32> -> vector<32x192xf32>
    %c2_96 = arith.constant 2 : index
    %c1_97 = arith.constant 1 : index
    %c0_98 = arith.constant 0 : index
    %c0_99 = arith.constant 0 : index
    %87 = vector.load %arg2[%c2_96, %c1_97, %c0_98, %c0_99] : memref<8x4x32x32xbf16, #tpu.memory_space<vmem>>, vector<1x1x32x32xbf16>
    %88 = vector.shape_cast %87 : vector<1x1x32x32xbf16> to vector<32x32xbf16>
    %cst_100 = arith.constant dense<0.000000e+00> : vector<32x192xf32>
    %89 = tpu.matmul %88, %79, %cst_100 {dimension_numbers = #tpu.dot_dimension_numbers<[1], [0], [0], [1], [0, 0, 1, 1], [], []>} : vector<32x32xbf16>, vector<32x192xbf16>, vector<32x192xf32> -> vector<32x192xf32>
    %90 = arith.truncf %89 : vector<32x192xf32> to vector<32x192xbf16>
    %c2_101 = arith.constant 2 : index
    %c1_102 = arith.constant 1 : index
    %c0_103 = arith.constant 0 : index
    %c0_104 = arith.constant 0 : index
    %91 = vector.load %arg3[%c2_101, %c1_102, %c0_103, %c0_104] : memref<8x4x192x192xbf16, #tpu.memory_space<vmem>>, vector<1x1x192x192xbf16>
    %92 = vector.shape_cast %91 : vector<1x1x192x192xbf16> to vector<192x192xbf16>
    %cst_105 = arith.constant dense<0.000000e+00> : vector<32x192xf32>
    %93 = tpu.matmul %90, %92, %cst_105 {dimension_numbers = #tpu.dot_dimension_numbers<[1], [0], [0], [1], [0, 0, 1, 1], [], []>} : vector<32x192xbf16>, vector<192x192xbf16>, vector<32x192xf32> -> vector<32x192xf32>
    %94 = arith.addf %86, %93 : vector<32x192xf32>
    %c2_106 = arith.constant 2 : index
    %c2_107 = arith.constant 2 : index
    %c0_108 = arith.constant 0 : index
    %c0_109 = arith.constant 0 : index
    %95 = vector.load %arg2[%c2_106, %c2_107, %c0_108, %c0_109] : memref<8x4x32x32xbf16, #tpu.memory_space<vmem>>, vector<1x1x32x32xbf16>
    %96 = vector.shape_cast %95 : vector<1x1x32x32xbf16> to vector<32x32xbf16>
    %cst_110 = arith.constant dense<0.000000e+00> : vector<32x192xf32>
    %97 = tpu.matmul %96, %79, %cst_110 {dimension_numbers = #tpu.dot_dimension_numbers<[1], [0], [0], [1], [0, 0, 1, 1], [], []>} : vector<32x32xbf16>, vector<32x192xbf16>, vector<32x192xf32> -> vector<32x192xf32>
    %98 = arith.truncf %97 : vector<32x192xf32> to vector<32x192xbf16>
    %c2_111 = arith.constant 2 : index
    %c2_112 = arith.constant 2 : index
    %c0_113 = arith.constant 0 : index
    %c0_114 = arith.constant 0 : index
    %99 = vector.load %arg3[%c2_111, %c2_112, %c0_113, %c0_114] : memref<8x4x192x192xbf16, #tpu.memory_space<vmem>>, vector<1x1x192x192xbf16>
    %100 = vector.shape_cast %99 : vector<1x1x192x192xbf16> to vector<192x192xbf16>
    %cst_115 = arith.constant dense<0.000000e+00> : vector<32x192xf32>
    %101 = tpu.matmul %98, %100, %cst_115 {dimension_numbers = #tpu.dot_dimension_numbers<[1], [0], [0], [1], [0, 0, 1, 1], [], []>} : vector<32x192xbf16>, vector<192x192xbf16>, vector<32x192xf32> -> vector<32x192xf32>
    %102 = arith.addf %94, %101 : vector<32x192xf32>
    %c2_116 = arith.constant 2 : index
    %c3_117 = arith.constant 3 : index
    %c0_118 = arith.constant 0 : index
    %c0_119 = arith.constant 0 : index
    %103 = vector.load %arg2[%c2_116, %c3_117, %c0_118, %c0_119] : memref<8x4x32x32xbf16, #tpu.memory_space<vmem>>, vector<1x1x32x32xbf16>
    %104 = vector.shape_cast %103 : vector<1x1x32x32xbf16> to vector<32x32xbf16>
    %cst_120 = arith.constant dense<0.000000e+00> : vector<32x192xf32>
    %105 = tpu.matmul %104, %79, %cst_120 {dimension_numbers = #tpu.dot_dimension_numbers<[1], [0], [0], [1], [0, 0, 1, 1], [], []>} : vector<32x32xbf16>, vector<32x192xbf16>, vector<32x192xf32> -> vector<32x192xf32>
    %106 = arith.truncf %105 : vector<32x192xf32> to vector<32x192xbf16>
    %c2_121 = arith.constant 2 : index
    %c3_122 = arith.constant 3 : index
    %c0_123 = arith.constant 0 : index
    %c0_124 = arith.constant 0 : index
    %107 = vector.load %arg3[%c2_121, %c3_122, %c0_123, %c0_124] : memref<8x4x192x192xbf16, #tpu.memory_space<vmem>>, vector<1x1x192x192xbf16>
    %108 = vector.shape_cast %107 : vector<1x1x192x192xbf16> to vector<192x192xbf16>
    %cst_125 = arith.constant dense<0.000000e+00> : vector<32x192xf32>
    %109 = tpu.matmul %106, %108, %cst_125 {dimension_numbers = #tpu.dot_dimension_numbers<[1], [0], [0], [1], [0, 0, 1, 1], [], []>} : vector<32x192xbf16>, vector<192x192xbf16>, vector<32x192xf32> -> vector<32x192xf32>
    %110 = arith.addf %102, %109 : vector<32x192xf32>
    %c2_126 = arith.constant 2 : index
    %c0_127 = arith.constant 0 : index
    %c0_128 = arith.constant 0 : index
    %111 = vector.load %arg4[%c2_126, %c0_127, %c0_128] : memref<8x1x192xf32, #tpu.memory_space<vmem>>, vector<1x1x192xf32>
    %112 = vector.shape_cast %111 : vector<1x1x192xf32> to vector<1x192xf32>
    %113 = vector.broadcast %112 : vector<1x192xf32> to vector<32x192xf32>
    %114 = arith.addf %110, %113 : vector<32x192xf32>
    %cst_129 = arith.constant 1.000000e-01 : f32
    %115 = vector.broadcast %cst_129 : f32 to vector<32x192xf32>
    %116 = arith.mulf %115, %114 : vector<32x192xf32>
    %117 = arith.maximumf %114, %116 : vector<32x192xf32>
    %118 = arith.truncf %117 : vector<32x192xf32> to vector<32x192xbf16>
    %c3_130 = arith.constant 3 : index
    %c0_131 = arith.constant 0 : index
    %c0_132 = arith.constant 0 : index
    %c0_133 = arith.constant 0 : index
    %119 = vector.load %arg2[%c3_130, %c0_131, %c0_132, %c0_133] : memref<8x4x32x32xbf16, #tpu.memory_space<vmem>>, vector<1x1x32x32xbf16>
    %120 = vector.shape_cast %119 : vector<1x1x32x32xbf16> to vector<32x32xbf16>
    %cst_134 = arith.constant dense<0.000000e+00> : vector<32x192xf32>
    %121 = tpu.matmul %120, %118, %cst_134 {dimension_numbers = #tpu.dot_dimension_numbers<[1], [0], [0], [1], [0, 0, 1, 1], [], []>} : vector<32x32xbf16>, vector<32x192xbf16>, vector<32x192xf32> -> vector<32x192xf32>
    %122 = arith.truncf %121 : vector<32x192xf32> to vector<32x192xbf16>
    %c3_135 = arith.constant 3 : index
    %c0_136 = arith.constant 0 : index
    %c0_137 = arith.constant 0 : index
    %c0_138 = arith.constant 0 : index
    %123 = vector.load %arg3[%c3_135, %c0_136, %c0_137, %c0_138] : memref<8x4x192x192xbf16, #tpu.memory_space<vmem>>, vector<1x1x192x192xbf16>
    %124 = vector.shape_cast %123 : vector<1x1x192x192xbf16> to vector<192x192xbf16>
    %cst_139 = arith.constant dense<0.000000e+00> : vector<32x192xf32>
    %125 = tpu.matmul %122, %124, %cst_139 {dimension_numbers = #tpu.dot_dimension_numbers<[1], [0], [0], [1], [0, 0, 1, 1], [], []>} : vector<32x192xbf16>, vector<192x192xbf16>, vector<32x192xf32> -> vector<32x192xf32>
    %c3_140 = arith.constant 3 : index
    %c1_141 = arith.constant 1 : index
    %c0_142 = arith.constant 0 : index
    %c0_143 = arith.constant 0 : index
    %126 = vector.load %arg2[%c3_140, %c1_141, %c0_142, %c0_143] : memref<8x4x32x32xbf16, #tpu.memory_space<vmem>>, vector<1x1x32x32xbf16>
    %127 = vector.shape_cast %126 : vector<1x1x32x32xbf16> to vector<32x32xbf16>
    %cst_144 = arith.constant dense<0.000000e+00> : vector<32x192xf32>
    %128 = tpu.matmul %127, %118, %cst_144 {dimension_numbers = #tpu.dot_dimension_numbers<[1], [0], [0], [1], [0, 0, 1, 1], [], []>} : vector<32x32xbf16>, vector<32x192xbf16>, vector<32x192xf32> -> vector<32x192xf32>
    %129 = arith.truncf %128 : vector<32x192xf32> to vector<32x192xbf16>
    %c3_145 = arith.constant 3 : index
    %c1_146 = arith.constant 1 : index
    %c0_147 = arith.constant 0 : index
    %c0_148 = arith.constant 0 : index
    %130 = vector.load %arg3[%c3_145, %c1_146, %c0_147, %c0_148] : memref<8x4x192x192xbf16, #tpu.memory_space<vmem>>, vector<1x1x192x192xbf16>
    %131 = vector.shape_cast %130 : vector<1x1x192x192xbf16> to vector<192x192xbf16>
    %cst_149 = arith.constant dense<0.000000e+00> : vector<32x192xf32>
    %132 = tpu.matmul %129, %131, %cst_149 {dimension_numbers = #tpu.dot_dimension_numbers<[1], [0], [0], [1], [0, 0, 1, 1], [], []>} : vector<32x192xbf16>, vector<192x192xbf16>, vector<32x192xf32> -> vector<32x192xf32>
    %133 = arith.addf %125, %132 : vector<32x192xf32>
    %c3_150 = arith.constant 3 : index
    %c2_151 = arith.constant 2 : index
    %c0_152 = arith.constant 0 : index
    %c0_153 = arith.constant 0 : index
    %134 = vector.load %arg2[%c3_150, %c2_151, %c0_152, %c0_153] : memref<8x4x32x32xbf16, #tpu.memory_space<vmem>>, vector<1x1x32x32xbf16>
    %135 = vector.shape_cast %134 : vector<1x1x32x32xbf16> to vector<32x32xbf16>
    %cst_154 = arith.constant dense<0.000000e+00> : vector<32x192xf32>
    %136 = tpu.matmul %135, %118, %cst_154 {dimension_numbers = #tpu.dot_dimension_numbers<[1], [0], [0], [1], [0, 0, 1, 1], [], []>} : vector<32x32xbf16>, vector<32x192xbf16>, vector<32x192xf32> -> vector<32x192xf32>
    %137 = arith.truncf %136 : vector<32x192xf32> to vector<32x192xbf16>
    %c3_155 = arith.constant 3 : index
    %c2_156 = arith.constant 2 : index
    %c0_157 = arith.constant 0 : index
    %c0_158 = arith.constant 0 : index
    %138 = vector.load %arg3[%c3_155, %c2_156, %c0_157, %c0_158] : memref<8x4x192x192xbf16, #tpu.memory_space<vmem>>, vector<1x1x192x192xbf16>
    %139 = vector.shape_cast %138 : vector<1x1x192x192xbf16> to vector<192x192xbf16>
    %cst_159 = arith.constant dense<0.000000e+00> : vector<32x192xf32>
    %140 = tpu.matmul %137, %139, %cst_159 {dimension_numbers = #tpu.dot_dimension_numbers<[1], [0], [0], [1], [0, 0, 1, 1], [], []>} : vector<32x192xbf16>, vector<192x192xbf16>, vector<32x192xf32> -> vector<32x192xf32>
    %141 = arith.addf %133, %140 : vector<32x192xf32>
    %c3_160 = arith.constant 3 : index
    %c3_161 = arith.constant 3 : index
    %c0_162 = arith.constant 0 : index
    %c0_163 = arith.constant 0 : index
    %142 = vector.load %arg2[%c3_160, %c3_161, %c0_162, %c0_163] : memref<8x4x32x32xbf16, #tpu.memory_space<vmem>>, vector<1x1x32x32xbf16>
    %143 = vector.shape_cast %142 : vector<1x1x32x32xbf16> to vector<32x32xbf16>
    %cst_164 = arith.constant dense<0.000000e+00> : vector<32x192xf32>
    %144 = tpu.matmul %143, %118, %cst_164 {dimension_numbers = #tpu.dot_dimension_numbers<[1], [0], [0], [1], [0, 0, 1, 1], [], []>} : vector<32x32xbf16>, vector<32x192xbf16>, vector<32x192xf32> -> vector<32x192xf32>
    %145 = arith.truncf %144 : vector<32x192xf32> to vector<32x192xbf16>
    %c3_165 = arith.constant 3 : index
    %c3_166 = arith.constant 3 : index
    %c0_167 = arith.constant 0 : index
    %c0_168 = arith.constant 0 : index
    %146 = vector.load %arg3[%c3_165, %c3_166, %c0_167, %c0_168] : memref<8x4x192x192xbf16, #tpu.memory_space<vmem>>, vector<1x1x192x192xbf16>
    %147 = vector.shape_cast %146 : vector<1x1x192x192xbf16> to vector<192x192xbf16>
    %cst_169 = arith.constant dense<0.000000e+00> : vector<32x192xf32>
    %148 = tpu.matmul %145, %147, %cst_169 {dimension_numbers = #tpu.dot_dimension_numbers<[1], [0], [0], [1], [0, 0, 1, 1], [], []>} : vector<32x192xbf16>, vector<192x192xbf16>, vector<32x192xf32> -> vector<32x192xf32>
    %149 = arith.addf %141, %148 : vector<32x192xf32>
    %c3_170 = arith.constant 3 : index
    %c0_171 = arith.constant 0 : index
    %c0_172 = arith.constant 0 : index
    %150 = vector.load %arg4[%c3_170, %c0_171, %c0_172] : memref<8x1x192xf32, #tpu.memory_space<vmem>>, vector<1x1x192xf32>
    %151 = vector.shape_cast %150 : vector<1x1x192xf32> to vector<1x192xf32>
    %152 = vector.broadcast %151 : vector<1x192xf32> to vector<32x192xf32>
    %153 = arith.addf %149, %152 : vector<32x192xf32>
    %cst_173 = arith.constant 1.000000e-01 : f32
    %154 = vector.broadcast %cst_173 : f32 to vector<32x192xf32>
    %155 = arith.mulf %154, %153 : vector<32x192xf32>
    %156 = arith.maximumf %153, %155 : vector<32x192xf32>
    %157 = arith.truncf %156 : vector<32x192xf32> to vector<32x192xbf16>
    %c4 = arith.constant 4 : index
    %c0_174 = arith.constant 0 : index
    %c0_175 = arith.constant 0 : index
    %c0_176 = arith.constant 0 : index
    %158 = vector.load %arg2[%c4, %c0_174, %c0_175, %c0_176] : memref<8x4x32x32xbf16, #tpu.memory_space<vmem>>, vector<1x1x32x32xbf16>
    %159 = vector.shape_cast %158 : vector<1x1x32x32xbf16> to vector<32x32xbf16>
    %cst_177 = arith.constant dense<0.000000e+00> : vector<32x192xf32>
    %160 = tpu.matmul %159, %157, %cst_177 {dimension_numbers = #tpu.dot_dimension_numbers<[1], [0], [0], [1], [0, 0, 1, 1], [], []>} : vector<32x32xbf16>, vector<32x192xbf16>, vector<32x192xf32> -> vector<32x192xf32>
    %161 = arith.truncf %160 : vector<32x192xf32> to vector<32x192xbf16>
    %c4_178 = arith.constant 4 : index
    %c0_179 = arith.constant 0 : index
    %c0_180 = arith.constant 0 : index
    %c0_181 = arith.constant 0 : index
    %162 = vector.load %arg3[%c4_178, %c0_179, %c0_180, %c0_181] : memref<8x4x192x192xbf16, #tpu.memory_space<vmem>>, vector<1x1x192x192xbf16>
    %163 = vector.shape_cast %162 : vector<1x1x192x192xbf16> to vector<192x192xbf16>
    %cst_182 = arith.constant dense<0.000000e+00> : vector<32x192xf32>
    %164 = tpu.matmul %161, %163, %cst_182 {dimension_numbers = #tpu.dot_dimension_numbers<[1], [0], [0], [1], [0, 0, 1, 1], [], []>} : vector<32x192xbf16>, vector<192x192xbf16>, vector<32x192xf32> -> vector<32x192xf32>
    %c4_183 = arith.constant 4 : index
    %c1_184 = arith.constant 1 : index
    %c0_185 = arith.constant 0 : index
    %c0_186 = arith.constant 0 : index
    %165 = vector.load %arg2[%c4_183, %c1_184, %c0_185, %c0_186] : memref<8x4x32x32xbf16, #tpu.memory_space<vmem>>, vector<1x1x32x32xbf16>
    %166 = vector.shape_cast %165 : vector<1x1x32x32xbf16> to vector<32x32xbf16>
    %cst_187 = arith.constant dense<0.000000e+00> : vector<32x192xf32>
    %167 = tpu.matmul %166, %157, %cst_187 {dimension_numbers = #tpu.dot_dimension_numbers<[1], [0], [0], [1], [0, 0, 1, 1], [], []>} : vector<32x32xbf16>, vector<32x192xbf16>, vector<32x192xf32> -> vector<32x192xf32>
    %168 = arith.truncf %167 : vector<32x192xf32> to vector<32x192xbf16>
    %c4_188 = arith.constant 4 : index
    %c1_189 = arith.constant 1 : index
    %c0_190 = arith.constant 0 : index
    %c0_191 = arith.constant 0 : index
    %169 = vector.load %arg3[%c4_188, %c1_189, %c0_190, %c0_191] : memref<8x4x192x192xbf16, #tpu.memory_space<vmem>>, vector<1x1x192x192xbf16>
    %170 = vector.shape_cast %169 : vector<1x1x192x192xbf16> to vector<192x192xbf16>
    %cst_192 = arith.constant dense<0.000000e+00> : vector<32x192xf32>
    %171 = tpu.matmul %168, %170, %cst_192 {dimension_numbers = #tpu.dot_dimension_numbers<[1], [0], [0], [1], [0, 0, 1, 1], [], []>} : vector<32x192xbf16>, vector<192x192xbf16>, vector<32x192xf32> -> vector<32x192xf32>
    %172 = arith.addf %164, %171 : vector<32x192xf32>
    %c4_193 = arith.constant 4 : index
    %c2_194 = arith.constant 2 : index
    %c0_195 = arith.constant 0 : index
    %c0_196 = arith.constant 0 : index
    %173 = vector.load %arg2[%c4_193, %c2_194, %c0_195, %c0_196] : memref<8x4x32x32xbf16, #tpu.memory_space<vmem>>, vector<1x1x32x32xbf16>
    %174 = vector.shape_cast %173 : vector<1x1x32x32xbf16> to vector<32x32xbf16>
    %cst_197 = arith.constant dense<0.000000e+00> : vector<32x192xf32>
    %175 = tpu.matmul %174, %157, %cst_197 {dimension_numbers = #tpu.dot_dimension_numbers<[1], [0], [0], [1], [0, 0, 1, 1], [], []>} : vector<32x32xbf16>, vector<32x192xbf16>, vector<32x192xf32> -> vector<32x192xf32>
    %176 = arith.truncf %175 : vector<32x192xf32> to vector<32x192xbf16>
    %c4_198 = arith.constant 4 : index
    %c2_199 = arith.constant 2 : index
    %c0_200 = arith.constant 0 : index
    %c0_201 = arith.constant 0 : index
    %177 = vector.load %arg3[%c4_198, %c2_199, %c0_200, %c0_201] : memref<8x4x192x192xbf16, #tpu.memory_space<vmem>>, vector<1x1x192x192xbf16>
    %178 = vector.shape_cast %177 : vector<1x1x192x192xbf16> to vector<192x192xbf16>
    %cst_202 = arith.constant dense<0.000000e+00> : vector<32x192xf32>
    %179 = tpu.matmul %176, %178, %cst_202 {dimension_numbers = #tpu.dot_dimension_numbers<[1], [0], [0], [1], [0, 0, 1, 1], [], []>} : vector<32x192xbf16>, vector<192x192xbf16>, vector<32x192xf32> -> vector<32x192xf32>
    %180 = arith.addf %172, %179 : vector<32x192xf32>
    %c4_203 = arith.constant 4 : index
    %c3_204 = arith.constant 3 : index
    %c0_205 = arith.constant 0 : index
    %c0_206 = arith.constant 0 : index
    %181 = vector.load %arg2[%c4_203, %c3_204, %c0_205, %c0_206] : memref<8x4x32x32xbf16, #tpu.memory_space<vmem>>, vector<1x1x32x32xbf16>
    %182 = vector.shape_cast %181 : vector<1x1x32x32xbf16> to vector<32x32xbf16>
    %cst_207 = arith.constant dense<0.000000e+00> : vector<32x192xf32>
    %183 = tpu.matmul %182, %157, %cst_207 {dimension_numbers = #tpu.dot_dimension_numbers<[1], [0], [0], [1], [0, 0, 1, 1], [], []>} : vector<32x32xbf16>, vector<32x192xbf16>, vector<32x192xf32> -> vector<32x192xf32>
    %184 = arith.truncf %183 : vector<32x192xf32> to vector<32x192xbf16>
    %c4_208 = arith.constant 4 : index
    %c3_209 = arith.constant 3 : index
    %c0_210 = arith.constant 0 : index
    %c0_211 = arith.constant 0 : index
    %185 = vector.load %arg3[%c4_208, %c3_209, %c0_210, %c0_211] : memref<8x4x192x192xbf16, #tpu.memory_space<vmem>>, vector<1x1x192x192xbf16>
    %186 = vector.shape_cast %185 : vector<1x1x192x192xbf16> to vector<192x192xbf16>
    %cst_212 = arith.constant dense<0.000000e+00> : vector<32x192xf32>
    %187 = tpu.matmul %184, %186, %cst_212 {dimension_numbers = #tpu.dot_dimension_numbers<[1], [0], [0], [1], [0, 0, 1, 1], [], []>} : vector<32x192xbf16>, vector<192x192xbf16>, vector<32x192xf32> -> vector<32x192xf32>
    %188 = arith.addf %180, %187 : vector<32x192xf32>
    %c4_213 = arith.constant 4 : index
    %c0_214 = arith.constant 0 : index
    %c0_215 = arith.constant 0 : index
    %189 = vector.load %arg4[%c4_213, %c0_214, %c0_215] : memref<8x1x192xf32, #tpu.memory_space<vmem>>, vector<1x1x192xf32>
    %190 = vector.shape_cast %189 : vector<1x1x192xf32> to vector<1x192xf32>
    %191 = vector.broadcast %190 : vector<1x192xf32> to vector<32x192xf32>
    %192 = arith.addf %188, %191 : vector<32x192xf32>
    %cst_216 = arith.constant 1.000000e-01 : f32
    %193 = vector.broadcast %cst_216 : f32 to vector<32x192xf32>
    %194 = arith.mulf %193, %192 : vector<32x192xf32>
    %195 = arith.maximumf %192, %194 : vector<32x192xf32>
    %196 = arith.truncf %195 : vector<32x192xf32> to vector<32x192xbf16>
    %c5 = arith.constant 5 : index
    %c0_217 = arith.constant 0 : index
    %c0_218 = arith.constant 0 : index
    %c0_219 = arith.constant 0 : index
    %197 = vector.load %arg2[%c5, %c0_217, %c0_218, %c0_219] : memref<8x4x32x32xbf16, #tpu.memory_space<vmem>>, vector<1x1x32x32xbf16>
    %198 = vector.shape_cast %197 : vector<1x1x32x32xbf16> to vector<32x32xbf16>
    %cst_220 = arith.constant dense<0.000000e+00> : vector<32x192xf32>
    %199 = tpu.matmul %198, %196, %cst_220 {dimension_numbers = #tpu.dot_dimension_numbers<[1], [0], [0], [1], [0, 0, 1, 1], [], []>} : vector<32x32xbf16>, vector<32x192xbf16>, vector<32x192xf32> -> vector<32x192xf32>
    %200 = arith.truncf %199 : vector<32x192xf32> to vector<32x192xbf16>
    %c5_221 = arith.constant 5 : index
    %c0_222 = arith.constant 0 : index
    %c0_223 = arith.constant 0 : index
    %c0_224 = arith.constant 0 : index
    %201 = vector.load %arg3[%c5_221, %c0_222, %c0_223, %c0_224] : memref<8x4x192x192xbf16, #tpu.memory_space<vmem>>, vector<1x1x192x192xbf16>
    %202 = vector.shape_cast %201 : vector<1x1x192x192xbf16> to vector<192x192xbf16>
    %cst_225 = arith.constant dense<0.000000e+00> : vector<32x192xf32>
    %203 = tpu.matmul %200, %202, %cst_225 {dimension_numbers = #tpu.dot_dimension_numbers<[1], [0], [0], [1], [0, 0, 1, 1], [], []>} : vector<32x192xbf16>, vector<192x192xbf16>, vector<32x192xf32> -> vector<32x192xf32>
    %c5_226 = arith.constant 5 : index
    %c1_227 = arith.constant 1 : index
    %c0_228 = arith.constant 0 : index
    %c0_229 = arith.constant 0 : index
    %204 = vector.load %arg2[%c5_226, %c1_227, %c0_228, %c0_229] : memref<8x4x32x32xbf16, #tpu.memory_space<vmem>>, vector<1x1x32x32xbf16>
    %205 = vector.shape_cast %204 : vector<1x1x32x32xbf16> to vector<32x32xbf16>
    %cst_230 = arith.constant dense<0.000000e+00> : vector<32x192xf32>
    %206 = tpu.matmul %205, %196, %cst_230 {dimension_numbers = #tpu.dot_dimension_numbers<[1], [0], [0], [1], [0, 0, 1, 1], [], []>} : vector<32x32xbf16>, vector<32x192xbf16>, vector<32x192xf32> -> vector<32x192xf32>
    %207 = arith.truncf %206 : vector<32x192xf32> to vector<32x192xbf16>
    %c5_231 = arith.constant 5 : index
    %c1_232 = arith.constant 1 : index
    %c0_233 = arith.constant 0 : index
    %c0_234 = arith.constant 0 : index
    %208 = vector.load %arg3[%c5_231, %c1_232, %c0_233, %c0_234] : memref<8x4x192x192xbf16, #tpu.memory_space<vmem>>, vector<1x1x192x192xbf16>
    %209 = vector.shape_cast %208 : vector<1x1x192x192xbf16> to vector<192x192xbf16>
    %cst_235 = arith.constant dense<0.000000e+00> : vector<32x192xf32>
    %210 = tpu.matmul %207, %209, %cst_235 {dimension_numbers = #tpu.dot_dimension_numbers<[1], [0], [0], [1], [0, 0, 1, 1], [], []>} : vector<32x192xbf16>, vector<192x192xbf16>, vector<32x192xf32> -> vector<32x192xf32>
    %211 = arith.addf %203, %210 : vector<32x192xf32>
    %c5_236 = arith.constant 5 : index
    %c2_237 = arith.constant 2 : index
    %c0_238 = arith.constant 0 : index
    %c0_239 = arith.constant 0 : index
    %212 = vector.load %arg2[%c5_236, %c2_237, %c0_238, %c0_239] : memref<8x4x32x32xbf16, #tpu.memory_space<vmem>>, vector<1x1x32x32xbf16>
    %213 = vector.shape_cast %212 : vector<1x1x32x32xbf16> to vector<32x32xbf16>
    %cst_240 = arith.constant dense<0.000000e+00> : vector<32x192xf32>
    %214 = tpu.matmul %213, %196, %cst_240 {dimension_numbers = #tpu.dot_dimension_numbers<[1], [0], [0], [1], [0, 0, 1, 1], [], []>} : vector<32x32xbf16>, vector<32x192xbf16>, vector<32x192xf32> -> vector<32x192xf32>
    %215 = arith.truncf %214 : vector<32x192xf32> to vector<32x192xbf16>
    %c5_241 = arith.constant 5 : index
    %c2_242 = arith.constant 2 : index
    %c0_243 = arith.constant 0 : index
    %c0_244 = arith.constant 0 : index
    %216 = vector.load %arg3[%c5_241, %c2_242, %c0_243, %c0_244] : memref<8x4x192x192xbf16, #tpu.memory_space<vmem>>, vector<1x1x192x192xbf16>
    %217 = vector.shape_cast %216 : vector<1x1x192x192xbf16> to vector<192x192xbf16>
    %cst_245 = arith.constant dense<0.000000e+00> : vector<32x192xf32>
    %218 = tpu.matmul %215, %217, %cst_245 {dimension_numbers = #tpu.dot_dimension_numbers<[1], [0], [0], [1], [0, 0, 1, 1], [], []>} : vector<32x192xbf16>, vector<192x192xbf16>, vector<32x192xf32> -> vector<32x192xf32>
    %219 = arith.addf %211, %218 : vector<32x192xf32>
    %c5_246 = arith.constant 5 : index
    %c3_247 = arith.constant 3 : index
    %c0_248 = arith.constant 0 : index
    %c0_249 = arith.constant 0 : index
    %220 = vector.load %arg2[%c5_246, %c3_247, %c0_248, %c0_249] : memref<8x4x32x32xbf16, #tpu.memory_space<vmem>>, vector<1x1x32x32xbf16>
    %221 = vector.shape_cast %220 : vector<1x1x32x32xbf16> to vector<32x32xbf16>
    %cst_250 = arith.constant dense<0.000000e+00> : vector<32x192xf32>
    %222 = tpu.matmul %221, %196, %cst_250 {dimension_numbers = #tpu.dot_dimension_numbers<[1], [0], [0], [1], [0, 0, 1, 1], [], []>} : vector<32x32xbf16>, vector<32x192xbf16>, vector<32x192xf32> -> vector<32x192xf32>
    %223 = arith.truncf %222 : vector<32x192xf32> to vector<32x192xbf16>
    %c5_251 = arith.constant 5 : index
    %c3_252 = arith.constant 3 : index
    %c0_253 = arith.constant 0 : index
    %c0_254 = arith.constant 0 : index
    %224 = vector.load %arg3[%c5_251, %c3_252, %c0_253, %c0_254] : memref<8x4x192x192xbf16, #tpu.memory_space<vmem>>, vector<1x1x192x192xbf16>
    %225 = vector.shape_cast %224 : vector<1x1x192x192xbf16> to vector<192x192xbf16>
    %cst_255 = arith.constant dense<0.000000e+00> : vector<32x192xf32>
    %226 = tpu.matmul %223, %225, %cst_255 {dimension_numbers = #tpu.dot_dimension_numbers<[1], [0], [0], [1], [0, 0, 1, 1], [], []>} : vector<32x192xbf16>, vector<192x192xbf16>, vector<32x192xf32> -> vector<32x192xf32>
    %227 = arith.addf %219, %226 : vector<32x192xf32>
    %c5_256 = arith.constant 5 : index
    %c0_257 = arith.constant 0 : index
    %c0_258 = arith.constant 0 : index
    %228 = vector.load %arg4[%c5_256, %c0_257, %c0_258] : memref<8x1x192xf32, #tpu.memory_space<vmem>>, vector<1x1x192xf32>
    %229 = vector.shape_cast %228 : vector<1x1x192xf32> to vector<1x192xf32>
    %230 = vector.broadcast %229 : vector<1x192xf32> to vector<32x192xf32>
    %231 = arith.addf %227, %230 : vector<32x192xf32>
    %cst_259 = arith.constant 1.000000e-01 : f32
    %232 = vector.broadcast %cst_259 : f32 to vector<32x192xf32>
    %233 = arith.mulf %232, %231 : vector<32x192xf32>
    %234 = arith.maximumf %231, %233 : vector<32x192xf32>
    %235 = arith.truncf %234 : vector<32x192xf32> to vector<32x192xbf16>
    %c6 = arith.constant 6 : index
    %c0_260 = arith.constant 0 : index
    %c0_261 = arith.constant 0 : index
    %c0_262 = arith.constant 0 : index
    %236 = vector.load %arg2[%c6, %c0_260, %c0_261, %c0_262] : memref<8x4x32x32xbf16, #tpu.memory_space<vmem>>, vector<1x1x32x32xbf16>
    %237 = vector.shape_cast %236 : vector<1x1x32x32xbf16> to vector<32x32xbf16>
    %cst_263 = arith.constant dense<0.000000e+00> : vector<32x192xf32>
    %238 = tpu.matmul %237, %235, %cst_263 {dimension_numbers = #tpu.dot_dimension_numbers<[1], [0], [0], [1], [0, 0, 1, 1], [], []>} : vector<32x32xbf16>, vector<32x192xbf16>, vector<32x192xf32> -> vector<32x192xf32>
    %239 = arith.truncf %238 : vector<32x192xf32> to vector<32x192xbf16>
    %c6_264 = arith.constant 6 : index
    %c0_265 = arith.constant 0 : index
    %c0_266 = arith.constant 0 : index
    %c0_267 = arith.constant 0 : index
    %240 = vector.load %arg3[%c6_264, %c0_265, %c0_266, %c0_267] : memref<8x4x192x192xbf16, #tpu.memory_space<vmem>>, vector<1x1x192x192xbf16>
    %241 = vector.shape_cast %240 : vector<1x1x192x192xbf16> to vector<192x192xbf16>
    %cst_268 = arith.constant dense<0.000000e+00> : vector<32x192xf32>
    %242 = tpu.matmul %239, %241, %cst_268 {dimension_numbers = #tpu.dot_dimension_numbers<[1], [0], [0], [1], [0, 0, 1, 1], [], []>} : vector<32x192xbf16>, vector<192x192xbf16>, vector<32x192xf32> -> vector<32x192xf32>
    %c6_269 = arith.constant 6 : index
    %c1_270 = arith.constant 1 : index
    %c0_271 = arith.constant 0 : index
    %c0_272 = arith.constant 0 : index
    %243 = vector.load %arg2[%c6_269, %c1_270, %c0_271, %c0_272] : memref<8x4x32x32xbf16, #tpu.memory_space<vmem>>, vector<1x1x32x32xbf16>
    %244 = vector.shape_cast %243 : vector<1x1x32x32xbf16> to vector<32x32xbf16>
    %cst_273 = arith.constant dense<0.000000e+00> : vector<32x192xf32>
    %245 = tpu.matmul %244, %235, %cst_273 {dimension_numbers = #tpu.dot_dimension_numbers<[1], [0], [0], [1], [0, 0, 1, 1], [], []>} : vector<32x32xbf16>, vector<32x192xbf16>, vector<32x192xf32> -> vector<32x192xf32>
    %246 = arith.truncf %245 : vector<32x192xf32> to vector<32x192xbf16>
    %c6_274 = arith.constant 6 : index
    %c1_275 = arith.constant 1 : index
    %c0_276 = arith.constant 0 : index
    %c0_277 = arith.constant 0 : index
    %247 = vector.load %arg3[%c6_274, %c1_275, %c0_276, %c0_277] : memref<8x4x192x192xbf16, #tpu.memory_space<vmem>>, vector<1x1x192x192xbf16>
    %248 = vector.shape_cast %247 : vector<1x1x192x192xbf16> to vector<192x192xbf16>
    %cst_278 = arith.constant dense<0.000000e+00> : vector<32x192xf32>
    %249 = tpu.matmul %246, %248, %cst_278 {dimension_numbers = #tpu.dot_dimension_numbers<[1], [0], [0], [1], [0, 0, 1, 1], [], []>} : vector<32x192xbf16>, vector<192x192xbf16>, vector<32x192xf32> -> vector<32x192xf32>
    %250 = arith.addf %242, %249 : vector<32x192xf32>
    %c6_279 = arith.constant 6 : index
    %c2_280 = arith.constant 2 : index
    %c0_281 = arith.constant 0 : index
    %c0_282 = arith.constant 0 : index
    %251 = vector.load %arg2[%c6_279, %c2_280, %c0_281, %c0_282] : memref<8x4x32x32xbf16, #tpu.memory_space<vmem>>, vector<1x1x32x32xbf16>
    %252 = vector.shape_cast %251 : vector<1x1x32x32xbf16> to vector<32x32xbf16>
    %cst_283 = arith.constant dense<0.000000e+00> : vector<32x192xf32>
    %253 = tpu.matmul %252, %235, %cst_283 {dimension_numbers = #tpu.dot_dimension_numbers<[1], [0], [0], [1], [0, 0, 1, 1], [], []>} : vector<32x32xbf16>, vector<32x192xbf16>, vector<32x192xf32> -> vector<32x192xf32>
    %254 = arith.truncf %253 : vector<32x192xf32> to vector<32x192xbf16>
    %c6_284 = arith.constant 6 : index
    %c2_285 = arith.constant 2 : index
    %c0_286 = arith.constant 0 : index
    %c0_287 = arith.constant 0 : index
    %255 = vector.load %arg3[%c6_284, %c2_285, %c0_286, %c0_287] : memref<8x4x192x192xbf16, #tpu.memory_space<vmem>>, vector<1x1x192x192xbf16>
    %256 = vector.shape_cast %255 : vector<1x1x192x192xbf16> to vector<192x192xbf16>
    %cst_288 = arith.constant dense<0.000000e+00> : vector<32x192xf32>
    %257 = tpu.matmul %254, %256, %cst_288 {dimension_numbers = #tpu.dot_dimension_numbers<[1], [0], [0], [1], [0, 0, 1, 1], [], []>} : vector<32x192xbf16>, vector<192x192xbf16>, vector<32x192xf32> -> vector<32x192xf32>
    %258 = arith.addf %250, %257 : vector<32x192xf32>
    %c6_289 = arith.constant 6 : index
    %c3_290 = arith.constant 3 : index
    %c0_291 = arith.constant 0 : index
    %c0_292 = arith.constant 0 : index
    %259 = vector.load %arg2[%c6_289, %c3_290, %c0_291, %c0_292] : memref<8x4x32x32xbf16, #tpu.memory_space<vmem>>, vector<1x1x32x32xbf16>
    %260 = vector.shape_cast %259 : vector<1x1x32x32xbf16> to vector<32x32xbf16>
    %cst_293 = arith.constant dense<0.000000e+00> : vector<32x192xf32>
    %261 = tpu.matmul %260, %235, %cst_293 {dimension_numbers = #tpu.dot_dimension_numbers<[1], [0], [0], [1], [0, 0, 1, 1], [], []>} : vector<32x32xbf16>, vector<32x192xbf16>, vector<32x192xf32> -> vector<32x192xf32>
    %262 = arith.truncf %261 : vector<32x192xf32> to vector<32x192xbf16>
    %c6_294 = arith.constant 6 : index
    %c3_295 = arith.constant 3 : index
    %c0_296 = arith.constant 0 : index
    %c0_297 = arith.constant 0 : index
    %263 = vector.load %arg3[%c6_294, %c3_295, %c0_296, %c0_297] : memref<8x4x192x192xbf16, #tpu.memory_space<vmem>>, vector<1x1x192x192xbf16>
    %264 = vector.shape_cast %263 : vector<1x1x192x192xbf16> to vector<192x192xbf16>
    %cst_298 = arith.constant dense<0.000000e+00> : vector<32x192xf32>
    %265 = tpu.matmul %262, %264, %cst_298 {dimension_numbers = #tpu.dot_dimension_numbers<[1], [0], [0], [1], [0, 0, 1, 1], [], []>} : vector<32x192xbf16>, vector<192x192xbf16>, vector<32x192xf32> -> vector<32x192xf32>
    %266 = arith.addf %258, %265 : vector<32x192xf32>
    %c6_299 = arith.constant 6 : index
    %c0_300 = arith.constant 0 : index
    %c0_301 = arith.constant 0 : index
    %267 = vector.load %arg4[%c6_299, %c0_300, %c0_301] : memref<8x1x192xf32, #tpu.memory_space<vmem>>, vector<1x1x192xf32>
    %268 = vector.shape_cast %267 : vector<1x1x192xf32> to vector<1x192xf32>
    %269 = vector.broadcast %268 : vector<1x192xf32> to vector<32x192xf32>
    %270 = arith.addf %266, %269 : vector<32x192xf32>
    %cst_302 = arith.constant 1.000000e-01 : f32
    %271 = vector.broadcast %cst_302 : f32 to vector<32x192xf32>
    %272 = arith.mulf %271, %270 : vector<32x192xf32>
    %273 = arith.maximumf %270, %272 : vector<32x192xf32>
    %274 = arith.truncf %273 : vector<32x192xf32> to vector<32x192xbf16>
    %c7 = arith.constant 7 : index
    %c0_303 = arith.constant 0 : index
    %c0_304 = arith.constant 0 : index
    %c0_305 = arith.constant 0 : index
    %275 = vector.load %arg2[%c7, %c0_303, %c0_304, %c0_305] : memref<8x4x32x32xbf16, #tpu.memory_space<vmem>>, vector<1x1x32x32xbf16>
    %276 = vector.shape_cast %275 : vector<1x1x32x32xbf16> to vector<32x32xbf16>
    %cst_306 = arith.constant dense<0.000000e+00> : vector<32x192xf32>
    %277 = tpu.matmul %276, %274, %cst_306 {dimension_numbers = #tpu.dot_dimension_numbers<[1], [0], [0], [1], [0, 0, 1, 1], [], []>} : vector<32x32xbf16>, vector<32x192xbf16>, vector<32x192xf32> -> vector<32x192xf32>
    %278 = arith.truncf %277 : vector<32x192xf32> to vector<32x192xbf16>
    %c7_307 = arith.constant 7 : index
    %c0_308 = arith.constant 0 : index
    %c0_309 = arith.constant 0 : index
    %c0_310 = arith.constant 0 : index
    %279 = vector.load %arg3[%c7_307, %c0_308, %c0_309, %c0_310] : memref<8x4x192x192xbf16, #tpu.memory_space<vmem>>, vector<1x1x192x192xbf16>
    %280 = vector.shape_cast %279 : vector<1x1x192x192xbf16> to vector<192x192xbf16>
    %cst_311 = arith.constant dense<0.000000e+00> : vector<32x192xf32>
    %281 = tpu.matmul %278, %280, %cst_311 {dimension_numbers = #tpu.dot_dimension_numbers<[1], [0], [0], [1], [0, 0, 1, 1], [], []>} : vector<32x192xbf16>, vector<192x192xbf16>, vector<32x192xf32> -> vector<32x192xf32>
    %c7_312 = arith.constant 7 : index
    %c1_313 = arith.constant 1 : index
    %c0_314 = arith.constant 0 : index
    %c0_315 = arith.constant 0 : index
    %282 = vector.load %arg2[%c7_312, %c1_313, %c0_314, %c0_315] : memref<8x4x32x32xbf16, #tpu.memory_space<vmem>>, vector<1x1x32x32xbf16>
    %283 = vector.shape_cast %282 : vector<1x1x32x32xbf16> to vector<32x32xbf16>
    %cst_316 = arith.constant dense<0.000000e+00> : vector<32x192xf32>
    %284 = tpu.matmul %283, %274, %cst_316 {dimension_numbers = #tpu.dot_dimension_numbers<[1], [0], [0], [1], [0, 0, 1, 1], [], []>} : vector<32x32xbf16>, vector<32x192xbf16>, vector<32x192xf32> -> vector<32x192xf32>
    %285 = arith.truncf %284 : vector<32x192xf32> to vector<32x192xbf16>
    %c7_317 = arith.constant 7 : index
    %c1_318 = arith.constant 1 : index
    %c0_319 = arith.constant 0 : index
    %c0_320 = arith.constant 0 : index
    %286 = vector.load %arg3[%c7_317, %c1_318, %c0_319, %c0_320] : memref<8x4x192x192xbf16, #tpu.memory_space<vmem>>, vector<1x1x192x192xbf16>
    %287 = vector.shape_cast %286 : vector<1x1x192x192xbf16> to vector<192x192xbf16>
    %cst_321 = arith.constant dense<0.000000e+00> : vector<32x192xf32>
    %288 = tpu.matmul %285, %287, %cst_321 {dimension_numbers = #tpu.dot_dimension_numbers<[1], [0], [0], [1], [0, 0, 1, 1], [], []>} : vector<32x192xbf16>, vector<192x192xbf16>, vector<32x192xf32> -> vector<32x192xf32>
    %289 = arith.addf %281, %288 : vector<32x192xf32>
    %c7_322 = arith.constant 7 : index
    %c2_323 = arith.constant 2 : index
    %c0_324 = arith.constant 0 : index
    %c0_325 = arith.constant 0 : index
    %290 = vector.load %arg2[%c7_322, %c2_323, %c0_324, %c0_325] : memref<8x4x32x32xbf16, #tpu.memory_space<vmem>>, vector<1x1x32x32xbf16>
    %291 = vector.shape_cast %290 : vector<1x1x32x32xbf16> to vector<32x32xbf16>
    %cst_326 = arith.constant dense<0.000000e+00> : vector<32x192xf32>
    %292 = tpu.matmul %291, %274, %cst_326 {dimension_numbers = #tpu.dot_dimension_numbers<[1], [0], [0], [1], [0, 0, 1, 1], [], []>} : vector<32x32xbf16>, vector<32x192xbf16>, vector<32x192xf32> -> vector<32x192xf32>
    %293 = arith.truncf %292 : vector<32x192xf32> to vector<32x192xbf16>
    %c7_327 = arith.constant 7 : index
    %c2_328 = arith.constant 2 : index
    %c0_329 = arith.constant 0 : index
    %c0_330 = arith.constant 0 : index
    %294 = vector.load %arg3[%c7_327, %c2_328, %c0_329, %c0_330] : memref<8x4x192x192xbf16, #tpu.memory_space<vmem>>, vector<1x1x192x192xbf16>
    %295 = vector.shape_cast %294 : vector<1x1x192x192xbf16> to vector<192x192xbf16>
    %cst_331 = arith.constant dense<0.000000e+00> : vector<32x192xf32>
    %296 = tpu.matmul %293, %295, %cst_331 {dimension_numbers = #tpu.dot_dimension_numbers<[1], [0], [0], [1], [0, 0, 1, 1], [], []>} : vector<32x192xbf16>, vector<192x192xbf16>, vector<32x192xf32> -> vector<32x192xf32>
    %297 = arith.addf %289, %296 : vector<32x192xf32>
    %c7_332 = arith.constant 7 : index
    %c3_333 = arith.constant 3 : index
    %c0_334 = arith.constant 0 : index
    %c0_335 = arith.constant 0 : index
    %298 = vector.load %arg2[%c7_332, %c3_333, %c0_334, %c0_335] : memref<8x4x32x32xbf16, #tpu.memory_space<vmem>>, vector<1x1x32x32xbf16>
    %299 = vector.shape_cast %298 : vector<1x1x32x32xbf16> to vector<32x32xbf16>
    %cst_336 = arith.constant dense<0.000000e+00> : vector<32x192xf32>
    %300 = tpu.matmul %299, %274, %cst_336 {dimension_numbers = #tpu.dot_dimension_numbers<[1], [0], [0], [1], [0, 0, 1, 1], [], []>} : vector<32x32xbf16>, vector<32x192xbf16>, vector<32x192xf32> -> vector<32x192xf32>
    %301 = arith.truncf %300 : vector<32x192xf32> to vector<32x192xbf16>
    %c7_337 = arith.constant 7 : index
    %c3_338 = arith.constant 3 : index
    %c0_339 = arith.constant 0 : index
    %c0_340 = arith.constant 0 : index
    %302 = vector.load %arg3[%c7_337, %c3_338, %c0_339, %c0_340] : memref<8x4x192x192xbf16, #tpu.memory_space<vmem>>, vector<1x1x192x192xbf16>
    %303 = vector.shape_cast %302 : vector<1x1x192x192xbf16> to vector<192x192xbf16>
    %cst_341 = arith.constant dense<0.000000e+00> : vector<32x192xf32>
    %304 = tpu.matmul %301, %303, %cst_341 {dimension_numbers = #tpu.dot_dimension_numbers<[1], [0], [0], [1], [0, 0, 1, 1], [], []>} : vector<32x192xbf16>, vector<192x192xbf16>, vector<32x192xf32> -> vector<32x192xf32>
    %305 = arith.addf %297, %304 : vector<32x192xf32>
    %c7_342 = arith.constant 7 : index
    %c0_343 = arith.constant 0 : index
    %c0_344 = arith.constant 0 : index
    %306 = vector.load %arg4[%c7_342, %c0_343, %c0_344] : memref<8x1x192xf32, #tpu.memory_space<vmem>>, vector<1x1x192xf32>
    %307 = vector.shape_cast %306 : vector<1x1x192xf32> to vector<1x192xf32>
    %308 = vector.broadcast %307 : vector<1x192xf32> to vector<32x192xf32>
    %309 = arith.addf %305, %308 : vector<32x192xf32>
    %310 = math.tanh %309 : vector<32x192xf32>
    %c0_345 = arith.constant 0 : index
    %c0_346 = arith.constant 0 : index
    %c0_347 = arith.constant 0 : index
    %311 = vector.load %arg5[%c0_345, %c0_346, %c0_347] : memref<1x32x192xf32, #tpu.memory_space<vmem>>, vector<1x32x192xf32>
    %312 = vector.shape_cast %311 : vector<1x32x192xf32> to vector<32x192xf32>
    %313 = vector.shape_cast %310 : vector<32x192xf32> to vector<1x32x192xf32>
    tpu.vector_store %arg5[%c0_345, %c0_346, %c0_347], %313 {strides = array<i32>} : memref<1x32x192xf32, #tpu.memory_space<vmem>>, vector<1x32x192xf32>,
    return
  }
  func.func @transform_0(%arg0: i32) -> (i32, i32, i32) {
    %c0_i32 = arith.constant 0 : i32
    %c0_i32_0 = arith.constant 0 : i32
    %c0_i32_1 = arith.constant 0 : i32
    return %arg0, %c0_i32, %c0_i32_0 : i32, i32, i32
  }
  func.func @transform_1(%arg0: i32) -> (i32, i32, i32, i32) {
    %c0_i32 = arith.constant 0 : i32
    %c0_i32_0 = arith.constant 0 : i32
    %c0_i32_1 = arith.constant 0 : i32
    %c0_i32_2 = arith.constant 0 : i32
    %c0_i32_3 = arith.constant 0 : i32
    return %c0_i32, %c0_i32_0, %c0_i32_1, %c0_i32_2 : i32, i32, i32, i32
  }
  func.func @transform_2(%arg0: i32) -> (i32, i32, i32, i32) {
    %c0_i32 = arith.constant 0 : i32
    %c0_i32_0 = arith.constant 0 : i32
    %c0_i32_1 = arith.constant 0 : i32
    %c0_i32_2 = arith.constant 0 : i32
    %c0_i32_3 = arith.constant 0 : i32
    return %c0_i32, %c0_i32_0, %c0_i32_1, %c0_i32_2 : i32, i32, i32, i32
  }
  func.func @transform_3(%arg0: i32) -> (i32, i32, i32) {
    %c0_i32 = arith.constant 0 : i32
    %c0_i32_0 = arith.constant 0 : i32
    %c0_i32_1 = arith.constant 0 : i32
    %c0_i32_2 = arith.constant 0 : i32
    return %c0_i32, %c0_i32_0, %c0_i32_1 : i32, i32, i32
  }
  func.func @transform_4(%arg0: i32) -> (i32, i32, i32) {
    %c0_i32 = arith.constant 0 : i32
    %c0_i32_0 = arith.constant 0 : i32
    %c0_i32_1 = arith.constant 0 : i32
    return %arg0, %c0_i32, %c0_i32_0 : i32, i32, i32
  }
}

</mosaic_0001>

<llo_original>
// kernel: conv_ae_forward.1
$region0: #{conv_ae_forward.1}
  #allocation0 [shape = 'u32[]', space=smem, size = 0x4, offset = 0x4, fixed_abs, tag = 'smem constant byte address 0x4 - core index']
  #allocation1 [shape = 'u32[144,128]{1,0:T(1,128)}', space=vmem, size = 0x12000, scoped, tag = 'internal scratch']
  %s0 = inlined_call_operand.vmem [shape: bf16[2,32,192], index: 0, kind: input, shape index: {}]
  %s1 = inlined_call_operand.hbm [shape: bf16[8,4,32,32], index: 1, kind: input, shape index: {}]
  %s2 = inlined_call_operand.hbm [shape: bf16[8,4,192,192], index: 2, kind: input, shape index: {}]
  %s3 = inlined_call_operand.hbm [shape: f32[8,1,192], index: 3, kind: input, shape index: {}]
  %s4 = inlined_call_operand.vmem [shape: f32[2,32,192], index: 4, kind: output, shape index: {}]
  %s5 = sld [smem:[#allocation0]]
  $region61: #{conv_ae_forward.1} parent=0
    _
  %s7 = ssub.s32 1, %s5
  %s8 = scalar_select 0, %s7, %s5
  $region1: #{conv_ae_forward.1} parent=0
    #allocation2 [shape = 'u8[262144]{0}', space=vmem, size = 0x40000, scoped, tag = 'input window, operand 1, single buffered']
    #allocation3 [shape = 's32[2]{0}', space=sflag, size = 0x8, scoped, tag = 'scoped memory for conv_ae_forward.1']
    #allocation4 [shape = 'u8[3145728]{0}', space=vmem, size = 0x300000, scoped, tag = 'input window, operand 2, single buffered']
    #allocation5 [shape = 's32[1]{0}', space=sflag, size = 0x4, scoped, tag = 'scoped memory for conv_ae_forward.1']
    #allocation6 [shape = 'u8[8192]{0}', space=vmem, size = 0x2000, scoped, tag = 'input window, operand 3, single buffered']
    %9 = vsyncpa [#allocation3], 0
    %10 = vsyncpa [#allocation5], 0
    loop: start=0, step=1, limit=4
    $region2: #{conv_ae_forward.1} parent=1 // loop_pre_header
      _
    $region3: #{conv_ae_forward.1} parent=1 // loop_header
      %s12 = sphi 0, %s16
      %p13 = scmp.ge.s32.totalorder %s12, 4
      %s22 = sphi 0, %s24
      %s25 = sphi 0, %s22
      %s26 = sphi 0, %s25
      %s42 = sphi 0, %s26
      %s46 = sphi 0, %s46
      %s48 = sphi 0, %s46
      %s49 = sphi 0, %s48
      %s63 = sphi 0, %s49
      %s67 = sphi 0, %s67
      %s69 = sphi 0, %s67
      %s70 = sphi 0, %s69
      %s84 = sphi 0, %s70
      %s88 = sphi 0, %s88
      %s90 = sphi 0, %s88
      %s91 = sphi 0, %s90
      %s105 = sphi 0, %s91
      %s111 = sphi 0, %s113
      %s114 = sphi 0, %s111
      %s115 = sphi 0, %s114
      %s131 = sphi 0, %s115
    $region4: #{conv_ae_forward.1} parent=1 // loop_header_branch
      %15 = sbr.rel (%p13) target = $region8
    $region5: #{conv_ae_forward.1} parent=1 // loop_body
      %s17 = ssub.s32 %s12, 1
      %s18 = ssub.s32 %s12, 2
      %s19 = sadd.s32 %s12, 1
      %s20 = ssub.s32 %s12, %s19
      %p21 = scmp.eq.s32.totalorder %s20, 0
      %s23 = sadd.s32 %s22, 1
      %s24 = scalar_select %p21, %s22, %s23
      %p27 = pneg %p21
      %p28 = scmp.eq.s32.totalorder %s12, 1
      %p29 = por %p27, %p28
      %p30 = scmp.ne.s32.totalorder %s22, %s25
      %p31 = scmp.eq.s32.totalorder %s12, 0
      %p32 = por %p30, %p31
      %p33 = scmp.ne.s32.totalorder %s22, %s25
      %p34 = scmp.eq.s32.totalorder %s17, 1
      %p35 = por %p33, %p34
      %p36 = scmp.ne.s32.totalorder %s25, %s26
      %p37 = scmp.eq.s32.totalorder %s17, 0
      %p38 = por %p36, %p37
      %p39 = scmp.ne.s32.totalorder %s25, %s26
      %p40 = scmp.eq.s32.totalorder %s18, 1
      %p41 = por %p39, %p40
      %p43 = scmp.ne.s32.totalorder %s26, %s42
      %p44 = scmp.eq.s32.totalorder %s18, 0
      %p45 = por %p43, %p44
      %s47 = sadd.s32 %s46, 1
      %p50 = scmp.eq.s32.totalorder %s12, 1
      %p51 = scmp.ne.s32.totalorder %s46, %s48
      %p52 = scmp.eq.s32.totalorder %s12, 0
      %p53 = por %p51, %p52
      %p54 = scmp.ne.s32.totalorder %s46, %s48
      %p55 = scmp.eq.s32.totalorder %s17, 1
      %p56 = por %p54, %p55
      %p57 = scmp.ne.s32.totalorder %s48, %s49
      %p58 = scmp.eq.s32.totalorder %s17, 0
      %p59 = por %p57, %p58
      %p60 = scmp.ne.s32.totalorder %s48, %s49
      %p61 = scmp.eq.s32.totalorder %s18, 1
      %p62 = por %p60, %p61
      %p64 = scmp.ne.s32.totalorder %s49, %s63
      %p65 = scmp.eq.s32.totalorder %s18, 0
      %p66 = por %p64, %p65
      %s68 = sadd.s32 %s67, 1
      %p71 = scmp.eq.s32.totalorder %s12, 1
      %p72 = scmp.ne.s32.totalorder %s67, %s69
      %p73 = scmp.eq.s32.totalorder %s12, 0
      %p74 = por %p72, %p73
      %p75 = scmp.ne.s32.totalorder %s67, %s69
      %p76 = scmp.eq.s32.totalorder %s17, 1
      %p77 = por %p75, %p76
      %p78 = scmp.ne.s32.totalorder %s69, %s70
      %p79 = scmp.eq.s32.totalorder %s17, 0
      %p80 = por %p78, %p79
      %p81 = scmp.ne.s32.totalorder %s69, %s70
      %p82 = scmp.eq.s32.totalorder %s18, 1
      %p83 = por %p81, %p82
      %p85 = scmp.ne.s32.totalorder %s70, %s84
      %p86 = scmp.eq.s32.totalorder %s18, 0
      %p87 = por %p85, %p86
      %s89 = sadd.s32 %s88, 1
      %p92 = scmp.eq.s32.totalorder %s12, 1
      %p93 = scmp.ne.s32.totalorder %s88, %s90
      %p94 = scmp.eq.s32.totalorder %s12, 0
      %p95 = por %p93, %p94
      %p96 = scmp.ne.s32.totalorder %s88, %s90
      %p97 = scmp.eq.s32.totalorder %s17, 1
      %p98 = por %p96, %p97
      %p99 = scmp.ne.s32.totalorder %s90, %s91
      %p100 = scmp.eq.s32.totalorder %s17, 0
      %p101 = por %p99, %p100
      %p102 = scmp.ne.s32.totalorder %s90, %s91
      %p103 = scmp.eq.s32.totalorder %s18, 1
      %p104 = por %p102, %p103
      %p106 = scmp.ne.s32.totalorder %s91, %s105
      %p107 = scmp.eq.s32.totalorder %s18, 0
      %p108 = por %p106, %p107
      %s109 = ssub.s32 %s12, %s19
      %p110 = scmp.eq.s32.totalorder %s109, 0
      %s112 = sadd.s32 %s111, 1
      %s113 = scalar_select %p110, %s111, %s112
      %p116 = pneg %p110
      %p117 = scmp.eq.s32.totalorder %s12, 1
      %p118 = por %p116, %p117
      %p119 = scmp.ne.s32.totalorder %s111, %s114
      %p120 = scmp.eq.s32.totalorder %s12, 0
      %p121 = por %p119, %p120
      %p122 = scmp.ne.s32.totalorder %s111, %s114
      %p123 = scmp.eq.s32.totalorder %s17, 1
      %p124 = por %p122, %p123
      %p125 = scmp.ne.s32.totalorder %s114, %s115
      %p126 = scmp.eq.s32.totalorder %s17, 0
      %p127 = por %p125, %p126
      %p128 = scmp.ne.s32.totalorder %s114, %s115
      %p129 = scmp.eq.s32.totalorder %s18, 1
      %p130 = por %p128, %p129
      %p132 = scmp.ne.s32.totalorder %s115, %s131
      %p133 = scmp.eq.s32.totalorder %s18, 0
      %p134 = por %p132, %p133
      %p135 = scmp.le.s32.totalorder 1, %s12
      %p136 = scmp.lt.s32.totalorder %s12, 3
      %p137 = pnand %p135, %p136
      %p138 = pneg %p137
      // Predicated region
      $region9: #{conv_ae_forward.1} parent=5 // pred_check
        _
      $region10: #{conv_ae_forward.1} parent=5 // pred_check_branch
        %140 = sbr.rel (%p137) target = $region12
      $region11: #{conv_ae_forward.1} parent=5 // pred_region
        %s141 = ssub.s32 %s12, 1
        // Predicated region
        $region13: #{conv_ae_forward.1} parent=11 // pred_check
          %p142 = pneg %p59
        $region14: #{conv_ae_forward.1} parent=11 // pred_check_branch
          %144 = sbr.rel (%p142) target = $region16
        $region15: #{conv_ae_forward.1} parent=11 // pred_region
          %s146 = ssub.s32 8192, 8192
          %147 = vsyncadd [#allocation3], %s146
          %s148 = sshll.u32 [#allocation2], 4
          %s149 = int_to_ptr.vmem [resolvable:$true] %s148
          %154 = dma.hbm_to_vmem [thread:$0]  %s1, 8192, %s149, [#allocation3], 64, 64, 4
        $region16: #{conv_ae_forward.1} parent=11 // pred_fallthru
          _
        // Predicated region
        $region17: #{conv_ae_forward.1} parent=11 // pred_check
          %p155 = pneg %p80
        $region18: #{conv_ae_forward.1} parent=11 // pred_check_branch
          %157 = sbr.rel (%p155) target = $region20
        $region19: #{conv_ae_forward.1} parent=11 // pred_region
          %s159 = ssub.s32 98304, 98304
          %160 = vsyncadd [#allocation5], %s159
          %s161 = sshll.u32 [#allocation4], 4
          %s162 = int_to_ptr.vmem [resolvable:$true] %s161
          %167 = dma.hbm_to_vmem [thread:$0]  %s2, 98304, %s162, [#allocation5], 128, 128, 8
        $region20: #{conv_ae_forward.1} parent=11 // pred_fallthru
          _
        // Predicated region
        $region21: #{conv_ae_forward.1} parent=11 // pred_check
          %p168 = pneg %p101
        $region22: #{conv_ae_forward.1} parent=11 // pred_check_branch
          %170 = sbr.rel (%p168) target = $region24
        $region23: #{conv_ae_forward.1} parent=11 // pred_region
          %s172 = ssub.s32 256, 256
          %173 = vsyncadd [#allocation5], %s172
          %s174 = sshll.u32 [#allocation6], 4
          %s175 = int_to_ptr.vmem [resolvable:$true] %s174
          %180 = dma.hbm_to_vmem [thread:$0]  %s3, 256, %s175, [#allocation5], 32, 32, 2
        $region24: #{conv_ae_forward.1} parent=11 // pred_fallthru
          _
      $region12: #{conv_ae_forward.1} parent=5 // pred_fallthru
        _
      %p181 = scmp.lt.s32.totalorder %s12, 2
      // Predicated region
      $region25: #{conv_ae_forward.1} parent=5 // pred_check
        %p182 = pneg %p181
      $region26: #{conv_ae_forward.1} parent=5 // pred_check_branch
        %184 = sbr.rel (%p182) target = $region28
      $region27: #{conv_ae_forward.1} parent=5 // pred_region
        // Predicated region
        $region29: #{conv_ae_forward.1} parent=27 // pred_check
          %p185 = pneg %p32
        $region30: #{conv_ae_forward.1} parent=27 // pred_check_branch
          %187 = sbr.rel (%p185) target = $region32
        $region31: #{conv_ae_forward.1} parent=27 // pred_region
          %p188 = scmp.lt.s32.totalorder %s12, 1
          %s189 = scalar_select %p188, %s12, 1
          %s190 = smul.addr %s189, 8
          %s191 = smul.addr %s190, 4
          %s192 = scalar_lea.vmem %s0, %s191
        $region32: #{conv_ae_forward.1} parent=27 // pred_fallthru
          _
      $region28: #{conv_ae_forward.1} parent=5 // pred_fallthru
        _
      %p193 = scmp.le.s32.totalorder 1, %s12
      %p194 = scmp.lt.s32.totalorder %s12, 3
      %p195 = pnand %p193, %p194
      %p196 = pneg %p195
      // Predicated region
      $region33: #{conv_ae_forward.1} parent=5 // pred_check
        _
      $region34: #{conv_ae_forward.1} parent=5 // pred_check_branch
        %198 = sbr.rel (%p195) target = $region36
      $region35: #{conv_ae_forward.1} parent=5 // pred_region
        %s199 = ssub.s32 %s12, 1
        // Predicated region
        $region37: #{conv_ae_forward.1} parent=35 // pred_check
          %p200 = pneg %p59
        $region38: #{conv_ae_forward.1} parent=35 // pred_check_branch
          %202 = sbr.rel (%p200) target = $region40
        $region39: #{conv_ae_forward.1} parent=35 // pred_region
          %203 = dma.done [#allocation3], 8192
        $region40: #{conv_ae_forward.1} parent=35 // pred_fallthru
          _
        // Predicated region
        $region41: #{conv_ae_forward.1} parent=35 // pred_check
          %p204 = pneg %p80
        $region42: #{conv_ae_forward.1} parent=35 // pred_check_branch
          %206 = sbr.rel (%p204) target = $region44
        $region43: #{conv_ae_forward.1} parent=35 // pred_region
          %207 = dma.done [#allocation5], 98304
        $region44: #{conv_ae_forward.1} parent=35 // pred_fallthru
          _
        // Predicated region
        $region45: #{conv_ae_forward.1} parent=35 // pred_check
          %p208 = pneg %p101
        $region46: #{conv_ae_forward.1} parent=35 // pred_check_branch
          %210 = sbr.rel (%p208) target = $region48
        $region47: #{conv_ae_forward.1} parent=35 // pred_region
          %211 = dma.done [#allocation5], 256
        $region48: #{conv_ae_forward.1} parent=35 // pred_fallthru
          _
        %p212 = scmp.lt.s32.totalorder %s17, 1
        %s213 = scalar_select %p212, %s17, 1
        %s214 = smul.addr %s213, 8
        %s215 = smul.addr %s214, 4
        %s216 = scalar_lea.vmem %s0, %s215
        %p217 = pneg %p38
        %p218 = pneg %p35
        %p219 = pneg %p59
        %p220 = pneg %p56
        %p221 = pneg %p80
        %p222 = pneg %p77
        %p223 = pneg %p101
        %p224 = pneg %p98
        %p225 = pneg %p127
        %p226 = pneg %p124
        %p227 = scmp.lt.s32.totalorder %s17, 1
        %s228 = scalar_select %p227, %s17, 1
        %s229 = smul.addr %s228, 8
        %s230 = smul.addr %s229, 8
        %s231 = scalar_lea.vmem %s4, %s230
        %p232 = scmp.lt.s32.totalorder %s17, 1
        %s233 = scalar_select %p232, %s17, 1
        %s234 = smul.addr %s233, 8
        %s235 = smul.addr %s234, 4
        %s236 = scalar_lea.vmem %s0, %s235
        %p237 = scmp.lt.s32.totalorder %s17, 1
        %s238 = scalar_select %p237, %s17, 1
        %s239 = smul.addr %s238, 8
        %s240 = smul.addr %s239, 8
        %s241 = scalar_lea.vmem %s4, %s240
        %v243 = vld [vmem:[%s236] sm:$0xff]
        %v244 = vld [vmem:[%s236 + $0x8] sm:$0xff]
        %v245 = vld [vmem:[%s236 + $0x10] sm:$0xff]
        %v246 = vld [vmem:[%s236 + $0x18] sm:$0xff]
        %v247 = vld [vmem:[#allocation2] sm:$0xf]
        %v248 = vld [vmem:[#allocation2 + $0x4] sm:$0xf]
        %v249 = vld [vmem:[#allocation2 + $0x8] sm:$0xf]
        %v250 = vld [vmem:[#allocation2 + $0xc] sm:$0xf]
        %v255 = vunpack.c.l.b16 %v247
        %v256 = vunpack.c.l.b16 %v248
        %v257 = vunpack.c.l.b16 %v249
        %v258 = vunpack.c.l.b16 %v250
        %v259 = vpack.c.b16 %v256, %v255
        %v260 = vpack.c.b16 %v258, %v257
        %v265 = vunpack.c.l.b16 %v243
        %v266 = vunpack.c.h.b16 %v243
        %v267 = vunpack.c.l.b16 %v244
        %v268 = vunpack.c.h.b16 %v244
        %v269 = vunpack.c.l.b16 %v245
        %v270 = vunpack.c.h.b16 %v245
        %v271 = vunpack.c.l.b16 %v246
        %v272 = vunpack.c.h.b16 %v246
        %v273 = vpack.c.b16 %v267, %v265
        %v274 = vpack.c.b16 %v268, %v266
        %v275 = vpack.c.b16 %v271, %v269
        %v276 = vpack.c.b16 %v272, %v270
        %vm281 = vcmask 261120
        %v283 = vsel %vm281, %v259, 0
        %v286 = vsel %vm281, %v260, 0
        %288 = vmatprep.subr.bf16.mxu0 %v274
        %289 = vmatpush1.bf16.msra.mxu0 %v273
        %290 = vmatprep.subr.bf16.mxu0 %v276
        %291 = vmatpush1.bf16.msra.mxu0 %v275
        %292 = vmatprep.subr.bf16.mxu0 0
        %293 = vmatpush1.bf16.msra.mxu0 0
        %294 = vmatprep.subr.bf16.mxu0 0
        %295 = vmatpush1.bf16.msra.mxu0 0
        %296 = vmatprep.subr.bf16.mxu0 0
        %297 = vmatpush1.bf16.msra.mxu0 0
        %298 = vmatprep.subr.bf16.mxu0 0
        %299 = vmatpush1.bf16.msra.mxu0 0
        %300 = vmatprep.subr.bf16.mxu0 0
        %301 = vmatpush1.bf16.msra.mxu0 0
        %302 = vmatprep.subr.bf16.mxu0 0
        %303 = vmatpush1.bf16.msra.mxu0 0
        %304 = vmatprep.subr.bf16.mxu0 0
        %305 = vmatpush1.bf16.msra.mxu0 0
        %306 = vmatprep.subr.bf16.mxu0 0
        %307 = vmatpush1.bf16.msra.mxu0 0
        %308 = vmatprep.subr.bf16.mxu0 0
        %309 = vmatpush1.bf16.msra.mxu0 0
        %310 = vmatprep.subr.bf16.mxu0 0
        %311 = vmatpush1.bf16.msra.mxu0 0
        %312 = vmatprep.subr.bf16.mxu0 0
        %313 = vmatpush1.bf16.msra.mxu0 0
        %314 = vmatprep.subr.bf16.mxu0 0
        %315 = vmatpush1.bf16.msra.mxu0 0
        %316 = vmatprep.subr.bf16.mxu0 0
        %317 = vmatpush1.bf16.msra.mxu0 0
        %318 = vmatprep.subr.bf16.mxu0 0
        %319 = vmatpush1.bf16.msra.mxu0 0
        %320 = vmatprep.mubr.bf16.mxu0 0
        %321 = vmatmul.mubr.bf16.gmra.mrb[0].mxu0 %v283
        %v322 = vpop.f32.mrb[0].mxu0
        %v323 = vadd.f32 0.0, %v322
        %v324 = vpop.f32.mrb[0].mxu0
        %v325 = vadd.f32 0.0, %v324
        %v326 = vpop.f32.mrb[0].mxu0
        %v327 = vadd.f32 0.0, %v326
        %v328 = vpop.f32.mrb[0].mxu0
        %v329 = vadd.f32 0.0, %v328
        %330 = vmatprep.mubr.bf16.mxu0 0
        %331 = vmatmul.mubr.bf16.gmra.mrb[0].mxu0 %v286
        %v332 = vpop.f32.mrb[0].mxu0
        %v333 = vadd.f32 0.0, %v332
        %v334 = vpop.f32.mrb[0].mxu0
        %v335 = vadd.f32 0.0, %v334
        %v336 = vpop.f32.mrb[0].mxu0
        %v337 = vadd.f32 0.0, %v336
        %v338 = vpop.f32.mrb[0].mxu0
        %v339 = vadd.f32 0.0, %v338
        %340 = vdwg.mxu0
        %v341 = vpack.c.bf16 %v327, %v323
        %v342 = vpack.c.bf16 %v329, %v325
        %v343 = vpack.c.bf16 %v337, %v333
        %v344 = vpack.c.bf16 %v339, %v335
        %v345 = vld [vmem:[#allocation4] sm:$0xff]
        %v346 = vld [vmem:[#allocation4 + $0x8] sm:$0xff]
        %v347 = vld [vmem:[#allocation4 + $0x10] sm:$0xff]
        %v348 = vld [vmem:[#allocation4 + $0x18] sm:$0xff]
        %v349 = vld [vmem:[#allocation4 + $0x20] sm:$0xff]
        %v350 = vld [vmem:[#allocation4 + $0x28] sm:$0xff]
        %v351 = vld [vmem:[#allocation4 + $0x30] sm:$0xff]
        %v352 = vld [vmem:[#allocation4 + $0x38] sm:$0xff]
        %v353 = vld [vmem:[#allocation4 + $0x40] sm:$0xff]
        %v354 = vld [vmem:[#allocation4 + $0x48] sm:$0xff]
        %v355 = vld [vmem:[#allocation4 + $0x50] sm:$0xff]
        %v356 = vld [vmem:[#allocation4 + $0x58] sm:$0xff]
        %v357 = vld [vmem:[#allocation4 + $0x60] sm:$0xff]
        %v358 = vld [vmem:[#allocation4 + $0x68] sm:$0xff]
        %v359 = vld [vmem:[#allocation4 + $0x70] sm:$0xff]
        %v360 = vld [vmem:[#allocation4 + $0x78] sm:$0xff]
        %v361 = vld [vmem:[#allocation4 + $0x80] sm:$0xff]
        %v362 = vld [vmem:[#allocation4 + $0x88] sm:$0xff]
        %v363 = vld [vmem:[#allocation4 + $0x90] sm:$0xff]
        %v364 = vld [vmem:[#allocation4 + $0x98] sm:$0xff]
        %v365 = vld [vmem:[#allocation4 + $0xa0] sm:$0xff]
        %v366 = vld [vmem:[#allocation4 + $0xa8] sm:$0xff]
        %v367 = vld [vmem:[#allocation4 + $0xb0] sm:$0xff]
        %v368 = vld [vmem:[#allocation4 + $0xb8] sm:$0xff]
        %s369 = scalar_lea.vmem [#allocation2], 16
        %v370 = vld [vmem:[%s369] sm:$0xf]
        %v371 = vld [vmem:[%s369 + $0x4] sm:$0xf]
        %v372 = vld [vmem:[%s369 + $0x8] sm:$0xf]
        %v373 = vld [vmem:[%s369 + $0xc] sm:$0xf]
        %v378 = vunpack.c.l.b16 %v370
        %v379 = vunpack.c.l.b16 %v371
        %v380 = vunpack.c.l.b16 %v372
        %v381 = vunpack.c.l.b16 %v373
        %v382 = vpack.c.b16 %v379, %v378
        %v383 = vpack.c.b16 %v381, %v380
        %v385 = vsel %vm281, %v382, 0
        %v388 = vsel %vm281, %v383, 0
        %390 = vmatprep.subr.bf16.mxu0 %v274
        %391 = vmatpush1.bf16.msra.mxu0 %v273
        %392 = vmatprep.subr.bf16.mxu0 %v276
        %393 = vmatpush1.bf16.msra.mxu0 %v275
        %394 = vmatprep.subr.bf16.mxu0 0
        %395 = vmatpush1.bf16.msra.mxu0 0
        %396 = vmatprep.subr.bf16.mxu0 0
        %397 = vmatpush1.bf16.msra.mxu0 0
        %398 = vmatprep.subr.bf16.mxu0 0
        %399 = vmatpush1.bf16.msra.mxu0 0
        %400 = vmatprep.subr.bf16.mxu0 0
        %401 = vmatpush1.bf16.msra.mxu0 0
        %402 = vmatprep.subr.bf16.mxu0 0
        %403 = vmatpush1.bf16.msra.mxu0 0
        %404 = vmatprep.subr.bf16.mxu0 0
        %405 = vmatpush1.bf16.msra.mxu0 0
        %406 = vmatprep.subr.bf16.mxu0 0
        %407 = vmatpush1.bf16.msra.mxu0 0
        %408 = vmatprep.subr.bf16.mxu0 0
        %409 = vmatpush1.bf16.msra.mxu0 0
        %410 = vmatprep.subr.bf16.mxu0 0
        %411 = vmatpush1.bf16.msra.mxu0 0
        %412 = vmatprep.subr.bf16.mxu0 0
        %413 = vmatpush1.bf16.msra.mxu0 0
        %414 = vmatprep.subr.bf16.mxu0 0
        %415 = vmatpush1.bf16.msra.mxu0 0
        %416 = vmatprep.subr.bf16.mxu0 0
        %417 = vmatpush1.bf16.msra.mxu0 0
        %418 = vmatprep.subr.bf16.mxu0 0
        %419 = vmatpush1.bf16.msra.mxu0 0
        %420 = vmatprep.subr.bf16.mxu0 0
        %421 = vmatpush1.bf16.msra.mxu0 0
        %422 = vmatprep.mubr.bf16.mxu0 0
        %423 = vmatmul.mubr.bf16.gmra.mrb[0].mxu0 %v385
        %v424 = vpop.f32.mrb[0].mxu0
        %v425 = vadd.f32 0.0, %v424
        %v426 = vpop.f32.mrb[0].mxu0
        %v427 = vadd.f32 0.0, %v426
        %v428 = vpop.f32.mrb[0].mxu0
        %v429 = vadd.f32 0.0, %v428
        %v430 = vpop.f32.mrb[0].mxu0
        %v431 = vadd.f32 0.0, %v430
        %432 = vmatprep.mubr.bf16.mxu0 0
        %433 = vmatmul.mubr.bf16.gmra.mrb[0].mxu0 %v388
        %v434 = vpop.f32.mrb[0].mxu0
        %v435 = vadd.f32 0.0, %v434
        %v436 = vpop.f32.mrb[0].mxu0
        %v437 = vadd.f32 0.0, %v436
        %v438 = vpop.f32.mrb[0].mxu0
        %v439 = vadd.f32 0.0, %v438
        %v440 = vpop.f32.mrb[0].mxu0
        %v441 = vadd.f32 0.0, %v440
        %442 = vdwg.mxu0
        %v443 = vpack.c.bf16 %v429, %v425
        %v444 = vpack.c.bf16 %v431, %v427
        %v445 = vpack.c.bf16 %v439, %v435
        %v446 = vpack.c.bf16 %v441, %v437
        %s447 = scalar_lea.vmem [#allocation4], 192
        %v448 = vld [vmem:[%s447] sm:$0xff]
        %v449 = vld [vmem:[%s447 + $0x8] sm:$0xff]
        %v450 = vld [vmem:[%s447 + $0x10] sm:$0xff]
        %v451 = vld [vmem:[%s447 + $0x18] sm:$0xff]
        %v452 = vld [vmem:[%s447 + $0x20] sm:$0xff]
        %v453 = vld [vmem:[%s447 + $0x28] sm:$0xff]
        %v454 = vld [vmem:[%s447 + $0x30] sm:$0xff]
        %v455 = vld [vmem:[%s447 + $0x38] sm:$0xff]
        %v456 = vld [vmem:[%s447 + $0x40] sm:$0xff]
        %v457 = vld [vmem:[%s447 + $0x48] sm:$0xff]
        %v458 = vld [vmem:[%s447 + $0x50] sm:$0xff]
        %v459 = vld [vmem:[%s447 + $0x58] sm:$0xff]
        %v460 = vld [vmem:[%s447 + $0x60] sm:$0xff]
        %v461 = vld [vmem:[%s447 + $0x68] sm:$0xff]
        %v462 = vld [vmem:[%s447 + $0x70] sm:$0xff]
        %v463 = vld [vmem:[%s447 + $0x78] sm:$0xff]
        %v464 = vld [vmem:[%s447 + $0x80] sm:$0xff]
        %v465 = vld [vmem:[%s447 + $0x88] sm:$0xff]
        %v466 = vld [vmem:[%s447 + $0x90] sm:$0xff]
        %v467 = vld [vmem:[%s447 + $0x98] sm:$0xff]
        %v468 = vld [vmem:[%s447 + $0xa0] sm:$0xff]
        %v469 = vld [vmem:[%s447 + $0xa8] sm:$0xff]
        %v470 = vld [vmem:[%s447 + $0xb0] sm:$0xff]
        %v471 = vld [vmem:[%s447 + $0xb8] sm:$0xff]
        %v496 = vunpack.c.l.b16 %v448
        %v497 = vunpack.c.h.b16 %v448
        %v498 = vunpack.c.l.b16 %v449
        %v499 = vunpack.c.h.b16 %v449
        %v500 = vunpack.c.l.b16 %v450
        %v501 = vunpack.c.h.b16 %v450
        %v502 = vunpack.c.l.b16 %v451
        %v503 = vunpack.c.h.b16 %v451
        %v504 = vunpack.c.l.b16 %v452
        %v505 = vunpack.c.h.b16 %v452
        %v506 = vunpack.c.l.b16 %v453
        %v507 = vunpack.c.h.b16 %v453
        %v508 = vunpack.c.l.b16 %v454
        %v509 = vunpack.c.h.b16 %v454
        %v510 = vunpack.c.l.b16 %v455
        %v511 = vunpack.c.h.b16 %v455
        %v512 = vunpack.c.l.b16 %v456
        %v513 = vunpack.c.h.b16 %v456
        %v514 = vunpack.c.l.b16 %v457
        %v515 = vunpack.c.h.b16 %v457
        %v516 = vunpack.c.l.b16 %v458
        %v517 = vunpack.c.h.b16 %v458
        %v518 = vunpack.c.l.b16 %v459
        %v519 = vunpack.c.h.b16 %v459
        %v520 = vunpack.c.l.b16 %v460
        %v521 = vunpack.c.h.b16 %v460
        %v522 = vunpack.c.l.b16 %v461
        %v523 = vunpack.c.h.b16 %v461
        %v524 = vunpack.c.l.b16 %v462
        %v525 = vunpack.c.h.b16 %v462
        %v526 = vunpack.c.l.b16 %v463
        %v527 = vunpack.c.h.b16 %v463
        %v528 = vunpack.c.l.b16 %v464
        %v529 = vunpack.c.h.b16 %v464
        %v530 = vunpack.c.l.b16 %v465
        %v531 = vunpack.c.h.b16 %v465
        %v532 = vunpack.c.l.b16 %v466
        %v533 = vunpack.c.h.b16 %v466
        %v534 = vunpack.c.l.b16 %v467
        %v535 = vunpack.c.h.b16 %v467
        %v536 = vunpack.c.l.b16 %v468
        %v537 = vunpack.c.h.b16 %v468
        %v538 = vunpack.c.l.b16 %v469
        %v539 = vunpack.c.h.b16 %v469
        %v540 = vunpack.c.l.b16 %v470
        %v541 = vunpack.c.h.b16 %v470
        %v542 = vunpack.c.l.b16 %v471
        %v543 = vunpack.c.h.b16 %v471
        %v544 = vpack.c.b16 %v498, %v496
        %v545 = vpack.c.b16 %v499, %v497
        %v546 = vpack.c.b16 %v502, %v500
        %v547 = vpack.c.b16 %v503, %v501
        %v548 = vpack.c.b16 %v506, %v504
        %v549 = vpack.c.b16 %v507, %v505
        %v550 = vpack.c.b16 %v510, %v508
        %v551 = vpack.c.b16 %v511, %v509
        %v552 = vpack.c.b16 %v514, %v512
        %v553 = vpack.c.b16 %v515, %v513
        %v554 = vpack.c.b16 %v518, %v516
        %v555 = vpack.c.b16 %v519, %v517
        %v556 = vpack.c.b16 %v522, %v520
        %v557 = vpack.c.b16 %v523, %v521
        %v558 = vpack.c.b16 %v526, %v524
        %v559 = vpack.c.b16 %v527, %v525
        %v560 = vpack.c.b16 %v530, %v528
        %v561 = vpack.c.b16 %v531, %v529
        %v562 = vpack.c.b16 %v534, %v532
        %v563 = vpack.c.b16 %v535, %v533
        %v564 = vpack.c.b16 %v538, %v536
        %v565 = vpack.c.b16 %v539, %v537
        %v566 = vpack.c.b16 %v542, %v540
        %v567 = vpack.c.b16 %v543, %v541
        %vm592 = vcmask 523264
        %v594 = vsel %vm592, %v444, 0
        %v597 = vsel %vm592, %v446, 0
        %599 = vmatprep.subr.bf16.mxu0 %v545
        %600 = vmatpush1.bf16.msra.mxu0 %v544
        %601 = vmatprep.subr.bf16.mxu0 %v547
        %602 = vmatpush1.bf16.msra.mxu0 %v546
        %603 = vmatprep.subr.bf16.mxu0 %v549
        %604 = vmatpush1.bf16.msra.mxu0 %v548
        %605 = vmatprep.subr.bf16.mxu0 %v551
        %606 = vmatpush1.bf16.msra.mxu0 %v550
        %607 = vmatprep.subr.bf16.mxu0 %v553
        %608 = vmatpush1.bf16.msra.mxu0 %v552
        %609 = vmatprep.subr.bf16.mxu0 %v555
        %610 = vmatpush1.bf16.msra.mxu0 %v554
        %611 = vmatprep.subr.bf16.mxu0 %v557
        %612 = vmatpush1.bf16.msra.mxu0 %v556
        %613 = vmatprep.subr.bf16.mxu0 %v559
        %614 = vmatpush1.bf16.msra.mxu0 %v558
        %615 = vmatprep.subr.bf16.mxu0 %v561
        %616 = vmatpush1.bf16.msra.mxu0 %v560
        %617 = vmatprep.subr.bf16.mxu0 %v563
        %618 = vmatpush1.bf16.msra.mxu0 %v562
        %619 = vmatprep.subr.bf16.mxu0 %v565
        %620 = vmatpush1.bf16.msra.mxu0 %v564
        %621 = vmatprep.subr.bf16.mxu0 %v567
        %622 = vmatpush1.bf16.msra.mxu0 %v566
        %623 = vmatprep.subr.bf16.mxu0 0
        %624 = vmatpush1.bf16.msra.mxu0 0
        %625 = vmatprep.subr.bf16.mxu0 0
        %626 = vmatpush1.bf16.msra.mxu0 0
        %627 = vmatprep.subr.bf16.mxu0 0
        %628 = vmatpush1.bf16.msra.mxu0 0
        %629 = vmatprep.subr.bf16.mxu0 0
        %630 = vmatpush1.bf16.msra.mxu0 0
        %631 = vmatprep.mubr.bf16.mxu0 %v594
        %632 = vmatmul.mubr.bf16.gmra.mrb[0].mxu0 %v443
        %v633 = vpop.f32.mrb[0].mxu0
        %v634 = vadd.f32 0.0, %v633
        %v635 = vpop.f32.mrb[0].mxu0
        %v636 = vadd.f32 0.0, %v635
        %v637 = vpop.f32.mrb[0].mxu0
        %v638 = vadd.f32 0.0, %v637
        %v639 = vpop.f32.mrb[0].mxu0
        %v640 = vadd.f32 0.0, %v639
        %641 = vmatprep.mubr.bf16.mxu0 %v597
        %642 = vmatmul.mubr.bf16.gmra.mrb[0].mxu0 %v445
        %v643 = vpop.f32.mrb[0].mxu0
        %v644 = vadd.f32 0.0, %v643
        %v645 = vpop.f32.mrb[0].mxu0
        %v646 = vadd.f32 0.0, %v645
        %v647 = vpop.f32.mrb[0].mxu0
        %v648 = vadd.f32 0.0, %v647
        %v649 = vpop.f32.mrb[0].mxu0
        %v650 = vadd.f32 0.0, %v649
        %651 = vdwg.mxu0
        %v676 = vunpack.c.l.b16 %v345
        %v677 = vunpack.c.h.b16 %v345
        %v678 = vunpack.c.l.b16 %v346
        %v679 = vunpack.c.h.b16 %v346
        %v680 = vunpack.c.l.b16 %v347
        %v681 = vunpack.c.h.b16 %v347
        %v682 = vunpack.c.l.b16 %v348
        %v683 = vunpack.c.h.b16 %v348
        %v684 = vunpack.c.l.b16 %v349
        %v685 = vunpack.c.h.b16 %v349
        %v686 = vunpack.c.l.b16 %v350
        %v687 = vunpack.c.h.b16 %v350
        %v688 = vunpack.c.l.b16 %v351
        %v689 = vunpack.c.h.b16 %v351
        %v690 = vunpack.c.l.b16 %v352
        %v691 = vunpack.c.h.b16 %v352
        %v692 = vunpack.c.l.b16 %v353
        %v693 = vunpack.c.h.b16 %v353
        %v694 = vunpack.c.l.b16 %v354
        %v695 = vunpack.c.h.b16 %v354
        %v696 = vunpack.c.l.b16 %v355
        %v697 = vunpack.c.h.b16 %v355
        %v698 = vunpack.c.l.b16 %v356
        %v699 = vunpack.c.h.b16 %v356
        %v700 = vunpack.c.l.b16 %v357
        %v701 = vunpack.c.h.b16 %v357
        %v702 = vunpack.c.l.b16 %v358
        %v703 = vunpack.c.h.b16 %v358
        %v704 = vunpack.c.l.b16 %v359
        %v705 = vunpack.c.h.b16 %v359
        %v706 = vunpack.c.l.b16 %v360
        %v707 = vunpack.c.h.b16 %v360
        %v708 = vunpack.c.l.b16 %v361
        %v709 = vunpack.c.h.b16 %v361
        %v710 = vunpack.c.l.b16 %v362
        %v711 = vunpack.c.h.b16 %v362
        %v712 = vunpack.c.l.b16 %v363
        %v713 = vunpack.c.h.b16 %v363
        %v714 = vunpack.c.l.b16 %v364
        %v715 = vunpack.c.h.b16 %v364
        %v716 = vunpack.c.l.b16 %v365
        %v717 = vunpack.c.h.b16 %v365
        %v718 = vunpack.c.l.b16 %v366
        %v719 = vunpack.c.h.b16 %v366
        %v720 = vunpack.c.l.b16 %v367
        %v721 = vunpack.c.h.b16 %v367
        %v722 = vunpack.c.l.b16 %v368
        %v723 = vunpack.c.h.b16 %v368
        %v724 = vpack.c.b16 %v678, %v676
        %v725 = vpack.c.b16 %v679, %v677
        %v726 = vpack.c.b16 %v682, %v680
        %v727 = vpack.c.b16 %v683, %v681
        %v728 = vpack.c.b16 %v686, %v684
        %v729 = vpack.c.b16 %v687, %v685
        %v730 = vpack.c.b16 %v690, %v688
        %v731 = vpack.c.b16 %v691, %v689
        %v732 = vpack.c.b16 %v694, %v692
        %v733 = vpack.c.b16 %v695, %v693
        %v734 = vpack.c.b16 %v698, %v696
        %v735 = vpack.c.b16 %v699, %v697
        %v736 = vpack.c.b16 %v702, %v700
        %v737 = vpack.c.b16 %v703, %v701
        %v738 = vpack.c.b16 %v706, %v704
        %v739 = vpack.c.b16 %v707, %v705
        %v740 = vpack.c.b16 %v710, %v708
        %v741 = vpack.c.b16 %v711, %v709
        %v742 = vpack.c.b16 %v714, %v712
        %v743 = vpack.c.b16 %v715, %v713
        %v744 = vpack.c.b16 %v718, %v716
        %v745 = vpack.c.b16 %v719, %v717
        %v746 = vpack.c.b16 %v722, %v720
        %v747 = vpack.c.b16 %v723, %v721
        %v773 = vsel %vm592, %v342, 0
        %v776 = vsel %vm592, %v344, 0
        %778 = vmatprep.subr.bf16.mxu0 %v725
        %779 = vmatpush1.bf16.msra.mxu0 %v724
        %780 = vmatprep.subr.bf16.mxu0 %v727
        %781 = vmatpush1.bf16.msra.mxu0 %v726
        %782 = vmatprep.subr.bf16.mxu0 %v729
        %783 = vmatpush1.bf16.msra.mxu0 %v728
        %784 = vmatprep.subr.bf16.mxu0 %v731
        %785 = vmatpush1.bf16.msra.mxu0 %v730
        %786 = vmatprep.subr.bf16.mxu0 %v733
        %787 = vmatpush1.bf16.msra.mxu0 %v732
        %788 = vmatprep.subr.bf16.mxu0 %v735
        %789 = vmatpush1.bf16.msra.mxu0 %v734
        %790 = vmatprep.subr.bf16.mxu0 %v737
        %791 = vmatpush1.bf16.msra.mxu0 %v736
        %792 = vmatprep.subr.bf16.mxu0 %v739
        %793 = vmatpush1.bf16.msra.mxu0 %v738
        %794 = vmatprep.subr.bf16.mxu0 %v741
        %795 = vmatpush1.bf16.msra.mxu0 %v740
        %796 = vmatprep.subr.bf16.mxu0 %v743
        %797 = vmatpush1.bf16.msra.mxu0 %v742
        %798 = vmatprep.subr.bf16.mxu0 %v745
        %799 = vmatpush1.bf16.msra.mxu0 %v744
        %800 = vmatprep.subr.bf16.mxu0 %v747
        %801 = vmatpush1.bf16.msra.mxu0 %v746
        %802 = vmatprep.subr.bf16.mxu0 0
        %803 = vmatpush1.bf16.msra.mxu0 0
        %804 = vmatprep.subr.bf16.mxu0 0
        %805 = vmatpush1.bf16.msra.mxu0 0
        %806 = vmatprep.subr.bf16.mxu0 0
        %807 = vmatpush1.bf16.msra.mxu0 0
        %808 = vmatprep.subr.bf16.mxu0 0
        %809 = vmatpush1.bf16.msra.mxu0 0
        %810 = vmatprep.mubr.bf16.mxu0 %v773
        %811 = vmatmul.mubr.bf16.gmra.mrb[0].mxu0 %v341
        %v812 = vpop.f32.mrb[0].mxu0
        %v813 = vadd.f32 %v634, %v812
        %v814 = vpop.f32.mrb[0].mxu0
        %v815 = vadd.f32 %v636, %v814
        %v816 = vpop.f32.mrb[0].mxu0
        %v817 = vadd.f32 %v638, %v816
        %v818 = vpop.f32.mrb[0].mxu0
        %v819 = vadd.f32 %v640, %v818
        %820 = vmatprep.mubr.bf16.mxu0 %v776
        %821 = vmatmul.mubr.bf16.gmra.mrb[0].mxu0 %v343
        %v822 = vpop.f32.mrb[0].mxu0
        %v823 = vadd.f32 %v644, %v822
        %v824 = vpop.f32.mrb[0].mxu0
        %v825 = vadd.f32 %v646, %v824
        %v826 = vpop.f32.mrb[0].mxu0
        %v827 = vadd.f32 %v648, %v826
        %v828 = vpop.f32.mrb[0].mxu0
        %v829 = vadd.f32 %v650, %v828
        %830 = vdwg.mxu0
        %s831 = scalar_lea.vmem [#allocation2], 32
        %v832 = vld [vmem:[%s831] sm:$0xf]
        %v833 = vld [vmem:[%s831 + $0x4] sm:$0xf]
        %v834 = vld [vmem:[%s831 + $0x8] sm:$0xf]
        %v835 = vld [vmem:[%s831 + $0xc] sm:$0xf]
        %v840 = vunpack.c.l.b16 %v832
        %v841 = vunpack.c.l.b16 %v833
        %v842 = vunpack.c.l.b16 %v834
        %v843 = vunpack.c.l.b16 %v835
        %v844 = vpack.c.b16 %v841, %v840
        %v845 = vpack.c.b16 %v843, %v842
        %v847 = vsel %vm281, %v844, 0
        %v850 = vsel %vm281, %v845, 0
        %852 = vmatprep.subr.bf16.mxu0 %v274
        %853 = vmatpush1.bf16.msra.mxu0 %v273
        %854 = vmatprep.subr.bf16.mxu0 %v276
        %855 = vmatpush1.bf16.msra.mxu0 %v275
        %856 = vmatprep.subr.bf16.mxu0 0
        %857 = vmatpush1.bf16.msra.mxu0 0
        %858 = vmatprep.subr.bf16.mxu0 0
        %859 = vmatpush1.bf16.msra.mxu0 0
        %860 = vmatprep.subr.bf16.mxu0 0
        %861 = vmatpush1.bf16.msra.mxu0 0
        %862 = vmatprep.subr.bf16.mxu0 0
        %863 = vmatpush1.bf16.msra.mxu0 0
        %864 = vmatprep.subr.bf16.mxu0 0
        %865 = vmatpush1.bf16.msra.mxu0 0
        %866 = vmatprep.subr.bf16.mxu0 0
        %867 = vmatpush1.bf16.msra.mxu0 0
        %868 = vmatprep.subr.bf16.mxu0 0
        %869 = vmatpush1.bf16.msra.mxu0 0
        %870 = vmatprep.subr.bf16.mxu0 0
        %871 = vmatpush1.bf16.msra.mxu0 0
        %872 = vmatprep.subr.bf16.mxu0 0
        %873 = vmatpush1.bf16.msra.mxu0 0
        %874 = vmatprep.subr.bf16.mxu0 0
        %875 = vmatpush1.bf16.msra.mxu0 0
        %876 = vmatprep.subr.bf16.mxu0 0
        %877 = vmatpush1.bf16.msra.mxu0 0
        %878 = vmatprep.subr.bf16.mxu0 0
        %879 = vmatpush1.bf16.msra.mxu0 0
        %880 = vmatprep.subr.bf16.mxu0 0
        %881 = vmatpush1.bf16.msra.mxu0 0
        %882 = vmatprep.subr.bf16.mxu0 0
        %883 = vmatpush1.bf16.msra.mxu0 0
        %884 = vmatprep.mubr.bf16.mxu0 0
        %885 = vmatmul.mubr.bf16.gmra.mrb[0].mxu0 %v847
        %v886 = vpop.f32.mrb[0].mxu0
        %v887 = vadd.f32 0.0, %v886
        %v888 = vpop.f32.mrb[0].mxu0
        %v889 = vadd.f32 0.0, %v888
        %v890 = vpop.f32.mrb[0].mxu0
        %v891 = vadd.f32 0.0, %v890
        %v892 = vpop.f32.mrb[0].mxu0
        %v893 = vadd.f32 0.0, %v892
        %894 = vmatprep.mubr.bf16.mxu0 0
        %895 = vmatmul.mubr.bf16.gmra.mrb[0].mxu0 %v850
        %v896 = vpop.f32.mrb[0].mxu0
        %v897 = vadd.f32 0.0, %v896
        %v898 = vpop.f32.mrb[0].mxu0
        %v899 = vadd.f32 0.0, %v898
        %v900 = vpop.f32.mrb[0].mxu0
        %v901 = vadd.f32 0.0, %v900
        %v902 = vpop.f32.mrb[0].mxu0
        %v903 = vadd.f32 0.0, %v902
        %904 = vdwg.mxu0
        %v905 = vpack.c.bf16 %v891, %v887
        %v906 = vpack.c.bf16 %v893, %v889
        %v907 = vpack.c.bf16 %v901, %v897
        %v908 = vpack.c.bf16 %v903, %v899
        %s909 = scalar_lea.vmem [#allocation4], 384
        %v910 = vld [vmem:[%s909] sm:$0xff]
        %v911 = vld [vmem:[%s909 + $0x8] sm:$0xff]
        %v912 = vld [vmem:[%s909 + $0x10] sm:$0xff]
        %v913 = vld [vmem:[%s909 + $0x18] sm:$0xff]
        %v914 = vld [vmem:[%s909 + $0x20] sm:$0xff]
        %v915 = vld [vmem:[%s909 + $0x28] sm:$0xff]
        %v916 = vld [vmem:[%s909 + $0x30] sm:$0xff]
        %v917 = vld [vmem:[%s909 + $0x38] sm:$0xff]
        %v918 = vld [vmem:[%s909 + $0x40] sm:$0xff]
        %v919 = vld [vmem:[%s909 + $0x48] sm:$0xff]
        %v920 = vld [vmem:[%s909 + $0x50] sm:$0xff]
        %v921 = vld [vmem:[%s909 + $0x58] sm:$0xff]
        %v922 = vld [vmem:[%s909 + $0x60] sm:$0xff]
        %v923 = vld [vmem:[%s909 + $0x68] sm:$0xff]
        %v924 = vld [vmem:[%s909 + $0x70] sm:$0xff]
        %v925 = vld [vmem:[%s909 + $0x78] sm:$0xff]
        %v926 = vld [vmem:[%s909 + $0x80] sm:$0xff]
        %v927 = vld [vmem:[%s909 + $0x88] sm:$0xff]
        %v928 = vld [vmem:[%s909 + $0x90] sm:$0xff]
        %v929 = vld [vmem:[%s909 + $0x98] sm:$0xff]
        %v930 = vld [vmem:[%s909 + $0xa0] sm:$0xff]
        %v931 = vld [vmem:[%s909 + $0xa8] sm:$0xff]
        %v932 = vld [vmem:[%s909 + $0xb0] sm:$0xff]
        %v933 = vld [vmem:[%s909 + $0xb8] sm:$0xff]
        %v958 = vunpack.c.l.b16 %v910
        %v959 = vunpack.c.h.b16 %v910
        %v960 = vunpack.c.l.b16 %v911
        %v961 = vunpack.c.h.b16 %v911
        %v962 = vunpack.c.l.b16 %v912
        %v963 = vunpack.c.h.b16 %v912
        %v964 = vunpack.c.l.b16 %v913
        %v965 = vunpack.c.h.b16 %v913
        %v966 = vunpack.c.l.b16 %v914
        %v967 = vunpack.c.h.b16 %v914
        %v968 = vunpack.c.l.b16 %v915
        %v969 = vunpack.c.h.b16 %v915
        %v970 = vunpack.c.l.b16 %v916
        %v971 = vunpack.c.h.b16 %v916
        %v972 = vunpack.c.l.b16 %v917
        %v973 = vunpack.c.h.b16 %v917
        %v974 = vunpack.c.l.b16 %v918
        %v975 = vunpack.c.h.b16 %v918
        %v976 = vunpack.c.l.b16 %v919
        %v977 = vunpack.c.h.b16 %v919
        %v978 = vunpack.c.l.b16 %v920
        %v979 = vunpack.c.h.b16 %v920
        %v980 = vunpack.c.l.b16 %v921
        %v981 = vunpack.c.h.b16 %v921
        %v982 = vunpack.c.l.b16 %v922
        %v983 = vunpack.c.h.b16 %v922
        %v984 = vunpack.c.l.b16 %v923
        %v985 = vunpack.c.h.b16 %v923
        %v986 = vunpack.c.l.b16 %v924
        %v987 = vunpack.c.h.b16 %v924
        %v988 = vunpack.c.l.b16 %v925
        %v989 = vunpack.c.h.b16 %v925
        %v990 = vunpack.c.l.b16 %v926
        %v991 = vunpack.c.h.b16 %v926
        %v992 = vunpack.c.l.b16 %v927
        %v993 = vunpack.c.h.b16 %v927
        %v994 = vunpack.c.l.b16 %v928
        %v995 = vunpack.c.h.b16 %v928
        %v996 = vunpack.c.l.b16 %v929
        %v997 = vunpack.c.h.b16 %v929
        %v998 = vunpack.c.l.b16 %v930
        %v999 = vunpack.c.h.b16 %v930
        %v1000 = vunpack.c.l.b16 %v931
        %v1001 = vunpack.c.h.b16 %v931
        %v1002 = vunpack.c.l.b16 %v932
        %v1003 = vunpack.c.h.b16 %v932
        %v1004 = vunpack.c.l.b16 %v933
        %v1005 = vunpack.c.h.b16 %v933
        %v1006 = vpack.c.b16 %v960, %v958
        %v1007 = vpack.c.b16 %v961, %v959
        %v1008 = vpack.c.b16 %v964, %v962
        %v1009 = vpack.c.b16 %v965, %v963
        %v1010 = vpack.c.b16 %v968, %v966
        %v1011 = vpack.c.b16 %v969, %v967
        %v1012 = vpack.c.b16 %v972, %v970
        %v1013 = vpack.c.b16 %v973, %v971
        %v1014 = vpack.c.b16 %v976, %v974
        %v1015 = vpack.c.b16 %v977, %v975
        %v1016 = vpack.c.b16 %v980, %v978
        %v1017 = vpack.c.b16 %v981, %v979
        %v1018 = vpack.c.b16 %v984, %v982
        %v1019 = vpack.c.b16 %v985, %v983
        %v1020 = vpack.c.b16 %v988, %v986
        %v1021 = vpack.c.b16 %v989, %v987
        %v1022 = vpack.c.b16 %v992, %v990
        %v1023 = vpack.c.b16 %v993, %v991
        %v1024 = vpack.c.b16 %v996, %v994
        %v1025 = vpack.c.b16 %v997, %v995
        %v1026 = vpack.c.b16 %v1000, %v998
        %v1027 = vpack.c.b16 %v1001, %v999
        %v1028 = vpack.c.b16 %v1004, %v1002
        %v1029 = vpack.c.b16 %v1005, %v1003
        %v1055 = vsel %vm592, %v906, 0
        %v1058 = vsel %vm592, %v908, 0
        %1060 = vmatprep.subr.bf16.mxu0 %v1007
        %1061 = vmatpush1.bf16.msra.mxu0 %v1006
        %1062 = vmatprep.subr.bf16.mxu0 %v1009
        %1063 = vmatpush1.bf16.msra.mxu0 %v1008
        %1064 = vmatprep.subr.bf16.mxu0 %v1011
        %1065 = vmatpush1.bf16.msra.mxu0 %v1010
        %1066 = vmatprep.subr.bf16.mxu0 %v1013
        %1067 = vmatpush1.bf16.msra.mxu0 %v1012
        %1068 = vmatprep.subr.bf16.mxu0 %v1015
        %1069 = vmatpush1.bf16.msra.mxu0 %v1014
        %1070 = vmatprep.subr.bf16.mxu0 %v1017
        %1071 = vmatpush1.bf16.msra.mxu0 %v1016
        %1072 = vmatprep.subr.bf16.mxu0 %v1019
        %1073 = vmatpush1.bf16.msra.mxu0 %v1018
        %1074 = vmatprep.subr.bf16.mxu0 %v1021
        %1075 = vmatpush1.bf16.msra.mxu0 %v1020
        %1076 = vmatprep.subr.bf16.mxu0 %v1023
        %1077 = vmatpush1.bf16.msra.mxu0 %v1022
        %1078 = vmatprep.subr.bf16.mxu0 %v1025
        %1079 = vmatpush1.bf16.msra.mxu0 %v1024
        %1080 = vmatprep.subr.bf16.mxu0 %v1027
        %1081 = vmatpush1.bf16.msra.mxu0 %v1026
        %1082 = vmatprep.subr.bf16.mxu0 %v1029
        %1083 = vmatpush1.bf16.msra.mxu0 %v1028
        %1084 = vmatprep.subr.bf16.mxu0 0
        %1085 = vmatpush1.bf16.msra.mxu0 0
        %1086 = vmatprep.subr.bf16.mxu0 0
        %1087 = vmatpush1.bf16.msra.mxu0 0
        %1088 = vmatprep.subr.bf16.mxu0 0
        %1089 = vmatpush1.bf16.msra.mxu0 0
        %1090 = vmatprep.subr.bf16.mxu0 0
        %1091 = vmatpush1.bf16.msra.mxu0 0
        %1092 = vmatprep.mubr.bf16.mxu0 %v1055
        %1093 = vmatmul.mubr.bf16.gmra.mrb[0].mxu0 %v905
        %v1094 = vpop.f32.mrb[0].mxu0
        %v1095 = vadd.f32 0.0, %v1094
        %v1096 = vpop.f32.mrb[0].mxu0
        %v1097 = vadd.f32 0.0, %v1096
        %v1098 = vpop.f32.mrb[0].mxu0
        %v1099 = vadd.f32 0.0, %v1098
        %v1100 = vpop.f32.mrb[0].mxu0
        %v1101 = vadd.f32 0.0, %v1100
        %1102 = vmatprep.mubr.bf16.mxu0 %v1058
        %1103 = vmatmul.mubr.bf16.gmra.mrb[0].mxu0 %v907
        %v1104 = vpop.f32.mrb[0].mxu0
        %v1105 = vadd.f32 0.0, %v1104
        %v1106 = vpop.f32.mrb[0].mxu0
        %v1107 = vadd.f32 0.0, %v1106
        %v1108 = vpop.f32.mrb[0].mxu0
        %v1109 = vadd.f32 0.0, %v1108
        %v1110 = vpop.f32.mrb[0].mxu0
        %v1111 = vadd.f32 0.0, %v1110
        %1112 = vdwg.mxu0
        %v1113 = vadd.f32 %v813, %v1095
        %v1114 = vadd.f32 %v815, %v1097
        %v1115 = vadd.f32 %v817, %v1099
        %v1116 = vadd.f32 %v819, %v1101
        %v1117 = vadd.f32 %v823, %v1105
        %v1118 = vadd.f32 %v825, %v1107
        %v1119 = vadd.f32 %v827, %v1109
        %v1120 = vadd.f32 %v829, %v1111
        %s1121 = scalar_lea.vmem [#allocation2], 48
        %v1122 = vld [vmem:[%s1121] sm:$0xf]
        %v1123 = vld [vmem:[%s1121 + $0x4] sm:$0xf]
        %v1124 = vld [vmem:[%s1121 + $0x8] sm:$0xf]
        %v1125 = vld [vmem:[%s1121 + $0xc] sm:$0xf]
        %v1130 = vunpack.c.l.b16 %v1122
        %v1131 = vunpack.c.l.b16 %v1123
        %v1132 = vunpack.c.l.b16 %v1124
        %v1133 = vunpack.c.l.b16 %v1125
        %v1134 = vpack.c.b16 %v1131, %v1130
        %v1135 = vpack.c.b16 %v1133, %v1132
        %v1137 = vsel %vm281, %v1134, 0
        %v1140 = vsel %vm281, %v1135, 0
        %1142 = vmatprep.subr.bf16.mxu0 %v274
        %1143 = vmatpush1.bf16.msra.mxu0 %v273
        %1144 = vmatprep.subr.bf16.mxu0 %v276
        %1145 = vmatpush1.bf16.msra.mxu0 %v275
        %1146 = vmatprep.subr.bf16.mxu0 0
        %1147 = vmatpush1.bf16.msra.mxu0 0
        %1148 = vmatprep.subr.bf16.mxu0 0
        %1149 = vmatpush1.bf16.msra.mxu0 0
        %1150 = vmatprep.subr.bf16.mxu0 0
        %1151 = vmatpush1.bf16.msra.mxu0 0
        %1152 = vmatprep.subr.bf16.mxu0 0
        %1153 = vmatpush1.bf16.msra.mxu0 0
        %1154 = vmatprep.subr.bf16.mxu0 0
        %1155 = vmatpush1.bf16.msra.mxu0 0
        %1156 = vmatprep.subr.bf16.mxu0 0
        %1157 = vmatpush1.bf16.msra.mxu0 0
        %1158 = vmatprep.subr.bf16.mxu0 0
        %1159 = vmatpush1.bf16.msra.mxu0 0
        %1160 = vmatprep.subr.bf16.mxu0 0
        %1161 = vmatpush1.bf16.msra.mxu0 0
        %1162 = vmatprep.subr.bf16.mxu0 0
        %1163 = vmatpush1.bf16.msra.mxu0 0
        %1164 = vmatprep.subr.bf16.mxu0 0
        %1165 = vmatpush1.bf16.msra.mxu0 0
        %1166 = vmatprep.subr.bf16.mxu0 0
        %1167 = vmatpush1.bf16.msra.mxu0 0
        %1168 = vmatprep.subr.bf16.mxu0 0
        %1169 = vmatpush1.bf16.msra.mxu0 0
        %1170 = vmatprep.subr.bf16.mxu0 0
        %1171 = vmatpush1.bf16.msra.mxu0 0
        %1172 = vmatprep.subr.bf16.mxu0 0
        %1173 = vmatpush1.bf16.msra.mxu0 0
        %1174 = vmatprep.mubr.bf16.mxu0 0
        %1175 = vmatmul.mubr.bf16.gmra.mrb[0].mxu0 %v1137
        %v1176 = vpop.f32.mrb[0].mxu0
        %v1177 = vadd.f32 0.0, %v1176
        %v1178 = vpop.f32.mrb[0].mxu0
        %v1179 = vadd.f32 0.0, %v1178
        %v1180 = vpop.f32.mrb[0].mxu0
        %v1181 = vadd.f32 0.0, %v1180
        %v1182 = vpop.f32.mrb[0].mxu0
        %v1183 = vadd.f32 0.0, %v1182
        %1184 = vmatprep.mubr.bf16.mxu0 0
        %1185 = vmatmul.mubr.bf16.gmra.mrb[0].mxu0 %v1140
        %v1186 = vpop.f32.mrb[0].mxu0
        %v1187 = vadd.f32 0.0, %v1186
        %v1188 = vpop.f32.mrb[0].mxu0
        %v1189 = vadd.f32 0.0, %v1188
        %v1190 = vpop.f32.mrb[0].mxu0
        %v1191 = vadd.f32 0.0, %v1190
        %v1192 = vpop.f32.mrb[0].mxu0
        %v1193 = vadd.f32 0.0, %v1192
        %1194 = vdwg.mxu0
        %v1195 = vpack.c.bf16 %v1181, %v1177
        %v1196 = vpack.c.bf16 %v1183, %v1179
        %v1197 = vpack.c.bf16 %v1191, %v1187
        %v1198 = vpack.c.bf16 %v1193, %v1189
        %s1199 = scalar_lea.vmem [#allocation4], 576
        %v1200 = vld [vmem:[%s1199] sm:$0xff]
        %v1201 = vld [vmem:[%s1199 + $0x8] sm:$0xff]
        %v1202 = vld [vmem:[%s1199 + $0x10] sm:$0xff]
        %v1203 = vld [vmem:[%s1199 + $0x18] sm:$0xff]
        %v1204 = vld [vmem:[%s1199 + $0x20] sm:$0xff]
        %v1205 = vld [vmem:[%s1199 + $0x28] sm:$0xff]
        %v1206 = vld [vmem:[%s1199 + $0x30] sm:$0xff]
        %v1207 = vld [vmem:[%s1199 + $0x38] sm:$0xff]
        %v1208 = vld [vmem:[%s1199 + $0x40] sm:$0xff]
        %v1209 = vld [vmem:[%s1199 + $0x48] sm:$0xff]
        %v1210 = vld [vmem:[%s1199 + $0x50] sm:$0xff]
        %v1211 = vld [vmem:[%s1199 + $0x58] sm:$0xff]
        %v1212 = vld [vmem:[%s1199 + $0x60] sm:$0xff]
        %v1213 = vld [vmem:[%s1199 + $0x68] sm:$0xff]
        %v1214 = vld [vmem:[%s1199 + $0x70] sm:$0xff]
        %v1215 = vld [vmem:[%s1199 + $0x78] sm:$0xff]
        %v1216 = vld [vmem:[%s1199 + $0x80] sm:$0xff]
        %v1217 = vld [vmem:[%s1199 + $0x88] sm:$0xff]
        %v1218 = vld [vmem:[%s1199 + $0x90] sm:$0xff]
        %v1219 = vld [vmem:[%s1199 + $0x98] sm:$0xff]
        %v1220 = vld [vmem:[%s1199 + $0xa0] sm:$0xff]
        %v1221 = vld [vmem:[%s1199 + $0xa8] sm:$0xff]
        %v1222 = vld [vmem:[%s1199 + $0xb0] sm:$0xff]
        %v1223 = vld [vmem:[%s1199 + $0xb8] sm:$0xff]
        %v1248 = vunpack.c.l.b16 %v1200
        %v1249 = vunpack.c.h.b16 %v1200
        %v1250 = vunpack.c.l.b16 %v1201
        %v1251 = vunpack.c.h.b16 %v1201
        %v1252 = vunpack.c.l.b16 %v1202
        %v1253 = vunpack.c.h.b16 %v1202
        %v1254 = vunpack.c.l.b16 %v1203
        %v1255 = vunpack.c.h.b16 %v1203
        %v1256 = vunpack.c.l.b16 %v1204
        %v1257 = vunpack.c.h.b16 %v1204
        %v1258 = vunpack.c.l.b16 %v1205
        %v1259 = vunpack.c.h.b16 %v1205
        %v1260 = vunpack.c.l.b16 %v1206
        %v1261 = vunpack.c.h.b16 %v1206
        %v1262 = vunpack.c.l.b16 %v1207
        %v1263 = vunpack.c.h.b16 %v1207
        %v1264 = vunpack.c.l.b16 %v1208
        %v1265 = vunpack.c.h.b16 %v1208
        %v1266 = vunpack.c.l.b16 %v1209
        %v1267 = vunpack.c.h.b16 %v1209
        %v1268 = vunpack.c.l.b16 %v1210
        %v1269 = vunpack.c.h.b16 %v1210
        %v1270 = vunpack.c.l.b16 %v1211
        %v1271 = vunpack.c.h.b16 %v1211
        %v1272 = vunpack.c.l.b16 %v1212
        %v1273 = vunpack.c.h.b16 %v1212
        %v1274 = vunpack.c.l.b16 %v1213
        %v1275 = vunpack.c.h.b16 %v1213
        %v1276 = vunpack.c.l.b16 %v1214
        %v1277 = vunpack.c.h.b16 %v1214
        %v1278 = vunpack.c.l.b16 %v1215
        %v1279 = vunpack.c.h.b16 %v1215
        %v1280 = vunpack.c.l.b16 %v1216
        %v1281 = vunpack.c.h.b16 %v1216
        %v1282 = vunpack.c.l.b16 %v1217
        %v1283 = vunpack.c.h.b16 %v1217
        %v1284 = vunpack.c.l.b16 %v1218
        %v1285 = vunpack.c.h.b16 %v1218
        %v1286 = vunpack.c.l.b16 %v1219
        %v1287 = vunpack.c.h.b16 %v1219
        %v1288 = vunpack.c.l.b16 %v1220
        %v1289 = vunpack.c.h.b16 %v1220
        %v1290 = vunpack.c.l.b16 %v1221
        %v1291 = vunpack.c.h.b16 %v1221
        %v1292 = vunpack.c.l.b16 %v1222
        %v1293 = vunpack.c.h.b16 %v1222
        %v1294 = vunpack.c.l.b16 %v1223
        %v1295 = vunpack.c.h.b16 %v1223
        %v1296 = vpack.c.b16 %v1250, %v1248
        %v1297 = vpack.c.b16 %v1251, %v1249
        %v1298 = vpack.c.b16 %v1254, %v1252
        %v1299 = vpack.c.b16 %v1255, %v1253
        %v1300 = vpack.c.b16 %v1258, %v1256
        %v1301 = vpack.c.b16 %v1259, %v1257
        %v1302 = vpack.c.b16 %v1262, %v1260
        %v1303 = vpack.c.b16 %v1263, %v1261
        %v1304 = vpack.c.b16 %v1266, %v1264
        %v1305 = vpack.c.b16 %v1267, %v1265
        %v1306 = vpack.c.b16 %v1270, %v1268
        %v1307 = vpack.c.b16 %v1271, %v1269
        %v1308 = vpack.c.b16 %v1274, %v1272
        %v1309 = vpack.c.b16 %v1275, %v1273
        %v1310 = vpack.c.b16 %v1278, %v1276
        %v1311 = vpack.c.b16 %v1279, %v1277
        %v1312 = vpack.c.b16 %v1282, %v1280
        %v1313 = vpack.c.b16 %v1283, %v1281
        %v1314 = vpack.c.b16 %v1286, %v1284
        %v1315 = vpack.c.b16 %v1287, %v1285
        %v1316 = vpack.c.b16 %v1290, %v1288
        %v1317 = vpack.c.b16 %v1291, %v1289
        %v1318 = vpack.c.b16 %v1294, %v1292
        %v1319 = vpack.c.b16 %v1295, %v1293
        %v1345 = vsel %vm592, %v1196, 0
        %v1348 = vsel %vm592, %v1198, 0
        %1350 = vmatprep.subr.bf16.mxu0 %v1297
        %1351 = vmatpush1.bf16.msra.mxu0 %v1296
        %1352 = vmatprep.subr.bf16.mxu0 %v1299
        %1353 = vmatpush1.bf16.msra.mxu0 %v1298
        %1354 = vmatprep.subr.bf16.mxu0 %v1301
        %1355 = vmatpush1.bf16.msra.mxu0 %v1300
        %1356 = vmatprep.subr.bf16.mxu0 %v1303
        %1357 = vmatpush1.bf16.msra.mxu0 %v1302
        %1358 = vmatprep.subr.bf16.mxu0 %v1305
        %1359 = vmatpush1.bf16.msra.mxu0 %v1304
        %1360 = vmatprep.subr.bf16.mxu0 %v1307
        %1361 = vmatpush1.bf16.msra.mxu0 %v1306
        %1362 = vmatprep.subr.bf16.mxu0 %v1309
        %1363 = vmatpush1.bf16.msra.mxu0 %v1308
        %1364 = vmatprep.subr.bf16.mxu0 %v1311
        %1365 = vmatpush1.bf16.msra.mxu0 %v1310
        %1366 = vmatprep.subr.bf16.mxu0 %v1313
        %1367 = vmatpush1.bf16.msra.mxu0 %v1312
        %1368 = vmatprep.subr.bf16.mxu0 %v1315
        %1369 = vmatpush1.bf16.msra.mxu0 %v1314
        %1370 = vmatprep.subr.bf16.mxu0 %v1317
        %1371 = vmatpush1.bf16.msra.mxu0 %v1316
        %1372 = vmatprep.subr.bf16.mxu0 %v1319
        %1373 = vmatpush1.bf16.msra.mxu0 %v1318
        %1374 = vmatprep.subr.bf16.mxu0 0
        %1375 = vmatpush1.bf16.msra.mxu0 0
        %1376 = vmatprep.subr.bf16.mxu0 0
        %1377 = vmatpush1.bf16.msra.mxu0 0
        %1378 = vmatprep.subr.bf16.mxu0 0
        %1379 = vmatpush1.bf16.msra.mxu0 0
        %1380 = vmatprep.subr.bf16.mxu0 0
        %1381 = vmatpush1.bf16.msra.mxu0 0
        %1382 = vmatprep.mubr.bf16.mxu0 %v1345
        %1383 = vmatmul.mubr.bf16.gmra.mrb[0].mxu0 %v1195
        %v1384 = vpop.f32.mrb[0].mxu0
        %v1385 = vadd.f32 0.0, %v1384
        %v1386 = vpop.f32.mrb[0].mxu0
        %v1387 = vadd.f32 0.0, %v1386
        %v1388 = vpop.f32.mrb[0].mxu0
        %v1389 = vadd.f32 0.0, %v1388
        %v1390 = vpop.f32.mrb[0].mxu0
        %v1391 = vadd.f32 0.0, %v1390
        %1392 = vmatprep.mubr.bf16.mxu0 %v1348
        %1393 = vmatmul.mubr.bf16.gmra.mrb[0].mxu0 %v1197
        %v1394 = vpop.f32.mrb[0].mxu0
        %v1395 = vadd.f32 0.0, %v1394
        %v1396 = vpop.f32.mrb[0].mxu0
        %v1397 = vadd.f32 0.0, %v1396
        %v1398 = vpop.f32.mrb[0].mxu0
        %v1399 = vadd.f32 0.0, %v1398
        %v1400 = vpop.f32.mrb[0].mxu0
        %v1401 = vadd.f32 0.0, %v1400
        %1402 = vdwg.mxu0
        %v1403 = vadd.f32 %v1113, %v1385
        %v1404 = vadd.f32 %v1114, %v1387
        %v1405 = vadd.f32 %v1115, %v1389
        %v1406 = vadd.f32 %v1116, %v1391
        %v1407 = vadd.f32 %v1117, %v1395
        %v1408 = vadd.f32 %v1118, %v1397
        %v1409 = vadd.f32 %v1119, %v1399
        %v1410 = vadd.f32 %v1120, %v1401
        %v1411 = vld [vmem:[#allocation6] sm:$0x3]
        %v1413 = vlaneseq
        %v1414 = vshrl.u32 %v1413, 7
        %v1415 = vsub.s32 0, %v1414
        %v1416 = vrot.slane %v1411, %v1415
        %v1417 = vlaneseq
        %v1418 = vshrl.u32 %v1417, 7
        %v1419 = vsub.s32 1, %v1418
        %v1420 = vrot.slane %v1411, %v1419
        %v1423 = vadd.f32 %v1403, %v1416
        %v1424 = vadd.f32 %v1404, %v1420
        %v1425 = vadd.f32 %v1405, %v1416
        %v1426 = vadd.f32 %v1406, %v1420
        %v1427 = vadd.f32 %v1407, %v1416
        %v1428 = vadd.f32 %v1408, %v1420
        %v1429 = vadd.f32 %v1409, %v1416
        %v1430 = vadd.f32 %v1410, %v1420
        %v1431 = vmul.f32 %v1423, 0.1
        %v1432 = vmul.f32 %v1424, 0.1
        %v1433 = vmul.f32 %v1425, 0.1
        %v1434 = vmul.f32 %v1426, 0.1
        %v1435 = vmul.f32 %v1427, 0.1
        %v1436 = vmul.f32 %v1428, 0.1
        %v1437 = vmul.f32 %v1429, 0.1
        %v1438 = vmul.f32 %v1430, 0.1
        %v1439 = vmax.f32 %v1423, %v1431
        %v1440 = vmax.f32 %v1424, %v1432
        %v1441 = vmax.f32 %v1425, %v1433
        %v1442 = vmax.f32 %v1426, %v1434
        %v1443 = vmax.f32 %v1427, %v1435
        %v1444 = vmax.f32 %v1428, %v1436
        %v1445 = vmax.f32 %v1429, %v1437
        %v1446 = vmax.f32 %v1430, %v1438
        %v1447 = vpack.c.bf16 %v1441, %v1439
        %v1448 = vpack.c.bf16 %v1442, %v1440
        %v1449 = vpack.c.bf16 %v1445, %v1443
        %v1450 = vpack.c.bf16 %v1446, %v1444
        %s1451 = scalar_lea.vmem [#allocation2], 64
        %v1452 = vld [vmem:[%s1451] sm:$0xf]
        %v1453 = vld [vmem:[%s1451 + $0x4] sm:$0xf]
        %v1454 = vld [vmem:[%s1451 + $0x8] sm:$0xf]
        %v1455 = vld [vmem:[%s1451 + $0xc] sm:$0xf]
        %v1460 = vunpack.c.l.b16 %v1452
        %v1461 = vunpack.c.l.b16 %v1453
        %v1462 = vunpack.c.l.b16 %v1454
        %v1463 = vunpack.c.l.b16 %v1455
        %v1464 = vpack.c.b16 %v1461, %v1460
        %v1465 = vpack.c.b16 %v1463, %v1462
        %v1467 = vsel %vm281, %v1464, 0
        %v1470 = vsel %vm281, %v1465, 0
        %1472 = vmatprep.subr.bf16.mxu0 %v1448
        %1473 = vmatpush1.bf16.msra.mxu0 %v1447
        %1474 = vmatprep.subr.bf16.mxu0 %v1450
        %1475 = vmatpush1.bf16.msra.mxu0 %v1449
        %1476 = vmatprep.subr.bf16.mxu0 0
        %1477 = vmatpush1.bf16.msra.mxu0 0
        %1478 = vmatprep.subr.bf16.mxu0 0
        %1479 = vmatpush1.bf16.msra.mxu0 0
        %1480 = vmatprep.subr.bf16.mxu0 0
        %1481 = vmatpush1.bf16.msra.mxu0 0
        %1482 = vmatprep.subr.bf16.mxu0 0
        %1483 = vmatpush1.bf16.msra.mxu0 0
        %1484 = vmatprep.subr.bf16.mxu0 0
        %1485 = vmatpush1.bf16.msra.mxu0 0
        %1486 = vmatprep.subr.bf16.mxu0 0
        %1487 = vmatpush1.bf16.msra.mxu0 0
        %1488 = vmatprep.subr.bf16.mxu0 0
        %1489 = vmatpush1.bf16.msra.mxu0 0
        %1490 = vmatprep.subr.bf16.mxu0 0
        %1491 = vmatpush1.bf16.msra.mxu0 0
        %1492 = vmatprep.subr.bf16.mxu0 0
        %1493 = vmatpush1.bf16.msra.mxu0 0
        %1494 = vmatprep.subr.bf16.mxu0 0
        %1495 = vmatpush1.bf16.msra.mxu0 0
        %1496 = vmatprep.subr.bf16.mxu0 0
        %1497 = vmatpush1.bf16.msra.mxu0 0
        %1498 = vmatprep.subr.bf16.mxu0 0
        %1499 = vmatpush1.bf16.msra.mxu0 0
        %1500 = vmatprep.subr.bf16.mxu0 0
        %1501 = vmatpush1.bf16.msra.mxu0 0
        %1502 = vmatprep.subr.bf16.mxu0 0
        %1503 = vmatpush1.bf16.msra.mxu0 0
        %1504 = vmatprep.mubr.bf16.mxu0 0
        %1505 = vmatmul.mubr.bf16.gmra.mrb[0].mxu0 %v1467
        %v1506 = vpop.f32.mrb[0].mxu0
        %v1507 = vadd.f32 0.0, %v1506
        %v1508 = vpop.f32.mrb[0].mxu0
        %v1509 = vadd.f32 0.0, %v1508
        %v1510 = vpop.f32.mrb[0].mxu0
        %v1511 = vadd.f32 0.0, %v1510
        %v1512 = vpop.f32.mrb[0].mxu0
        %v1513 = vadd.f32 0.0, %v1512
        %1514 = vmatprep.mubr.bf16.mxu0 0
        %1515 = vmatmul.mubr.bf16.gmra.mrb[0].mxu0 %v1470
        %v1516 = vpop.f32.mrb[0].mxu0
        %v1517 = vadd.f32 0.0, %v1516
        %v1518 = vpop.f32.mrb[0].mxu0
        %v1519 = vadd.f32 0.0, %v1518
        %v1520 = vpop.f32.mrb[0].mxu0
        %v1521 = vadd.f32 0.0, %v1520
        %v1522 = vpop.f32.mrb[0].mxu0
        %v1523 = vadd.f32 0.0, %v1522
        %1524 = vdwg.mxu0
        %v1525 = vpack.c.bf16 %v1511, %v1507
        %v1526 = vpack.c.bf16 %v1513, %v1509
        %v1527 = vpack.c.bf16 %v1521, %v1517
        %v1528 = vpack.c.bf16 %v1523, %v1519
        %s1529 = scalar_lea.vmem [#allocation4], 768
        %v1530 = vld [vmem:[%s1529] sm:$0xff]
        %v1531 = vld [vmem:[%s1529 + $0x8] sm:$0xff]
        %v1532 = vld [vmem:[%s1529 + $0x10] sm:$0xff]
        %v1533 = vld [vmem:[%s1529 + $0x18] sm:$0xff]
        %v1534 = vld [vmem:[%s1529 + $0x20] sm:$0xff]
        %v1535 = vld [vmem:[%s1529 + $0x28] sm:$0xff]
        %v1536 = vld [vmem:[%s1529 + $0x30] sm:$0xff]
        %v1537 = vld [vmem:[%s1529 + $0x38] sm:$0xff]
        %v1538 = vld [vmem:[%s1529 + $0x40] sm:$0xff]
        %v1539 = vld [vmem:[%s1529 + $0x48] sm:$0xff]
        %v1540 = vld [vmem:[%s1529 + $0x50] sm:$0xff]
        %v1541 = vld [vmem:[%s1529 + $0x58] sm:$0xff]
        %v1542 = vld [vmem:[%s1529 + $0x60] sm:$0xff]
        %v1543 = vld [vmem:[%s1529 + $0x68] sm:$0xff]
        %v1544 = vld [vmem:[%s1529 + $0x70] sm:$0xff]
        %v1545 = vld [vmem:[%s1529 + $0x78] sm:$0xff]
        %v1546 = vld [vmem:[%s1529 + $0x80] sm:$0xff]
        %v1547 = vld [vmem:[%s1529 + $0x88] sm:$0xff]
        %v1548 = vld [vmem:[%s1529 + $0x90] sm:$0xff]
        %v1549 = vld [vmem:[%s1529 + $0x98] sm:$0xff]
        %v1550 = vld [vmem:[%s1529 + $0xa0] sm:$0xff]
        %v1551 = vld [vmem:[%s1529 + $0xa8] sm:$0xff]
        %v1552 = vld [vmem:[%s1529 + $0xb0] sm:$0xff]
        %v1553 = vld [vmem:[%s1529 + $0xb8] sm:$0xff]
        %s1554 = scalar_lea.vmem [#allocation2], 80
        %v1555 = vld [vmem:[%s1554] sm:$0xf]
        %v1556 = vld [vmem:[%s1554 + $0x4] sm:$0xf]
        %v1557 = vld [vmem:[%s1554 + $0x8] sm:$0xf]
        %v1558 = vld [vmem:[%s1554 + $0xc] sm:$0xf]
        %v1563 = vunpack.c.l.b16 %v1555
        %v1564 = vunpack.c.l.b16 %v1556
        %v1565 = vunpack.c.l.b16 %v1557
        %v1566 = vunpack.c.l.b16 %v1558
        %v1567 = vpack.c.b16 %v1564, %v1563
        %v1568 = vpack.c.b16 %v1566, %v1565
        %v1570 = vsel %vm281, %v1567, 0
        %v1573 = vsel %vm281, %v1568, 0
        %1575 = vmatprep.subr.bf16.mxu0 %v1448
        %1576 = vmatpush1.bf16.msra.mxu0 %v1447
        %1577 = vmatprep.subr.bf16.mxu0 %v1450
        %1578 = vmatpush1.bf16.msra.mxu0 %v1449
        %1579 = vmatprep.subr.bf16.mxu0 0
        %1580 = vmatpush1.bf16.msra.mxu0 0
        %1581 = vmatprep.subr.bf16.mxu0 0
        %1582 = vmatpush1.bf16.msra.mxu0 0
        %1583 = vmatprep.subr.bf16.mxu0 0
        %1584 = vmatpush1.bf16.msra.mxu0 0
        %1585 = vmatprep.subr.bf16.mxu0 0
        %1586 = vmatpush1.bf16.msra.mxu0 0
        %1587 = vmatprep.subr.bf16.mxu0 0
        %1588 = vmatpush1.bf16.msra.mxu0 0
        %1589 = vmatprep.subr.bf16.mxu0 0
        %1590 = vmatpush1.bf16.msra.mxu0 0
        %1591 = vmatprep.subr.bf16.mxu0 0
        %1592 = vmatpush1.bf16.msra.mxu0 0
        %1593 = vmatprep.subr.bf16.mxu0 0
        %1594 = vmatpush1.bf16.msra.mxu0 0
        %1595 = vmatprep.subr.bf16.mxu0 0
        %1596 = vmatpush1.bf16.msra.mxu0 0
        %1597 = vmatprep.subr.bf16.mxu0 0
        %1598 = vmatpush1.bf16.msra.mxu0 0
        %1599 = vmatprep.subr.bf16.mxu0 0
        %1600 = vmatpush1.bf16.msra.mxu0 0
        %1601 = vmatprep.subr.bf16.mxu0 0
        %1602 = vmatpush1.bf16.msra.mxu0 0
        %1603 = vmatprep.subr.bf16.mxu0 0
        %1604 = vmatpush1.bf16.msra.mxu0 0
        %1605 = vmatprep.subr.bf16.mxu0 0
        %1606 = vmatpush1.bf16.msra.mxu0 0
        %1607 = vmatprep.mubr.bf16.mxu0 0
        %1608 = vmatmul.mubr.bf16.gmra.mrb[0].mxu0 %v1570
        %v1609 = vpop.f32.mrb[0].mxu0
        %v1610 = vadd.f32 0.0, %v1609
        %v1611 = vpop.f32.mrb[0].mxu0
        %v1612 = vadd.f32 0.0, %v1611
        %v1613 = vpop.f32.mrb[0].mxu0
        %v1614 = vadd.f32 0.0, %v1613
        %v1615 = vpop.f32.mrb[0].mxu0
        %v1616 = vadd.f32 0.0, %v1615
        %1617 = vmatprep.mubr.bf16.mxu0 0
        %1618 = vmatmul.mubr.bf16.gmra.mrb[0].mxu0 %v1573
        %v1619 = vpop.f32.mrb[0].mxu0
        %v1620 = vadd.f32 0.0, %v1619
        %v1621 = vpop.f32.mrb[0].mxu0
        %v1622 = vadd.f32 0.0, %v1621
        %v1623 = vpop.f32.mrb[0].mxu0
        %v1624 = vadd.f32 0.0, %v1623
        %v1625 = vpop.f32.mrb[0].mxu0
        %v1626 = vadd.f32 0.0, %v1625
        %1627 = vdwg.mxu0
        %v1628 = vpack.c.bf16 %v1614, %v1610
        %v1629 = vpack.c.bf16 %v1616, %v1612
        %v1630 = vpack.c.bf16 %v1624, %v1620
        %v1631 = vpack.c.bf16 %v1626, %v1622
        %s1632 = scalar_lea.vmem [#allocation4], 960
        %v1633 = vld [vmem:[%s1632] sm:$0xff]
        %v1634 = vld [vmem:[%s1632 + $0x8] sm:$0xff]
        %v1635 = vld [vmem:[%s1632 + $0x10] sm:$0xff]
        %v1636 = vld [vmem:[%s1632 + $0x18] sm:$0xff]
        %v1637 = vld [vmem:[%s1632 + $0x20] sm:$0xff]
        %v1638 = vld [vmem:[%s1632 + $0x28] sm:$0xff]
        %v1639 = vld [vmem:[%s1632 + $0x30] sm:$0xff]
        %v1640 = vld [vmem:[%s1632 + $0x38] sm:$0xff]
        %v1641 = vld [vmem:[%s1632 + $0x40] sm:$0xff]
        %v1642 = vld [vmem:[%s1632 + $0x48] sm:$0xff]
        %v1643 = vld [vmem:[%s1632 + $0x50] sm:$0xff]
        %v1644 = vld [vmem:[%s1632 + $0x58] sm:$0xff]
        %v1645 = vld [vmem:[%s1632 + $0x60] sm:$0xff]
        %v1646 = vld [vmem:[%s1632 + $0x68] sm:$0xff]
        %v1647 = vld [vmem:[%s1632 + $0x70] sm:$0xff]
        %v1648 = vld [vmem:[%s1632 + $0x78] sm:$0xff]
        %v1649 = vld [vmem:[%s1632 + $0x80] sm:$0xff]
        %v1650 = vld [vmem:[%s1632 + $0x88] sm:$0xff]
        %v1651 = vld [vmem:[%s1632 + $0x90] sm:$0xff]
        %v1652 = vld [vmem:[%s1632 + $0x98] sm:$0xff]
        %v1653 = vld [vmem:[%s1632 + $0xa0] sm:$0xff]
        %v1654 = vld [vmem:[%s1632 + $0xa8] sm:$0xff]
        %v1655 = vld [vmem:[%s1632 + $0xb0] sm:$0xff]
        %v1656 = vld [vmem:[%s1632 + $0xb8] sm:$0xff]
        %v1681 = vunpack.c.l.b16 %v1633
        %v1682 = vunpack.c.h.b16 %v1633
        %v1683 = vunpack.c.l.b16 %v1634
        %v1684 = vunpack.c.h.b16 %v1634
        %v1685 = vunpack.c.l.b16 %v1635
        %v1686 = vunpack.c.h.b16 %v1635
        %v1687 = vunpack.c.l.b16 %v1636
        %v1688 = vunpack.c.h.b16 %v1636
        %v1689 = vunpack.c.l.b16 %v1637
        %v1690 = vunpack.c.h.b16 %v1637
        %v1691 = vunpack.c.l.b16 %v1638
        %v1692 = vunpack.c.h.b16 %v1638
        %v1693 = vunpack.c.l.b16 %v1639
        %v1694 = vunpack.c.h.b16 %v1639
        %v1695 = vunpack.c.l.b16 %v1640
        %v1696 = vunpack.c.h.b16 %v1640
        %v1697 = vunpack.c.l.b16 %v1641
        %v1698 = vunpack.c.h.b16 %v1641
        %v1699 = vunpack.c.l.b16 %v1642
        %v1700 = vunpack.c.h.b16 %v1642
        %v1701 = vunpack.c.l.b16 %v1643
        %v1702 = vunpack.c.h.b16 %v1643
        %v1703 = vunpack.c.l.b16 %v1644
        %v1704 = vunpack.c.h.b16 %v1644
        %v1705 = vunpack.c.l.b16 %v1645
        %v1706 = vunpack.c.h.b16 %v1645
        %v1707 = vunpack.c.l.b16 %v1646
        %v1708 = vunpack.c.h.b16 %v1646
        %v1709 = vunpack.c.l.b16 %v1647
        %v1710 = vunpack.c.h.b16 %v1647
        %v1711 = vunpack.c.l.b16 %v1648
        %v1712 = vunpack.c.h.b16 %v1648
        %v1713 = vunpack.c.l.b16 %v1649
        %v1714 = vunpack.c.h.b16 %v1649
        %v1715 = vunpack.c.l.b16 %v1650
        %v1716 = vunpack.c.h.b16 %v1650
        %v1717 = vunpack.c.l.b16 %v1651
        %v1718 = vunpack.c.h.b16 %v1651
        %v1719 = vunpack.c.l.b16 %v1652
        %v1720 = vunpack.c.h.b16 %v1652
        %v1721 = vunpack.c.l.b16 %v1653
        %v1722 = vunpack.c.h.b16 %v1653
        %v1723 = vunpack.c.l.b16 %v1654
        %v1724 = vunpack.c.h.b16 %v1654
        %v1725 = vunpack.c.l.b16 %v1655
        %v1726 = vunpack.c.h.b16 %v1655
        %v1727 = vunpack.c.l.b16 %v1656
        %v1728 = vunpack.c.h.b16 %v1656
        %v1729 = vpack.c.b16 %v1683, %v1681
        %v1730 = vpack.c.b16 %v1684, %v1682
        %v1731 = vpack.c.b16 %v1687, %v1685
        %v1732 = vpack.c.b16 %v1688, %v1686
        %v1733 = vpack.c.b16 %v1691, %v1689
        %v1734 = vpack.c.b16 %v1692, %v1690
        %v1735 = vpack.c.b16 %v1695, %v1693
        %v1736 = vpack.c.b16 %v1696, %v1694
        %v1737 = vpack.c.b16 %v1699, %v1697
        %v1738 = vpack.c.b16 %v1700, %v1698
        %v1739 = vpack.c.b16 %v1703, %v1701
        %v1740 = vpack.c.b16 %v1704, %v1702
        %v1741 = vpack.c.b16 %v1707, %v1705
        %v1742 = vpack.c.b16 %v1708, %v1706
        %v1743 = vpack.c.b16 %v1711, %v1709
        %v1744 = vpack.c.b16 %v1712, %v1710
        %v1745 = vpack.c.b16 %v1715, %v1713
        %v1746 = vpack.c.b16 %v1716, %v1714
        %v1747 = vpack.c.b16 %v1719, %v1717
        %v1748 = vpack.c.b16 %v1720, %v1718
        %v1749 = vpack.c.b16 %v1723, %v1721
        %v1750 = vpack.c.b16 %v1724, %v1722
        %v1751 = vpack.c.b16 %v1727, %v1725
        %v1752 = vpack.c.b16 %v1728, %v1726
        %v1778 = vsel %vm592, %v1629, 0
        %v1781 = vsel %vm592, %v1631, 0
        %1783 = vmatprep.subr.bf16.mxu0 %v1730
        %1784 = vmatpush1.bf16.msra.mxu0 %v1729
        %1785 = vmatprep.subr.bf16.mxu0 %v1732
        %1786 = vmatpush1.bf16.msra.mxu0 %v1731
        %1787 = vmatprep.subr.bf16.mxu0 %v1734
        %1788 = vmatpush1.bf16.msra.mxu0 %v1733
        %1789 = vmatprep.subr.bf16.mxu0 %v1736
        %1790 = vmatpush1.bf16.msra.mxu0 %v1735
        %1791 = vmatprep.subr.bf16.mxu0 %v1738
        %1792 = vmatpush1.bf16.msra.mxu0 %v1737
        %1793 = vmatprep.subr.bf16.mxu0 %v1740
        %1794 = vmatpush1.bf16.msra.mxu0 %v1739
        %1795 = vmatprep.subr.bf16.mxu0 %v1742
        %1796 = vmatpush1.bf16.msra.mxu0 %v1741
        %1797 = vmatprep.subr.bf16.mxu0 %v1744
        %1798 = vmatpush1.bf16.msra.mxu0 %v1743
        %1799 = vmatprep.subr.bf16.mxu0 %v1746
        %1800 = vmatpush1.bf16.msra.mxu0 %v1745
        %1801 = vmatprep.subr.bf16.mxu0 %v1748
        %1802 = vmatpush1.bf16.msra.mxu0 %v1747
        %1803 = vmatprep.subr.bf16.mxu0 %v1750
        %1804 = vmatpush1.bf16.msra.mxu0 %v1749
        %1805 = vmatprep.subr.bf16.mxu0 %v1752
        %1806 = vmatpush1.bf16.msra.mxu0 %v1751
        %1807 = vmatprep.subr.bf16.mxu0 0
        %1808 = vmatpush1.bf16.msra.mxu0 0
        %1809 = vmatprep.subr.bf16.mxu0 0
        %1810 = vmatpush1.bf16.msra.mxu0 0
        %1811 = vmatprep.subr.bf16.mxu0 0
        %1812 = vmatpush1.bf16.msra.mxu0 0
        %1813 = vmatprep.subr.bf16.mxu0 0
        %1814 = vmatpush1.bf16.msra.mxu0 0
        %1815 = vmatprep.mubr.bf16.mxu0 %v1778
        %1816 = vmatmul.mubr.bf16.gmra.mrb[0].mxu0 %v1628
        %v1817 = vpop.f32.mrb[0].mxu0
        %v1818 = vadd.f32 0.0, %v1817
        %v1819 = vpop.f32.mrb[0].mxu0
        %v1820 = vadd.f32 0.0, %v1819
        %v1821 = vpop.f32.mrb[0].mxu0
        %v1822 = vadd.f32 0.0, %v1821
        %v1823 = vpop.f32.mrb[0].mxu0
        %v1824 = vadd.f32 0.0, %v1823
        %1825 = vmatprep.mubr.bf16.mxu0 %v1781
        %1826 = vmatmul.mubr.bf16.gmra.mrb[0].mxu0 %v1630
        %v1827 = vpop.f32.mrb[0].mxu0
        %v1828 = vadd.f32 0.0, %v1827
        %v1829 = vpop.f32.mrb[0].mxu0
        %v1830 = vadd.f32 0.0, %v1829
        %v1831 = vpop.f32.mrb[0].mxu0
        %v1832 = vadd.f32 0.0, %v1831
        %v1833 = vpop.f32.mrb[0].mxu0
        %v1834 = vadd.f32 0.0, %v1833
        %1835 = vdwg.mxu0
        %v1860 = vunpack.c.l.b16 %v1530
        %v1861 = vunpack.c.h.b16 %v1530
        %v1862 = vunpack.c.l.b16 %v1531
        %v1863 = vunpack.c.h.b16 %v1531
        %v1864 = vunpack.c.l.b16 %v1532
        %v1865 = vunpack.c.h.b16 %v1532
        %v1866 = vunpack.c.l.b16 %v1533
        %v1867 = vunpack.c.h.b16 %v1533
        %v1868 = vunpack.c.l.b16 %v1534
        %v1869 = vunpack.c.h.b16 %v1534
        %v1870 = vunpack.c.l.b16 %v1535
        %v1871 = vunpack.c.h.b16 %v1535
        %v1872 = vunpack.c.l.b16 %v1536
        %v1873 = vunpack.c.h.b16 %v1536
        %v1874 = vunpack.c.l.b16 %v1537
        %v1875 = vunpack.c.h.b16 %v1537
        %v1876 = vunpack.c.l.b16 %v1538
        %v1877 = vunpack.c.h.b16 %v1538
        %v1878 = vunpack.c.l.b16 %v1539
        %v1879 = vunpack.c.h.b16 %v1539
        %v1880 = vunpack.c.l.b16 %v1540
        %v1881 = vunpack.c.h.b16 %v1540
        %v1882 = vunpack.c.l.b16 %v1541
        %v1883 = vunpack.c.h.b16 %v1541
        %v1884 = vunpack.c.l.b16 %v1542
        %v1885 = vunpack.c.h.b16 %v1542
        %v1886 = vunpack.c.l.b16 %v1543
        %v1887 = vunpack.c.h.b16 %v1543
        %v1888 = vunpack.c.l.b16 %v1544
        %v1889 = vunpack.c.h.b16 %v1544
        %v1890 = vunpack.c.l.b16 %v1545
        %v1891 = vunpack.c.h.b16 %v1545
        %v1892 = vunpack.c.l.b16 %v1546
        %v1893 = vunpack.c.h.b16 %v1546
        %v1894 = vunpack.c.l.b16 %v1547
        %v1895 = vunpack.c.h.b16 %v1547
        %v1896 = vunpack.c.l.b16 %v1548
        %v1897 = vunpack.c.h.b16 %v1548
        %v1898 = vunpack.c.l.b16 %v1549
        %v1899 = vunpack.c.h.b16 %v1549
        %v1900 = vunpack.c.l.b16 %v1550
        %v1901 = vunpack.c.h.b16 %v1550
        %v1902 = vunpack.c.l.b16 %v1551
        %v1903 = vunpack.c.h.b16 %v1551
        %v1904 = vunpack.c.l.b16 %v1552
        %v1905 = vunpack.c.h.b16 %v1552
        %v1906 = vunpack.c.l.b16 %v1553
        %v1907 = vunpack.c.h.b16 %v1553
        %v1908 = vpack.c.b16 %v1862, %v1860
        %v1909 = vpack.c.b16 %v1863, %v1861
        %v1910 = vpack.c.b16 %v1866, %v1864
        %v1911 = vpack.c.b16 %v1867, %v1865
        %v1912 = vpack.c.b16 %v1870, %v1868
        %v1913 = vpack.c.b16 %v1871, %v1869
        %v1914 = vpack.c.b16 %v1874, %v1872
        %v1915 = vpack.c.b16 %v1875, %v1873
        %v1916 = vpack.c.b16 %v1878, %v1876
        %v1917 = vpack.c.b16 %v1879, %v1877
        %v1918 = vpack.c.b16 %v1882, %v1880
        %v1919 = vpack.c.b16 %v1883, %v1881
        %v1920 = vpack.c.b16 %v1886, %v1884
        %v1921 = vpack.c.b16 %v1887, %v1885
        %v1922 = vpack.c.b16 %v1890, %v1888
        %v1923 = vpack.c.b16 %v1891, %v1889
        %v1924 = vpack.c.b16 %v1894, %v1892
        %v1925 = vpack.c.b16 %v1895, %v1893
        %v1926 = vpack.c.b16 %v1898, %v1896
        %v1927 = vpack.c.b16 %v1899, %v1897
        %v1928 = vpack.c.b16 %v1902, %v1900
        %v1929 = vpack.c.b16 %v1903, %v1901
        %v1930 = vpack.c.b16 %v1906, %v1904
        %v1931 = vpack.c.b16 %v1907, %v1905
        %v1957 = vsel %vm592, %v1526, 0
        %v1960 = vsel %vm592, %v1528, 0
        %1962 = vmatprep.subr.bf16.mxu0 %v1909
        %1963 = vmatpush1.bf16.msra.mxu0 %v1908
        %1964 = vmatprep.subr.bf16.mxu0 %v1911
        %1965 = vmatpush1.bf16.msra.mxu0 %v1910
        %1966 = vmatprep.subr.bf16.mxu0 %v1913
        %1967 = vmatpush1.bf16.msra.mxu0 %v1912
        %1968 = vmatprep.subr.bf16.mxu0 %v1915
        %1969 = vmatpush1.bf16.msra.mxu0 %v1914
        %1970 = vmatprep.subr.bf16.mxu0 %v1917
        %1971 = vmatpush1.bf16.msra.mxu0 %v1916
        %1972 = vmatprep.subr.bf16.mxu0 %v1919
        %1973 = vmatpush1.bf16.msra.mxu0 %v1918
        %1974 = vmatprep.subr.bf16.mxu0 %v1921
        %1975 = vmatpush1.bf16.msra.mxu0 %v1920
        %1976 = vmatprep.subr.bf16.mxu0 %v1923
        %1977 = vmatpush1.bf16.msra.mxu0 %v1922
        %1978 = vmatprep.subr.bf16.mxu0 %v1925
        %1979 = vmatpush1.bf16.msra.mxu0 %v1924
        %1980 = vmatprep.subr.bf16.mxu0 %v1927
        %1981 = vmatpush1.bf16.msra.mxu0 %v1926
        %1982 = vmatprep.subr.bf16.mxu0 %v1929
        %1983 = vmatpush1.bf16.msra.mxu0 %v1928
        %1984 = vmatprep.subr.bf16.mxu0 %v1931
        %1985 = vmatpush1.bf16.msra.mxu0 %v1930
        %1986 = vmatprep.subr.bf16.mxu0 0
        %1987 = vmatpush1.bf16.msra.mxu0 0
        %1988 = vmatprep.subr.bf16.mxu0 0
        %1989 = vmatpush1.bf16.msra.mxu0 0
        %1990 = vmatprep.subr.bf16.mxu0 0
        %1991 = vmatpush1.bf16.msra.mxu0 0
        %1992 = vmatprep.subr.bf16.mxu0 0
        %1993 = vmatpush1.bf16.msra.mxu0 0
        %1994 = vmatprep.mubr.bf16.mxu0 %v1957
        %1995 = vmatmul.mubr.bf16.gmra.mrb[0].mxu0 %v1525
        %v1996 = vpop.f32.mrb[0].mxu0
        %v1997 = vadd.f32 %v1818, %v1996
        %v1998 = vpop.f32.mrb[0].mxu0
        %v1999 = vadd.f32 %v1820, %v1998
        %v2000 = vpop.f32.mrb[0].mxu0
        %v2001 = vadd.f32 %v1822, %v2000
        %v2002 = vpop.f32.mrb[0].mxu0
        %v2003 = vadd.f32 %v1824, %v2002
        %2004 = vmatprep.mubr.bf16.mxu0 %v1960
        %2005 = vmatmul.mubr.bf16.gmra.mrb[0].mxu0 %v1527
        %v2006 = vpop.f32.mrb[0].mxu0
        %v2007 = vadd.f32 %v1828, %v2006
        %v2008 = vpop.f32.mrb[0].mxu0
        %v2009 = vadd.f32 %v1830, %v2008
        %v2010 = vpop.f32.mrb[0].mxu0
        %v2011 = vadd.f32 %v1832, %v2010
        %v2012 = vpop.f32.mrb[0].mxu0
        %v2013 = vadd.f32 %v1834, %v2012
        %2014 = vdwg.mxu0
        %s2015 = scalar_lea.vmem [#allocation2], 96
        %v2016 = vld [vmem:[%s2015] sm:$0xf]
        %v2017 = vld [vmem:[%s2015 + $0x4] sm:$0xf]
        %v2018 = vld [vmem:[%s2015 + $0x8] sm:$0xf]
        %v2019 = vld [vmem:[%s2015 + $0xc] sm:$0xf]
        %v2024 = vunpack.c.l.b16 %v2016
        %v2025 = vunpack.c.l.b16 %v2017
        %v2026 = vunpack.c.l.b16 %v2018
        %v2027 = vunpack.c.l.b16 %v2019
        %v2028 = vpack.c.b16 %v2025, %v2024
        %v2029 = vpack.c.b16 %v2027, %v2026
        %v2031 = vsel %vm281, %v2028, 0
        %v2034 = vsel %vm281, %v2029, 0
        %2036 = vmatprep.subr.bf16.mxu0 %v1448
        %2037 = vmatpush1.bf16.msra.mxu0 %v1447
        %2038 = vmatprep.subr.bf16.mxu0 %v1450
        %2039 = vmatpush1.bf16.msra.mxu0 %v1449
        %2040 = vmatprep.subr.bf16.mxu0 0
        %2041 = vmatpush1.bf16.msra.mxu0 0
        %2042 = vmatprep.subr.bf16.mxu0 0
        %2043 = vmatpush1.bf16.msra.mxu0 0
        %2044 = vmatprep.subr.bf16.mxu0 0
        %2045 = vmatpush1.bf16.msra.mxu0 0
        %2046 = vmatprep.subr.bf16.mxu0 0
        %2047 = vmatpush1.bf16.msra.mxu0 0
        %2048 = vmatprep.subr.bf16.mxu0 0
        %2049 = vmatpush1.bf16.msra.mxu0 0
        %2050 = vmatprep.subr.bf16.mxu0 0
        %2051 = vmatpush1.bf16.msra.mxu0 0
        %2052 = vmatprep.subr.bf16.mxu0 0
        %2053 = vmatpush1.bf16.msra.mxu0 0
        %2054 = vmatprep.subr.bf16.mxu0 0
        %2055 = vmatpush1.bf16.msra.mxu0 0
        %2056 = vmatprep.subr.bf16.mxu0 0
        %2057 = vmatpush1.bf16.msra.mxu0 0
        %2058 = vmatprep.subr.bf16.mxu0 0
        %2059 = vmatpush1.bf16.msra.mxu0 0
        %2060 = vmatprep.subr.bf16.mxu0 0
        %2061 = vmatpush1.bf16.msra.mxu0 0
        %2062 = vmatprep.subr.bf16.mxu0 0
        %2063 = vmatpush1.bf16.msra.mxu0 0
        %2064 = vmatprep.subr.bf16.mxu0 0
        %2065 = vmatpush1.bf16.msra.mxu0 0
        %2066 = vmatprep.subr.bf16.mxu0 0
        %2067 = vmatpush1.bf16.msra.mxu0 0
        %2068 = vmatprep.mubr.bf16.mxu0 0
        %2069 = vmatmul.mubr.bf16.gmra.mrb[0].mxu0 %v2031
        %v2070 = vpop.f32.mrb[0].mxu0
        %v2071 = vadd.f32 0.0, %v2070
        %v2072 = vpop.f32.mrb[0].mxu0
        %v2073 = vadd.f32 0.0, %v2072
        %v2074 = vpop.f32.mrb[0].mxu0
        %v2075 = vadd.f32 0.0, %v2074
        %v2076 = vpop.f32.mrb[0].mxu0
        %v2077 = vadd.f32 0.0, %v2076
        %2078 = vmatprep.mubr.bf16.mxu0 0
        %2079 = vmatmul.mubr.bf16.gmra.mrb[0].mxu0 %v2034
        %v2080 = vpop.f32.mrb[0].mxu0
        %v2081 = vadd.f32 0.0, %v2080
        %v2082 = vpop.f32.mrb[0].mxu0
        %v2083 = vadd.f32 0.0, %v2082
        %v2084 = vpop.f32.mrb[0].mxu0
        %v2085 = vadd.f32 0.0, %v2084
        %v2086 = vpop.f32.mrb[0].mxu0
        %v2087 = vadd.f32 0.0, %v2086
        %2088 = vdwg.mxu0
        %v2089 = vpack.c.bf16 %v2075, %v2071
        %v2090 = vpack.c.bf16 %v2077, %v2073
        %v2091 = vpack.c.bf16 %v2085, %v2081
        %v2092 = vpack.c.bf16 %v2087, %v2083
        %s2093 = scalar_lea.vmem [#allocation4], 1152
        %v2094 = vld [vmem:[%s2093] sm:$0xff]
        %v2095 = vld [vmem:[%s2093 + $0x8] sm:$0xff]
        %v2096 = vld [vmem:[%s2093 + $0x10] sm:$0xff]
        %v2097 = vld [vmem:[%s2093 + $0x18] sm:$0xff]
        %v2098 = vld [vmem:[%s2093 + $0x20] sm:$0xff]
        %v2099 = vld [vmem:[%s2093 + $0x28] sm:$0xff]
        %v2100 = vld [vmem:[%s2093 + $0x30] sm:$0xff]
        %v2101 = vld [vmem:[%s2093 + $0x38] sm:$0xff]
        %v2102 = vld [vmem:[%s2093 + $0x40] sm:$0xff]
        %v2103 = vld [vmem:[%s2093 + $0x48] sm:$0xff]
        %v2104 = vld [vmem:[%s2093 + $0x50] sm:$0xff]
        %v2105 = vld [vmem:[%s2093 + $0x58] sm:$0xff]
        %v2106 = vld [vmem:[%s2093 + $0x60] sm:$0xff]
        %v2107 = vld [vmem:[%s2093 + $0x68] sm:$0xff]
        %v2108 = vld [vmem:[%s2093 + $0x70] sm:$0xff]
        %v2109 = vld [vmem:[%s2093 + $0x78] sm:$0xff]
        %v2110 = vld [vmem:[%s2093 + $0x80] sm:$0xff]
        %v2111 = vld [vmem:[%s2093 + $0x88] sm:$0xff]
        %v2112 = vld [vmem:[%s2093 + $0x90] sm:$0xff]
        %v2113 = vld [vmem:[%s2093 + $0x98] sm:$0xff]
        %v2114 = vld [vmem:[%s2093 + $0xa0] sm:$0xff]
        %v2115 = vld [vmem:[%s2093 + $0xa8] sm:$0xff]
        %v2116 = vld [vmem:[%s2093 + $0xb0] sm:$0xff]
        %v2117 = vld [vmem:[%s2093 + $0xb8] sm:$0xff]
        %v2142 = vunpack.c.l.b16 %v2094
        %v2143 = vunpack.c.h.b16 %v2094
        %v2144 = vunpack.c.l.b16 %v2095
        %v2145 = vunpack.c.h.b16 %v2095
        %v2146 = vunpack.c.l.b16 %v2096
        %v2147 = vunpack.c.h.b16 %v2096
        %v2148 = vunpack.c.l.b16 %v2097
        %v2149 = vunpack.c.h.b16 %v2097
        %v2150 = vunpack.c.l.b16 %v2098
        %v2151 = vunpack.c.h.b16 %v2098
        %v2152 = vunpack.c.l.b16 %v2099
        %v2153 = vunpack.c.h.b16 %v2099
        %v2154 = vunpack.c.l.b16 %v2100
        %v2155 = vunpack.c.h.b16 %v2100
        %v2156 = vunpack.c.l.b16 %v2101
        %v2157 = vunpack.c.h.b16 %v2101
        %v2158 = vunpack.c.l.b16 %v2102
        %v2159 = vunpack.c.h.b16 %v2102
        %v2160 = vunpack.c.l.b16 %v2103
        %v2161 = vunpack.c.h.b16 %v2103
        %v2162 = vunpack.c.l.b16 %v2104
        %v2163 = vunpack.c.h.b16 %v2104
        %v2164 = vunpack.c.l.b16 %v2105
        %v2165 = vunpack.c.h.b16 %v2105
        %v2166 = vunpack.c.l.b16 %v2106
        %v2167 = vunpack.c.h.b16 %v2106
        %v2168 = vunpack.c.l.b16 %v2107
        %v2169 = vunpack.c.h.b16 %v2107
        %v2170 = vunpack.c.l.b16 %v2108
        %v2171 = vunpack.c.h.b16 %v2108
        %v2172 = vunpack.c.l.b16 %v2109
        %v2173 = vunpack.c.h.b16 %v2109
        %v2174 = vunpack.c.l.b16 %v2110
        %v2175 = vunpack.c.h.b16 %v2110
        %v2176 = vunpack.c.l.b16 %v2111
        %v2177 = vunpack.c.h.b16 %v2111
        %v2178 = vunpack.c.l.b16 %v2112
        %v2179 = vunpack.c.h.b16 %v2112
        %v2180 = vunpack.c.l.b16 %v2113
        %v2181 = vunpack.c.h.b16 %v2113
        %v2182 = vunpack.c.l.b16 %v2114
        %v2183 = vunpack.c.h.b16 %v2114
        %v2184 = vunpack.c.l.b16 %v2115
        %v2185 = vunpack.c.h.b16 %v2115
        %v2186 = vunpack.c.l.b16 %v2116
        %v2187 = vunpack.c.h.b16 %v2116
        %v2188 = vunpack.c.l.b16 %v2117
        %v2189 = vunpack.c.h.b16 %v2117
        %v2190 = vpack.c.b16 %v2144, %v2142
        %v2191 = vpack.c.b16 %v2145, %v2143
        %v2192 = vpack.c.b16 %v2148, %v2146
        %v2193 = vpack.c.b16 %v2149, %v2147
        %v2194 = vpack.c.b16 %v2152, %v2150
        %v2195 = vpack.c.b16 %v2153, %v2151
        %v2196 = vpack.c.b16 %v2156, %v2154
        %v2197 = vpack.c.b16 %v2157, %v2155
        %v2198 = vpack.c.b16 %v2160, %v2158
        %v2199 = vpack.c.b16 %v2161, %v2159
        %v2200 = vpack.c.b16 %v2164, %v2162
        %v2201 = vpack.c.b16 %v2165, %v2163
        %v2202 = vpack.c.b16 %v2168, %v2166
        %v2203 = vpack.c.b16 %v2169, %v2167
        %v2204 = vpack.c.b16 %v2172, %v2170
        %v2205 = vpack.c.b16 %v2173, %v2171
        %v2206 = vpack.c.b16 %v2176, %v2174
        %v2207 = vpack.c.b16 %v2177, %v2175
        %v2208 = vpack.c.b16 %v2180, %v2178
        %v2209 = vpack.c.b16 %v2181, %v2179
        %v2210 = vpack.c.b16 %v2184, %v2182
        %v2211 = vpack.c.b16 %v2185, %v2183
        %v2212 = vpack.c.b16 %v2188, %v2186
        %v2213 = vpack.c.b16 %v2189, %v2187
        %v2239 = vsel %vm592, %v2090, 0
        %v2242 = vsel %vm592, %v2092, 0
        %2244 = vmatprep.subr.bf16.mxu0 %v2191
        %2245 = vmatpush1.bf16.msra.mxu0 %v2190
        %2246 = vmatprep.subr.bf16.mxu0 %v2193
        %2247 = vmatpush1.bf16.msra.mxu0 %v2192
        %2248 = vmatprep.subr.bf16.mxu0 %v2195
        %2249 = vmatpush1.bf16.msra.mxu0 %v2194
        %2250 = vmatprep.subr.bf16.mxu0 %v2197
        %2251 = vmatpush1.bf16.msra.mxu0 %v2196
        %2252 = vmatprep.subr.bf16.mxu0 %v2199
        %2253 = vmatpush1.bf16.msra.mxu0 %v2198
        %2254 = vmatprep.subr.bf16.mxu0 %v2201
        %2255 = vmatpush1.bf16.msra.mxu0 %v2200
        %2256 = vmatprep.subr.bf16.mxu0 %v2203
        %2257 = vmatpush1.bf16.msra.mxu0 %v2202
        %2258 = vmatprep.subr.bf16.mxu0 %v2205
        %2259 = vmatpush1.bf16.msra.mxu0 %v2204
        %2260 = vmatprep.subr.bf16.mxu0 %v2207
        %2261 = vmatpush1.bf16.msra.mxu0 %v2206
        %2262 = vmatprep.subr.bf16.mxu0 %v2209
        %2263 = vmatpush1.bf16.msra.mxu0 %v2208
        %2264 = vmatprep.subr.bf16.mxu0 %v2211
        %2265 = vmatpush1.bf16.msra.mxu0 %v2210
        %2266 = vmatprep.subr.bf16.mxu0 %v2213
        %2267 = vmatpush1.bf16.msra.mxu0 %v2212
        %2268 = vmatprep.subr.bf16.mxu0 0
        %2269 = vmatpush1.bf16.msra.mxu0 0
        %2270 = vmatprep.subr.bf16.mxu0 0
        %2271 = vmatpush1.bf16.msra.mxu0 0
        %2272 = vmatprep.subr.bf16.mxu0 0
        %2273 = vmatpush1.bf16.msra.mxu0 0
        %2274 = vmatprep.subr.bf16.mxu0 0
        %2275 = vmatpush1.bf16.msra.mxu0 0
        %2276 = vmatprep.mubr.bf16.mxu0 %v2239
        %2277 = vmatmul.mubr.bf16.gmra.mrb[0].mxu0 %v2089
        %v2278 = vpop.f32.mrb[0].mxu0
        %v2279 = vadd.f32 0.0, %v2278
        %v2280 = vpop.f32.mrb[0].mxu0
        %v2281 = vadd.f32 0.0, %v2280
        %v2282 = vpop.f32.mrb[0].mxu0
        %v2283 = vadd.f32 0.0, %v2282
        %v2284 = vpop.f32.mrb[0].mxu0
        %v2285 = vadd.f32 0.0, %v2284
        %2286 = vmatprep.mubr.bf16.mxu0 %v2242
        %2287 = vmatmul.mubr.bf16.gmra.mrb[0].mxu0 %v2091
        %v2288 = vpop.f32.mrb[0].mxu0
        %v2289 = vadd.f32 0.0, %v2288
        %v2290 = vpop.f32.mrb[0].mxu0
        %v2291 = vadd.f32 0.0, %v2290
        %v2292 = vpop.f32.mrb[0].mxu0
        %v2293 = vadd.f32 0.0, %v2292
        %v2294 = vpop.f32.mrb[0].mxu0
        %v2295 = vadd.f32 0.0, %v2294
        %2296 = vdwg.mxu0
        %v2297 = vadd.f32 %v1997, %v2279
        %v2298 = vadd.f32 %v1999, %v2281
        %v2299 = vadd.f32 %v2001, %v2283
        %v2300 = vadd.f32 %v2003, %v2285
        %v2301 = vadd.f32 %v2007, %v2289
        %v2302 = vadd.f32 %v2009, %v2291
        %v2303 = vadd.f32 %v2011, %v2293
        %v2304 = vadd.f32 %v2013, %v2295
        %s2305 = scalar_lea.vmem [#allocation2], 112
        %v2306 = vld [vmem:[%s2305] sm:$0xf]
        %v2307 = vld [vmem:[%s2305 + $0x4] sm:$0xf]
        %v2308 = vld [vmem:[%s2305 + $0x8] sm:$0xf]
        %v2309 = vld [vmem:[%s2305 + $0xc] sm:$0xf]
        %v2314 = vunpack.c.l.b16 %v2306
        %v2315 = vunpack.c.l.b16 %v2307
        %v2316 = vunpack.c.l.b16 %v2308
        %v2317 = vunpack.c.l.b16 %v2309
        %v2318 = vpack.c.b16 %v2315, %v2314
        %v2319 = vpack.c.b16 %v2317, %v2316
        %v2321 = vsel %vm281, %v2318, 0
        %v2324 = vsel %vm281, %v2319, 0
        %2326 = vmatprep.subr.bf16.mxu0 %v1448
        %2327 = vmatpush1.bf16.msra.mxu0 %v1447
        %2328 = vmatprep.subr.bf16.mxu0 %v1450
        %2329 = vmatpush1.bf16.msra.mxu0 %v1449
        %2330 = vmatprep.subr.bf16.mxu0 0
        %2331 = vmatpush1.bf16.msra.mxu0 0
        %2332 = vmatprep.subr.bf16.mxu0 0
        %2333 = vmatpush1.bf16.msra.mxu0 0
        %2334 = vmatprep.subr.bf16.mxu0 0
        %2335 = vmatpush1.bf16.msra.mxu0 0
        %2336 = vmatprep.subr.bf16.mxu0 0
        %2337 = vmatpush1.bf16.msra.mxu0 0
        %2338 = vmatprep.subr.bf16.mxu0 0
        %2339 = vmatpush1.bf16.msra.mxu0 0
        %2340 = vmatprep.subr.bf16.mxu0 0
        %2341 = vmatpush1.bf16.msra.mxu0 0
        %2342 = vmatprep.subr.bf16.mxu0 0
        %2343 = vmatpush1.bf16.msra.mxu0 0
        %2344 = vmatprep.subr.bf16.mxu0 0
        %2345 = vmatpush1.bf16.msra.mxu0 0
        %2346 = vmatprep.subr.bf16.mxu0 0
        %2347 = vmatpush1.bf16.msra.mxu0 0
        %2348 = vmatprep.subr.bf16.mxu0 0
        %2349 = vmatpush1.bf16.msra.mxu0 0
        %2350 = vmatprep.subr.bf16.mxu0 0
        %2351 = vmatpush1.bf16.msra.mxu0 0
        %2352 = vmatprep.subr.bf16.mxu0 0
        %2353 = vmatpush1.bf16.msra.mxu0 0
        %2354 = vmatprep.subr.bf16.mxu0 0
        %2355 = vmatpush1.bf16.msra.mxu0 0
        %2356 = vmatprep.subr.bf16.mxu0 0
        %2357 = vmatpush1.bf16.msra.mxu0 0
        %2358 = vmatprep.mubr.bf16.mxu0 0
        %2359 = vmatmul.mubr.bf16.gmra.mrb[0].mxu0 %v2321
        %v2360 = vpop.f32.mrb[0].mxu0
        %v2361 = vadd.f32 0.0, %v2360
        %v2362 = vpop.f32.mrb[0].mxu0
        %v2363 = vadd.f32 0.0, %v2362
        %v2364 = vpop.f32.mrb[0].mxu0
        %v2365 = vadd.f32 0.0, %v2364
        %v2366 = vpop.f32.mrb[0].mxu0
        %v2367 = vadd.f32 0.0, %v2366
        %2368 = vmatprep.mubr.bf16.mxu0 0
        %2369 = vmatmul.mubr.bf16.gmra.mrb[0].mxu0 %v2324
        %v2370 = vpop.f32.mrb[0].mxu0
        %v2371 = vadd.f32 0.0, %v2370
        %v2372 = vpop.f32.mrb[0].mxu0
        %v2373 = vadd.f32 0.0, %v2372
        %v2374 = vpop.f32.mrb[0].mxu0
        %v2375 = vadd.f32 0.0, %v2374
        %v2376 = vpop.f32.mrb[0].mxu0
        %v2377 = vadd.f32 0.0, %v2376
        %2378 = vdwg.mxu0
        %v2379 = vpack.c.bf16 %v2365, %v2361
        %v2380 = vpack.c.bf16 %v2367, %v2363
        %v2381 = vpack.c.bf16 %v2375, %v2371
        %v2382 = vpack.c.bf16 %v2377, %v2373
        %s2383 = scalar_lea.vmem [#allocation4], 1344
        %v2384 = vld [vmem:[%s2383] sm:$0xff]
        %v2385 = vld [vmem:[%s2383 + $0x8] sm:$0xff]
        %v2386 = vld [vmem:[%s2383 + $0x10] sm:$0xff]
        %v2387 = vld [vmem:[%s2383 + $0x18] sm:$0xff]
        %v2388 = vld [vmem:[%s2383 + $0x20] sm:$0xff]
        %v2389 = vld [vmem:[%s2383 + $0x28] sm:$0xff]
        %v2390 = vld [vmem:[%s2383 + $0x30] sm:$0xff]
        %v2391 = vld [vmem:[%s2383 + $0x38] sm:$0xff]
        %v2392 = vld [vmem:[%s2383 + $0x40] sm:$0xff]
        %v2393 = vld [vmem:[%s2383 + $0x48] sm:$0xff]
        %v2394 = vld [vmem:[%s2383 + $0x50] sm:$0xff]
        %v2395 = vld [vmem:[%s2383 + $0x58] sm:$0xff]
        %v2396 = vld [vmem:[%s2383 + $0x60] sm:$0xff]
        %v2397 = vld [vmem:[%s2383 + $0x68] sm:$0xff]
        %v2398 = vld [vmem:[%s2383 + $0x70] sm:$0xff]
        %v2399 = vld [vmem:[%s2383 + $0x78] sm:$0xff]
        %v2400 = vld [vmem:[%s2383 + $0x80] sm:$0xff]
        %v2401 = vld [vmem:[%s2383 + $0x88] sm:$0xff]
        %v2402 = vld [vmem:[%s2383 + $0x90] sm:$0xff]
        %v2403 = vld [vmem:[%s2383 + $0x98] sm:$0xff]
        %v2404 = vld [vmem:[%s2383 + $0xa0] sm:$0xff]
        %v2405 = vld [vmem:[%s2383 + $0xa8] sm:$0xff]
        %v2406 = vld [vmem:[%s2383 + $0xb0] sm:$0xff]
        %v2407 = vld [vmem:[%s2383 + $0xb8] sm:$0xff]
        %v2432 = vunpack.c.l.b16 %v2384
        %v2433 = vunpack.c.h.b16 %v2384
        %v2434 = vunpack.c.l.b16 %v2385
        %v2435 = vunpack.c.h.b16 %v2385
        %v2436 = vunpack.c.l.b16 %v2386
        %v2437 = vunpack.c.h.b16 %v2386
        %v2438 = vunpack.c.l.b16 %v2387
        %v2439 = vunpack.c.h.b16 %v2387
        %v2440 = vunpack.c.l.b16 %v2388
        %v2441 = vunpack.c.h.b16 %v2388
        %v2442 = vunpack.c.l.b16 %v2389
        %v2443 = vunpack.c.h.b16 %v2389
        %v2444 = vunpack.c.l.b16 %v2390
        %v2445 = vunpack.c.h.b16 %v2390
        %v2446 = vunpack.c.l.b16 %v2391
        %v2447 = vunpack.c.h.b16 %v2391
        %v2448 = vunpack.c.l.b16 %v2392
        %v2449 = vunpack.c.h.b16 %v2392
        %v2450 = vunpack.c.l.b16 %v2393
        %v2451 = vunpack.c.h.b16 %v2393
        %v2452 = vunpack.c.l.b16 %v2394
        %v2453 = vunpack.c.h.b16 %v2394
        %v2454 = vunpack.c.l.b16 %v2395
        %v2455 = vunpack.c.h.b16 %v2395
        %v2456 = vunpack.c.l.b16 %v2396
        %v2457 = vunpack.c.h.b16 %v2396
        %v2458 = vunpack.c.l.b16 %v2397
        %v2459 = vunpack.c.h.b16 %v2397
        %v2460 = vunpack.c.l.b16 %v2398
        %v2461 = vunpack.c.h.b16 %v2398
        %v2462 = vunpack.c.l.b16 %v2399
        %v2463 = vunpack.c.h.b16 %v2399
        %v2464 = vunpack.c.l.b16 %v2400
        %v2465 = vunpack.c.h.b16 %v2400
        %v2466 = vunpack.c.l.b16 %v2401
        %v2467 = vunpack.c.h.b16 %v2401
        %v2468 = vunpack.c.l.b16 %v2402
        %v2469 = vunpack.c.h.b16 %v2402
        %v2470 = vunpack.c.l.b16 %v2403
        %v2471 = vunpack.c.h.b16 %v2403
        %v2472 = vunpack.c.l.b16 %v2404
        %v2473 = vunpack.c.h.b16 %v2404
        %v2474 = vunpack.c.l.b16 %v2405
        %v2475 = vunpack.c.h.b16 %v2405
        %v2476 = vunpack.c.l.b16 %v2406
        %v2477 = vunpack.c.h.b16 %v2406
        %v2478 = vunpack.c.l.b16 %v2407
        %v2479 = vunpack.c.h.b16 %v2407
        %v2480 = vpack.c.b16 %v2434, %v2432
        %v2481 = vpack.c.b16 %v2435, %v2433
        %v2482 = vpack.c.b16 %v2438, %v2436
        %v2483 = vpack.c.b16 %v2439, %v2437
        %v2484 = vpack.c.b16 %v2442, %v2440
        %v2485 = vpack.c.b16 %v2443, %v2441
        %v2486 = vpack.c.b16 %v2446, %v2444
        %v2487 = vpack.c.b16 %v2447, %v2445
        %v2488 = vpack.c.b16 %v2450, %v2448
        %v2489 = vpack.c.b16 %v2451, %v2449
        %v2490 = vpack.c.b16 %v2454, %v2452
        %v2491 = vpack.c.b16 %v2455, %v2453
        %v2492 = vpack.c.b16 %v2458, %v2456
        %v2493 = vpack.c.b16 %v2459, %v2457
        %v2494 = vpack.c.b16 %v2462, %v2460
        %v2495 = vpack.c.b16 %v2463, %v2461
        %v2496 = vpack.c.b16 %v2466, %v2464
        %v2497 = vpack.c.b16 %v2467, %v2465
        %v2498 = vpack.c.b16 %v2470, %v2468
        %v2499 = vpack.c.b16 %v2471, %v2469
        %v2500 = vpack.c.b16 %v2474, %v2472
        %v2501 = vpack.c.b16 %v2475, %v2473
        %v2502 = vpack.c.b16 %v2478, %v2476
        %v2503 = vpack.c.b16 %v2479, %v2477
        %v2529 = vsel %vm592, %v2380, 0
        %v2532 = vsel %vm592, %v2382, 0
        %2534 = vmatprep.subr.bf16.mxu0 %v2481
        %2535 = vmatpush1.bf16.msra.mxu0 %v2480
        %2536 = vmatprep.subr.bf16.mxu0 %v2483
        %2537 = vmatpush1.bf16.msra.mxu0 %v2482
        %2538 = vmatprep.subr.bf16.mxu0 %v2485
        %2539 = vmatpush1.bf16.msra.mxu0 %v2484
        %2540 = vmatprep.subr.bf16.mxu0 %v2487
        %2541 = vmatpush1.bf16.msra.mxu0 %v2486
        %2542 = vmatprep.subr.bf16.mxu0 %v2489
        %2543 = vmatpush1.bf16.msra.mxu0 %v2488
        %2544 = vmatprep.subr.bf16.mxu0 %v2491
        %2545 = vmatpush1.bf16.msra.mxu0 %v2490
        %2546 = vmatprep.subr.bf16.mxu0 %v2493
        %2547 = vmatpush1.bf16.msra.mxu0 %v2492
        %2548 = vmatprep.subr.bf16.mxu0 %v2495
        %2549 = vmatpush1.bf16.msra.mxu0 %v2494
        %2550 = vmatprep.subr.bf16.mxu0 %v2497
        %2551 = vmatpush1.bf16.msra.mxu0 %v2496
        %2552 = vmatprep.subr.bf16.mxu0 %v2499
        %2553 = vmatpush1.bf16.msra.mxu0 %v2498
        %2554 = vmatprep.subr.bf16.mxu0 %v2501
        %2555 = vmatpush1.bf16.msra.mxu0 %v2500
        %2556 = vmatprep.subr.bf16.mxu0 %v2503
        %2557 = vmatpush1.bf16.msra.mxu0 %v2502
        %2558 = vmatprep.subr.bf16.mxu0 0
        %2559 = vmatpush1.bf16.msra.mxu0 0
        %2560 = vmatprep.subr.bf16.mxu0 0
        %2561 = vmatpush1.bf16.msra.mxu0 0
        %2562 = vmatprep.subr.bf16.mxu0 0
        %2563 = vmatpush1.bf16.msra.mxu0 0
        %2564 = vmatprep.subr.bf16.mxu0 0
        %2565 = vmatpush1.bf16.msra.mxu0 0
        %2566 = vmatprep.mubr.bf16.mxu0 %v2529
        %2567 = vmatmul.mubr.bf16.gmra.mrb[0].mxu0 %v2379
        %v2568 = vpop.f32.mrb[0].mxu0
        %v2569 = vadd.f32 0.0, %v2568
        %v2570 = vpop.f32.mrb[0].mxu0
        %v2571 = vadd.f32 0.0, %v2570
        %v2572 = vpop.f32.mrb[0].mxu0
        %v2573 = vadd.f32 0.0, %v2572
        %v2574 = vpop.f32.mrb[0].mxu0
        %v2575 = vadd.f32 0.0, %v2574
        %2576 = vmatprep.mubr.bf16.mxu0 %v2532
        %2577 = vmatmul.mubr.bf16.gmra.mrb[0].mxu0 %v2381
        %v2578 = vpop.f32.mrb[0].mxu0
        %v2579 = vadd.f32 0.0, %v2578
        %v2580 = vpop.f32.mrb[0].mxu0
        %v2581 = vadd.f32 0.0, %v2580
        %v2582 = vpop.f32.mrb[0].mxu0
        %v2583 = vadd.f32 0.0, %v2582
        %v2584 = vpop.f32.mrb[0].mxu0
        %v2585 = vadd.f32 0.0, %v2584
        %2586 = vdwg.mxu0
        %v2587 = vadd.f32 %v2297, %v2569
        %v2588 = vadd.f32 %v2298, %v2571
        %v2589 = vadd.f32 %v2299, %v2573
        %v2590 = vadd.f32 %v2300, %v2575
        %v2591 = vadd.f32 %v2301, %v2579
        %v2592 = vadd.f32 %v2302, %v2581
        %v2593 = vadd.f32 %v2303, %v2583
        %v2594 = vadd.f32 %v2304, %v2585
        %s2595 = scalar_lea.vmem [#allocation6], 2
        %v2596 = vld [vmem:[%s2595] sm:$0x3]
        %v2598 = vlaneseq
        %v2599 = vshrl.u32 %v2598, 7
        %v2600 = vsub.s32 0, %v2599
        %v2601 = vrot.slane %v2596, %v2600
        %v2602 = vlaneseq
        %v2603 = vshrl.u32 %v2602, 7
        %v2604 = vsub.s32 1, %v2603
        %v2605 = vrot.slane %v2596, %v2604
        %v2608 = vadd.f32 %v2587, %v2601
        %v2609 = vadd.f32 %v2588, %v2605
        %v2610 = vadd.f32 %v2589, %v2601
        %v2611 = vadd.f32 %v2590, %v2605
        %v2612 = vadd.f32 %v2591, %v2601
        %v2613 = vadd.f32 %v2592, %v2605
        %v2614 = vadd.f32 %v2593, %v2601
        %v2615 = vadd.f32 %v2594, %v2605
        %v2616 = vmul.f32 %v2608, 0.1
        %v2617 = vmul.f32 %v2609, 0.1
        %v2618 = vmul.f32 %v2610, 0.1
        %v2619 = vmul.f32 %v2611, 0.1
        %v2620 = vmul.f32 %v2612, 0.1
        %v2621 = vmul.f32 %v2613, 0.1
        %v2622 = vmul.f32 %v2614, 0.1
        %v2623 = vmul.f32 %v2615, 0.1
        %v2624 = vmax.f32 %v2608, %v2616
        %v2625 = vmax.f32 %v2609, %v2617
        %v2626 = vmax.f32 %v2610, %v2618
        %v2627 = vmax.f32 %v2611, %v2619
        %v2628 = vmax.f32 %v2612, %v2620
        %v2629 = vmax.f32 %v2613, %v2621
        %v2630 = vmax.f32 %v2614, %v2622
        %v2631 = vmax.f32 %v2615, %v2623
        %v2632 = vpack.c.bf16 %v2626, %v2624
        %v2633 = vpack.c.bf16 %v2627, %v2625
        %v2634 = vpack.c.bf16 %v2630, %v2628
        %v2635 = vpack.c.bf16 %v2631, %v2629
        %s2636 = scalar_lea.vmem [#allocation2], 128
        %v2637 = vld [vmem:[%s2636] sm:$0xf]
        %v2638 = vld [vmem:[%s2636 + $0x4] sm:$0xf]
        %v2639 = vld [vmem:[%s2636 + $0x8] sm:$0xf]
        %v2640 = vld [vmem:[%s2636 + $0xc] sm:$0xf]
        %v2645 = vunpack.c.l.b16 %v2637
        %v2646 = vunpack.c.l.b16 %v2638
        %v2647 = vunpack.c.l.b16 %v2639
        %v2648 = vunpack.c.l.b16 %v2640
        %v2649 = vpack.c.b16 %v2646, %v2645
        %v2650 = vpack.c.b16 %v2648, %v2647
        %v2652 = vsel %vm281, %v2649, 0
        %v2655 = vsel %vm281, %v2650, 0
        %2657 = vmatprep.subr.bf16.mxu0 %v2633
        %2658 = vmatpush1.bf16.msra.mxu0 %v2632
        %2659 = vmatprep.subr.bf16.mxu0 %v2635
        %2660 = vmatpush1.bf16.msra.mxu0 %v2634
        %2661 = vmatprep.subr.bf16.mxu0 0
        %2662 = vmatpush1.bf16.msra.mxu0 0
        %2663 = vmatprep.subr.bf16.mxu0 0
        %2664 = vmatpush1.bf16.msra.mxu0 0
        %2665 = vmatprep.subr.bf16.mxu0 0
        %2666 = vmatpush1.bf16.msra.mxu0 0
        %2667 = vmatprep.subr.bf16.mxu0 0
        %2668 = vmatpush1.bf16.msra.mxu0 0
        %2669 = vmatprep.subr.bf16.mxu0 0
        %2670 = vmatpush1.bf16.msra.mxu0 0
        %2671 = vmatprep.subr.bf16.mxu0 0
        %2672 = vmatpush1.bf16.msra.mxu0 0
        %2673 = vmatprep.subr.bf16.mxu0 0
        %2674 = vmatpush1.bf16.msra.mxu0 0
        %2675 = vmatprep.subr.bf16.mxu0 0
        %2676 = vmatpush1.bf16.msra.mxu0 0
        %2677 = vmatprep.subr.bf16.mxu0 0
        %2678 = vmatpush1.bf16.msra.mxu0 0
        %2679 = vmatprep.subr.bf16.mxu0 0
        %2680 = vmatpush1.bf16.msra.mxu0 0
        %2681 = vmatprep.subr.bf16.mxu0 0
        %2682 = vmatpush1.bf16.msra.mxu0 0
        %2683 = vmatprep.subr.bf16.mxu0 0
        %2684 = vmatpush1.bf16.msra.mxu0 0
        %2685 = vmatprep.subr.bf16.mxu0 0
        %2686 = vmatpush1.bf16.msra.mxu0 0
        %2687 = vmatprep.subr.bf16.mxu0 0
        %2688 = vmatpush1.bf16.msra.mxu0 0
        %2689 = vmatprep.mubr.bf16.mxu0 0
        %2690 = vmatmul.mubr.bf16.gmra.mrb[0].mxu0 %v2652
        %v2691 = vpop.f32.mrb[0].mxu0
        %v2692 = vadd.f32 0.0, %v2691
        %v2693 = vpop.f32.mrb[0].mxu0
        %v2694 = vadd.f32 0.0, %v2693
        %v2695 = vpop.f32.mrb[0].mxu0
        %v2696 = vadd.f32 0.0, %v2695
        %v2697 = vpop.f32.mrb[0].mxu0
        %v2698 = vadd.f32 0.0, %v2697
        %2699 = vmatprep.mubr.bf16.mxu0 0
        %2700 = vmatmul.mubr.bf16.gmra.mrb[0].mxu0 %v2655
        %v2701 = vpop.f32.mrb[0].mxu0
        %v2702 = vadd.f32 0.0, %v2701
        %v2703 = vpop.f32.mrb[0].mxu0
        %v2704 = vadd.f32 0.0, %v2703
        %v2705 = vpop.f32.mrb[0].mxu0
        %v2706 = vadd.f32 0.0, %v2705
        %v2707 = vpop.f32.mrb[0].mxu0
        %v2708 = vadd.f32 0.0, %v2707
        %2709 = vdwg.mxu0
        %v2710 = vpack.c.bf16 %v2696, %v2692
        %v2711 = vpack.c.bf16 %v2698, %v2694
        %v2712 = vpack.c.bf16 %v2706, %v2702
        %v2713 = vpack.c.bf16 %v2708, %v2704
        %s2714 = scalar_lea.vmem [#allocation4], 1536
        %v2715 = vld [vmem:[%s2714] sm:$0xff]
        %v2716 = vld [vmem:[%s2714 + $0x8] sm:$0xff]
        %v2717 = vld [vmem:[%s2714 + $0x10] sm:$0xff]
        %v2718 = vld [vmem:[%s2714 + $0x18] sm:$0xff]
        %v2719 = vld [vmem:[%s2714 + $0x20] sm:$0xff]
        %v2720 = vld [vmem:[%s2714 + $0x28] sm:$0xff]
        %v2721 = vld [vmem:[%s2714 + $0x30] sm:$0xff]
        %v2722 = vld [vmem:[%s2714 + $0x38] sm:$0xff]
        %v2723 = vld [vmem:[%s2714 + $0x40] sm:$0xff]
        %v2724 = vld [vmem:[%s2714 + $0x48] sm:$0xff]
        %v2725 = vld [vmem:[%s2714 + $0x50] sm:$0xff]
        %v2726 = vld [vmem:[%s2714 + $0x58] sm:$0xff]
        %v2727 = vld [vmem:[%s2714 + $0x60] sm:$0xff]
        %v2728 = vld [vmem:[%s2714 + $0x68] sm:$0xff]
        %v2729 = vld [vmem:[%s2714 + $0x70] sm:$0xff]
        %v2730 = vld [vmem:[%s2714 + $0x78] sm:$0xff]
        %v2731 = vld [vmem:[%s2714 + $0x80] sm:$0xff]
        %v2732 = vld [vmem:[%s2714 + $0x88] sm:$0xff]
        %v2733 = vld [vmem:[%s2714 + $0x90] sm:$0xff]
        %v2734 = vld [vmem:[%s2714 + $0x98] sm:$0xff]
        %v2735 = vld [vmem:[%s2714 + $0xa0] sm:$0xff]
        %v2736 = vld [vmem:[%s2714 + $0xa8] sm:$0xff]
        %v2737 = vld [vmem:[%s2714 + $0xb0] sm:$0xff]
        %v2738 = vld [vmem:[%s2714 + $0xb8] sm:$0xff]
        %s2739 = scalar_lea.vmem [#allocation2], 144
        %v2740 = vld [vmem:[%s2739] sm:$0xf]
        %v2741 = vld [vmem:[%s2739 + $0x4] sm:$0xf]
        %v2742 = vld [vmem:[%s2739 + $0x8] sm:$0xf]
        %v2743 = vld [vmem:[%s2739 + $0xc] sm:$0xf]
        %v2748 = vunpack.c.l.b16 %v2740
        %v2749 = vunpack.c.l.b16 %v2741
        %v2750 = vunpack.c.l.b16 %v2742
        %v2751 = vunpack.c.l.b16 %v2743
        %v2752 = vpack.c.b16 %v2749, %v2748
        %v2753 = vpack.c.b16 %v2751, %v2750
        %v2755 = vsel %vm281, %v2752, 0
        %v2758 = vsel %vm281, %v2753, 0
        %2760 = vmatprep.subr.bf16.mxu0 %v2633
        %2761 = vmatpush1.bf16.msra.mxu0 %v2632
        %2762 = vmatprep.subr.bf16.mxu0 %v2635
        %2763 = vmatpush1.bf16.msra.mxu0 %v2634
        %2764 = vmatprep.subr.bf16.mxu0 0
        %2765 = vmatpush1.bf16.msra.mxu0 0
        %2766 = vmatprep.subr.bf16.mxu0 0
        %2767 = vmatpush1.bf16.msra.mxu0 0
        %2768 = vmatprep.subr.bf16.mxu0 0
        %2769 = vmatpush1.bf16.msra.mxu0 0
        %2770 = vmatprep.subr.bf16.mxu0 0
        %2771 = vmatpush1.bf16.msra.mxu0 0
        %2772 = vmatprep.subr.bf16.mxu0 0
        %2773 = vmatpush1.bf16.msra.mxu0 0
        %2774 = vmatprep.subr.bf16.mxu0 0
        %2775 = vmatpush1.bf16.msra.mxu0 0
        %2776 = vmatprep.subr.bf16.mxu0 0
        %2777 = vmatpush1.bf16.msra.mxu0 0
        %2778 = vmatprep.subr.bf16.mxu0 0
        %2779 = vmatpush1.bf16.msra.mxu0 0
        %2780 = vmatprep.subr.bf16.mxu0 0
        %2781 = vmatpush1.bf16.msra.mxu0 0
        %2782 = vmatprep.subr.bf16.mxu0 0
        %2783 = vmatpush1.bf16.msra.mxu0 0
        %2784 = vmatprep.subr.bf16.mxu0 0
        %2785 = vmatpush1.bf16.msra.mxu0 0
        %2786 = vmatprep.subr.bf16.mxu0 0
        %2787 = vmatpush1.bf16.msra.mxu0 0
        %2788 = vmatprep.subr.bf16.mxu0 0
        %2789 = vmatpush1.bf16.msra.mxu0 0
        %2790 = vmatprep.subr.bf16.mxu0 0
        %2791 = vmatpush1.bf16.msra.mxu0 0
        %2792 = vmatprep.mubr.bf16.mxu0 0
        %2793 = vmatmul.mubr.bf16.gmra.mrb[0].mxu0 %v2755
        %v2794 = vpop.f32.mrb[0].mxu0
        %v2795 = vadd.f32 0.0, %v2794
        %v2796 = vpop.f32.mrb[0].mxu0
        %v2797 = vadd.f32 0.0, %v2796
        %v2798 = vpop.f32.mrb[0].mxu0
        %v2799 = vadd.f32 0.0, %v2798
        %v2800 = vpop.f32.mrb[0].mxu0
        %v2801 = vadd.f32 0.0, %v2800
        %2802 = vmatprep.mubr.bf16.mxu0 0
        %2803 = vmatmul.mubr.bf16.gmra.mrb[0].mxu0 %v2758
        %v2804 = vpop.f32.mrb[0].mxu0
        %v2805 = vadd.f32 0.0, %v2804
        %v2806 = vpop.f32.mrb[0].mxu0
        %v2807 = vadd.f32 0.0, %v2806
        %v2808 = vpop.f32.mrb[0].mxu0
        %v2809 = vadd.f32 0.0, %v2808
        %v2810 = vpop.f32.mrb[0].mxu0
        %v2811 = vadd.f32 0.0, %v2810
        %2812 = vdwg.mxu0
        %v2813 = vpack.c.bf16 %v2799, %v2795
        %v2814 = vpack.c.bf16 %v2801, %v2797
        %v2815 = vpack.c.bf16 %v2809, %v2805
        %v2816 = vpack.c.bf16 %v2811, %v2807
        %s2817 = scalar_lea.vmem [#allocation4], 1728
        %v2818 = vld [vmem:[%s2817] sm:$0xff]
        %v2819 = vld [vmem:[%s2817 + $0x8] sm:$0xff]
        %v2820 = vld [vmem:[%s2817 + $0x10] sm:$0xff]
        %v2821 = vld [vmem:[%s2817 + $0x18] sm:$0xff]
        %v2822 = vld [vmem:[%s2817 + $0x20] sm:$0xff]
        %v2823 = vld [vmem:[%s2817 + $0x28] sm:$0xff]
        %v2824 = vld [vmem:[%s2817 + $0x30] sm:$0xff]
        %v2825 = vld [vmem:[%s2817 + $0x38] sm:$0xff]
        %v2826 = vld [vmem:[%s2817 + $0x40] sm:$0xff]
        %v2827 = vld [vmem:[%s2817 + $0x48] sm:$0xff]
        %v2828 = vld [vmem:[%s2817 + $0x50] sm:$0xff]
        %v2829 = vld [vmem:[%s2817 + $0x58] sm:$0xff]
        %v2830 = vld [vmem:[%s2817 + $0x60] sm:$0xff]
        %v2831 = vld [vmem:[%s2817 + $0x68] sm:$0xff]
        %v2832 = vld [vmem:[%s2817 + $0x70] sm:$0xff]
        %v2833 = vld [vmem:[%s2817 + $0x78] sm:$0xff]
        %v2834 = vld [vmem:[%s2817 + $0x80] sm:$0xff]
        %v2835 = vld [vmem:[%s2817 + $0x88] sm:$0xff]
        %v2836 = vld [vmem:[%s2817 + $0x90] sm:$0xff]
        %v2837 = vld [vmem:[%s2817 + $0x98] sm:$0xff]
        %v2838 = vld [vmem:[%s2817 + $0xa0] sm:$0xff]
        %v2839 = vld [vmem:[%s2817 + $0xa8] sm:$0xff]
        %v2840 = vld [vmem:[%s2817 + $0xb0] sm:$0xff]
        %v2841 = vld [vmem:[%s2817 + $0xb8] sm:$0xff]
        %v2866 = vunpack.c.l.b16 %v2818
        %v2867 = vunpack.c.h.b16 %v2818
        %v2868 = vunpack.c.l.b16 %v2819
        %v2869 = vunpack.c.h.b16 %v2819
        %v2870 = vunpack.c.l.b16 %v2820
        %v2871 = vunpack.c.h.b16 %v2820
        %v2872 = vunpack.c.l.b16 %v2821
        %v2873 = vunpack.c.h.b16 %v2821
        %v2874 = vunpack.c.l.b16 %v2822
        %v2875 = vunpack.c.h.b16 %v2822
        %v2876 = vunpack.c.l.b16 %v2823
        %v2877 = vunpack.c.h.b16 %v2823
        %v2878 = vunpack.c.l.b16 %v2824
        %v2879 = vunpack.c.h.b16 %v2824
        %v2880 = vunpack.c.l.b16 %v2825
        %v2881 = vunpack.c.h.b16 %v2825
        %v2882 = vunpack.c.l.b16 %v2826
        %v2883 = vunpack.c.h.b16 %v2826
        %v2884 = vunpack.c.l.b16 %v2827
        %v2885 = vunpack.c.h.b16 %v2827
        %v2886 = vunpack.c.l.b16 %v2828
        %v2887 = vunpack.c.h.b16 %v2828
        %v2888 = vunpack.c.l.b16 %v2829
        %v2889 = vunpack.c.h.b16 %v2829
        %v2890 = vunpack.c.l.b16 %v2830
        %v2891 = vunpack.c.h.b16 %v2830
        %v2892 = vunpack.c.l.b16 %v2831
        %v2893 = vunpack.c.h.b16 %v2831
        %v2894 = vunpack.c.l.b16 %v2832
        %v2895 = vunpack.c.h.b16 %v2832
        %v2896 = vunpack.c.l.b16 %v2833
        %v2897 = vunpack.c.h.b16 %v2833
        %v2898 = vunpack.c.l.b16 %v2834
        %v2899 = vunpack.c.h.b16 %v2834
        %v2900 = vunpack.c.l.b16 %v2835
        %v2901 = vunpack.c.h.b16 %v2835
        %v2902 = vunpack.c.l.b16 %v2836
        %v2903 = vunpack.c.h.b16 %v2836
        %v2904 = vunpack.c.l.b16 %v2837
        %v2905 = vunpack.c.h.b16 %v2837
        %v2906 = vunpack.c.l.b16 %v2838
        %v2907 = vunpack.c.h.b16 %v2838
        %v2908 = vunpack.c.l.b16 %v2839
        %v2909 = vunpack.c.h.b16 %v2839
        %v2910 = vunpack.c.l.b16 %v2840
        %v2911 = vunpack.c.h.b16 %v2840
        %v2912 = vunpack.c.l.b16 %v2841
        %v2913 = vunpack.c.h.b16 %v2841
        %v2914 = vpack.c.b16 %v2868, %v2866
        %v2915 = vpack.c.b16 %v2869, %v2867
        %v2916 = vpack.c.b16 %v2872, %v2870
        %v2917 = vpack.c.b16 %v2873, %v2871
        %v2918 = vpack.c.b16 %v2876, %v2874
        %v2919 = vpack.c.b16 %v2877, %v2875
        %v2920 = vpack.c.b16 %v2880, %v2878
        %v2921 = vpack.c.b16 %v2881, %v2879
        %v2922 = vpack.c.b16 %v2884, %v2882
        %v2923 = vpack.c.b16 %v2885, %v2883
        %v2924 = vpack.c.b16 %v2888, %v2886
        %v2925 = vpack.c.b16 %v2889, %v2887
        %v2926 = vpack.c.b16 %v2892, %v2890
        %v2927 = vpack.c.b16 %v2893, %v2891
        %v2928 = vpack.c.b16 %v2896, %v2894
        %v2929 = vpack.c.b16 %v2897, %v2895
        %v2930 = vpack.c.b16 %v2900, %v2898
        %v2931 = vpack.c.b16 %v2901, %v2899
        %v2932 = vpack.c.b16 %v2904, %v2902
        %v2933 = vpack.c.b16 %v2905, %v2903
        %v2934 = vpack.c.b16 %v2908, %v2906
        %v2935 = vpack.c.b16 %v2909, %v2907
        %v2936 = vpack.c.b16 %v2912, %v2910
        %v2937 = vpack.c.b16 %v2913, %v2911
        %v2963 = vsel %vm592, %v2814, 0
        %v2966 = vsel %vm592, %v2816, 0
        %2968 = vmatprep.subr.bf16.mxu0 %v2915
        %2969 = vmatpush1.bf16.msra.mxu0 %v2914
        %2970 = vmatprep.subr.bf16.mxu0 %v2917
        %2971 = vmatpush1.bf16.msra.mxu0 %v2916
        %2972 = vmatprep.subr.bf16.mxu0 %v2919
        %2973 = vmatpush1.bf16.msra.mxu0 %v2918
        %2974 = vmatprep.subr.bf16.mxu0 %v2921
        %2975 = vmatpush1.bf16.msra.mxu0 %v2920
        %2976 = vmatprep.subr.bf16.mxu0 %v2923
        %2977 = vmatpush1.bf16.msra.mxu0 %v2922
        %2978 = vmatprep.subr.bf16.mxu0 %v2925
        %2979 = vmatpush1.bf16.msra.mxu0 %v2924
        %2980 = vmatprep.subr.bf16.mxu0 %v2927
        %2981 = vmatpush1.bf16.msra.mxu0 %v2926
        %2982 = vmatprep.subr.bf16.mxu0 %v2929
        %2983 = vmatpush1.bf16.msra.mxu0 %v2928
        %2984 = vmatprep.subr.bf16.mxu0 %v2931
        %2985 = vmatpush1.bf16.msra.mxu0 %v2930
        %2986 = vmatprep.subr.bf16.mxu0 %v2933
        %2987 = vmatpush1.bf16.msra.mxu0 %v2932
        %2988 = vmatprep.subr.bf16.mxu0 %v2935
        %2989 = vmatpush1.bf16.msra.mxu0 %v2934
        %2990 = vmatprep.subr.bf16.mxu0 %v2937
        %2991 = vmatpush1.bf16.msra.mxu0 %v2936
        %2992 = vmatprep.subr.bf16.mxu0 0
        %2993 = vmatpush1.bf16.msra.mxu0 0
        %2994 = vmatprep.subr.bf16.mxu0 0
        %2995 = vmatpush1.bf16.msra.mxu0 0
        %2996 = vmatprep.subr.bf16.mxu0 0
        %2997 = vmatpush1.bf16.msra.mxu0 0
        %2998 = vmatprep.subr.bf16.mxu0 0
        %2999 = vmatpush1.bf16.msra.mxu0 0
        %3000 = vmatprep.mubr.bf16.mxu0 %v2963
        %3001 = vmatmul.mubr.bf16.gmra.mrb[0].mxu0 %v2813
        %v3002 = vpop.f32.mrb[0].mxu0
        %v3003 = vadd.f32 0.0, %v3002
        %v3004 = vpop.f32.mrb[0].mxu0
        %v3005 = vadd.f32 0.0, %v3004
        %v3006 = vpop.f32.mrb[0].mxu0
        %v3007 = vadd.f32 0.0, %v3006
        %v3008 = vpop.f32.mrb[0].mxu0
        %v3009 = vadd.f32 0.0, %v3008
        %3010 = vmatprep.mubr.bf16.mxu0 %v2966
        %3011 = vmatmul.mubr.bf16.gmra.mrb[0].mxu0 %v2815
        %v3012 = vpop.f32.mrb[0].mxu0
        %v3013 = vadd.f32 0.0, %v3012
        %v3014 = vpop.f32.mrb[0].mxu0
        %v3015 = vadd.f32 0.0, %v3014
        %v3016 = vpop.f32.mrb[0].mxu0
        %v3017 = vadd.f32 0.0, %v3016
        %v3018 = vpop.f32.mrb[0].mxu0
        %v3019 = vadd.f32 0.0, %v3018
        %3020 = vdwg.mxu0
        %v3045 = vunpack.c.l.b16 %v2715
        %v3046 = vunpack.c.h.b16 %v2715
        %v3047 = vunpack.c.l.b16 %v2716
        %v3048 = vunpack.c.h.b16 %v2716
        %v3049 = vunpack.c.l.b16 %v2717
        %v3050 = vunpack.c.h.b16 %v2717
        %v3051 = vunpack.c.l.b16 %v2718
        %v3052 = vunpack.c.h.b16 %v2718
        %v3053 = vunpack.c.l.b16 %v2719
        %v3054 = vunpack.c.h.b16 %v2719
        %v3055 = vunpack.c.l.b16 %v2720
        %v3056 = vunpack.c.h.b16 %v2720
        %v3057 = vunpack.c.l.b16 %v2721
        %v3058 = vunpack.c.h.b16 %v2721
        %v3059 = vunpack.c.l.b16 %v2722
        %v3060 = vunpack.c.h.b16 %v2722
        %v3061 = vunpack.c.l.b16 %v2723
        %v3062 = vunpack.c.h.b16 %v2723
        %v3063 = vunpack.c.l.b16 %v2724
        %v3064 = vunpack.c.h.b16 %v2724
        %v3065 = vunpack.c.l.b16 %v2725
        %v3066 = vunpack.c.h.b16 %v2725
        %v3067 = vunpack.c.l.b16 %v2726
        %v3068 = vunpack.c.h.b16 %v2726
        %v3069 = vunpack.c.l.b16 %v2727
        %v3070 = vunpack.c.h.b16 %v2727
        %v3071 = vunpack.c.l.b16 %v2728
        %v3072 = vunpack.c.h.b16 %v2728
        %v3073 = vunpack.c.l.b16 %v2729
        %v3074 = vunpack.c.h.b16 %v2729
        %v3075 = vunpack.c.l.b16 %v2730
        %v3076 = vunpack.c.h.b16 %v2730
        %v3077 = vunpack.c.l.b16 %v2731
        %v3078 = vunpack.c.h.b16 %v2731
        %v3079 = vunpack.c.l.b16 %v2732
        %v3080 = vunpack.c.h.b16 %v2732
        %v3081 = vunpack.c.l.b16 %v2733
        %v3082 = vunpack.c.h.b16 %v2733
        %v3083 = vunpack.c.l.b16 %v2734
        %v3084 = vunpack.c.h.b16 %v2734
        %v3085 = vunpack.c.l.b16 %v2735
        %v3086 = vunpack.c.h.b16 %v2735
        %v3087 = vunpack.c.l.b16 %v2736
        %v3088 = vunpack.c.h.b16 %v2736
        %v3089 = vunpack.c.l.b16 %v2737
        %v3090 = vunpack.c.h.b16 %v2737
        %v3091 = vunpack.c.l.b16 %v2738
        %v3092 = vunpack.c.h.b16 %v2738
        %v3093 = vpack.c.b16 %v3047, %v3045
        %v3094 = vpack.c.b16 %v3048, %v3046
        %v3095 = vpack.c.b16 %v3051, %v3049
        %v3096 = vpack.c.b16 %v3052, %v3050
        %v3097 = vpack.c.b16 %v3055, %v3053
        %v3098 = vpack.c.b16 %v3056, %v3054
        %v3099 = vpack.c.b16 %v3059, %v3057
        %v3100 = vpack.c.b16 %v3060, %v3058
        %v3101 = vpack.c.b16 %v3063, %v3061
        %v3102 = vpack.c.b16 %v3064, %v3062
        %v3103 = vpack.c.b16 %v3067, %v3065
        %v3104 = vpack.c.b16 %v3068, %v3066
        %v3105 = vpack.c.b16 %v3071, %v3069
        %v3106 = vpack.c.b16 %v3072, %v3070
        %v3107 = vpack.c.b16 %v3075, %v3073
        %v3108 = vpack.c.b16 %v3076, %v3074
        %v3109 = vpack.c.b16 %v3079, %v3077
        %v3110 = vpack.c.b16 %v3080, %v3078
        %v3111 = vpack.c.b16 %v3083, %v3081
        %v3112 = vpack.c.b16 %v3084, %v3082
        %v3113 = vpack.c.b16 %v3087, %v3085
        %v3114 = vpack.c.b16 %v3088, %v3086
        %v3115 = vpack.c.b16 %v3091, %v3089
        %v3116 = vpack.c.b16 %v3092, %v3090
        %v3142 = vsel %vm592, %v2711, 0
        %v3145 = vsel %vm592, %v2713, 0
        %3147 = vmatprep.subr.bf16.mxu0 %v3094
        %3148 = vmatpush1.bf16.msra.mxu0 %v3093
        %3149 = vmatprep.subr.bf16.mxu0 %v3096
        %3150 = vmatpush1.bf16.msra.mxu0 %v3095
        %3151 = vmatprep.subr.bf16.mxu0 %v3098
        %3152 = vmatpush1.bf16.msra.mxu0 %v3097
        %3153 = vmatprep.subr.bf16.mxu0 %v3100
        %3154 = vmatpush1.bf16.msra.mxu0 %v3099
        %3155 = vmatprep.subr.bf16.mxu0 %v3102
        %3156 = vmatpush1.bf16.msra.mxu0 %v3101
        %3157 = vmatprep.subr.bf16.mxu0 %v3104
        %3158 = vmatpush1.bf16.msra.mxu0 %v3103
        %3159 = vmatprep.subr.bf16.mxu0 %v3106
        %3160 = vmatpush1.bf16.msra.mxu0 %v3105
        %3161 = vmatprep.subr.bf16.mxu0 %v3108
        %3162 = vmatpush1.bf16.msra.mxu0 %v3107
        %3163 = vmatprep.subr.bf16.mxu0 %v3110
        %3164 = vmatpush1.bf16.msra.mxu0 %v3109
        %3165 = vmatprep.subr.bf16.mxu0 %v3112
        %3166 = vmatpush1.bf16.msra.mxu0 %v3111
        %3167 = vmatprep.subr.bf16.mxu0 %v3114
        %3168 = vmatpush1.bf16.msra.mxu0 %v3113
        %3169 = vmatprep.subr.bf16.mxu0 %v3116
        %3170 = vmatpush1.bf16.msra.mxu0 %v3115
        %3171 = vmatprep.subr.bf16.mxu0 0
        %3172 = vmatpush1.bf16.msra.mxu0 0
        %3173 = vmatprep.subr.bf16.mxu0 0
        %3174 = vmatpush1.bf16.msra.mxu0 0
        %3175 = vmatprep.subr.bf16.mxu0 0
        %3176 = vmatpush1.bf16.msra.mxu0 0
        %3177 = vmatprep.subr.bf16.mxu0 0
        %3178 = vmatpush1.bf16.msra.mxu0 0
        %3179 = vmatprep.mubr.bf16.mxu0 %v3142
        %3180 = vmatmul.mubr.bf16.gmra.mrb[0].mxu0 %v2710
        %v3181 = vpop.f32.mrb[0].mxu0
        %v3182 = vadd.f32 %v3003, %v3181
        %v3183 = vpop.f32.mrb[0].mxu0
        %v3184 = vadd.f32 %v3005, %v3183
        %v3185 = vpop.f32.mrb[0].mxu0
        %v3186 = vadd.f32 %v3007, %v3185
        %v3187 = vpop.f32.mrb[0].mxu0
        %v3188 = vadd.f32 %v3009, %v3187
        %3189 = vmatprep.mubr.bf16.mxu0 %v3145
        %3190 = vmatmul.mubr.bf16.gmra.mrb[0].mxu0 %v2712
        %v3191 = vpop.f32.mrb[0].mxu0
        %v3192 = vadd.f32 %v3013, %v3191
        %v3193 = vpop.f32.mrb[0].mxu0
        %v3194 = vadd.f32 %v3015, %v3193
        %v3195 = vpop.f32.mrb[0].mxu0
        %v3196 = vadd.f32 %v3017, %v3195
        %v3197 = vpop.f32.mrb[0].mxu0
        %v3198 = vadd.f32 %v3019, %v3197
        %3199 = vdwg.mxu0
        %s3200 = scalar_lea.vmem [#allocation2], 160
        %v3201 = vld [vmem:[%s3200] sm:$0xf]
        %v3202 = vld [vmem:[%s3200 + $0x4] sm:$0xf]
        %v3203 = vld [vmem:[%s3200 + $0x8] sm:$0xf]
        %v3204 = vld [vmem:[%s3200 + $0xc] sm:$0xf]
        %v3209 = vunpack.c.l.b16 %v3201
        %v3210 = vunpack.c.l.b16 %v3202
        %v3211 = vunpack.c.l.b16 %v3203
        %v3212 = vunpack.c.l.b16 %v3204
        %v3213 = vpack.c.b16 %v3210, %v3209
        %v3214 = vpack.c.b16 %v3212, %v3211
        %v3216 = vsel %vm281, %v3213, 0
        %v3219 = vsel %vm281, %v3214, 0
        %3221 = vmatprep.subr.bf16.mxu0 %v2633
        %3222 = vmatpush1.bf16.msra.mxu0 %v2632
        %3223 = vmatprep.subr.bf16.mxu0 %v2635
        %3224 = vmatpush1.bf16.msra.mxu0 %v2634
        %3225 = vmatprep.subr.bf16.mxu0 0
        %3226 = vmatpush1.bf16.msra.mxu0 0
        %3227 = vmatprep.subr.bf16.mxu0 0
        %3228 = vmatpush1.bf16.msra.mxu0 0
        %3229 = vmatprep.subr.bf16.mxu0 0
        %3230 = vmatpush1.bf16.msra.mxu0 0
        %3231 = vmatprep.subr.bf16.mxu0 0
        %3232 = vmatpush1.bf16.msra.mxu0 0
        %3233 = vmatprep.subr.bf16.mxu0 0
        %3234 = vmatpush1.bf16.msra.mxu0 0
        %3235 = vmatprep.subr.bf16.mxu0 0
        %3236 = vmatpush1.bf16.msra.mxu0 0
        %3237 = vmatprep.subr.bf16.mxu0 0
        %3238 = vmatpush1.bf16.msra.mxu0 0
        %3239 = vmatprep.subr.bf16.mxu0 0
        %3240 = vmatpush1.bf16.msra.mxu0 0
        %3241 = vmatprep.subr.bf16.mxu0 0
        %3242 = vmatpush1.bf16.msra.mxu0 0
        %3243 = vmatprep.subr.bf16.mxu0 0
        %3244 = vmatpush1.bf16.msra.mxu0 0
        %3245 = vmatprep.subr.bf16.mxu0 0
        %3246 = vmatpush1.bf16.msra.mxu0 0
        %3247 = vmatprep.subr.bf16.mxu0 0
        %3248 = vmatpush1.bf16.msra.mxu0 0
        %3249 = vmatprep.subr.bf16.mxu0 0
        %3250 = vmatpush1.bf16.msra.mxu0 0
        %3251 = vmatprep.subr.bf16.mxu0 0
        %3252 = vmatpush1.bf16.msra.mxu0 0
        %3253 = vmatprep.mubr.bf16.mxu0 0
        %3254 = vmatmul.mubr.bf16.gmra.mrb[0].mxu0 %v3216
        %v3255 = vpop.f32.mrb[0].mxu0
        %v3256 = vadd.f32 0.0, %v3255
        %v3257 = vpop.f32.mrb[0].mxu0
        %v3258 = vadd.f32 0.0, %v3257
        %v3259 = vpop.f32.mrb[0].mxu0
        %v3260 = vadd.f32 0.0, %v3259
        %v3261 = vpop.f32.mrb[0].mxu0
        %v3262 = vadd.f32 0.0, %v3261
        %3263 = vmatprep.mubr.bf16.mxu0 0
        %3264 = vmatmul.mubr.bf16.gmra.mrb[0].mxu0 %v3219
        %v3265 = vpop.f32.mrb[0].mxu0
        %v3266 = vadd.f32 0.0, %v3265
        %v3267 = vpop.f32.mrb[0].mxu0
        %v3268 = vadd.f32 0.0, %v3267
        %v3269 = vpop.f32.mrb[0].mxu0
        %v3270 = vadd.f32 0.0, %v3269
        %v3271 = vpop.f32.mrb[0].mxu0
        %v3272 = vadd.f32 0.0, %v3271
        %3273 = vdwg.mxu0
        %v3274 = vpack.c.bf16 %v3260, %v3256
        %v3275 = vpack.c.bf16 %v3262, %v3258
        %v3276 = vpack.c.bf16 %v3270, %v3266
        %v3277 = vpack.c.bf16 %v3272, %v3268
        %s3278 = scalar_lea.vmem [#allocation4], 1920
        %v3279 = vld [vmem:[%s3278] sm:$0xff]
        %v3280 = vld [vmem:[%s3278 + $0x8] sm:$0xff]
        %v3281 = vld [vmem:[%s3278 + $0x10] sm:$0xff]
        %v3282 = vld [vmem:[%s3278 + $0x18] sm:$0xff]
        %v3283 = vld [vmem:[%s3278 + $0x20] sm:$0xff]
        %v3284 = vld [vmem:[%s3278 + $0x28] sm:$0xff]
        %v3285 = vld [vmem:[%s3278 + $0x30] sm:$0xff]
        %v3286 = vld [vmem:[%s3278 + $0x38] sm:$0xff]
        %v3287 = vld [vmem:[%s3278 + $0x40] sm:$0xff]
        %v3288 = vld [vmem:[%s3278 + $0x48] sm:$0xff]
        %v3289 = vld [vmem:[%s3278 + $0x50] sm:$0xff]
        %v3290 = vld [vmem:[%s3278 + $0x58] sm:$0xff]
        %v3291 = vld [vmem:[%s3278 + $0x60] sm:$0xff]
        %v3292 = vld [vmem:[%s3278 + $0x68] sm:$0xff]
        %v3293 = vld [vmem:[%s3278 + $0x70] sm:$0xff]
        %v3294 = vld [vmem:[%s3278 + $0x78] sm:$0xff]
        %v3295 = vld [vmem:[%s3278 + $0x80] sm:$0xff]
        %v3296 = vld [vmem:[%s3278 + $0x88] sm:$0xff]
        %v3297 = vld [vmem:[%s3278 + $0x90] sm:$0xff]
        %v3298 = vld [vmem:[%s3278 + $0x98] sm:$0xff]
        %v3299 = vld [vmem:[%s3278 + $0xa0] sm:$0xff]
        %v3300 = vld [vmem:[%s3278 + $0xa8] sm:$0xff]
        %v3301 = vld [vmem:[%s3278 + $0xb0] sm:$0xff]
        %v3302 = vld [vmem:[%s3278 + $0xb8] sm:$0xff]
        %v3327 = vunpack.c.l.b16 %v3279
        %v3328 = vunpack.c.h.b16 %v3279
        %v3329 = vunpack.c.l.b16 %v3280
        %v3330 = vunpack.c.h.b16 %v3280
        %v3331 = vunpack.c.l.b16 %v3281
        %v3332 = vunpack.c.h.b16 %v3281
        %v3333 = vunpack.c.l.b16 %v3282
        %v3334 = vunpack.c.h.b16 %v3282
        %v3335 = vunpack.c.l.b16 %v3283
        %v3336 = vunpack.c.h.b16 %v3283
        %v3337 = vunpack.c.l.b16 %v3284
        %v3338 = vunpack.c.h.b16 %v3284
        %v3339 = vunpack.c.l.b16 %v3285
        %v3340 = vunpack.c.h.b16 %v3285
        %v3341 = vunpack.c.l.b16 %v3286
        %v3342 = vunpack.c.h.b16 %v3286
        %v3343 = vunpack.c.l.b16 %v3287
        %v3344 = vunpack.c.h.b16 %v3287
        %v3345 = vunpack.c.l.b16 %v3288
        %v3346 = vunpack.c.h.b16 %v3288
        %v3347 = vunpack.c.l.b16 %v3289
        %v3348 = vunpack.c.h.b16 %v3289
        %v3349 = vunpack.c.l.b16 %v3290
        %v3350 = vunpack.c.h.b16 %v3290
        %v3351 = vunpack.c.l.b16 %v3291
        %v3352 = vunpack.c.h.b16 %v3291
        %v3353 = vunpack.c.l.b16 %v3292
        %v3354 = vunpack.c.h.b16 %v3292
        %v3355 = vunpack.c.l.b16 %v3293
        %v3356 = vunpack.c.h.b16 %v3293
        %v3357 = vunpack.c.l.b16 %v3294
        %v3358 = vunpack.c.h.b16 %v3294
        %v3359 = vunpack.c.l.b16 %v3295
        %v3360 = vunpack.c.h.b16 %v3295
        %v3361 = vunpack.c.l.b16 %v3296
        %v3362 = vunpack.c.h.b16 %v3296
        %v3363 = vunpack.c.l.b16 %v3297
        %v3364 = vunpack.c.h.b16 %v3297
        %v3365 = vunpack.c.l.b16 %v3298
        %v3366 = vunpack.c.h.b16 %v3298
        %v3367 = vunpack.c.l.b16 %v3299
        %v3368 = vunpack.c.h.b16 %v3299
        %v3369 = vunpack.c.l.b16 %v3300
        %v3370 = vunpack.c.h.b16 %v3300
        %v3371 = vunpack.c.l.b16 %v3301
        %v3372 = vunpack.c.h.b16 %v3301
        %v3373 = vunpack.c.l.b16 %v3302
        %v3374 = vunpack.c.h.b16 %v3302
        %v3375 = vpack.c.b16 %v3329, %v3327
        %v3376 = vpack.c.b16 %v3330, %v3328
        %v3377 = vpack.c.b16 %v3333, %v3331
        %v3378 = vpack.c.b16 %v3334, %v3332
        %v3379 = vpack.c.b16 %v3337, %v3335
        %v3380 = vpack.c.b16 %v3338, %v3336
        %v3381 = vpack.c.b16 %v3341, %v3339
        %v3382 = vpack.c.b16 %v3342, %v3340
        %v3383 = vpack.c.b16 %v3345, %v3343
        %v3384 = vpack.c.b16 %v3346, %v3344
        %v3385 = vpack.c.b16 %v3349, %v3347
        %v3386 = vpack.c.b16 %v3350, %v3348
        %v3387 = vpack.c.b16 %v3353, %v3351
        %v3388 = vpack.c.b16 %v3354, %v3352
        %v3389 = vpack.c.b16 %v3357, %v3355
        %v3390 = vpack.c.b16 %v3358, %v3356
        %v3391 = vpack.c.b16 %v3361, %v3359
        %v3392 = vpack.c.b16 %v3362, %v3360
        %v3393 = vpack.c.b16 %v3365, %v3363
        %v3394 = vpack.c.b16 %v3366, %v3364
        %v3395 = vpack.c.b16 %v3369, %v3367
        %v3396 = vpack.c.b16 %v3370, %v3368
        %v3397 = vpack.c.b16 %v3373, %v3371
        %v3398 = vpack.c.b16 %v3374, %v3372
        %v3424 = vsel %vm592, %v3275, 0
        %v3427 = vsel %vm592, %v3277, 0
        %3429 = vmatprep.subr.bf16.mxu0 %v3376
        %3430 = vmatpush1.bf16.msra.mxu0 %v3375
        %3431 = vmatprep.subr.bf16.mxu0 %v3378
        %3432 = vmatpush1.bf16.msra.mxu0 %v3377
        %3433 = vmatprep.subr.bf16.mxu0 %v3380
        %3434 = vmatpush1.bf16.msra.mxu0 %v3379
        %3435 = vmatprep.subr.bf16.mxu0 %v3382
        %3436 = vmatpush1.bf16.msra.mxu0 %v3381
        %3437 = vmatprep.subr.bf16.mxu0 %v3384
        %3438 = vmatpush1.bf16.msra.mxu0 %v3383
        %3439 = vmatprep.subr.bf16.mxu0 %v3386
        %3440 = vmatpush1.bf16.msra.mxu0 %v3385
        %3441 = vmatprep.subr.bf16.mxu0 %v3388
        %3442 = vmatpush1.bf16.msra.mxu0 %v3387
        %3443 = vmatprep.subr.bf16.mxu0 %v3390
        %3444 = vmatpush1.bf16.msra.mxu0 %v3389
        %3445 = vmatprep.subr.bf16.mxu0 %v3392
        %3446 = vmatpush1.bf16.msra.mxu0 %v3391
        %3447 = vmatprep.subr.bf16.mxu0 %v3394
        %3448 = vmatpush1.bf16.msra.mxu0 %v3393
        %3449 = vmatprep.subr.bf16.mxu0 %v3396
        %3450 = vmatpush1.bf16.msra.mxu0 %v3395
        %3451 = vmatprep.subr.bf16.mxu0 %v3398
        %3452 = vmatpush1.bf16.msra.mxu0 %v3397
        %3453 = vmatprep.subr.bf16.mxu0 0
        %3454 = vmatpush1.bf16.msra.mxu0 0
        %3455 = vmatprep.subr.bf16.mxu0 0
        %3456 = vmatpush1.bf16.msra.mxu0 0
        %3457 = vmatprep.subr.bf16.mxu0 0
        %3458 = vmatpush1.bf16.msra.mxu0 0
        %3459 = vmatprep.subr.bf16.mxu0 0
        %3460 = vmatpush1.bf16.msra.mxu0 0
        %3461 = vmatprep.mubr.bf16.mxu0 %v3424
        %3462 = vmatmul.mubr.bf16.gmra.mrb[0].mxu0 %v3274
        %v3463 = vpop.f32.mrb[0].mxu0
        %v3464 = vadd.f32 0.0, %v3463
        %v3465 = vpop.f32.mrb[0].mxu0
        %v3466 = vadd.f32 0.0, %v3465
        %v3467 = vpop.f32.mrb[0].mxu0
        %v3468 = vadd.f32 0.0, %v3467
        %v3469 = vpop.f32.mrb[0].mxu0
        %v3470 = vadd.f32 0.0, %v3469
        %3471 = vmatprep.mubr.bf16.mxu0 %v3427
        %3472 = vmatmul.mubr.bf16.gmra.mrb[0].mxu0 %v3276
        %v3473 = vpop.f32.mrb[0].mxu0
        %v3474 = vadd.f32 0.0, %v3473
        %v3475 = vpop.f32.mrb[0].mxu0
        %v3476 = vadd.f32 0.0, %v3475
        %v3477 = vpop.f32.mrb[0].mxu0
        %v3478 = vadd.f32 0.0, %v3477
        %v3479 = vpop.f32.mrb[0].mxu0
        %v3480 = vadd.f32 0.0, %v3479
        %3481 = vdwg.mxu0
        %v3482 = vadd.f32 %v3182, %v3464
        %v3483 = vadd.f32 %v3184, %v3466
        %v3484 = vadd.f32 %v3186, %v3468
        %v3485 = vadd.f32 %v3188, %v3470
        %v3486 = vadd.f32 %v3192, %v3474
        %v3487 = vadd.f32 %v3194, %v3476
        %v3488 = vadd.f32 %v3196, %v3478
        %v3489 = vadd.f32 %v3198, %v3480
        %s3490 = scalar_lea.vmem [#allocation2], 176
        %v3491 = vld [vmem:[%s3490] sm:$0xf]
        %v3492 = vld [vmem:[%s3490 + $0x4] sm:$0xf]
        %v3493 = vld [vmem:[%s3490 + $0x8] sm:$0xf]
        %v3494 = vld [vmem:[%s3490 + $0xc] sm:$0xf]
        %v3499 = vunpack.c.l.b16 %v3491
        %v3500 = vunpack.c.l.b16 %v3492
        %v3501 = vunpack.c.l.b16 %v3493
        %v3502 = vunpack.c.l.b16 %v3494
        %v3503 = vpack.c.b16 %v3500, %v3499
        %v3504 = vpack.c.b16 %v3502, %v3501
        %v3506 = vsel %vm281, %v3503, 0
        %v3509 = vsel %vm281, %v3504, 0
        %3511 = vmatprep.subr.bf16.mxu0 %v2633
        %3512 = vmatpush1.bf16.msra.mxu0 %v2632
        %3513 = vmatprep.subr.bf16.mxu0 %v2635
        %3514 = vmatpush1.bf16.msra.mxu0 %v2634
        %3515 = vmatprep.subr.bf16.mxu0 0
        %3516 = vmatpush1.bf16.msra.mxu0 0
        %3517 = vmatprep.subr.bf16.mxu0 0
        %3518 = vmatpush1.bf16.msra.mxu0 0
        %3519 = vmatprep.subr.bf16.mxu0 0
        %3520 = vmatpush1.bf16.msra.mxu0 0
        %3521 = vmatprep.subr.bf16.mxu0 0
        %3522 = vmatpush1.bf16.msra.mxu0 0
        %3523 = vmatprep.subr.bf16.mxu0 0
        %3524 = vmatpush1.bf16.msra.mxu0 0
        %3525 = vmatprep.subr.bf16.mxu0 0
        %3526 = vmatpush1.bf16.msra.mxu0 0
        %3527 = vmatprep.subr.bf16.mxu0 0
        %3528 = vmatpush1.bf16.msra.mxu0 0
        %3529 = vmatprep.subr.bf16.mxu0 0
        %3530 = vmatpush1.bf16.msra.mxu0 0
        %3531 = vmatprep.subr.bf16.mxu0 0
        %3532 = vmatpush1.bf16.msra.mxu0 0
        %3533 = vmatprep.subr.bf16.mxu0 0
        %3534 = vmatpush1.bf16.msra.mxu0 0
        %3535 = vmatprep.subr.bf16.mxu0 0
        %3536 = vmatpush1.bf16.msra.mxu0 0
        %3537 = vmatprep.subr.bf16.mxu0 0
        %3538 = vmatpush1.bf16.msra.mxu0 0
        %3539 = vmatprep.subr.bf16.mxu0 0
        %3540 = vmatpush1.bf16.msra.mxu0 0
        %3541 = vmatprep.subr.bf16.mxu0 0
        %3542 = vmatpush1.bf16.msra.mxu0 0
        %3543 = vmatprep.mubr.bf16.mxu0 0
        %3544 = vmatmul.mubr.bf16.gmra.mrb[0].mxu0 %v3506
        %v3545 = vpop.f32.mrb[0].mxu0
        %v3546 = vadd.f32 0.0, %v3545
        %v3547 = vpop.f32.mrb[0].mxu0
        %v3548 = vadd.f32 0.0, %v3547
        %v3549 = vpop.f32.mrb[0].mxu0
        %v3550 = vadd.f32 0.0, %v3549
        %v3551 = vpop.f32.mrb[0].mxu0
        %v3552 = vadd.f32 0.0, %v3551
        %3553 = vmatprep.mubr.bf16.mxu0 0
        %3554 = vmatmul.mubr.bf16.gmra.mrb[0].mxu0 %v3509
        %v3555 = vpop.f32.mrb[0].mxu0
        %v3556 = vadd.f32 0.0, %v3555
        %v3557 = vpop.f32.mrb[0].mxu0
        %v3558 = vadd.f32 0.0, %v3557
        %v3559 = vpop.f32.mrb[0].mxu0
        %v3560 = vadd.f32 0.0, %v3559
        %v3561 = vpop.f32.mrb[0].mxu0
        %v3562 = vadd.f32 0.0, %v3561
        %3563 = vdwg.mxu0
        %v3564 = vpack.c.bf16 %v3550, %v3546
        %v3565 = vpack.c.bf16 %v3552, %v3548
        %v3566 = vpack.c.bf16 %v3560, %v3556
        %v3567 = vpack.c.bf16 %v3562, %v3558
        %s3568 = scalar_lea.vmem [#allocation4], 2112
        %v3569 = vld [vmem:[%s3568] sm:$0xff]
        %v3570 = vld [vmem:[%s3568 + $0x8] sm:$0xff]
        %v3571 = vld [vmem:[%s3568 + $0x10] sm:$0xff]
        %v3572 = vld [vmem:[%s3568 + $0x18] sm:$0xff]
        %v3573 = vld [vmem:[%s3568 + $0x20] sm:$0xff]
        %v3574 = vld [vmem:[%s3568 + $0x28] sm:$0xff]
        %v3575 = vld [vmem:[%s3568 + $0x30] sm:$0xff]
        %v3576 = vld [vmem:[%s3568 + $0x38] sm:$0xff]
        %v3577 = vld [vmem:[%s3568 + $0x40] sm:$0xff]
        %v3578 = vld [vmem:[%s3568 + $0x48] sm:$0xff]
        %v3579 = vld [vmem:[%s3568 + $0x50] sm:$0xff]
        %v3580 = vld [vmem:[%s3568 + $0x58] sm:$0xff]
        %v3581 = vld [vmem:[%s3568 + $0x60] sm:$0xff]
        %v3582 = vld [vmem:[%s3568 + $0x68] sm:$0xff]
        %v3583 = vld [vmem:[%s3568 + $0x70] sm:$0xff]
        %v3584 = vld [vmem:[%s3568 + $0x78] sm:$0xff]
        %v3585 = vld [vmem:[%s3568 + $0x80] sm:$0xff]
        %v3586 = vld [vmem:[%s3568 + $0x88] sm:$0xff]
        %v3587 = vld [vmem:[%s3568 + $0x90] sm:$0xff]
        %v3588 = vld [vmem:[%s3568 + $0x98] sm:$0xff]
        %v3589 = vld [vmem:[%s3568 + $0xa0] sm:$0xff]
        %v3590 = vld [vmem:[%s3568 + $0xa8] sm:$0xff]
        %v3591 = vld [vmem:[%s3568 + $0xb0] sm:$0xff]
        %v3592 = vld [vmem:[%s3568 + $0xb8] sm:$0xff]
        %v3617 = vunpack.c.l.b16 %v3569
        %v3618 = vunpack.c.h.b16 %v3569
        %v3619 = vunpack.c.l.b16 %v3570
        %v3620 = vunpack.c.h.b16 %v3570
        %v3621 = vunpack.c.l.b16 %v3571
        %v3622 = vunpack.c.h.b16 %v3571
        %v3623 = vunpack.c.l.b16 %v3572
        %v3624 = vunpack.c.h.b16 %v3572
        %v3625 = vunpack.c.l.b16 %v3573
        %v3626 = vunpack.c.h.b16 %v3573
        %v3627 = vunpack.c.l.b16 %v3574
        %v3628 = vunpack.c.h.b16 %v3574
        %v3629 = vunpack.c.l.b16 %v3575
        %v3630 = vunpack.c.h.b16 %v3575
        %v3631 = vunpack.c.l.b16 %v3576
        %v3632 = vunpack.c.h.b16 %v3576
        %v3633 = vunpack.c.l.b16 %v3577
        %v3634 = vunpack.c.h.b16 %v3577
        %v3635 = vunpack.c.l.b16 %v3578
        %v3636 = vunpack.c.h.b16 %v3578
        %v3637 = vunpack.c.l.b16 %v3579
        %v3638 = vunpack.c.h.b16 %v3579
        %v3639 = vunpack.c.l.b16 %v3580
        %v3640 = vunpack.c.h.b16 %v3580
        %v3641 = vunpack.c.l.b16 %v3581
        %v3642 = vunpack.c.h.b16 %v3581
        %v3643 = vunpack.c.l.b16 %v3582
        %v3644 = vunpack.c.h.b16 %v3582
        %v3645 = vunpack.c.l.b16 %v3583
        %v3646 = vunpack.c.h.b16 %v3583
        %v3647 = vunpack.c.l.b16 %v3584
        %v3648 = vunpack.c.h.b16 %v3584
        %v3649 = vunpack.c.l.b16 %v3585
        %v3650 = vunpack.c.h.b16 %v3585
        %v3651 = vunpack.c.l.b16 %v3586
        %v3652 = vunpack.c.h.b16 %v3586
        %v3653 = vunpack.c.l.b16 %v3587
        %v3654 = vunpack.c.h.b16 %v3587
        %v3655 = vunpack.c.l.b16 %v3588
        %v3656 = vunpack.c.h.b16 %v3588
        %v3657 = vunpack.c.l.b16 %v3589
        %v3658 = vunpack.c.h.b16 %v3589
        %v3659 = vunpack.c.l.b16 %v3590
        %v3660 = vunpack.c.h.b16 %v3590
        %v3661 = vunpack.c.l.b16 %v3591
        %v3662 = vunpack.c.h.b16 %v3591
        %v3663 = vunpack.c.l.b16 %v3592
        %v3664 = vunpack.c.h.b16 %v3592
        %v3665 = vpack.c.b16 %v3619, %v3617
        %v3666 = vpack.c.b16 %v3620, %v3618
        %v3667 = vpack.c.b16 %v3623, %v3621
        %v3668 = vpack.c.b16 %v3624, %v3622
        %v3669 = vpack.c.b16 %v3627, %v3625
        %v3670 = vpack.c.b16 %v3628, %v3626
        %v3671 = vpack.c.b16 %v3631, %v3629
        %v3672 = vpack.c.b16 %v3632, %v3630
        %v3673 = vpack.c.b16 %v3635, %v3633
        %v3674 = vpack.c.b16 %v3636, %v3634
        %v3675 = vpack.c.b16 %v3639, %v3637
        %v3676 = vpack.c.b16 %v3640, %v3638
        %v3677 = vpack.c.b16 %v3643, %v3641
        %v3678 = vpack.c.b16 %v3644, %v3642
        %v3679 = vpack.c.b16 %v3647, %v3645
        %v3680 = vpack.c.b16 %v3648, %v3646
        %v3681 = vpack.c.b16 %v3651, %v3649
        %v3682 = vpack.c.b16 %v3652, %v3650
        %v3683 = vpack.c.b16 %v3655, %v3653
        %v3684 = vpack.c.b16 %v3656, %v3654
        %v3685 = vpack.c.b16 %v3659, %v3657
        %v3686 = vpack.c.b16 %v3660, %v3658
        %v3687 = vpack.c.b16 %v3663, %v3661
        %v3688 = vpack.c.b16 %v3664, %v3662
        %v3714 = vsel %vm592, %v3565, 0
        %v3717 = vsel %vm592, %v3567, 0
        %3719 = vmatprep.subr.bf16.mxu0 %v3666
        %3720 = vmatpush1.bf16.msra.mxu0 %v3665
        %3721 = vmatprep.subr.bf16.mxu0 %v3668
        %3722 = vmatpush1.bf16.msra.mxu0 %v3667
        %3723 = vmatprep.subr.bf16.mxu0 %v3670
        %3724 = vmatpush1.bf16.msra.mxu0 %v3669
        %3725 = vmatprep.subr.bf16.mxu0 %v3672
        %3726 = vmatpush1.bf16.msra.mxu0 %v3671
        %3727 = vmatprep.subr.bf16.mxu0 %v3674
        %3728 = vmatpush1.bf16.msra.mxu0 %v3673
        %3729 = vmatprep.subr.bf16.mxu0 %v3676
        %3730 = vmatpush1.bf16.msra.mxu0 %v3675
        %3731 = vmatprep.subr.bf16.mxu0 %v3678
        %3732 = vmatpush1.bf16.msra.mxu0 %v3677
        %3733 = vmatprep.subr.bf16.mxu0 %v3680
        %3734 = vmatpush1.bf16.msra.mxu0 %v3679
        %3735 = vmatprep.subr.bf16.mxu0 %v3682
        %3736 = vmatpush1.bf16.msra.mxu0 %v3681
        %3737 = vmatprep.subr.bf16.mxu0 %v3684
        %3738 = vmatpush1.bf16.msra.mxu0 %v3683
        %3739 = vmatprep.subr.bf16.mxu0 %v3686
        %3740 = vmatpush1.bf16.msra.mxu0 %v3685
        %3741 = vmatprep.subr.bf16.mxu0 %v3688
        %3742 = vmatpush1.bf16.msra.mxu0 %v3687
        %3743 = vmatprep.subr.bf16.mxu0 0
        %3744 = vmatpush1.bf16.msra.mxu0 0
        %3745 = vmatprep.subr.bf16.mxu0 0
        %3746 = vmatpush1.bf16.msra.mxu0 0
        %3747 = vmatprep.subr.bf16.mxu0 0
        %3748 = vmatpush1.bf16.msra.mxu0 0
        %3749 = vmatprep.subr.bf16.mxu0 0
        %3750 = vmatpush1.bf16.msra.mxu0 0
        %3751 = vmatprep.mubr.bf16.mxu0 %v3714
        %3752 = vmatmul.mubr.bf16.gmra.mrb[0].mxu0 %v3564
        %v3753 = vpop.f32.mrb[0].mxu0
        %v3754 = vadd.f32 0.0, %v3753
        %v3755 = vpop.f32.mrb[0].mxu0
        %v3756 = vadd.f32 0.0, %v3755
        %v3757 = vpop.f32.mrb[0].mxu0
        %v3758 = vadd.f32 0.0, %v3757
        %v3759 = vpop.f32.mrb[0].mxu0
        %v3760 = vadd.f32 0.0, %v3759
        %3761 = vmatprep.mubr.bf16.mxu0 %v3717
        %3762 = vmatmul.mubr.bf16.gmra.mrb[0].mxu0 %v3566
        %v3763 = vpop.f32.mrb[0].mxu0
        %v3764 = vadd.f32 0.0, %v3763
        %v3765 = vpop.f32.mrb[0].mxu0
        %v3766 = vadd.f32 0.0, %v3765
        %v3767 = vpop.f32.mrb[0].mxu0
        %v3768 = vadd.f32 0.0, %v3767
        %v3769 = vpop.f32.mrb[0].mxu0
        %v3770 = vadd.f32 0.0, %v3769
        %3771 = vdwg.mxu0
        %v3772 = vadd.f32 %v3482, %v3754
        %v3773 = vadd.f32 %v3483, %v3756
        %v3774 = vadd.f32 %v3484, %v3758
        %v3775 = vadd.f32 %v3485, %v3760
        %v3776 = vadd.f32 %v3486, %v3764
        %v3777 = vadd.f32 %v3487, %v3766
        %v3778 = vadd.f32 %v3488, %v3768
        %v3779 = vadd.f32 %v3489, %v3770
        %s3780 = scalar_lea.vmem [#allocation6], 4
        %v3781 = vld [vmem:[%s3780] sm:$0x3]
        %v3783 = vlaneseq
        %v3784 = vshrl.u32 %v3783, 7
        %v3785 = vsub.s32 0, %v3784
        %v3786 = vrot.slane %v3781, %v3785
        %v3787 = vlaneseq
        %v3788 = vshrl.u32 %v3787, 7
        %v3789 = vsub.s32 1, %v3788
        %v3790 = vrot.slane %v3781, %v3789
        %v3793 = vadd.f32 %v3772, %v3786
        %v3794 = vadd.f32 %v3773, %v3790
        %v3795 = vadd.f32 %v3774, %v3786
        %v3796 = vadd.f32 %v3775, %v3790
        %v3797 = vadd.f32 %v3776, %v3786
        %v3798 = vadd.f32 %v3777, %v3790
        %v3799 = vadd.f32 %v3778, %v3786
        %v3800 = vadd.f32 %v3779, %v3790
        %v3801 = vmul.f32 %v3793, 0.1
        %v3802 = vmul.f32 %v3794, 0.1
        %v3803 = vmul.f32 %v3795, 0.1
        %v3804 = vmul.f32 %v3796, 0.1
        %v3805 = vmul.f32 %v3797, 0.1
        %v3806 = vmul.f32 %v3798, 0.1
        %v3807 = vmul.f32 %v3799, 0.1
        %v3808 = vmul.f32 %v3800, 0.1
        %v3809 = vmax.f32 %v3793, %v3801
        %v3810 = vmax.f32 %v3794, %v3802
        %v3811 = vmax.f32 %v3795, %v3803
        %v3812 = vmax.f32 %v3796, %v3804
        %v3813 = vmax.f32 %v3797, %v3805
        %v3814 = vmax.f32 %v3798, %v3806
        %v3815 = vmax.f32 %v3799, %v3807
        %v3816 = vmax.f32 %v3800, %v3808
        %v3817 = vpack.c.bf16 %v3811, %v3809
        %v3818 = vpack.c.bf16 %v3812, %v3810
        %v3819 = vpack.c.bf16 %v3815, %v3813
        %v3820 = vpack.c.bf16 %v3816, %v3814
        %s3821 = scalar_lea.vmem [#allocation2], 192
        %v3822 = vld [vmem:[%s3821] sm:$0xf]
        %v3823 = vld [vmem:[%s3821 + $0x4] sm:$0xf]
        %v3824 = vld [vmem:[%s3821 + $0x8] sm:$0xf]
        %v3825 = vld [vmem:[%s3821 + $0xc] sm:$0xf]
        %v3830 = vunpack.c.l.b16 %v3822
        %v3831 = vunpack.c.l.b16 %v3823
        %v3832 = vunpack.c.l.b16 %v3824
        %v3833 = vunpack.c.l.b16 %v3825
        %v3834 = vpack.c.b16 %v3831, %v3830
        %v3835 = vpack.c.b16 %v3833, %v3832
        %v3837 = vsel %vm281, %v3834, 0
        %v3840 = vsel %vm281, %v3835, 0
        %3842 = vmatprep.subr.bf16.mxu0 %v3818
        %3843 = vmatpush1.bf16.msra.mxu0 %v3817
        %3844 = vmatprep.subr.bf16.mxu0 %v3820
        %3845 = vmatpush1.bf16.msra.mxu0 %v3819
        %3846 = vmatprep.subr.bf16.mxu0 0
        %3847 = vmatpush1.bf16.msra.mxu0 0
        %3848 = vmatprep.subr.bf16.mxu0 0
        %3849 = vmatpush1.bf16.msra.mxu0 0
        %3850 = vmatprep.subr.bf16.mxu0 0
        %3851 = vmatpush1.bf16.msra.mxu0 0
        %3852 = vmatprep.subr.bf16.mxu0 0
        %3853 = vmatpush1.bf16.msra.mxu0 0
        %3854 = vmatprep.subr.bf16.mxu0 0
        %3855 = vmatpush1.bf16.msra.mxu0 0
        %3856 = vmatprep.subr.bf16.mxu0 0
        %3857 = vmatpush1.bf16.msra.mxu0 0
        %3858 = vmatprep.subr.bf16.mxu0 0
        %3859 = vmatpush1.bf16.msra.mxu0 0
        %3860 = vmatprep.subr.bf16.mxu0 0
        %3861 = vmatpush1.bf16.msra.mxu0 0
        %3862 = vmatprep.subr.bf16.mxu0 0
        %3863 = vmatpush1.bf16.msra.mxu0 0
        %3864 = vmatprep.subr.bf16.mxu0 0
        %3865 = vmatpush1.bf16.msra.mxu0 0
        %3866 = vmatprep.subr.bf16.mxu0 0
        %3867 = vmatpush1.bf16.msra.mxu0 0
        %3868 = vmatprep.subr.bf16.mxu0 0
        %3869 = vmatpush1.bf16.msra.mxu0 0
        %3870 = vmatprep.subr.bf16.mxu0 0
        %3871 = vmatpush1.bf16.msra.mxu0 0
        %3872 = vmatprep.subr.bf16.mxu0 0
        %3873 = vmatpush1.bf16.msra.mxu0 0
        %3874 = vmatprep.mubr.bf16.mxu0 0
        %3875 = vmatmul.mubr.bf16.gmra.mrb[0].mxu0 %v3837
        %v3876 = vpop.f32.mrb[0].mxu0
        %v3877 = vadd.f32 0.0, %v3876
        %v3878 = vpop.f32.mrb[0].mxu0
        %v3879 = vadd.f32 0.0, %v3878
        %v3880 = vpop.f32.mrb[0].mxu0
        %v3881 = vadd.f32 0.0, %v3880
        %v3882 = vpop.f32.mrb[0].mxu0
        %v3883 = vadd.f32 0.0, %v3882
        %3884 = vmatprep.mubr.bf16.mxu0 0
        %3885 = vmatmul.mubr.bf16.gmra.mrb[0].mxu0 %v3840
        %v3886 = vpop.f32.mrb[0].mxu0
        %v3887 = vadd.f32 0.0, %v3886
        %v3888 = vpop.f32.mrb[0].mxu0
        %v3889 = vadd.f32 0.0, %v3888
        %v3890 = vpop.f32.mrb[0].mxu0
        %v3891 = vadd.f32 0.0, %v3890
        %v3892 = vpop.f32.mrb[0].mxu0
        %v3893 = vadd.f32 0.0, %v3892
        %3894 = vdwg.mxu0
        %v3895 = vpack.c.bf16 %v3881, %v3877
        %v3896 = vpack.c.bf16 %v3883, %v3879
        %v3897 = vpack.c.bf16 %v3891, %v3887
        %v3898 = vpack.c.bf16 %v3893, %v3889
        %s3899 = scalar_lea.vmem [#allocation4], 2304
        %v3900 = vld [vmem:[%s3899] sm:$0xff]
        %v3901 = vld [vmem:[%s3899 + $0x8] sm:$0xff]
        %v3902 = vld [vmem:[%s3899 + $0x10] sm:$0xff]
        %v3903 = vld [vmem:[%s3899 + $0x18] sm:$0xff]
        %v3904 = vld [vmem:[%s3899 + $0x20] sm:$0xff]
        %v3905 = vld [vmem:[%s3899 + $0x28] sm:$0xff]
        %v3906 = vld [vmem:[%s3899 + $0x30] sm:$0xff]
        %v3907 = vld [vmem:[%s3899 + $0x38] sm:$0xff]
        %v3908 = vld [vmem:[%s3899 + $0x40] sm:$0xff]
        %v3909 = vld [vmem:[%s3899 + $0x48] sm:$0xff]
        %v3910 = vld [vmem:[%s3899 + $0x50] sm:$0xff]
        %v3911 = vld [vmem:[%s3899 + $0x58] sm:$0xff]
        %v3912 = vld [vmem:[%s3899 + $0x60] sm:$0xff]
        %v3913 = vld [vmem:[%s3899 + $0x68] sm:$0xff]
        %v3914 = vld [vmem:[%s3899 + $0x70] sm:$0xff]
        %v3915 = vld [vmem:[%s3899 + $0x78] sm:$0xff]
        %v3916 = vld [vmem:[%s3899 + $0x80] sm:$0xff]
        %v3917 = vld [vmem:[%s3899 + $0x88] sm:$0xff]
        %v3918 = vld [vmem:[%s3899 + $0x90] sm:$0xff]
        %v3919 = vld [vmem:[%s3899 + $0x98] sm:$0xff]
        %v3920 = vld [vmem:[%s3899 + $0xa0] sm:$0xff]
        %v3921 = vld [vmem:[%s3899 + $0xa8] sm:$0xff]
        %v3922 = vld [vmem:[%s3899 + $0xb0] sm:$0xff]
        %v3923 = vld [vmem:[%s3899 + $0xb8] sm:$0xff]
        %s3924 = scalar_lea.vmem [#allocation2], 208
        %v3925 = vld [vmem:[%s3924] sm:$0xf]
        %v3926 = vld [vmem:[%s3924 + $0x4] sm:$0xf]
        %v3927 = vld [vmem:[%s3924 + $0x8] sm:$0xf]
        %v3928 = vld [vmem:[%s3924 + $0xc] sm:$0xf]
        %v3933 = vunpack.c.l.b16 %v3925
        %v3934 = vunpack.c.l.b16 %v3926
        %v3935 = vunpack.c.l.b16 %v3927
        %v3936 = vunpack.c.l.b16 %v3928
        %v3937 = vpack.c.b16 %v3934, %v3933
        %v3938 = vpack.c.b16 %v3936, %v3935
        %v3940 = vsel %vm281, %v3937, 0
        %v3943 = vsel %vm281, %v3938, 0
        %3945 = vmatprep.subr.bf16.mxu0 %v3818
        %3946 = vmatpush1.bf16.msra.mxu0 %v3817
        %3947 = vmatprep.subr.bf16.mxu0 %v3820
        %3948 = vmatpush1.bf16.msra.mxu0 %v3819
        %3949 = vmatprep.subr.bf16.mxu0 0
        %3950 = vmatpush1.bf16.msra.mxu0 0
        %3951 = vmatprep.subr.bf16.mxu0 0
        %3952 = vmatpush1.bf16.msra.mxu0 0
        %3953 = vmatprep.subr.bf16.mxu0 0
        %3954 = vmatpush1.bf16.msra.mxu0 0
        %3955 = vmatprep.subr.bf16.mxu0 0
        %3956 = vmatpush1.bf16.msra.mxu0 0
        %3957 = vmatprep.subr.bf16.mxu0 0
        %3958 = vmatpush1.bf16.msra.mxu0 0
        %3959 = vmatprep.subr.bf16.mxu0 0
        %3960 = vmatpush1.bf16.msra.mxu0 0
        %3961 = vmatprep.subr.bf16.mxu0 0
        %3962 = vmatpush1.bf16.msra.mxu0 0
        %3963 = vmatprep.subr.bf16.mxu0 0
        %3964 = vmatpush1.bf16.msra.mxu0 0
        %3965 = vmatprep.subr.bf16.mxu0 0
        %3966 = vmatpush1.bf16.msra.mxu0 0
        %3967 = vmatprep.subr.bf16.mxu0 0
        %3968 = vmatpush1.bf16.msra.mxu0 0
        %3969 = vmatprep.subr.bf16.mxu0 0
        %3970 = vmatpush1.bf16.msra.mxu0 0
        %3971 = vmatprep.subr.bf16.mxu0 0
        %3972 = vmatpush1.bf16.msra.mxu0 0
        %3973 = vmatprep.subr.bf16.mxu0 0
        %3974 = vmatpush1.bf16.msra.mxu0 0
        %3975 = vmatprep.subr.bf16.mxu0 0
        %3976 = vmatpush1.bf16.msra.mxu0 0
        %3977 = vmatprep.mubr.bf16.mxu0 0
        %3978 = vmatmul.mubr.bf16.gmra.mrb[0].mxu0 %v3940
        %v3979 = vpop.f32.mrb[0].mxu0
        %v3980 = vadd.f32 0.0, %v3979
        %v3981 = vpop.f32.mrb[0].mxu0
        %v3982 = vadd.f32 0.0, %v3981
        %v3983 = vpop.f32.mrb[0].mxu0
        %v3984 = vadd.f32 0.0, %v3983
        %v3985 = vpop.f32.mrb[0].mxu0
        %v3986 = vadd.f32 0.0, %v3985
        %3987 = vmatprep.mubr.bf16.mxu0 0
        %3988 = vmatmul.mubr.bf16.gmra.mrb[0].mxu0 %v3943
        %v3989 = vpop.f32.mrb[0].mxu0
        %v3990 = vadd.f32 0.0, %v3989
        %v3991 = vpop.f32.mrb[0].mxu0
        %v3992 = vadd.f32 0.0, %v3991
        %v3993 = vpop.f32.mrb[0].mxu0
        %v3994 = vadd.f32 0.0, %v3993
        %v3995 = vpop.f32.mrb[0].mxu0
        %v3996 = vadd.f32 0.0, %v3995
        %3997 = vdwg.mxu0
        %v3998 = vpack.c.bf16 %v3984, %v3980
        %v3999 = vpack.c.bf16 %v3986, %v3982
        %v4000 = vpack.c.bf16 %v3994, %v3990
        %v4001 = vpack.c.bf16 %v3996, %v3992
        %s4002 = scalar_lea.vmem [#allocation4], 2496
        %v4003 = vld [vmem:[%s4002] sm:$0xff]
        %v4004 = vld [vmem:[%s4002 + $0x8] sm:$0xff]
        %v4005 = vld [vmem:[%s4002 + $0x10] sm:$0xff]
        %v4006 = vld [vmem:[%s4002 + $0x18] sm:$0xff]
        %v4007 = vld [vmem:[%s4002 + $0x20] sm:$0xff]
        %v4008 = vld [vmem:[%s4002 + $0x28] sm:$0xff]
        %v4009 = vld [vmem:[%s4002 + $0x30] sm:$0xff]
        %v4010 = vld [vmem:[%s4002 + $0x38] sm:$0xff]
        %v4011 = vld [vmem:[%s4002 + $0x40] sm:$0xff]
        %v4012 = vld [vmem:[%s4002 + $0x48] sm:$0xff]
        %v4013 = vld [vmem:[%s4002 + $0x50] sm:$0xff]
        %v4014 = vld [vmem:[%s4002 + $0x58] sm:$0xff]
        %v4015 = vld [vmem:[%s4002 + $0x60] sm:$0xff]
        %v4016 = vld [vmem:[%s4002 + $0x68] sm:$0xff]
        %v4017 = vld [vmem:[%s4002 + $0x70] sm:$0xff]
        %v4018 = vld [vmem:[%s4002 + $0x78] sm:$0xff]
        %v4019 = vld [vmem:[%s4002 + $0x80] sm:$0xff]
        %v4020 = vld [vmem:[%s4002 + $0x88] sm:$0xff]
        %v4021 = vld [vmem:[%s4002 + $0x90] sm:$0xff]
        %v4022 = vld [vmem:[%s4002 + $0x98] sm:$0xff]
        %v4023 = vld [vmem:[%s4002 + $0xa0] sm:$0xff]
        %v4024 = vld [vmem:[%s4002 + $0xa8] sm:$0xff]
        %v4025 = vld [vmem:[%s4002 + $0xb0] sm:$0xff]
        %v4026 = vld [vmem:[%s4002 + $0xb8] sm:$0xff]
        %v4051 = vunpack.c.l.b16 %v4003
        %v4052 = vunpack.c.h.b16 %v4003
        %v4053 = vunpack.c.l.b16 %v4004
        %v4054 = vunpack.c.h.b16 %v4004
        %v4055 = vunpack.c.l.b16 %v4005
        %v4056 = vunpack.c.h.b16 %v4005
        %v4057 = vunpack.c.l.b16 %v4006
        %v4058 = vunpack.c.h.b16 %v4006
        %v4059 = vunpack.c.l.b16 %v4007
        %v4060 = vunpack.c.h.b16 %v4007
        %v4061 = vunpack.c.l.b16 %v4008
        %v4062 = vunpack.c.h.b16 %v4008
        %v4063 = vunpack.c.l.b16 %v4009
        %v4064 = vunpack.c.h.b16 %v4009
        %v4065 = vunpack.c.l.b16 %v4010
        %v4066 = vunpack.c.h.b16 %v4010
        %v4067 = vunpack.c.l.b16 %v4011
        %v4068 = vunpack.c.h.b16 %v4011
        %v4069 = vunpack.c.l.b16 %v4012
        %v4070 = vunpack.c.h.b16 %v4012
        %v4071 = vunpack.c.l.b16 %v4013
        %v4072 = vunpack.c.h.b16 %v4013
        %v4073 = vunpack.c.l.b16 %v4014
        %v4074 = vunpack.c.h.b16 %v4014
        %v4075 = vunpack.c.l.b16 %v4015
        %v4076 = vunpack.c.h.b16 %v4015
        %v4077 = vunpack.c.l.b16 %v4016
        %v4078 = vunpack.c.h.b16 %v4016
        %v4079 = vunpack.c.l.b16 %v4017
        %v4080 = vunpack.c.h.b16 %v4017
        %v4081 = vunpack.c.l.b16 %v4018
        %v4082 = vunpack.c.h.b16 %v4018
        %v4083 = vunpack.c.l.b16 %v4019
        %v4084 = vunpack.c.h.b16 %v4019
        %v4085 = vunpack.c.l.b16 %v4020
        %v4086 = vunpack.c.h.b16 %v4020
        %v4087 = vunpack.c.l.b16 %v4021
        %v4088 = vunpack.c.h.b16 %v4021
        %v4089 = vunpack.c.l.b16 %v4022
        %v4090 = vunpack.c.h.b16 %v4022
        %v4091 = vunpack.c.l.b16 %v4023
        %v4092 = vunpack.c.h.b16 %v4023
        %v4093 = vunpack.c.l.b16 %v4024
        %v4094 = vunpack.c.h.b16 %v4024
        %v4095 = vunpack.c.l.b16 %v4025
        %v4096 = vunpack.c.h.b16 %v4025
        %v4097 = vunpack.c.l.b16 %v4026
        %v4098 = vunpack.c.h.b16 %v4026
        %v4099 = vpack.c.b16 %v4053, %v4051
        %v4100 = vpack.c.b16 %v4054, %v4052
        %v4101 = vpack.c.b16 %v4057, %v4055
        %v4102 = vpack.c.b16 %v4058, %v4056
        %v4103 = vpack.c.b16 %v4061, %v4059
        %v4104 = vpack.c.b16 %v4062, %v4060
        %v4105 = vpack.c.b16 %v4065, %v4063
        %v4106 = vpack.c.b16 %v4066, %v4064
        %v4107 = vpack.c.b16 %v4069, %v4067
        %v4108 = vpack.c.b16 %v4070, %v4068
        %v4109 = vpack.c.b16 %v4073, %v4071
        %v4110 = vpack.c.b16 %v4074, %v4072
        %v4111 = vpack.c.b16 %v4077, %v4075
        %v4112 = vpack.c.b16 %v4078, %v4076
        %v4113 = vpack.c.b16 %v4081, %v4079
        %v4114 = vpack.c.b16 %v4082, %v4080
        %v4115 = vpack.c.b16 %v4085, %v4083
        %v4116 = vpack.c.b16 %v4086, %v4084
        %v4117 = vpack.c.b16 %v4089, %v4087
        %v4118 = vpack.c.b16 %v4090, %v4088
        %v4119 = vpack.c.b16 %v4093, %v4091
        %v4120 = vpack.c.b16 %v4094, %v4092
        %v4121 = vpack.c.b16 %v4097, %v4095
        %v4122 = vpack.c.b16 %v4098, %v4096
        %v4148 = vsel %vm592, %v3999, 0
        %v4151 = vsel %vm592, %v4001, 0
        %4153 = vmatprep.subr.bf16.mxu0 %v4100
        %4154 = vmatpush1.bf16.msra.mxu0 %v4099
        %4155 = vmatprep.subr.bf16.mxu0 %v4102
        %4156 = vmatpush1.bf16.msra.mxu0 %v4101
        %4157 = vmatprep.subr.bf16.mxu0 %v4104
        %4158 = vmatpush1.bf16.msra.mxu0 %v4103
        %4159 = vmatprep.subr.bf16.mxu0 %v4106
        %4160 = vmatpush1.bf16.msra.mxu0 %v4105
        %4161 = vmatprep.subr.bf16.mxu0 %v4108
        %4162 = vmatpush1.bf16.msra.mxu0 %v4107
        %4163 = vmatprep.subr.bf16.mxu0 %v4110
        %4164 = vmatpush1.bf16.msra.mxu0 %v4109
        %4165 = vmatprep.subr.bf16.mxu0 %v4112
        %4166 = vmatpush1.bf16.msra.mxu0 %v4111
        %4167 = vmatprep.subr.bf16.mxu0 %v4114
        %4168 = vmatpush1.bf16.msra.mxu0 %v4113
        %4169 = vmatprep.subr.bf16.mxu0 %v4116
        %4170 = vmatpush1.bf16.msra.mxu0 %v4115
        %4171 = vmatprep.subr.bf16.mxu0 %v4118
        %4172 = vmatpush1.bf16.msra.mxu0 %v4117
        %4173 = vmatprep.subr.bf16.mxu0 %v4120
        %4174 = vmatpush1.bf16.msra.mxu0 %v4119
        %4175 = vmatprep.subr.bf16.mxu0 %v4122
        %4176 = vmatpush1.bf16.msra.mxu0 %v4121
        %4177 = vmatprep.subr.bf16.mxu0 0
        %4178 = vmatpush1.bf16.msra.mxu0 0
        %4179 = vmatprep.subr.bf16.mxu0 0
        %4180 = vmatpush1.bf16.msra.mxu0 0
        %4181 = vmatprep.subr.bf16.mxu0 0
        %4182 = vmatpush1.bf16.msra.mxu0 0
        %4183 = vmatprep.subr.bf16.mxu0 0
        %4184 = vmatpush1.bf16.msra.mxu0 0
        %4185 = vmatprep.mubr.bf16.mxu0 %v4148
        %4186 = vmatmul.mubr.bf16.gmra.mrb[0].mxu0 %v3998
        %v4187 = vpop.f32.mrb[0].mxu0
        %v4188 = vadd.f32 0.0, %v4187
        %v4189 = vpop.f32.mrb[0].mxu0
        %v4190 = vadd.f32 0.0, %v4189
        %v4191 = vpop.f32.mrb[0].mxu0
        %v4192 = vadd.f32 0.0, %v4191
        %v4193 = vpop.f32.mrb[0].mxu0
        %v4194 = vadd.f32 0.0, %v4193
        %4195 = vmatprep.mubr.bf16.mxu0 %v4151
        %4196 = vmatmul.mubr.bf16.gmra.mrb[0].mxu0 %v4000
        %v4197 = vpop.f32.mrb[0].mxu0
        %v4198 = vadd.f32 0.0, %v4197
        %v4199 = vpop.f32.mrb[0].mxu0
        %v4200 = vadd.f32 0.0, %v4199
        %v4201 = vpop.f32.mrb[0].mxu0
        %v4202 = vadd.f32 0.0, %v4201
        %v4203 = vpop.f32.mrb[0].mxu0
        %v4204 = vadd.f32 0.0, %v4203
        %4205 = vdwg.mxu0
        %v4230 = vunpack.c.l.b16 %v3900
        %v4231 = vunpack.c.h.b16 %v3900
        %v4232 = vunpack.c.l.b16 %v3901
        %v4233 = vunpack.c.h.b16 %v3901
        %v4234 = vunpack.c.l.b16 %v3902
        %v4235 = vunpack.c.h.b16 %v3902
        %v4236 = vunpack.c.l.b16 %v3903
        %v4237 = vunpack.c.h.b16 %v3903
        %v4238 = vunpack.c.l.b16 %v3904
        %v4239 = vunpack.c.h.b16 %v3904
        %v4240 = vunpack.c.l.b16 %v3905
        %v4241 = vunpack.c.h.b16 %v3905
        %v4242 = vunpack.c.l.b16 %v3906
        %v4243 = vunpack.c.h.b16 %v3906
        %v4244 = vunpack.c.l.b16 %v3907
        %v4245 = vunpack.c.h.b16 %v3907
        %v4246 = vunpack.c.l.b16 %v3908
        %v4247 = vunpack.c.h.b16 %v3908
        %v4248 = vunpack.c.l.b16 %v3909
        %v4249 = vunpack.c.h.b16 %v3909
        %v4250 = vunpack.c.l.b16 %v3910
        %v4251 = vunpack.c.h.b16 %v3910
        %v4252 = vunpack.c.l.b16 %v3911
        %v4253 = vunpack.c.h.b16 %v3911
        %v4254 = vunpack.c.l.b16 %v3912
        %v4255 = vunpack.c.h.b16 %v3912
        %v4256 = vunpack.c.l.b16 %v3913
        %v4257 = vunpack.c.h.b16 %v3913
        %v4258 = vunpack.c.l.b16 %v3914
        %v4259 = vunpack.c.h.b16 %v3914
        %v4260 = vunpack.c.l.b16 %v3915
        %v4261 = vunpack.c.h.b16 %v3915
        %v4262 = vunpack.c.l.b16 %v3916
        %v4263 = vunpack.c.h.b16 %v3916
        %v4264 = vunpack.c.l.b16 %v3917
        %v4265 = vunpack.c.h.b16 %v3917
        %v4266 = vunpack.c.l.b16 %v3918
        %v4267 = vunpack.c.h.b16 %v3918
        %v4268 = vunpack.c.l.b16 %v3919
        %v4269 = vunpack.c.h.b16 %v3919
        %v4270 = vunpack.c.l.b16 %v3920
        %v4271 = vunpack.c.h.b16 %v3920
        %v4272 = vunpack.c.l.b16 %v3921
        %v4273 = vunpack.c.h.b16 %v3921
        %v4274 = vunpack.c.l.b16 %v3922
        %v4275 = vunpack.c.h.b16 %v3922
        %v4276 = vunpack.c.l.b16 %v3923
        %v4277 = vunpack.c.h.b16 %v3923
        %v4278 = vpack.c.b16 %v4232, %v4230
        %v4279 = vpack.c.b16 %v4233, %v4231
        %v4280 = vpack.c.b16 %v4236, %v4234
        %v4281 = vpack.c.b16 %v4237, %v4235
        %v4282 = vpack.c.b16 %v4240, %v4238
        %v4283 = vpack.c.b16 %v4241, %v4239
        %v4284 = vpack.c.b16 %v4244, %v4242
        %v4285 = vpack.c.b16 %v4245, %v4243
        %v4286 = vpack.c.b16 %v4248, %v4246
        %v4287 = vpack.c.b16 %v4249, %v4247
        %v4288 = vpack.c.b16 %v4252, %v4250
        %v4289 = vpack.c.b16 %v4253, %v4251
        %v4290 = vpack.c.b16 %v4256, %v4254
        %v4291 = vpack.c.b16 %v4257, %v4255
        %v4292 = vpack.c.b16 %v4260, %v4258
        %v4293 = vpack.c.b16 %v4261, %v4259
        %v4294 = vpack.c.b16 %v4264, %v4262
        %v4295 = vpack.c.b16 %v4265, %v4263
        %v4296 = vpack.c.b16 %v4268, %v4266
        %v4297 = vpack.c.b16 %v4269, %v4267
        %v4298 = vpack.c.b16 %v4272, %v4270
        %v4299 = vpack.c.b16 %v4273, %v4271
        %v4300 = vpack.c.b16 %v4276, %v4274
        %v4301 = vpack.c.b16 %v4277, %v4275
        %v4327 = vsel %vm592, %v3896, 0
        %v4330 = vsel %vm592, %v3898, 0
        %4332 = vmatprep.subr.bf16.mxu0 %v4279
        %4333 = vmatpush1.bf16.msra.mxu0 %v4278
        %4334 = vmatprep.subr.bf16.mxu0 %v4281
        %4335 = vmatpush1.bf16.msra.mxu0 %v4280
        %4336 = vmatprep.subr.bf16.mxu0 %v4283
        %4337 = vmatpush1.bf16.msra.mxu0 %v4282
        %4338 = vmatprep.subr.bf16.mxu0 %v4285
        %4339 = vmatpush1.bf16.msra.mxu0 %v4284
        %4340 = vmatprep.subr.bf16.mxu0 %v4287
        %4341 = vmatpush1.bf16.msra.mxu0 %v4286
        %4342 = vmatprep.subr.bf16.mxu0 %v4289
        %4343 = vmatpush1.bf16.msra.mxu0 %v4288
        %4344 = vmatprep.subr.bf16.mxu0 %v4291
        %4345 = vmatpush1.bf16.msra.mxu0 %v4290
        %4346 = vmatprep.subr.bf16.mxu0 %v4293
        %4347 = vmatpush1.bf16.msra.mxu0 %v4292
        %4348 = vmatprep.subr.bf16.mxu0 %v4295
        %4349 = vmatpush1.bf16.msra.mxu0 %v4294
        %4350 = vmatprep.subr.bf16.mxu0 %v4297
        %4351 = vmatpush1.bf16.msra.mxu0 %v4296
        %4352 = vmatprep.subr.bf16.mxu0 %v4299
        %4353 = vmatpush1.bf16.msra.mxu0 %v4298
        %4354 = vmatprep.subr.bf16.mxu0 %v4301
        %4355 = vmatpush1.bf16.msra.mxu0 %v4300
        %4356 = vmatprep.subr.bf16.mxu0 0
        %4357 = vmatpush1.bf16.msra.mxu0 0
        %4358 = vmatprep.subr.bf16.mxu0 0
        %4359 = vmatpush1.bf16.msra.mxu0 0
        %4360 = vmatprep.subr.bf16.mxu0 0
        %4361 = vmatpush1.bf16.msra.mxu0 0
        %4362 = vmatprep.subr.bf16.mxu0 0
        %4363 = vmatpush1.bf16.msra.mxu0 0
        %4364 = vmatprep.mubr.bf16.mxu0 %v4327
        %4365 = vmatmul.mubr.bf16.gmra.mrb[0].mxu0 %v3895
        %v4366 = vpop.f32.mrb[0].mxu0
        %v4367 = vadd.f32 %v4188, %v4366
        %v4368 = vpop.f32.mrb[0].mxu0
        %v4369 = vadd.f32 %v4190, %v4368
        %v4370 = vpop.f32.mrb[0].mxu0
        %v4371 = vadd.f32 %v4192, %v4370
        %v4372 = vpop.f32.mrb[0].mxu0
        %v4373 = vadd.f32 %v4194, %v4372
        %4374 = vmatprep.mubr.bf16.mxu0 %v4330
        %4375 = vmatmul.mubr.bf16.gmra.mrb[0].mxu0 %v3897
        %v4376 = vpop.f32.mrb[0].mxu0
        %v4377 = vadd.f32 %v4198, %v4376
        %v4378 = vpop.f32.mrb[0].mxu0
        %v4379 = vadd.f32 %v4200, %v4378
        %v4380 = vpop.f32.mrb[0].mxu0
        %v4381 = vadd.f32 %v4202, %v4380
        %v4382 = vpop.f32.mrb[0].mxu0
        %v4383 = vadd.f32 %v4204, %v4382
        %4384 = vdwg.mxu0
        %s4385 = scalar_lea.vmem [#allocation2], 224
        %v4386 = vld [vmem:[%s4385] sm:$0xf]
        %v4387 = vld [vmem:[%s4385 + $0x4] sm:$0xf]
        %v4388 = vld [vmem:[%s4385 + $0x8] sm:$0xf]
        %v4389 = vld [vmem:[%s4385 + $0xc] sm:$0xf]
        %v4394 = vunpack.c.l.b16 %v4386
        %v4395 = vunpack.c.l.b16 %v4387
        %v4396 = vunpack.c.l.b16 %v4388
        %v4397 = vunpack.c.l.b16 %v4389
        %v4398 = vpack.c.b16 %v4395, %v4394
        %v4399 = vpack.c.b16 %v4397, %v4396
        %v4401 = vsel %vm281, %v4398, 0
        %v4404 = vsel %vm281, %v4399, 0
        %4406 = vmatprep.subr.bf16.mxu0 %v3818
        %4407 = vmatpush1.bf16.msra.mxu0 %v3817
        %4408 = vmatprep.subr.bf16.mxu0 %v3820
        %4409 = vmatpush1.bf16.msra.mxu0 %v3819
        %4410 = vmatprep.subr.bf16.mxu0 0
        %4411 = vmatpush1.bf16.msra.mxu0 0
        %4412 = vmatprep.subr.bf16.mxu0 0
        %4413 = vmatpush1.bf16.msra.mxu0 0
        %4414 = vmatprep.subr.bf16.mxu0 0
        %4415 = vmatpush1.bf16.msra.mxu0 0
        %4416 = vmatprep.subr.bf16.mxu0 0
        %4417 = vmatpush1.bf16.msra.mxu0 0
        %4418 = vmatprep.subr.bf16.mxu0 0
        %4419 = vmatpush1.bf16.msra.mxu0 0
        %4420 = vmatprep.subr.bf16.mxu0 0
        %4421 = vmatpush1.bf16.msra.mxu0 0
        %4422 = vmatprep.subr.bf16.mxu0 0
        %4423 = vmatpush1.bf16.msra.mxu0 0
        %4424 = vmatprep.subr.bf16.mxu0 0
        %4425 = vmatpush1.bf16.msra.mxu0 0
        %4426 = vmatprep.subr.bf16.mxu0 0
        %4427 = vmatpush1.bf16.msra.mxu0 0
        %4428 = vmatprep.subr.bf16.mxu0 0
        %4429 = vmatpush1.bf16.msra.mxu0 0
        %4430 = vmatprep.subr.bf16.mxu0 0
        %4431 = vmatpush1.bf16.msra.mxu0 0
        %4432 = vmatprep.subr.bf16.mxu0 0
        %4433 = vmatpush1.bf16.msra.mxu0 0
        %4434 = vmatprep.subr.bf16.mxu0 0
        %4435 = vmatpush1.bf16.msra.mxu0 0
        %4436 = vmatprep.subr.bf16.mxu0 0
        %4437 = vmatpush1.bf16.msra.mxu0 0
        %4438 = vmatprep.mubr.bf16.mxu0 0
        %4439 = vmatmul.mubr.bf16.gmra.mrb[0].mxu0 %v4401
        %v4440 = vpop.f32.mrb[0].mxu0
        %v4441 = vadd.f32 0.0, %v4440
        %v4442 = vpop.f32.mrb[0].mxu0
        %v4443 = vadd.f32 0.0, %v4442
        %v4444 = vpop.f32.mrb[0].mxu0
        %v4445 = vadd.f32 0.0, %v4444
        %v4446 = vpop.f32.mrb[0].mxu0
        %v4447 = vadd.f32 0.0, %v4446
        %4448 = vmatprep.mubr.bf16.mxu0 0
        %4449 = vmatmul.mubr.bf16.gmra.mrb[0].mxu0 %v4404
        %v4450 = vpop.f32.mrb[0].mxu0
        %v4451 = vadd.f32 0.0, %v4450
        %v4452 = vpop.f32.mrb[0].mxu0
        %v4453 = vadd.f32 0.0, %v4452
        %v4454 = vpop.f32.mrb[0].mxu0
        %v4455 = vadd.f32 0.0, %v4454
        %v4456 = vpop.f32.mrb[0].mxu0
        %v4457 = vadd.f32 0.0, %v4456
        %4458 = vdwg.mxu0
        %v4459 = vpack.c.bf16 %v4445, %v4441
        %v4460 = vpack.c.bf16 %v4447, %v4443
        %v4461 = vpack.c.bf16 %v4455, %v4451
        %v4462 = vpack.c.bf16 %v4457, %v4453
        %s4463 = scalar_lea.vmem [#allocation4], 2688
        %v4464 = vld [vmem:[%s4463] sm:$0xff]
        %v4465 = vld [vmem:[%s4463 + $0x8] sm:$0xff]
        %v4466 = vld [vmem:[%s4463 + $0x10] sm:$0xff]
        %v4467 = vld [vmem:[%s4463 + $0x18] sm:$0xff]
        %v4468 = vld [vmem:[%s4463 + $0x20] sm:$0xff]
        %v4469 = vld [vmem:[%s4463 + $0x28] sm:$0xff]
        %v4470 = vld [vmem:[%s4463 + $0x30] sm:$0xff]
        %v4471 = vld [vmem:[%s4463 + $0x38] sm:$0xff]
        %v4472 = vld [vmem:[%s4463 + $0x40] sm:$0xff]
        %v4473 = vld [vmem:[%s4463 + $0x48] sm:$0xff]
        %v4474 = vld [vmem:[%s4463 + $0x50] sm:$0xff]
        %v4475 = vld [vmem:[%s4463 + $0x58] sm:$0xff]
        %v4476 = vld [vmem:[%s4463 + $0x60] sm:$0xff]
        %v4477 = vld [vmem:[%s4463 + $0x68] sm:$0xff]
        %v4478 = vld [vmem:[%s4463 + $0x70] sm:$0xff]
        %v4479 = vld [vmem:[%s4463 + $0x78] sm:$0xff]
        %v4480 = vld [vmem:[%s4463 + $0x80] sm:$0xff]
        %v4481 = vld [vmem:[%s4463 + $0x88] sm:$0xff]
        %v4482 = vld [vmem:[%s4463 + $0x90] sm:$0xff]
        %v4483 = vld [vmem:[%s4463 + $0x98] sm:$0xff]
        %v4484 = vld [vmem:[%s4463 + $0xa0] sm:$0xff]
        %v4485 = vld [vmem:[%s4463 + $0xa8] sm:$0xff]
        %v4486 = vld [vmem:[%s4463 + $0xb0] sm:$0xff]
        %v4487 = vld [vmem:[%s4463 + $0xb8] sm:$0xff]
        %v4512 = vunpack.c.l.b16 %v4464
        %v4513 = vunpack.c.h.b16 %v4464
        %v4514 = vunpack.c.l.b16 %v4465
        %v4515 = vunpack.c.h.b16 %v4465
        %v4516 = vunpack.c.l.b16 %v4466
        %v4517 = vunpack.c.h.b16 %v4466
        %v4518 = vunpack.c.l.b16 %v4467
        %v4519 = vunpack.c.h.b16 %v4467
        %v4520 = vunpack.c.l.b16 %v4468
        %v4521 = vunpack.c.h.b16 %v4468
        %v4522 = vunpack.c.l.b16 %v4469
        %v4523 = vunpack.c.h.b16 %v4469
        %v4524 = vunpack.c.l.b16 %v4470
        %v4525 = vunpack.c.h.b16 %v4470
        %v4526 = vunpack.c.l.b16 %v4471
        %v4527 = vunpack.c.h.b16 %v4471
        %v4528 = vunpack.c.l.b16 %v4472
        %v4529 = vunpack.c.h.b16 %v4472
        %v4530 = vunpack.c.l.b16 %v4473
        %v4531 = vunpack.c.h.b16 %v4473
        %v4532 = vunpack.c.l.b16 %v4474
        %v4533 = vunpack.c.h.b16 %v4474
        %v4534 = vunpack.c.l.b16 %v4475
        %v4535 = vunpack.c.h.b16 %v4475
        %v4536 = vunpack.c.l.b16 %v4476
        %v4537 = vunpack.c.h.b16 %v4476
        %v4538 = vunpack.c.l.b16 %v4477
        %v4539 = vunpack.c.h.b16 %v4477
        %v4540 = vunpack.c.l.b16 %v4478
        %v4541 = vunpack.c.h.b16 %v4478
        %v4542 = vunpack.c.l.b16 %v4479
        %v4543 = vunpack.c.h.b16 %v4479
        %v4544 = vunpack.c.l.b16 %v4480
        %v4545 = vunpack.c.h.b16 %v4480
        %v4546 = vunpack.c.l.b16 %v4481
        %v4547 = vunpack.c.h.b16 %v4481
        %v4548 = vunpack.c.l.b16 %v4482
        %v4549 = vunpack.c.h.b16 %v4482
        %v4550 = vunpack.c.l.b16 %v4483
        %v4551 = vunpack.c.h.b16 %v4483
        %v4552 = vunpack.c.l.b16 %v4484
        %v4553 = vunpack.c.h.b16 %v4484
        %v4554 = vunpack.c.l.b16 %v4485
        %v4555 = vunpack.c.h.b16 %v4485
        %v4556 = vunpack.c.l.b16 %v4486
        %v4557 = vunpack.c.h.b16 %v4486
        %v4558 = vunpack.c.l.b16 %v4487
        %v4559 = vunpack.c.h.b16 %v4487
        %v4560 = vpack.c.b16 %v4514, %v4512
        %v4561 = vpack.c.b16 %v4515, %v4513
        %v4562 = vpack.c.b16 %v4518, %v4516
        %v4563 = vpack.c.b16 %v4519, %v4517
        %v4564 = vpack.c.b16 %v4522, %v4520
        %v4565 = vpack.c.b16 %v4523, %v4521
        %v4566 = vpack.c.b16 %v4526, %v4524
        %v4567 = vpack.c.b16 %v4527, %v4525
        %v4568 = vpack.c.b16 %v4530, %v4528
        %v4569 = vpack.c.b16 %v4531, %v4529
        %v4570 = vpack.c.b16 %v4534, %v4532
        %v4571 = vpack.c.b16 %v4535, %v4533
        %v4572 = vpack.c.b16 %v4538, %v4536
        %v4573 = vpack.c.b16 %v4539, %v4537
        %v4574 = vpack.c.b16 %v4542, %v4540
        %v4575 = vpack.c.b16 %v4543, %v4541
        %v4576 = vpack.c.b16 %v4546, %v4544
        %v4577 = vpack.c.b16 %v4547, %v4545
        %v4578 = vpack.c.b16 %v4550, %v4548
        %v4579 = vpack.c.b16 %v4551, %v4549
        %v4580 = vpack.c.b16 %v4554, %v4552
        %v4581 = vpack.c.b16 %v4555, %v4553
        %v4582 = vpack.c.b16 %v4558, %v4556
        %v4583 = vpack.c.b16 %v4559, %v4557
        %v4609 = vsel %vm592, %v4460, 0
        %v4612 = vsel %vm592, %v4462, 0
        %4614 = vmatprep.subr.bf16.mxu0 %v4561
        %4615 = vmatpush1.bf16.msra.mxu0 %v4560
        %4616 = vmatprep.subr.bf16.mxu0 %v4563
        %4617 = vmatpush1.bf16.msra.mxu0 %v4562
        %4618 = vmatprep.subr.bf16.mxu0 %v4565
        %4619 = vmatpush1.bf16.msra.mxu0 %v4564
        %4620 = vmatprep.subr.bf16.mxu0 %v4567
        %4621 = vmatpush1.bf16.msra.mxu0 %v4566
        %4622 = vmatprep.subr.bf16.mxu0 %v4569
        %4623 = vmatpush1.bf16.msra.mxu0 %v4568
        %4624 = vmatprep.subr.bf16.mxu0 %v4571
        %4625 = vmatpush1.bf16.msra.mxu0 %v4570
        %4626 = vmatprep.subr.bf16.mxu0 %v4573
        %4627 = vmatpush1.bf16.msra.mxu0 %v4572
        %4628 = vmatprep.subr.bf16.mxu0 %v4575
        %4629 = vmatpush1.bf16.msra.mxu0 %v4574
        %4630 = vmatprep.subr.bf16.mxu0 %v4577
        %4631 = vmatpush1.bf16.msra.mxu0 %v4576
        %4632 = vmatprep.subr.bf16.mxu0 %v4579
        %4633 = vmatpush1.bf16.msra.mxu0 %v4578
        %4634 = vmatprep.subr.bf16.mxu0 %v4581
        %4635 = vmatpush1.bf16.msra.mxu0 %v4580
        %4636 = vmatprep.subr.bf16.mxu0 %v4583
        %4637 = vmatpush1.bf16.msra.mxu0 %v4582
        %4638 = vmatprep.subr.bf16.mxu0 0
        %4639 = vmatpush1.bf16.msra.mxu0 0
        %4640 = vmatprep.subr.bf16.mxu0 0
        %4641 = vmatpush1.bf16.msra.mxu0 0
        %4642 = vmatprep.subr.bf16.mxu0 0
        %4643 = vmatpush1.bf16.msra.mxu0 0
        %4644 = vmatprep.subr.bf16.mxu0 0
        %4645 = vmatpush1.bf16.msra.mxu0 0
        %4646 = vmatprep.mubr.bf16.mxu0 %v4609
        %4647 = vmatmul.mubr.bf16.gmra.mrb[0].mxu0 %v4459
        %v4648 = vpop.f32.mrb[0].mxu0
        %v4649 = vadd.f32 0.0, %v4648
        %v4650 = vpop.f32.mrb[0].mxu0
        %v4651 = vadd.f32 0.0, %v4650
        %v4652 = vpop.f32.mrb[0].mxu0
        %v4653 = vadd.f32 0.0, %v4652
        %v4654 = vpop.f32.mrb[0].mxu0
        %v4655 = vadd.f32 0.0, %v4654
        %4656 = vmatprep.mubr.bf16.mxu0 %v4612
        %4657 = vmatmul.mubr.bf16.gmra.mrb[0].mxu0 %v4461
        %v4658 = vpop.f32.mrb[0].mxu0
        %v4659 = vadd.f32 0.0, %v4658
        %v4660 = vpop.f32.mrb[0].mxu0
        %v4661 = vadd.f32 0.0, %v4660
        %v4662 = vpop.f32.mrb[0].mxu0
        %v4663 = vadd.f32 0.0, %v4662
        %v4664 = vpop.f32.mrb[0].mxu0
        %v4665 = vadd.f32 0.0, %v4664
        %4666 = vdwg.mxu0
        %v4667 = vadd.f32 %v4367, %v4649
        %v4668 = vadd.f32 %v4369, %v4651
        %v4669 = vadd.f32 %v4371, %v4653
        %v4670 = vadd.f32 %v4373, %v4655
        %v4671 = vadd.f32 %v4377, %v4659
        %v4672 = vadd.f32 %v4379, %v4661
        %v4673 = vadd.f32 %v4381, %v4663
        %v4674 = vadd.f32 %v4383, %v4665
        %s4675 = scalar_lea.vmem [#allocation2], 240
        %v4676 = vld [vmem:[%s4675] sm:$0xf]
        %v4677 = vld [vmem:[%s4675 + $0x4] sm:$0xf]
        %v4678 = vld [vmem:[%s4675 + $0x8] sm:$0xf]
        %v4679 = vld [vmem:[%s4675 + $0xc] sm:$0xf]
        %v4684 = vunpack.c.l.b16 %v4676
        %v4685 = vunpack.c.l.b16 %v4677
        %v4686 = vunpack.c.l.b16 %v4678
        %v4687 = vunpack.c.l.b16 %v4679
        %v4688 = vpack.c.b16 %v4685, %v4684
        %v4689 = vpack.c.b16 %v4687, %v4686
        %v4691 = vsel %vm281, %v4688, 0
        %v4694 = vsel %vm281, %v4689, 0
        %4696 = vmatprep.subr.bf16.mxu0 %v3818
        %4697 = vmatpush1.bf16.msra.mxu0 %v3817
        %4698 = vmatprep.subr.bf16.mxu0 %v3820
        %4699 = vmatpush1.bf16.msra.mxu0 %v3819
        %4700 = vmatprep.subr.bf16.mxu0 0
        %4701 = vmatpush1.bf16.msra.mxu0 0
        %4702 = vmatprep.subr.bf16.mxu0 0
        %4703 = vmatpush1.bf16.msra.mxu0 0
        %4704 = vmatprep.subr.bf16.mxu0 0
        %4705 = vmatpush1.bf16.msra.mxu0 0
        %4706 = vmatprep.subr.bf16.mxu0 0
        %4707 = vmatpush1.bf16.msra.mxu0 0
        %4708 = vmatprep.subr.bf16.mxu0 0
        %4709 = vmatpush1.bf16.msra.mxu0 0
        %4710 = vmatprep.subr.bf16.mxu0 0
        %4711 = vmatpush1.bf16.msra.mxu0 0
        %4712 = vmatprep.subr.bf16.mxu0 0
        %4713 = vmatpush1.bf16.msra.mxu0 0
        %4714 = vmatprep.subr.bf16.mxu0 0
        %4715 = vmatpush1.bf16.msra.mxu0 0
        %4716 = vmatprep.subr.bf16.mxu0 0
        %4717 = vmatpush1.bf16.msra.mxu0 0
        %4718 = vmatprep.subr.bf16.mxu0 0
        %4719 = vmatpush1.bf16.msra.mxu0 0
        %4720 = vmatprep.subr.bf16.mxu0 0
        %4721 = vmatpush1.bf16.msra.mxu0 0
        %4722 = vmatprep.subr.bf16.mxu0 0
        %4723 = vmatpush1.bf16.msra.mxu0 0
        %4724 = vmatprep.subr.bf16.mxu0 0
        %4725 = vmatpush1.bf16.msra.mxu0 0
        %4726 = vmatprep.subr.bf16.mxu0 0
        %4727 = vmatpush1.bf16.msra.mxu0 0
        %4728 = vmatprep.mubr.bf16.mxu0 0
        %4729 = vmatmul.mubr.bf16.gmra.mrb[0].mxu0 %v4691
        %v4730 = vpop.f32.mrb[0].mxu0
        %v4731 = vadd.f32 0.0, %v4730
        %v4732 = vpop.f32.mrb[0].mxu0
        %v4733 = vadd.f32 0.0, %v4732
        %v4734 = vpop.f32.mrb[0].mxu0
        %v4735 = vadd.f32 0.0, %v4734
        %v4736 = vpop.f32.mrb[0].mxu0
        %v4737 = vadd.f32 0.0, %v4736
        %4738 = vmatprep.mubr.bf16.mxu0 0
        %4739 = vmatmul.mubr.bf16.gmra.mrb[0].mxu0 %v4694
        %v4740 = vpop.f32.mrb[0].mxu0
        %v4741 = vadd.f32 0.0, %v4740
        %v4742 = vpop.f32.mrb[0].mxu0
        %v4743 = vadd.f32 0.0, %v4742
        %v4744 = vpop.f32.mrb[0].mxu0
        %v4745 = vadd.f32 0.0, %v4744
        %v4746 = vpop.f32.mrb[0].mxu0
        %v4747 = vadd.f32 0.0, %v4746
        %4748 = vdwg.mxu0
        %v4749 = vpack.c.bf16 %v4735, %v4731
        %v4750 = vpack.c.bf16 %v4737, %v4733
        %v4751 = vpack.c.bf16 %v4745, %v4741
        %v4752 = vpack.c.bf16 %v4747, %v4743
        %s4753 = scalar_lea.vmem [#allocation4], 2880
        %v4754 = vld [vmem:[%s4753] sm:$0xff]
        %v4755 = vld [vmem:[%s4753 + $0x8] sm:$0xff]
        %v4756 = vld [vmem:[%s4753 + $0x10] sm:$0xff]
        %v4757 = vld [vmem:[%s4753 + $0x18] sm:$0xff]
        %v4758 = vld [vmem:[%s4753 + $0x20] sm:$0xff]
        %v4759 = vld [vmem:[%s4753 + $0x28] sm:$0xff]
        %v4760 = vld [vmem:[%s4753 + $0x30] sm:$0xff]
        %v4761 = vld [vmem:[%s4753 + $0x38] sm:$0xff]
        %v4762 = vld [vmem:[%s4753 + $0x40] sm:$0xff]
        %v4763 = vld [vmem:[%s4753 + $0x48] sm:$0xff]
        %v4764 = vld [vmem:[%s4753 + $0x50] sm:$0xff]
        %v4765 = vld [vmem:[%s4753 + $0x58] sm:$0xff]
        %v4766 = vld [vmem:[%s4753 + $0x60] sm:$0xff]
        %v4767 = vld [vmem:[%s4753 + $0x68] sm:$0xff]
        %v4768 = vld [vmem:[%s4753 + $0x70] sm:$0xff]
        %v4769 = vld [vmem:[%s4753 + $0x78] sm:$0xff]
        %v4770 = vld [vmem:[%s4753 + $0x80] sm:$0xff]
        %v4771 = vld [vmem:[%s4753 + $0x88] sm:$0xff]
        %v4772 = vld [vmem:[%s4753 + $0x90] sm:$0xff]
        %v4773 = vld [vmem:[%s4753 + $0x98] sm:$0xff]
        %v4774 = vld [vmem:[%s4753 + $0xa0] sm:$0xff]
        %v4775 = vld [vmem:[%s4753 + $0xa8] sm:$0xff]
        %v4776 = vld [vmem:[%s4753 + $0xb0] sm:$0xff]
        %v4777 = vld [vmem:[%s4753 + $0xb8] sm:$0xff]
        %v4802 = vunpack.c.l.b16 %v4754
        %v4803 = vunpack.c.h.b16 %v4754
        %v4804 = vunpack.c.l.b16 %v4755
        %v4805 = vunpack.c.h.b16 %v4755
        %v4806 = vunpack.c.l.b16 %v4756
        %v4807 = vunpack.c.h.b16 %v4756
        %v4808 = vunpack.c.l.b16 %v4757
        %v4809 = vunpack.c.h.b16 %v4757
        %v4810 = vunpack.c.l.b16 %v4758
        %v4811 = vunpack.c.h.b16 %v4758
        %v4812 = vunpack.c.l.b16 %v4759
        %v4813 = vunpack.c.h.b16 %v4759
        %v4814 = vunpack.c.l.b16 %v4760
        %v4815 = vunpack.c.h.b16 %v4760
        %v4816 = vunpack.c.l.b16 %v4761
        %v4817 = vunpack.c.h.b16 %v4761
        %v4818 = vunpack.c.l.b16 %v4762
        %v4819 = vunpack.c.h.b16 %v4762
        %v4820 = vunpack.c.l.b16 %v4763
        %v4821 = vunpack.c.h.b16 %v4763
        %v4822 = vunpack.c.l.b16 %v4764
        %v4823 = vunpack.c.h.b16 %v4764
        %v4824 = vunpack.c.l.b16 %v4765
        %v4825 = vunpack.c.h.b16 %v4765
        %v4826 = vunpack.c.l.b16 %v4766
        %v4827 = vunpack.c.h.b16 %v4766
        %v4828 = vunpack.c.l.b16 %v4767
        %v4829 = vunpack.c.h.b16 %v4767
        %v4830 = vunpack.c.l.b16 %v4768
        %v4831 = vunpack.c.h.b16 %v4768
        %v4832 = vunpack.c.l.b16 %v4769
        %v4833 = vunpack.c.h.b16 %v4769
        %v4834 = vunpack.c.l.b16 %v4770
        %v4835 = vunpack.c.h.b16 %v4770
        %v4836 = vunpack.c.l.b16 %v4771
        %v4837 = vunpack.c.h.b16 %v4771
        %v4838 = vunpack.c.l.b16 %v4772
        %v4839 = vunpack.c.h.b16 %v4772
        %v4840 = vunpack.c.l.b16 %v4773
        %v4841 = vunpack.c.h.b16 %v4773
        %v4842 = vunpack.c.l.b16 %v4774
        %v4843 = vunpack.c.h.b16 %v4774
        %v4844 = vunpack.c.l.b16 %v4775
        %v4845 = vunpack.c.h.b16 %v4775
        %v4846 = vunpack.c.l.b16 %v4776
        %v4847 = vunpack.c.h.b16 %v4776
        %v4848 = vunpack.c.l.b16 %v4777
        %v4849 = vunpack.c.h.b16 %v4777
        %v4850 = vpack.c.b16 %v4804, %v4802
        %v4851 = vpack.c.b16 %v4805, %v4803
        %v4852 = vpack.c.b16 %v4808, %v4806
        %v4853 = vpack.c.b16 %v4809, %v4807
        %v4854 = vpack.c.b16 %v4812, %v4810
        %v4855 = vpack.c.b16 %v4813, %v4811
        %v4856 = vpack.c.b16 %v4816, %v4814
        %v4857 = vpack.c.b16 %v4817, %v4815
        %v4858 = vpack.c.b16 %v4820, %v4818
        %v4859 = vpack.c.b16 %v4821, %v4819
        %v4860 = vpack.c.b16 %v4824, %v4822
        %v4861 = vpack.c.b16 %v4825, %v4823
        %v4862 = vpack.c.b16 %v4828, %v4826
        %v4863 = vpack.c.b16 %v4829, %v4827
        %v4864 = vpack.c.b16 %v4832, %v4830
        %v4865 = vpack.c.b16 %v4833, %v4831
        %v4866 = vpack.c.b16 %v4836, %v4834
        %v4867 = vpack.c.b16 %v4837, %v4835
        %v4868 = vpack.c.b16 %v4840, %v4838
        %v4869 = vpack.c.b16 %v4841, %v4839
        %v4870 = vpack.c.b16 %v4844, %v4842
        %v4871 = vpack.c.b16 %v4845, %v4843
        %v4872 = vpack.c.b16 %v4848, %v4846
        %v4873 = vpack.c.b16 %v4849, %v4847
        %v4899 = vsel %vm592, %v4750, 0
        %v4902 = vsel %vm592, %v4752, 0
        %4904 = vmatprep.subr.bf16.mxu0 %v4851
        %4905 = vmatpush1.bf16.msra.mxu0 %v4850
        %4906 = vmatprep.subr.bf16.mxu0 %v4853
        %4907 = vmatpush1.bf16.msra.mxu0 %v4852
        %4908 = vmatprep.subr.bf16.mxu0 %v4855
        %4909 = vmatpush1.bf16.msra.mxu0 %v4854
        %4910 = vmatprep.subr.bf16.mxu0 %v4857
        %4911 = vmatpush1.bf16.msra.mxu0 %v4856
        %4912 = vmatprep.subr.bf16.mxu0 %v4859
        %4913 = vmatpush1.bf16.msra.mxu0 %v4858
        %4914 = vmatprep.subr.bf16.mxu0 %v4861
        %4915 = vmatpush1.bf16.msra.mxu0 %v4860
        %4916 = vmatprep.subr.bf16.mxu0 %v4863
        %4917 = vmatpush1.bf16.msra.mxu0 %v4862
        %4918 = vmatprep.subr.bf16.mxu0 %v4865
        %4919 = vmatpush1.bf16.msra.mxu0 %v4864
        %4920 = vmatprep.subr.bf16.mxu0 %v4867
        %4921 = vmatpush1.bf16.msra.mxu0 %v4866
        %4922 = vmatprep.subr.bf16.mxu0 %v4869
        %4923 = vmatpush1.bf16.msra.mxu0 %v4868
        %4924 = vmatprep.subr.bf16.mxu0 %v4871
        %4925 = vmatpush1.bf16.msra.mxu0 %v4870
        %4926 = vmatprep.subr.bf16.mxu0 %v4873
        %4927 = vmatpush1.bf16.msra.mxu0 %v4872
        %4928 = vmatprep.subr.bf16.mxu0 0
        %4929 = vmatpush1.bf16.msra.mxu0 0
        %4930 = vmatprep.subr.bf16.mxu0 0
        %4931 = vmatpush1.bf16.msra.mxu0 0
        %4932 = vmatprep.subr.bf16.mxu0 0
        %4933 = vmatpush1.bf16.msra.mxu0 0
        %4934 = vmatprep.subr.bf16.mxu0 0
        %4935 = vmatpush1.bf16.msra.mxu0 0
        %4936 = vmatprep.mubr.bf16.mxu0 %v4899
        %4937 = vmatmul.mubr.bf16.gmra.mrb[0].mxu0 %v4749
        %v4938 = vpop.f32.mrb[0].mxu0
        %v4939 = vadd.f32 0.0, %v4938
        %v4940 = vpop.f32.mrb[0].mxu0
        %v4941 = vadd.f32 0.0, %v4940
        %v4942 = vpop.f32.mrb[0].mxu0
        %v4943 = vadd.f32 0.0, %v4942
        %v4944 = vpop.f32.mrb[0].mxu0
        %v4945 = vadd.f32 0.0, %v4944
        %4946 = vmatprep.mubr.bf16.mxu0 %v4902
        %4947 = vmatmul.mubr.bf16.gmra.mrb[0].mxu0 %v4751
        %v4948 = vpop.f32.mrb[0].mxu0
        %v4949 = vadd.f32 0.0, %v4948
        %v4950 = vpop.f32.mrb[0].mxu0
        %v4951 = vadd.f32 0.0, %v4950
        %v4952 = vpop.f32.mrb[0].mxu0
        %v4953 = vadd.f32 0.0, %v4952
        %v4954 = vpop.f32.mrb[0].mxu0
        %v4955 = vadd.f32 0.0, %v4954
        %4956 = vdwg.mxu0
        %v4957 = vadd.f32 %v4667, %v4939
        %v4958 = vadd.f32 %v4668, %v4941
        %v4959 = vadd.f32 %v4669, %v4943
        %v4960 = vadd.f32 %v4670, %v4945
        %v4961 = vadd.f32 %v4671, %v4949
        %v4962 = vadd.f32 %v4672, %v4951
        %v4963 = vadd.f32 %v4673, %v4953
        %v4964 = vadd.f32 %v4674, %v4955
        %s4965 = scalar_lea.vmem [#allocation6], 6
        %v4966 = vld [vmem:[%s4965] sm:$0x3]
        %v4968 = vlaneseq
        %v4969 = vshrl.u32 %v4968, 7
        %v4970 = vsub.s32 0, %v4969
        %v4971 = vrot.slane %v4966, %v4970
        %v4972 = vlaneseq
        %v4973 = vshrl.u32 %v4972, 7
        %v4974 = vsub.s32 1, %v4973
        %v4975 = vrot.slane %v4966, %v4974
        %v4978 = vadd.f32 %v4957, %v4971
        %v4979 = vadd.f32 %v4958, %v4975
        %v4980 = vadd.f32 %v4959, %v4971
        %v4981 = vadd.f32 %v4960, %v4975
        %v4982 = vadd.f32 %v4961, %v4971
        %v4983 = vadd.f32 %v4962, %v4975
        %v4984 = vadd.f32 %v4963, %v4971
        %v4985 = vadd.f32 %v4964, %v4975
        %v4986 = vmul.f32 %v4978, 0.1
        %v4987 = vmul.f32 %v4979, 0.1
        %v4988 = vmul.f32 %v4980, 0.1
        %v4989 = vmul.f32 %v4981, 0.1
        %v4990 = vmul.f32 %v4982, 0.1
        %v4991 = vmul.f32 %v4983, 0.1
        %v4992 = vmul.f32 %v4984, 0.1
        %v4993 = vmul.f32 %v4985, 0.1
        %v4994 = vmax.f32 %v4978, %v4986
        %v4995 = vmax.f32 %v4979, %v4987
        %v4996 = vmax.f32 %v4980, %v4988
        %v4997 = vmax.f32 %v4981, %v4989
        %v4998 = vmax.f32 %v4982, %v4990
        %v4999 = vmax.f32 %v4983, %v4991
        %v5000 = vmax.f32 %v4984, %v4992
        %v5001 = vmax.f32 %v4985, %v4993
        %v5002 = vpack.c.bf16 %v4996, %v4994
        %v5003 = vpack.c.bf16 %v4997, %v4995
        %v5004 = vpack.c.bf16 %v5000, %v4998
        %v5005 = vpack.c.bf16 %v5001, %v4999
        %s5006 = scalar_lea.vmem [#allocation2], 256
        %v5007 = vld [vmem:[%s5006] sm:$0xf]
        %v5008 = vld [vmem:[%s5006 + $0x4] sm:$0xf]
        %v5009 = vld [vmem:[%s5006 + $0x8] sm:$0xf]
        %v5010 = vld [vmem:[%s5006 + $0xc] sm:$0xf]
        %v5015 = vunpack.c.l.b16 %v5007
        %v5016 = vunpack.c.l.b16 %v5008
        %v5017 = vunpack.c.l.b16 %v5009
        %v5018 = vunpack.c.l.b16 %v5010
        %v5019 = vpack.c.b16 %v5016, %v5015
        %v5020 = vpack.c.b16 %v5018, %v5017
        %v5022 = vsel %vm281, %v5019, 0
        %v5025 = vsel %vm281, %v5020, 0
        %5027 = vmatprep.subr.bf16.mxu0 %v5003
        %5028 = vmatpush1.bf16.msra.mxu0 %v5002
        %5029 = vmatprep.subr.bf16.mxu0 %v5005
        %5030 = vmatpush1.bf16.msra.mxu0 %v5004
        %5031 = vmatprep.subr.bf16.mxu0 0
        %5032 = vmatpush1.bf16.msra.mxu0 0
        %5033 = vmatprep.subr.bf16.mxu0 0
        %5034 = vmatpush1.bf16.msra.mxu0 0
        %5035 = vmatprep.subr.bf16.mxu0 0
        %5036 = vmatpush1.bf16.msra.mxu0 0
        %5037 = vmatprep.subr.bf16.mxu0 0
        %5038 = vmatpush1.bf16.msra.mxu0 0
        %5039 = vmatprep.subr.bf16.mxu0 0
        %5040 = vmatpush1.bf16.msra.mxu0 0
        %5041 = vmatprep.subr.bf16.mxu0 0
        %5042 = vmatpush1.bf16.msra.mxu0 0
        %5043 = vmatprep.subr.bf16.mxu0 0
        %5044 = vmatpush1.bf16.msra.mxu0 0
        %5045 = vmatprep.subr.bf16.mxu0 0
        %5046 = vmatpush1.bf16.msra.mxu0 0
        %5047 = vmatprep.subr.bf16.mxu0 0
        %5048 = vmatpush1.bf16.msra.mxu0 0
        %5049 = vmatprep.subr.bf16.mxu0 0
        %5050 = vmatpush1.bf16.msra.mxu0 0
        %5051 = vmatprep.subr.bf16.mxu0 0
        %5052 = vmatpush1.bf16.msra.mxu0 0
        %5053 = vmatprep.subr.bf16.mxu0 0
        %5054 = vmatpush1.bf16.msra.mxu0 0
        %5055 = vmatprep.subr.bf16.mxu0 0
        %5056 = vmatpush1.bf16.msra.mxu0 0
        %5057 = vmatprep.subr.bf16.mxu0 0
        %5058 = vmatpush1.bf16.msra.mxu0 0
        %5059 = vmatprep.mubr.bf16.mxu0 0
        %5060 = vmatmul.mubr.bf16.gmra.mrb[0].mxu0 %v5022
        %v5061 = vpop.f32.mrb[0].mxu0
        %v5062 = vadd.f32 0.0, %v5061
        %v5063 = vpop.f32.mrb[0].mxu0
        %v5064 = vadd.f32 0.0, %v5063
        %v5065 = vpop.f32.mrb[0].mxu0
        %v5066 = vadd.f32 0.0, %v5065
        %v5067 = vpop.f32.mrb[0].mxu0
        %v5068 = vadd.f32 0.0, %v5067
        %5069 = vmatprep.mubr.bf16.mxu0 0
        %5070 = vmatmul.mubr.bf16.gmra.mrb[0].mxu0 %v5025
        %v5071 = vpop.f32.mrb[0].mxu0
        %v5072 = vadd.f32 0.0, %v5071
        %v5073 = vpop.f32.mrb[0].mxu0
        %v5074 = vadd.f32 0.0, %v5073
        %v5075 = vpop.f32.mrb[0].mxu0
        %v5076 = vadd.f32 0.0, %v5075
        %v5077 = vpop.f32.mrb[0].mxu0
        %v5078 = vadd.f32 0.0, %v5077
        %5079 = vdwg.mxu0
        %v5080 = vpack.c.bf16 %v5066, %v5062
        %v5081 = vpack.c.bf16 %v5068, %v5064
        %v5082 = vpack.c.bf16 %v5076, %v5072
        %v5083 = vpack.c.bf16 %v5078, %v5074
        %s5084 = scalar_lea.vmem [#allocation4], 3072
        %v5085 = vld [vmem:[%s5084] sm:$0xff]
        %v5086 = vld [vmem:[%s5084 + $0x8] sm:$0xff]
        %v5087 = vld [vmem:[%s5084 + $0x10] sm:$0xff]
        %v5088 = vld [vmem:[%s5084 + $0x18] sm:$0xff]
        %v5089 = vld [vmem:[%s5084 + $0x20] sm:$0xff]
        %v5090 = vld [vmem:[%s5084 + $0x28] sm:$0xff]
        %v5091 = vld [vmem:[%s5084 + $0x30] sm:$0xff]
        %v5092 = vld [vmem:[%s5084 + $0x38] sm:$0xff]
        %v5093 = vld [vmem:[%s5084 + $0x40] sm:$0xff]
        %v5094 = vld [vmem:[%s5084 + $0x48] sm:$0xff]
        %v5095 = vld [vmem:[%s5084 + $0x50] sm:$0xff]
        %v5096 = vld [vmem:[%s5084 + $0x58] sm:$0xff]
        %v5097 = vld [vmem:[%s5084 + $0x60] sm:$0xff]
        %v5098 = vld [vmem:[%s5084 + $0x68] sm:$0xff]
        %v5099 = vld [vmem:[%s5084 + $0x70] sm:$0xff]
        %v5100 = vld [vmem:[%s5084 + $0x78] sm:$0xff]
        %v5101 = vld [vmem:[%s5084 + $0x80] sm:$0xff]
        %v5102 = vld [vmem:[%s5084 + $0x88] sm:$0xff]
        %v5103 = vld [vmem:[%s5084 + $0x90] sm:$0xff]
        %v5104 = vld [vmem:[%s5084 + $0x98] sm:$0xff]
        %v5105 = vld [vmem:[%s5084 + $0xa0] sm:$0xff]
        %v5106 = vld [vmem:[%s5084 + $0xa8] sm:$0xff]
        %v5107 = vld [vmem:[%s5084 + $0xb0] sm:$0xff]
        %v5108 = vld [vmem:[%s5084 + $0xb8] sm:$0xff]
        %s5109 = scalar_lea.vmem [#allocation2], 272
        %v5110 = vld [vmem:[%s5109] sm:$0xf]
        %v5111 = vld [vmem:[%s5109 + $0x4] sm:$0xf]
        %v5112 = vld [vmem:[%s5109 + $0x8] sm:$0xf]
        %v5113 = vld [vmem:[%s5109 + $0xc] sm:$0xf]
        %v5118 = vunpack.c.l.b16 %v5110
        %v5119 = vunpack.c.l.b16 %v5111
        %v5120 = vunpack.c.l.b16 %v5112
        %v5121 = vunpack.c.l.b16 %v5113
        %v5122 = vpack.c.b16 %v5119, %v5118
        %v5123 = vpack.c.b16 %v5121, %v5120
        %v5125 = vsel %vm281, %v5122, 0
        %v5128 = vsel %vm281, %v5123, 0
        %5130 = vmatprep.subr.bf16.mxu0 %v5003
        %5131 = vmatpush1.bf16.msra.mxu0 %v5002
        %5132 = vmatprep.subr.bf16.mxu0 %v5005
        %5133 = vmatpush1.bf16.msra.mxu0 %v5004
        %5134 = vmatprep.subr.bf16.mxu0 0
        %5135 = vmatpush1.bf16.msra.mxu0 0
        %5136 = vmatprep.subr.bf16.mxu0 0
        %5137 = vmatpush1.bf16.msra.mxu0 0
        %5138 = vmatprep.subr.bf16.mxu0 0
        %5139 = vmatpush1.bf16.msra.mxu0 0
        %5140 = vmatprep.subr.bf16.mxu0 0
        %5141 = vmatpush1.bf16.msra.mxu0 0
        %5142 = vmatprep.subr.bf16.mxu0 0
        %5143 = vmatpush1.bf16.msra.mxu0 0
        %5144 = vmatprep.subr.bf16.mxu0 0
        %5145 = vmatpush1.bf16.msra.mxu0 0
        %5146 = vmatprep.subr.bf16.mxu0 0
        %5147 = vmatpush1.bf16.msra.mxu0 0
        %5148 = vmatprep.subr.bf16.mxu0 0
        %5149 = vmatpush1.bf16.msra.mxu0 0
        %5150 = vmatprep.subr.bf16.mxu0 0
        %5151 = vmatpush1.bf16.msra.mxu0 0
        %5152 = vmatprep.subr.bf16.mxu0 0
        %5153 = vmatpush1.bf16.msra.mxu0 0
        %5154 = vmatprep.subr.bf16.mxu0 0
        %5155 = vmatpush1.bf16.msra.mxu0 0
        %5156 = vmatprep.subr.bf16.mxu0 0
        %5157 = vmatpush1.bf16.msra.mxu0 0
        %5158 = vmatprep.subr.bf16.mxu0 0
        %5159 = vmatpush1.bf16.msra.mxu0 0
        %5160 = vmatprep.subr.bf16.mxu0 0
        %5161 = vmatpush1.bf16.msra.mxu0 0
        %5162 = vmatprep.mubr.bf16.mxu0 0
        %5163 = vmatmul.mubr.bf16.gmra.mrb[0].mxu0 %v5125
        %v5164 = vpop.f32.mrb[0].mxu0
        %v5165 = vadd.f32 0.0, %v5164
        %v5166 = vpop.f32.mrb[0].mxu0
        %v5167 = vadd.f32 0.0, %v5166
        %v5168 = vpop.f32.mrb[0].mxu0
        %v5169 = vadd.f32 0.0, %v5168
        %v5170 = vpop.f32.mrb[0].mxu0
        %v5171 = vadd.f32 0.0, %v5170
        %5172 = vmatprep.mubr.bf16.mxu0 0
        %5173 = vmatmul.mubr.bf16.gmra.mrb[0].mxu0 %v5128
        %v5174 = vpop.f32.mrb[0].mxu0
        %v5175 = vadd.f32 0.0, %v5174
        %v5176 = vpop.f32.mrb[0].mxu0
        %v5177 = vadd.f32 0.0, %v5176
        %v5178 = vpop.f32.mrb[0].mxu0
        %v5179 = vadd.f32 0.0, %v5178
        %v5180 = vpop.f32.mrb[0].mxu0
        %v5181 = vadd.f32 0.0, %v5180
        %5182 = vdwg.mxu0
        %v5183 = vpack.c.bf16 %v5169, %v5165
        %v5184 = vpack.c.bf16 %v5171, %v5167
        %v5185 = vpack.c.bf16 %v5179, %v5175
        %v5186 = vpack.c.bf16 %v5181, %v5177
        %s5187 = scalar_lea.vmem [#allocation4], 3264
        %v5188 = vld [vmem:[%s5187] sm:$0xff]
        %v5189 = vld [vmem:[%s5187 + $0x8] sm:$0xff]
        %v5190 = vld [vmem:[%s5187 + $0x10] sm:$0xff]
        %v5191 = vld [vmem:[%s5187 + $0x18] sm:$0xff]
        %v5192 = vld [vmem:[%s5187 + $0x20] sm:$0xff]
        %v5193 = vld [vmem:[%s5187 + $0x28] sm:$0xff]
        %v5194 = vld [vmem:[%s5187 + $0x30] sm:$0xff]
        %v5195 = vld [vmem:[%s5187 + $0x38] sm:$0xff]
        %v5196 = vld [vmem:[%s5187 + $0x40] sm:$0xff]
        %v5197 = vld [vmem:[%s5187 + $0x48] sm:$0xff]
        %v5198 = vld [vmem:[%s5187 + $0x50] sm:$0xff]
        %v5199 = vld [vmem:[%s5187 + $0x58] sm:$0xff]
        %v5200 = vld [vmem:[%s5187 + $0x60] sm:$0xff]
        %v5201 = vld [vmem:[%s5187 + $0x68] sm:$0xff]
        %v5202 = vld [vmem:[%s5187 + $0x70] sm:$0xff]
        %v5203 = vld [vmem:[%s5187 + $0x78] sm:$0xff]
        %v5204 = vld [vmem:[%s5187 + $0x80] sm:$0xff]
        %v5205 = vld [vmem:[%s5187 + $0x88] sm:$0xff]
        %v5206 = vld [vmem:[%s5187 + $0x90] sm:$0xff]
        %v5207 = vld [vmem:[%s5187 + $0x98] sm:$0xff]
        %v5208 = vld [vmem:[%s5187 + $0xa0] sm:$0xff]
        %v5209 = vld [vmem:[%s5187 + $0xa8] sm:$0xff]
        %v5210 = vld [vmem:[%s5187 + $0xb0] sm:$0xff]
        %v5211 = vld [vmem:[%s5187 + $0xb8] sm:$0xff]
        %v5236 = vunpack.c.l.b16 %v5188
        %v5237 = vunpack.c.h.b16 %v5188
        %v5238 = vunpack.c.l.b16 %v5189
        %v5239 = vunpack.c.h.b16 %v5189
        %v5240 = vunpack.c.l.b16 %v5190
        %v5241 = vunpack.c.h.b16 %v5190
        %v5242 = vunpack.c.l.b16 %v5191
        %v5243 = vunpack.c.h.b16 %v5191
        %v5244 = vunpack.c.l.b16 %v5192
        %v5245 = vunpack.c.h.b16 %v5192
        %v5246 = vunpack.c.l.b16 %v5193
        %v5247 = vunpack.c.h.b16 %v5193
        %v5248 = vunpack.c.l.b16 %v5194
        %v5249 = vunpack.c.h.b16 %v5194
        %v5250 = vunpack.c.l.b16 %v5195
        %v5251 = vunpack.c.h.b16 %v5195
        %v5252 = vunpack.c.l.b16 %v5196
        %v5253 = vunpack.c.h.b16 %v5196
        %v5254 = vunpack.c.l.b16 %v5197
        %v5255 = vunpack.c.h.b16 %v5197
        %v5256 = vunpack.c.l.b16 %v5198
        %v5257 = vunpack.c.h.b16 %v5198
        %v5258 = vunpack.c.l.b16 %v5199
        %v5259 = vunpack.c.h.b16 %v5199
        %v5260 = vunpack.c.l.b16 %v5200
        %v5261 = vunpack.c.h.b16 %v5200
        %v5262 = vunpack.c.l.b16 %v5201
        %v5263 = vunpack.c.h.b16 %v5201
        %v5264 = vunpack.c.l.b16 %v5202
        %v5265 = vunpack.c.h.b16 %v5202
        %v5266 = vunpack.c.l.b16 %v5203
        %v5267 = vunpack.c.h.b16 %v5203
        %v5268 = vunpack.c.l.b16 %v5204
        %v5269 = vunpack.c.h.b16 %v5204
        %v5270 = vunpack.c.l.b16 %v5205
        %v5271 = vunpack.c.h.b16 %v5205
        %v5272 = vunpack.c.l.b16 %v5206
        %v5273 = vunpack.c.h.b16 %v5206
        %v5274 = vunpack.c.l.b16 %v5207
        %v5275 = vunpack.c.h.b16 %v5207
        %v5276 = vunpack.c.l.b16 %v5208
        %v5277 = vunpack.c.h.b16 %v5208
        %v5278 = vunpack.c.l.b16 %v5209
        %v5279 = vunpack.c.h.b16 %v5209
        %v5280 = vunpack.c.l.b16 %v5210
        %v5281 = vunpack.c.h.b16 %v5210
        %v5282 = vunpack.c.l.b16 %v5211
        %v5283 = vunpack.c.h.b16 %v5211
        %v5284 = vpack.c.b16 %v5238, %v5236
        %v5285 = vpack.c.b16 %v5239, %v5237
        %v5286 = vpack.c.b16 %v5242, %v5240
        %v5287 = vpack.c.b16 %v5243, %v5241
        %v5288 = vpack.c.b16 %v5246, %v5244
        %v5289 = vpack.c.b16 %v5247, %v5245
        %v5290 = vpack.c.b16 %v5250, %v5248
        %v5291 = vpack.c.b16 %v5251, %v5249
        %v5292 = vpack.c.b16 %v5254, %v5252
        %v5293 = vpack.c.b16 %v5255, %v5253
        %v5294 = vpack.c.b16 %v5258, %v5256
        %v5295 = vpack.c.b16 %v5259, %v5257
        %v5296 = vpack.c.b16 %v5262, %v5260
        %v5297 = vpack.c.b16 %v5263, %v5261
        %v5298 = vpack.c.b16 %v5266, %v5264
        %v5299 = vpack.c.b16 %v5267, %v5265
        %v5300 = vpack.c.b16 %v5270, %v5268
        %v5301 = vpack.c.b16 %v5271, %v5269
        %v5302 = vpack.c.b16 %v5274, %v5272
        %v5303 = vpack.c.b16 %v5275, %v5273
        %v5304 = vpack.c.b16 %v5278, %v5276
        %v5305 = vpack.c.b16 %v5279, %v5277
        %v5306 = vpack.c.b16 %v5282, %v5280
        %v5307 = vpack.c.b16 %v5283, %v5281
        %v5333 = vsel %vm592, %v5184, 0
        %v5336 = vsel %vm592, %v5186, 0
        %5338 = vmatprep.subr.bf16.mxu0 %v5285
        %5339 = vmatpush1.bf16.msra.mxu0 %v5284
        %5340 = vmatprep.subr.bf16.mxu0 %v5287
        %5341 = vmatpush1.bf16.msra.mxu0 %v5286
        %5342 = vmatprep.subr.bf16.mxu0 %v5289
        %5343 = vmatpush1.bf16.msra.mxu0 %v5288
        %5344 = vmatprep.subr.bf16.mxu0 %v5291
        %5345 = vmatpush1.bf16.msra.mxu0 %v5290
        %5346 = vmatprep.subr.bf16.mxu0 %v5293
        %5347 = vmatpush1.bf16.msra.mxu0 %v5292
        %5348 = vmatprep.subr.bf16.mxu0 %v5295
        %5349 = vmatpush1.bf16.msra.mxu0 %v5294
        %5350 = vmatprep.subr.bf16.mxu0 %v5297
        %5351 = vmatpush1.bf16.msra.mxu0 %v5296
        %5352 = vmatprep.subr.bf16.mxu0 %v5299
        %5353 = vmatpush1.bf16.msra.mxu0 %v5298
        %5354 = vmatprep.subr.bf16.mxu0 %v5301
        %5355 = vmatpush1.bf16.msra.mxu0 %v5300
        %5356 = vmatprep.subr.bf16.mxu0 %v5303
        %5357 = vmatpush1.bf16.msra.mxu0 %v5302
        %5358 = vmatprep.subr.bf16.mxu0 %v5305
        %5359 = vmatpush1.bf16.msra.mxu0 %v5304
        %5360 = vmatprep.subr.bf16.mxu0 %v5307
        %5361 = vmatpush1.bf16.msra.mxu0 %v5306
        %5362 = vmatprep.subr.bf16.mxu0 0
        %5363 = vmatpush1.bf16.msra.mxu0 0
        %5364 = vmatprep.subr.bf16.mxu0 0
        %5365 = vmatpush1.bf16.msra.mxu0 0
        %5366 = vmatprep.subr.bf16.mxu0 0
        %5367 = vmatpush1.bf16.msra.mxu0 0
        %5368 = vmatprep.subr.bf16.mxu0 0
        %5369 = vmatpush1.bf16.msra.mxu0 0
        %5370 = vmatprep.mubr.bf16.mxu0 %v5333
        %5371 = vmatmul.mubr.bf16.gmra.mrb[0].mxu0 %v5183
        %v5372 = vpop.f32.mrb[0].mxu0
        %v5373 = vadd.f32 0.0, %v5372
        %v5374 = vpop.f32.mrb[0].mxu0
        %v5375 = vadd.f32 0.0, %v5374
        %v5376 = vpop.f32.mrb[0].mxu0
        %v5377 = vadd.f32 0.0, %v5376
        %v5378 = vpop.f32.mrb[0].mxu0
        %v5379 = vadd.f32 0.0, %v5378
        %5380 = vmatprep.mubr.bf16.mxu0 %v5336
        %5381 = vmatmul.mubr.bf16.gmra.mrb[0].mxu0 %v5185
        %v5382 = vpop.f32.mrb[0].mxu0
        %v5383 = vadd.f32 0.0, %v5382
        %v5384 = vpop.f32.mrb[0].mxu0
        %v5385 = vadd.f32 0.0, %v5384
        %v5386 = vpop.f32.mrb[0].mxu0
        %v5387 = vadd.f32 0.0, %v5386
        %v5388 = vpop.f32.mrb[0].mxu0
        %v5389 = vadd.f32 0.0, %v5388
        %5390 = vdwg.mxu0
        %v5415 = vunpack.c.l.b16 %v5085
        %v5416 = vunpack.c.h.b16 %v5085
        %v5417 = vunpack.c.l.b16 %v5086
        %v5418 = vunpack.c.h.b16 %v5086
        %v5419 = vunpack.c.l.b16 %v5087
        %v5420 = vunpack.c.h.b16 %v5087
        %v5421 = vunpack.c.l.b16 %v5088
        %v5422 = vunpack.c.h.b16 %v5088
        %v5423 = vunpack.c.l.b16 %v5089
        %v5424 = vunpack.c.h.b16 %v5089
        %v5425 = vunpack.c.l.b16 %v5090
        %v5426 = vunpack.c.h.b16 %v5090
        %v5427 = vunpack.c.l.b16 %v5091
        %v5428 = vunpack.c.h.b16 %v5091
        %v5429 = vunpack.c.l.b16 %v5092
        %v5430 = vunpack.c.h.b16 %v5092
        %v5431 = vunpack.c.l.b16 %v5093
        %v5432 = vunpack.c.h.b16 %v5093
        %v5433 = vunpack.c.l.b16 %v5094
        %v5434 = vunpack.c.h.b16 %v5094
        %v5435 = vunpack.c.l.b16 %v5095
        %v5436 = vunpack.c.h.b16 %v5095
        %v5437 = vunpack.c.l.b16 %v5096
        %v5438 = vunpack.c.h.b16 %v5096
        %v5439 = vunpack.c.l.b16 %v5097
        %v5440 = vunpack.c.h.b16 %v5097
        %v5441 = vunpack.c.l.b16 %v5098
        %v5442 = vunpack.c.h.b16 %v5098
        %v5443 = vunpack.c.l.b16 %v5099
        %v5444 = vunpack.c.h.b16 %v5099
        %v5445 = vunpack.c.l.b16 %v5100
        %v5446 = vunpack.c.h.b16 %v5100
        %v5447 = vunpack.c.l.b16 %v5101
        %v5448 = vunpack.c.h.b16 %v5101
        %v5449 = vunpack.c.l.b16 %v5102
        %v5450 = vunpack.c.h.b16 %v5102
        %v5451 = vunpack.c.l.b16 %v5103
        %v5452 = vunpack.c.h.b16 %v5103
        %v5453 = vunpack.c.l.b16 %v5104
        %v5454 = vunpack.c.h.b16 %v5104
        %v5455 = vunpack.c.l.b16 %v5105
        %v5456 = vunpack.c.h.b16 %v5105
        %v5457 = vunpack.c.l.b16 %v5106
        %v5458 = vunpack.c.h.b16 %v5106
        %v5459 = vunpack.c.l.b16 %v5107
        %v5460 = vunpack.c.h.b16 %v5107
        %v5461 = vunpack.c.l.b16 %v5108
        %v5462 = vunpack.c.h.b16 %v5108
        %v5463 = vpack.c.b16 %v5417, %v5415
        %v5464 = vpack.c.b16 %v5418, %v5416
        %v5465 = vpack.c.b16 %v5421, %v5419
        %v5466 = vpack.c.b16 %v5422, %v5420
        %v5467 = vpack.c.b16 %v5425, %v5423
        %v5468 = vpack.c.b16 %v5426, %v5424
        %v5469 = vpack.c.b16 %v5429, %v5427
        %v5470 = vpack.c.b16 %v5430, %v5428
        %v5471 = vpack.c.b16 %v5433, %v5431
        %v5472 = vpack.c.b16 %v5434, %v5432
        %v5473 = vpack.c.b16 %v5437, %v5435
        %v5474 = vpack.c.b16 %v5438, %v5436
        %v5475 = vpack.c.b16 %v5441, %v5439
        %v5476 = vpack.c.b16 %v5442, %v5440
        %v5477 = vpack.c.b16 %v5445, %v5443
        %v5478 = vpack.c.b16 %v5446, %v5444
        %v5479 = vpack.c.b16 %v5449, %v5447
        %v5480 = vpack.c.b16 %v5450, %v5448
        %v5481 = vpack.c.b16 %v5453, %v5451
        %v5482 = vpack.c.b16 %v5454, %v5452
        %v5483 = vpack.c.b16 %v5457, %v5455
        %v5484 = vpack.c.b16 %v5458, %v5456
        %v5485 = vpack.c.b16 %v5461, %v5459
        %v5486 = vpack.c.b16 %v5462, %v5460
        %v5512 = vsel %vm592, %v5081, 0
        %v5515 = vsel %vm592, %v5083, 0
        %5517 = vmatprep.subr.bf16.mxu0 %v5464
        %5518 = vmatpush1.bf16.msra.mxu0 %v5463
        %5519 = vmatprep.subr.bf16.mxu0 %v5466
        %5520 = vmatpush1.bf16.msra.mxu0 %v5465
        %5521 = vmatprep.subr.bf16.mxu0 %v5468
        %5522 = vmatpush1.bf16.msra.mxu0 %v5467
        %5523 = vmatprep.subr.bf16.mxu0 %v5470
        %5524 = vmatpush1.bf16.msra.mxu0 %v5469
        %5525 = vmatprep.subr.bf16.mxu0 %v5472
        %5526 = vmatpush1.bf16.msra.mxu0 %v5471
        %5527 = vmatprep.subr.bf16.mxu0 %v5474
        %5528 = vmatpush1.bf16.msra.mxu0 %v5473
        %5529 = vmatprep.subr.bf16.mxu0 %v5476
        %5530 = vmatpush1.bf16.msra.mxu0 %v5475
        %5531 = vmatprep.subr.bf16.mxu0 %v5478
        %5532 = vmatpush1.bf16.msra.mxu0 %v5477
        %5533 = vmatprep.subr.bf16.mxu0 %v5480
        %5534 = vmatpush1.bf16.msra.mxu0 %v5479
        %5535 = vmatprep.subr.bf16.mxu0 %v5482
        %5536 = vmatpush1.bf16.msra.mxu0 %v5481
        %5537 = vmatprep.subr.bf16.mxu0 %v5484
        %5538 = vmatpush1.bf16.msra.mxu0 %v5483
        %5539 = vmatprep.subr.bf16.mxu0 %v5486
        %5540 = vmatpush1.bf16.msra.mxu0 %v5485
        %5541 = vmatprep.subr.bf16.mxu0 0
        %5542 = vmatpush1.bf16.msra.mxu0 0
        %5543 = vmatprep.subr.bf16.mxu0 0
        %5544 = vmatpush1.bf16.msra.mxu0 0
        %5545 = vmatprep.subr.bf16.mxu0 0
        %5546 = vmatpush1.bf16.msra.mxu0 0
        %5547 = vmatprep.subr.bf16.mxu0 0
        %5548 = vmatpush1.bf16.msra.mxu0 0
        %5549 = vmatprep.mubr.bf16.mxu0 %v5512
        %5550 = vmatmul.mubr.bf16.gmra.mrb[0].mxu0 %v5080
        %v5551 = vpop.f32.mrb[0].mxu0
        %v5552 = vadd.f32 %v5373, %v5551
        %v5553 = vpop.f32.mrb[0].mxu0
        %v5554 = vadd.f32 %v5375, %v5553
        %v5555 = vpop.f32.mrb[0].mxu0
        %v5556 = vadd.f32 %v5377, %v5555
        %v5557 = vpop.f32.mrb[0].mxu0
        %v5558 = vadd.f32 %v5379, %v5557
        %5559 = vmatprep.mubr.bf16.mxu0 %v5515
        %5560 = vmatmul.mubr.bf16.gmra.mrb[0].mxu0 %v5082
        %v5561 = vpop.f32.mrb[0].mxu0
        %v5562 = vadd.f32 %v5383, %v5561
        %v5563 = vpop.f32.mrb[0].mxu0
        %v5564 = vadd.f32 %v5385, %v5563
        %v5565 = vpop.f32.mrb[0].mxu0
        %v5566 = vadd.f32 %v5387, %v5565
        %v5567 = vpop.f32.mrb[0].mxu0
        %v5568 = vadd.f32 %v5389, %v5567
        %5569 = vdwg.mxu0
        %s5570 = scalar_lea.vmem [#allocation2], 288
        %v5571 = vld [vmem:[%s5570] sm:$0xf]
        %v5572 = vld [vmem:[%s5570 + $0x4] sm:$0xf]
        %v5573 = vld [vmem:[%s5570 + $0x8] sm:$0xf]
        %v5574 = vld [vmem:[%s5570 + $0xc] sm:$0xf]
        %v5579 = vunpack.c.l.b16 %v5571
        %v5580 = vunpack.c.l.b16 %v5572
        %v5581 = vunpack.c.l.b16 %v5573
        %v5582 = vunpack.c.l.b16 %v5574
        %v5583 = vpack.c.b16 %v5580, %v5579
        %v5584 = vpack.c.b16 %v5582, %v5581
        %v5586 = vsel %vm281, %v5583, 0
        %v5589 = vsel %vm281, %v5584, 0
        %5591 = vmatprep.subr.bf16.mxu0 %v5003
        %5592 = vmatpush1.bf16.msra.mxu0 %v5002
        %5593 = vmatprep.subr.bf16.mxu0 %v5005
        %5594 = vmatpush1.bf16.msra.mxu0 %v5004
        %5595 = vmatprep.subr.bf16.mxu0 0
        %5596 = vmatpush1.bf16.msra.mxu0 0
        %5597 = vmatprep.subr.bf16.mxu0 0
        %5598 = vmatpush1.bf16.msra.mxu0 0
        %5599 = vmatprep.subr.bf16.mxu0 0
        %5600 = vmatpush1.bf16.msra.mxu0 0
        %5601 = vmatprep.subr.bf16.mxu0 0
        %5602 = vmatpush1.bf16.msra.mxu0 0
        %5603 = vmatprep.subr.bf16.mxu0 0
        %5604 = vmatpush1.bf16.msra.mxu0 0
        %5605 = vmatprep.subr.bf16.mxu0 0
        %5606 = vmatpush1.bf16.msra.mxu0 0
        %5607 = vmatprep.subr.bf16.mxu0 0
        %5608 = vmatpush1.bf16.msra.mxu0 0
        %5609 = vmatprep.subr.bf16.mxu0 0
        %5610 = vmatpush1.bf16.msra.mxu0 0
        %5611 = vmatprep.subr.bf16.mxu0 0
        %5612 = vmatpush1.bf16.msra.mxu0 0
        %5613 = vmatprep.subr.bf16.mxu0 0
        %5614 = vmatpush1.bf16.msra.mxu0 0
        %5615 = vmatprep.subr.bf16.mxu0 0
        %5616 = vmatpush1.bf16.msra.mxu0 0
        %5617 = vmatprep.subr.bf16.mxu0 0
        %5618 = vmatpush1.bf16.msra.mxu0 0
        %5619 = vmatprep.subr.bf16.mxu0 0
        %5620 = vmatpush1.bf16.msra.mxu0 0
        %5621 = vmatprep.subr.bf16.mxu0 0
        %5622 = vmatpush1.bf16.msra.mxu0 0
        %5623 = vmatprep.mubr.bf16.mxu0 0
        %5624 = vmatmul.mubr.bf16.gmra.mrb[0].mxu0 %v5586
        %v5625 = vpop.f32.mrb[0].mxu0
        %v5626 = vadd.f32 0.0, %v5625
        %v5627 = vpop.f32.mrb[0].mxu0
        %v5628 = vadd.f32 0.0, %v5627
        %v5629 = vpop.f32.mrb[0].mxu0
        %v5630 = vadd.f32 0.0, %v5629
        %v5631 = vpop.f32.mrb[0].mxu0
        %v5632 = vadd.f32 0.0, %v5631
        %5633 = vmatprep.mubr.bf16.mxu0 0
        %5634 = vmatmul.mubr.bf16.gmra.mrb[0].mxu0 %v5589
        %v5635 = vpop.f32.mrb[0].mxu0
        %v5636 = vadd.f32 0.0, %v5635
        %v5637 = vpop.f32.mrb[0].mxu0
        %v5638 = vadd.f32 0.0, %v5637
        %v5639 = vpop.f32.mrb[0].mxu0
        %v5640 = vadd.f32 0.0, %v5639
        %v5641 = vpop.f32.mrb[0].mxu0
        %v5642 = vadd.f32 0.0, %v5641
        %5643 = vdwg.mxu0
        %v5644 = vpack.c.bf16 %v5630, %v5626
        %v5645 = vpack.c.bf16 %v5632, %v5628
        %v5646 = vpack.c.bf16 %v5640, %v5636
        %v5647 = vpack.c.bf16 %v5642, %v5638
        %s5648 = scalar_lea.vmem [#allocation4], 3456
        %v5649 = vld [vmem:[%s5648] sm:$0xff]
        %v5650 = vld [vmem:[%s5648 + $0x8] sm:$0xff]
        %v5651 = vld [vmem:[%s5648 + $0x10] sm:$0xff]
        %v5652 = vld [vmem:[%s5648 + $0x18] sm:$0xff]
        %v5653 = vld [vmem:[%s5648 + $0x20] sm:$0xff]
        %v5654 = vld [vmem:[%s5648 + $0x28] sm:$0xff]
        %v5655 = vld [vmem:[%s5648 + $0x30] sm:$0xff]
        %v5656 = vld [vmem:[%s5648 + $0x38] sm:$0xff]
        %v5657 = vld [vmem:[%s5648 + $0x40] sm:$0xff]
        %v5658 = vld [vmem:[%s5648 + $0x48] sm:$0xff]
        %v5659 = vld [vmem:[%s5648 + $0x50] sm:$0xff]
        %v5660 = vld [vmem:[%s5648 + $0x58] sm:$0xff]
        %v5661 = vld [vmem:[%s5648 + $0x60] sm:$0xff]
        %v5662 = vld [vmem:[%s5648 + $0x68] sm:$0xff]
        %v5663 = vld [vmem:[%s5648 + $0x70] sm:$0xff]
        %v5664 = vld [vmem:[%s5648 + $0x78] sm:$0xff]
        %v5665 = vld [vmem:[%s5648 + $0x80] sm:$0xff]
        %v5666 = vld [vmem:[%s5648 + $0x88] sm:$0xff]
        %v5667 = vld [vmem:[%s5648 + $0x90] sm:$0xff]
        %v5668 = vld [vmem:[%s5648 + $0x98] sm:$0xff]
        %v5669 = vld [vmem:[%s5648 + $0xa0] sm:$0xff]
        %v5670 = vld [vmem:[%s5648 + $0xa8] sm:$0xff]
        %v5671 = vld [vmem:[%s5648 + $0xb0] sm:$0xff]
        %v5672 = vld [vmem:[%s5648 + $0xb8] sm:$0xff]
        %v5697 = vunpack.c.l.b16 %v5649
        %v5698 = vunpack.c.h.b16 %v5649
        %v5699 = vunpack.c.l.b16 %v5650
        %v5700 = vunpack.c.h.b16 %v5650
        %v5701 = vunpack.c.l.b16 %v5651
        %v5702 = vunpack.c.h.b16 %v5651
        %v5703 = vunpack.c.l.b16 %v5652
        %v5704 = vunpack.c.h.b16 %v5652
        %v5705 = vunpack.c.l.b16 %v5653
        %v5706 = vunpack.c.h.b16 %v5653
        %v5707 = vunpack.c.l.b16 %v5654
        %v5708 = vunpack.c.h.b16 %v5654
        %v5709 = vunpack.c.l.b16 %v5655
        %v5710 = vunpack.c.h.b16 %v5655
        %v5711 = vunpack.c.l.b16 %v5656
        %v5712 = vunpack.c.h.b16 %v5656
        %v5713 = vunpack.c.l.b16 %v5657
        %v5714 = vunpack.c.h.b16 %v5657
        %v5715 = vunpack.c.l.b16 %v5658
        %v5716 = vunpack.c.h.b16 %v5658
        %v5717 = vunpack.c.l.b16 %v5659
        %v5718 = vunpack.c.h.b16 %v5659
        %v5719 = vunpack.c.l.b16 %v5660
        %v5720 = vunpack.c.h.b16 %v5660
        %v5721 = vunpack.c.l.b16 %v5661
        %v5722 = vunpack.c.h.b16 %v5661
        %v5723 = vunpack.c.l.b16 %v5662
        %v5724 = vunpack.c.h.b16 %v5662
        %v5725 = vunpack.c.l.b16 %v5663
        %v5726 = vunpack.c.h.b16 %v5663
        %v5727 = vunpack.c.l.b16 %v5664
        %v5728 = vunpack.c.h.b16 %v5664
        %v5729 = vunpack.c.l.b16 %v5665
        %v5730 = vunpack.c.h.b16 %v5665
        %v5731 = vunpack.c.l.b16 %v5666
        %v5732 = vunpack.c.h.b16 %v5666
        %v5733 = vunpack.c.l.b16 %v5667
        %v5734 = vunpack.c.h.b16 %v5667
        %v5735 = vunpack.c.l.b16 %v5668
        %v5736 = vunpack.c.h.b16 %v5668
        %v5737 = vunpack.c.l.b16 %v5669
        %v5738 = vunpack.c.h.b16 %v5669
        %v5739 = vunpack.c.l.b16 %v5670
        %v5740 = vunpack.c.h.b16 %v5670
        %v5741 = vunpack.c.l.b16 %v5671
        %v5742 = vunpack.c.h.b16 %v5671
        %v5743 = vunpack.c.l.b16 %v5672
        %v5744 = vunpack.c.h.b16 %v5672
        %v5745 = vpack.c.b16 %v5699, %v5697
        %v5746 = vpack.c.b16 %v5700, %v5698
        %v5747 = vpack.c.b16 %v5703, %v5701
        %v5748 = vpack.c.b16 %v5704, %v5702
        %v5749 = vpack.c.b16 %v5707, %v5705
        %v5750 = vpack.c.b16 %v5708, %v5706
        %v5751 = vpack.c.b16 %v5711, %v5709
        %v5752 = vpack.c.b16 %v5712, %v5710
        %v5753 = vpack.c.b16 %v5715, %v5713
        %v5754 = vpack.c.b16 %v5716, %v5714
        %v5755 = vpack.c.b16 %v5719, %v5717
        %v5756 = vpack.c.b16 %v5720, %v5718
        %v5757 = vpack.c.b16 %v5723, %v5721
        %v5758 = vpack.c.b16 %v5724, %v5722
        %v5759 = vpack.c.b16 %v5727, %v5725
        %v5760 = vpack.c.b16 %v5728, %v5726
        %v5761 = vpack.c.b16 %v5731, %v5729
        %v5762 = vpack.c.b16 %v5732, %v5730
        %v5763 = vpack.c.b16 %v5735, %v5733
        %v5764 = vpack.c.b16 %v5736, %v5734
        %v5765 = vpack.c.b16 %v5739, %v5737
        %v5766 = vpack.c.b16 %v5740, %v5738
        %v5767 = vpack.c.b16 %v5743, %v5741
        %v5768 = vpack.c.b16 %v5744, %v5742
        %v5794 = vsel %vm592, %v5645, 0
        %v5797 = vsel %vm592, %v5647, 0
        %5799 = vmatprep.subr.bf16.mxu0 %v5746
        %5800 = vmatpush1.bf16.msra.mxu0 %v5745
        %5801 = vmatprep.subr.bf16.mxu0 %v5748
        %5802 = vmatpush1.bf16.msra.mxu0 %v5747
        %5803 = vmatprep.subr.bf16.mxu0 %v5750
        %5804 = vmatpush1.bf16.msra.mxu0 %v5749
        %5805 = vmatprep.subr.bf16.mxu0 %v5752
        %5806 = vmatpush1.bf16.msra.mxu0 %v5751
        %5807 = vmatprep.subr.bf16.mxu0 %v5754
        %5808 = vmatpush1.bf16.msra.mxu0 %v5753
        %5809 = vmatprep.subr.bf16.mxu0 %v5756
        %5810 = vmatpush1.bf16.msra.mxu0 %v5755
        %5811 = vmatprep.subr.bf16.mxu0 %v5758
        %5812 = vmatpush1.bf16.msra.mxu0 %v5757
        %5813 = vmatprep.subr.bf16.mxu0 %v5760
        %5814 = vmatpush1.bf16.msra.mxu0 %v5759
        %5815 = vmatprep.subr.bf16.mxu0 %v5762
        %5816 = vmatpush1.bf16.msra.mxu0 %v5761
        %5817 = vmatprep.subr.bf16.mxu0 %v5764
        %5818 = vmatpush1.bf16.msra.mxu0 %v5763
        %5819 = vmatprep.subr.bf16.mxu0 %v5766
        %5820 = vmatpush1.bf16.msra.mxu0 %v5765
        %5821 = vmatprep.subr.bf16.mxu0 %v5768
        %5822 = vmatpush1.bf16.msra.mxu0 %v5767
        %5823 = vmatprep.subr.bf16.mxu0 0
        %5824 = vmatpush1.bf16.msra.mxu0 0
        %5825 = vmatprep.subr.bf16.mxu0 0
        %5826 = vmatpush1.bf16.msra.mxu0 0
        %5827 = vmatprep.subr.bf16.mxu0 0
        %5828 = vmatpush1.bf16.msra.mxu0 0
        %5829 = vmatprep.subr.bf16.mxu0 0
        %5830 = vmatpush1.bf16.msra.mxu0 0
        %5831 = vmatprep.mubr.bf16.mxu0 %v5794
        %5832 = vmatmul.mubr.bf16.gmra.mrb[0].mxu0 %v5644
        %v5833 = vpop.f32.mrb[0].mxu0
        %v5834 = vadd.f32 0.0, %v5833
        %v5835 = vpop.f32.mrb[0].mxu0
        %v5836 = vadd.f32 0.0, %v5835
        %v5837 = vpop.f32.mrb[0].mxu0
        %v5838 = vadd.f32 0.0, %v5837
        %v5839 = vpop.f32.mrb[0].mxu0
        %v5840 = vadd.f32 0.0, %v5839
        %5841 = vmatprep.mubr.bf16.mxu0 %v5797
        %5842 = vmatmul.mubr.bf16.gmra.mrb[0].mxu0 %v5646
        %v5843 = vpop.f32.mrb[0].mxu0
        %v5844 = vadd.f32 0.0, %v5843
        %v5845 = vpop.f32.mrb[0].mxu0
        %v5846 = vadd.f32 0.0, %v5845
        %v5847 = vpop.f32.mrb[0].mxu0
        %v5848 = vadd.f32 0.0, %v5847
        %v5849 = vpop.f32.mrb[0].mxu0
        %v5850 = vadd.f32 0.0, %v5849
        %5851 = vdwg.mxu0
        %v5852 = vadd.f32 %v5552, %v5834
        %v5853 = vadd.f32 %v5554, %v5836
        %v5854 = vadd.f32 %v5556, %v5838
        %v5855 = vadd.f32 %v5558, %v5840
        %v5856 = vadd.f32 %v5562, %v5844
        %v5857 = vadd.f32 %v5564, %v5846
        %v5858 = vadd.f32 %v5566, %v5848
        %v5859 = vadd.f32 %v5568, %v5850
        %s5860 = scalar_lea.vmem [#allocation2], 304
        %v5861 = vld [vmem:[%s5860] sm:$0xf]
        %v5862 = vld [vmem:[%s5860 + $0x4] sm:$0xf]
        %v5863 = vld [vmem:[%s5860 + $0x8] sm:$0xf]
        %v5864 = vld [vmem:[%s5860 + $0xc] sm:$0xf]
        %v5869 = vunpack.c.l.b16 %v5861
        %v5870 = vunpack.c.l.b16 %v5862
        %v5871 = vunpack.c.l.b16 %v5863
        %v5872 = vunpack.c.l.b16 %v5864
        %v5873 = vpack.c.b16 %v5870, %v5869
        %v5874 = vpack.c.b16 %v5872, %v5871
        %v5876 = vsel %vm281, %v5873, 0
        %v5879 = vsel %vm281, %v5874, 0
        %5881 = vmatprep.subr.bf16.mxu0 %v5003
        %5882 = vmatpush1.bf16.msra.mxu0 %v5002
        %5883 = vmatprep.subr.bf16.mxu0 %v5005
        %5884 = vmatpush1.bf16.msra.mxu0 %v5004
        %5885 = vmatprep.subr.bf16.mxu0 0
        %5886 = vmatpush1.bf16.msra.mxu0 0
        %5887 = vmatprep.subr.bf16.mxu0 0
        %5888 = vmatpush1.bf16.msra.mxu0 0
        %5889 = vmatprep.subr.bf16.mxu0 0
        %5890 = vmatpush1.bf16.msra.mxu0 0
        %5891 = vmatprep.subr.bf16.mxu0 0
        %5892 = vmatpush1.bf16.msra.mxu0 0
        %5893 = vmatprep.subr.bf16.mxu0 0
        %5894 = vmatpush1.bf16.msra.mxu0 0
        %5895 = vmatprep.subr.bf16.mxu0 0
        %5896 = vmatpush1.bf16.msra.mxu0 0
        %5897 = vmatprep.subr.bf16.mxu0 0
        %5898 = vmatpush1.bf16.msra.mxu0 0
        %5899 = vmatprep.subr.bf16.mxu0 0
        %5900 = vmatpush1.bf16.msra.mxu0 0
        %5901 = vmatprep.subr.bf16.mxu0 0
        %5902 = vmatpush1.bf16.msra.mxu0 0
        %5903 = vmatprep.subr.bf16.mxu0 0
        %5904 = vmatpush1.bf16.msra.mxu0 0
        %5905 = vmatprep.subr.bf16.mxu0 0
        %5906 = vmatpush1.bf16.msra.mxu0 0
        %5907 = vmatprep.subr.bf16.mxu0 0
        %5908 = vmatpush1.bf16.msra.mxu0 0
        %5909 = vmatprep.subr.bf16.mxu0 0
        %5910 = vmatpush1.bf16.msra.mxu0 0
        %5911 = vmatprep.subr.bf16.mxu0 0
        %5912 = vmatpush1.bf16.msra.mxu0 0
        %5913 = vmatprep.mubr.bf16.mxu0 0
        %5914 = vmatmul.mubr.bf16.gmra.mrb[0].mxu0 %v5876
        %v5915 = vpop.f32.mrb[0].mxu0
        %v5916 = vadd.f32 0.0, %v5915
        %v5917 = vpop.f32.mrb[0].mxu0
        %v5918 = vadd.f32 0.0, %v5917
        %v5919 = vpop.f32.mrb[0].mxu0
        %v5920 = vadd.f32 0.0, %v5919
        %v5921 = vpop.f32.mrb[0].mxu0
        %v5922 = vadd.f32 0.0, %v5921
        %5923 = vmatprep.mubr.bf16.mxu0 0
        %5924 = vmatmul.mubr.bf16.gmra.mrb[0].mxu0 %v5879
        %v5925 = vpop.f32.mrb[0].mxu0
        %v5926 = vadd.f32 0.0, %v5925
        %v5927 = vpop.f32.mrb[0].mxu0
        %v5928 = vadd.f32 0.0, %v5927
        %v5929 = vpop.f32.mrb[0].mxu0
        %v5930 = vadd.f32 0.0, %v5929
        %v5931 = vpop.f32.mrb[0].mxu0
        %v5932 = vadd.f32 0.0, %v5931
        %5933 = vdwg.mxu0
        %v5934 = vpack.c.bf16 %v5920, %v5916
        %v5935 = vpack.c.bf16 %v5922, %v5918
        %v5936 = vpack.c.bf16 %v5930, %v5926
        %v5937 = vpack.c.bf16 %v5932, %v5928
        %s5938 = scalar_lea.vmem [#allocation4], 3648
        %v5939 = vld [vmem:[%s5938] sm:$0xff]
        %v5940 = vld [vmem:[%s5938 + $0x8] sm:$0xff]
        %v5941 = vld [vmem:[%s5938 + $0x10] sm:$0xff]
        %v5942 = vld [vmem:[%s5938 + $0x18] sm:$0xff]
        %v5943 = vld [vmem:[%s5938 + $0x20] sm:$0xff]
        %v5944 = vld [vmem:[%s5938 + $0x28] sm:$0xff]
        %v5945 = vld [vmem:[%s5938 + $0x30] sm:$0xff]
        %v5946 = vld [vmem:[%s5938 + $0x38] sm:$0xff]
        %v5947 = vld [vmem:[%s5938 + $0x40] sm:$0xff]
        %v5948 = vld [vmem:[%s5938 + $0x48] sm:$0xff]
        %v5949 = vld [vmem:[%s5938 + $0x50] sm:$0xff]
        %v5950 = vld [vmem:[%s5938 + $0x58] sm:$0xff]
        %v5951 = vld [vmem:[%s5938 + $0x60] sm:$0xff]
        %v5952 = vld [vmem:[%s5938 + $0x68] sm:$0xff]
        %v5953 = vld [vmem:[%s5938 + $0x70] sm:$0xff]
        %v5954 = vld [vmem:[%s5938 + $0x78] sm:$0xff]
        %v5955 = vld [vmem:[%s5938 + $0x80] sm:$0xff]
        %v5956 = vld [vmem:[%s5938 + $0x88] sm:$0xff]
        %v5957 = vld [vmem:[%s5938 + $0x90] sm:$0xff]
        %v5958 = vld [vmem:[%s5938 + $0x98] sm:$0xff]
        %v5959 = vld [vmem:[%s5938 + $0xa0] sm:$0xff]
        %v5960 = vld [vmem:[%s5938 + $0xa8] sm:$0xff]
        %v5961 = vld [vmem:[%s5938 + $0xb0] sm:$0xff]
        %v5962 = vld [vmem:[%s5938 + $0xb8] sm:$0xff]
        %v5987 = vunpack.c.l.b16 %v5939
        %v5988 = vunpack.c.h.b16 %v5939
        %v5989 = vunpack.c.l.b16 %v5940
        %v5990 = vunpack.c.h.b16 %v5940
        %v5991 = vunpack.c.l.b16 %v5941
        %v5992 = vunpack.c.h.b16 %v5941
        %v5993 = vunpack.c.l.b16 %v5942
        %v5994 = vunpack.c.h.b16 %v5942
        %v5995 = vunpack.c.l.b16 %v5943
        %v5996 = vunpack.c.h.b16 %v5943
        %v5997 = vunpack.c.l.b16 %v5944
        %v5998 = vunpack.c.h.b16 %v5944
        %v5999 = vunpack.c.l.b16 %v5945
        %v6000 = vunpack.c.h.b16 %v5945
        %v6001 = vunpack.c.l.b16 %v5946
        %v6002 = vunpack.c.h.b16 %v5946
        %v6003 = vunpack.c.l.b16 %v5947
        %v6004 = vunpack.c.h.b16 %v5947
        %v6005 = vunpack.c.l.b16 %v5948
        %v6006 = vunpack.c.h.b16 %v5948
        %v6007 = vunpack.c.l.b16 %v5949
        %v6008 = vunpack.c.h.b16 %v5949
        %v6009 = vunpack.c.l.b16 %v5950
        %v6010 = vunpack.c.h.b16 %v5950
        %v6011 = vunpack.c.l.b16 %v5951
        %v6012 = vunpack.c.h.b16 %v5951
        %v6013 = vunpack.c.l.b16 %v5952
        %v6014 = vunpack.c.h.b16 %v5952
        %v6015 = vunpack.c.l.b16 %v5953
        %v6016 = vunpack.c.h.b16 %v5953
        %v6017 = vunpack.c.l.b16 %v5954
        %v6018 = vunpack.c.h.b16 %v5954
        %v6019 = vunpack.c.l.b16 %v5955
        %v6020 = vunpack.c.h.b16 %v5955
        %v6021 = vunpack.c.l.b16 %v5956
        %v6022 = vunpack.c.h.b16 %v5956
        %v6023 = vunpack.c.l.b16 %v5957
        %v6024 = vunpack.c.h.b16 %v5957
        %v6025 = vunpack.c.l.b16 %v5958
        %v6026 = vunpack.c.h.b16 %v5958
        %v6027 = vunpack.c.l.b16 %v5959
        %v6028 = vunpack.c.h.b16 %v5959
        %v6029 = vunpack.c.l.b16 %v5960
        %v6030 = vunpack.c.h.b16 %v5960
        %v6031 = vunpack.c.l.b16 %v5961
        %v6032 = vunpack.c.h.b16 %v5961
        %v6033 = vunpack.c.l.b16 %v5962
        %v6034 = vunpack.c.h.b16 %v5962
        %v6035 = vpack.c.b16 %v5989, %v5987
        %v6036 = vpack.c.b16 %v5990, %v5988
        %v6037 = vpack.c.b16 %v5993, %v5991
        %v6038 = vpack.c.b16 %v5994, %v5992
        %v6039 = vpack.c.b16 %v5997, %v5995
        %v6040 = vpack.c.b16 %v5998, %v5996
        %v6041 = vpack.c.b16 %v6001, %v5999
        %v6042 = vpack.c.b16 %v6002, %v6000
        %v6043 = vpack.c.b16 %v6005, %v6003
        %v6044 = vpack.c.b16 %v6006, %v6004
        %v6045 = vpack.c.b16 %v6009, %v6007
        %v6046 = vpack.c.b16 %v6010, %v6008
        %v6047 = vpack.c.b16 %v6013, %v6011
        %v6048 = vpack.c.b16 %v6014, %v6012
        %v6049 = vpack.c.b16 %v6017, %v6015
        %v6050 = vpack.c.b16 %v6018, %v6016
        %v6051 = vpack.c.b16 %v6021, %v6019
        %v6052 = vpack.c.b16 %v6022, %v6020
        %v6053 = vpack.c.b16 %v6025, %v6023
        %v6054 = vpack.c.b16 %v6026, %v6024
        %v6055 = vpack.c.b16 %v6029, %v6027
        %v6056 = vpack.c.b16 %v6030, %v6028
        %v6057 = vpack.c.b16 %v6033, %v6031
        %v6058 = vpack.c.b16 %v6034, %v6032
        %v6084 = vsel %vm592, %v5935, 0
        %v6087 = vsel %vm592, %v5937, 0
        %6089 = vmatprep.subr.bf16.mxu0 %v6036
        %6090 = vmatpush1.bf16.msra.mxu0 %v6035
        %6091 = vmatprep.subr.bf16.mxu0 %v6038
        %6092 = vmatpush1.bf16.msra.mxu0 %v6037
        %6093 = vmatprep.subr.bf16.mxu0 %v6040
        %6094 = vmatpush1.bf16.msra.mxu0 %v6039
        %6095 = vmatprep.subr.bf16.mxu0 %v6042
        %6096 = vmatpush1.bf16.msra.mxu0 %v6041
        %6097 = vmatprep.subr.bf16.mxu0 %v6044
        %6098 = vmatpush1.bf16.msra.mxu0 %v6043
        %6099 = vmatprep.subr.bf16.mxu0 %v6046
        %6100 = vmatpush1.bf16.msra.mxu0 %v6045
        %6101 = vmatprep.subr.bf16.mxu0 %v6048
        %6102 = vmatpush1.bf16.msra.mxu0 %v6047
        %6103 = vmatprep.subr.bf16.mxu0 %v6050
        %6104 = vmatpush1.bf16.msra.mxu0 %v6049
        %6105 = vmatprep.subr.bf16.mxu0 %v6052
        %6106 = vmatpush1.bf16.msra.mxu0 %v6051
        %6107 = vmatprep.subr.bf16.mxu0 %v6054
        %6108 = vmatpush1.bf16.msra.mxu0 %v6053
        %6109 = vmatprep.subr.bf16.mxu0 %v6056
        %6110 = vmatpush1.bf16.msra.mxu0 %v6055
        %6111 = vmatprep.subr.bf16.mxu0 %v6058
        %6112 = vmatpush1.bf16.msra.mxu0 %v6057
        %6113 = vmatprep.subr.bf16.mxu0 0
        %6114 = vmatpush1.bf16.msra.mxu0 0
        %6115 = vmatprep.subr.bf16.mxu0 0
        %6116 = vmatpush1.bf16.msra.mxu0 0
        %6117 = vmatprep.subr.bf16.mxu0 0
        %6118 = vmatpush1.bf16.msra.mxu0 0
        %6119 = vmatprep.subr.bf16.mxu0 0
        %6120 = vmatpush1.bf16.msra.mxu0 0
        %6121 = vmatprep.mubr.bf16.mxu0 %v6084
        %6122 = vmatmul.mubr.bf16.gmra.mrb[0].mxu0 %v5934
        %v6123 = vpop.f32.mrb[0].mxu0
        %v6124 = vadd.f32 0.0, %v6123
        %v6125 = vpop.f32.mrb[0].mxu0
        %v6126 = vadd.f32 0.0, %v6125
        %v6127 = vpop.f32.mrb[0].mxu0
        %v6128 = vadd.f32 0.0, %v6127
        %v6129 = vpop.f32.mrb[0].mxu0
        %v6130 = vadd.f32 0.0, %v6129
        %6131 = vmatprep.mubr.bf16.mxu0 %v6087
        %6132 = vmatmul.mubr.bf16.gmra.mrb[0].mxu0 %v5936
        %v6133 = vpop.f32.mrb[0].mxu0
        %v6134 = vadd.f32 0.0, %v6133
        %v6135 = vpop.f32.mrb[0].mxu0
        %v6136 = vadd.f32 0.0, %v6135
        %v6137 = vpop.f32.mrb[0].mxu0
        %v6138 = vadd.f32 0.0, %v6137
        %v6139 = vpop.f32.mrb[0].mxu0
        %v6140 = vadd.f32 0.0, %v6139
        %6141 = vdwg.mxu0
        %v6142 = vadd.f32 %v5852, %v6124
        %v6143 = vadd.f32 %v5853, %v6126
        %v6144 = vadd.f32 %v5854, %v6128
        %v6145 = vadd.f32 %v5855, %v6130
        %v6146 = vadd.f32 %v5856, %v6134
        %v6147 = vadd.f32 %v5857, %v6136
        %v6148 = vadd.f32 %v5858, %v6138
        %v6149 = vadd.f32 %v5859, %v6140
        %s6150 = scalar_lea.vmem [#allocation6], 8
        %v6151 = vld [vmem:[%s6150] sm:$0x3]
        %v6153 = vlaneseq
        %v6154 = vshrl.u32 %v6153, 7
        %v6155 = vsub.s32 0, %v6154
        %v6156 = vrot.slane %v6151, %v6155
        %v6157 = vlaneseq
        %v6158 = vshrl.u32 %v6157, 7
        %v6159 = vsub.s32 1, %v6158
        %v6160 = vrot.slane %v6151, %v6159
        %v6163 = vadd.f32 %v6142, %v6156
        %v6164 = vadd.f32 %v6143, %v6160
        %v6165 = vadd.f32 %v6144, %v6156
        %v6166 = vadd.f32 %v6145, %v6160
        %v6167 = vadd.f32 %v6146, %v6156
        %v6168 = vadd.f32 %v6147, %v6160
        %v6169 = vadd.f32 %v6148, %v6156
        %v6170 = vadd.f32 %v6149, %v6160
        %v6171 = vmul.f32 %v6163, 0.1
        %v6172 = vmul.f32 %v6164, 0.1
        %v6173 = vmul.f32 %v6165, 0.1
        %v6174 = vmul.f32 %v6166, 0.1
        %v6175 = vmul.f32 %v6167, 0.1
        %v6176 = vmul.f32 %v6168, 0.1
        %v6177 = vmul.f32 %v6169, 0.1
        %v6178 = vmul.f32 %v6170, 0.1
        %v6179 = vmax.f32 %v6163, %v6171
        %v6180 = vmax.f32 %v6164, %v6172
        %v6181 = vmax.f32 %v6165, %v6173
        %v6182 = vmax.f32 %v6166, %v6174
        %v6183 = vmax.f32 %v6167, %v6175
        %v6184 = vmax.f32 %v6168, %v6176
        %v6185 = vmax.f32 %v6169, %v6177
        %v6186 = vmax.f32 %v6170, %v6178
        %v6187 = vpack.c.bf16 %v6181, %v6179
        %v6188 = vpack.c.bf16 %v6182, %v6180
        %v6189 = vpack.c.bf16 %v6185, %v6183
        %v6190 = vpack.c.bf16 %v6186, %v6184
        %s6191 = scalar_lea.vmem [#allocation2], 320
        %v6192 = vld [vmem:[%s6191] sm:$0xf]
        %v6193 = vld [vmem:[%s6191 + $0x4] sm:$0xf]
        %v6194 = vld [vmem:[%s6191 + $0x8] sm:$0xf]
        %v6195 = vld [vmem:[%s6191 + $0xc] sm:$0xf]
        %v6200 = vunpack.c.l.b16 %v6192
        %v6201 = vunpack.c.l.b16 %v6193
        %v6202 = vunpack.c.l.b16 %v6194
        %v6203 = vunpack.c.l.b16 %v6195
        %v6204 = vpack.c.b16 %v6201, %v6200
        %v6205 = vpack.c.b16 %v6203, %v6202
        %v6207 = vsel %vm281, %v6204, 0
        %v6210 = vsel %vm281, %v6205, 0
        %6212 = vmatprep.subr.bf16.mxu0 %v6188
        %6213 = vmatpush1.bf16.msra.mxu0 %v6187
        %6214 = vmatprep.subr.bf16.mxu0 %v6190
        %6215 = vmatpush1.bf16.msra.mxu0 %v6189
        %6216 = vmatprep.subr.bf16.mxu0 0
        %6217 = vmatpush1.bf16.msra.mxu0 0
        %6218 = vmatprep.subr.bf16.mxu0 0
        %6219 = vmatpush1.bf16.msra.mxu0 0
        %6220 = vmatprep.subr.bf16.mxu0 0
        %6221 = vmatpush1.bf16.msra.mxu0 0
        %6222 = vmatprep.subr.bf16.mxu0 0
        %6223 = vmatpush1.bf16.msra.mxu0 0
        %6224 = vmatprep.subr.bf16.mxu0 0
        %6225 = vmatpush1.bf16.msra.mxu0 0
        %6226 = vmatprep.subr.bf16.mxu0 0
        %6227 = vmatpush1.bf16.msra.mxu0 0
        %6228 = vmatprep.subr.bf16.mxu0 0
        %6229 = vmatpush1.bf16.msra.mxu0 0
        %6230 = vmatprep.subr.bf16.mxu0 0
        %6231 = vmatpush1.bf16.msra.mxu0 0
        %6232 = vmatprep.subr.bf16.mxu0 0
        %6233 = vmatpush1.bf16.msra.mxu0 0
        %6234 = vmatprep.subr.bf16.mxu0 0
        %6235 = vmatpush1.bf16.msra.mxu0 0
        %6236 = vmatprep.subr.bf16.mxu0 0
        %6237 = vmatpush1.bf16.msra.mxu0 0
        %6238 = vmatprep.subr.bf16.mxu0 0
        %6239 = vmatpush1.bf16.msra.mxu0 0
        %6240 = vmatprep.subr.bf16.mxu0 0
        %6241 = vmatpush1.bf16.msra.mxu0 0
        %6242 = vmatprep.subr.bf16.mxu0 0
        %6243 = vmatpush1.bf16.msra.mxu0 0
        %6244 = vmatprep.mubr.bf16.mxu0 0
        %6245 = vmatmul.mubr.bf16.gmra.mrb[0].mxu0 %v6207
        %v6246 = vpop.f32.mrb[0].mxu0
        %v6247 = vadd.f32 0.0, %v6246
        %v6248 = vpop.f32.mrb[0].mxu0
        %v6249 = vadd.f32 0.0, %v6248
        %v6250 = vpop.f32.mrb[0].mxu0
        %v6251 = vadd.f32 0.0, %v6250
        %v6252 = vpop.f32.mrb[0].mxu0
        %v6253 = vadd.f32 0.0, %v6252
        %6254 = vmatprep.mubr.bf16.mxu0 0
        %6255 = vmatmul.mubr.bf16.gmra.mrb[0].mxu0 %v6210
        %v6256 = vpop.f32.mrb[0].mxu0
        %v6257 = vadd.f32 0.0, %v6256
        %v6258 = vpop.f32.mrb[0].mxu0
        %v6259 = vadd.f32 0.0, %v6258
        %v6260 = vpop.f32.mrb[0].mxu0
        %v6261 = vadd.f32 0.0, %v6260
        %v6262 = vpop.f32.mrb[0].mxu0
        %v6263 = vadd.f32 0.0, %v6262
        %6264 = vdwg.mxu0
        %v6265 = vpack.c.bf16 %v6251, %v6247
        %v6266 = vpack.c.bf16 %v6253, %v6249
        %v6267 = vpack.c.bf16 %v6261, %v6257
        %v6268 = vpack.c.bf16 %v6263, %v6259
        %s6269 = scalar_lea.vmem [#allocation4], 3840
        %v6270 = vld [vmem:[%s6269] sm:$0xff]
        %v6271 = vld [vmem:[%s6269 + $0x8] sm:$0xff]
        %v6272 = vld [vmem:[%s6269 + $0x10] sm:$0xff]
        %v6273 = vld [vmem:[%s6269 + $0x18] sm:$0xff]
        %v6274 = vld [vmem:[%s6269 + $0x20] sm:$0xff]
        %v6275 = vld [vmem:[%s6269 + $0x28] sm:$0xff]
        %v6276 = vld [vmem:[%s6269 + $0x30] sm:$0xff]
        %v6277 = vld [vmem:[%s6269 + $0x38] sm:$0xff]
        %v6278 = vld [vmem:[%s6269 + $0x40] sm:$0xff]
        %v6279 = vld [vmem:[%s6269 + $0x48] sm:$0xff]
        %v6280 = vld [vmem:[%s6269 + $0x50] sm:$0xff]
        %v6281 = vld [vmem:[%s6269 + $0x58] sm:$0xff]
        %v6282 = vld [vmem:[%s6269 + $0x60] sm:$0xff]
        %v6283 = vld [vmem:[%s6269 + $0x68] sm:$0xff]
        %v6284 = vld [vmem:[%s6269 + $0x70] sm:$0xff]
        %v6285 = vld [vmem:[%s6269 + $0x78] sm:$0xff]
        %v6286 = vld [vmem:[%s6269 + $0x80] sm:$0xff]
        %v6287 = vld [vmem:[%s6269 + $0x88] sm:$0xff]
        %v6288 = vld [vmem:[%s6269 + $0x90] sm:$0xff]
        %v6289 = vld [vmem:[%s6269 + $0x98] sm:$0xff]
        %v6290 = vld [vmem:[%s6269 + $0xa0] sm:$0xff]
        %v6291 = vld [vmem:[%s6269 + $0xa8] sm:$0xff]
        %v6292 = vld [vmem:[%s6269 + $0xb0] sm:$0xff]
        %v6293 = vld [vmem:[%s6269 + $0xb8] sm:$0xff]
        %s6294 = scalar_lea.vmem [#allocation2], 336
        %v6295 = vld [vmem:[%s6294] sm:$0xf]
        %v6296 = vld [vmem:[%s6294 + $0x4] sm:$0xf]
        %v6297 = vld [vmem:[%s6294 + $0x8] sm:$0xf]
        %v6298 = vld [vmem:[%s6294 + $0xc] sm:$0xf]
        %v6303 = vunpack.c.l.b16 %v6295
        %v6304 = vunpack.c.l.b16 %v6296
        %v6305 = vunpack.c.l.b16 %v6297
        %v6306 = vunpack.c.l.b16 %v6298
        %v6307 = vpack.c.b16 %v6304, %v6303
        %v6308 = vpack.c.b16 %v6306, %v6305
        %v6310 = vsel %vm281, %v6307, 0
        %v6313 = vsel %vm281, %v6308, 0
        %6315 = vmatprep.subr.bf16.mxu0 %v6188
        %6316 = vmatpush1.bf16.msra.mxu0 %v6187
        %6317 = vmatprep.subr.bf16.mxu0 %v6190
        %6318 = vmatpush1.bf16.msra.mxu0 %v6189
        %6319 = vmatprep.subr.bf16.mxu0 0
        %6320 = vmatpush1.bf16.msra.mxu0 0
        %6321 = vmatprep.subr.bf16.mxu0 0
        %6322 = vmatpush1.bf16.msra.mxu0 0
        %6323 = vmatprep.subr.bf16.mxu0 0
        %6324 = vmatpush1.bf16.msra.mxu0 0
        %6325 = vmatprep.subr.bf16.mxu0 0
        %6326 = vmatpush1.bf16.msra.mxu0 0
        %6327 = vmatprep.subr.bf16.mxu0 0
        %6328 = vmatpush1.bf16.msra.mxu0 0
        %6329 = vmatprep.subr.bf16.mxu0 0
        %6330 = vmatpush1.bf16.msra.mxu0 0
        %6331 = vmatprep.subr.bf16.mxu0 0
        %6332 = vmatpush1.bf16.msra.mxu0 0
        %6333 = vmatprep.subr.bf16.mxu0 0
        %6334 = vmatpush1.bf16.msra.mxu0 0
        %6335 = vmatprep.subr.bf16.mxu0 0
        %6336 = vmatpush1.bf16.msra.mxu0 0
        %6337 = vmatprep.subr.bf16.mxu0 0
        %6338 = vmatpush1.bf16.msra.mxu0 0
        %6339 = vmatprep.subr.bf16.mxu0 0
        %6340 = vmatpush1.bf16.msra.mxu0 0
        %6341 = vmatprep.subr.bf16.mxu0 0
        %6342 = vmatpush1.bf16.msra.mxu0 0
        %6343 = vmatprep.subr.bf16.mxu0 0
        %6344 = vmatpush1.bf16.msra.mxu0 0
        %6345 = vmatprep.subr.bf16.mxu0 0
        %6346 = vmatpush1.bf16.msra.mxu0 0
        %6347 = vmatprep.mubr.bf16.mxu0 0
        %6348 = vmatmul.mubr.bf16.gmra.mrb[0].mxu0 %v6310
        %v6349 = vpop.f32.mrb[0].mxu0
        %v6350 = vadd.f32 0.0, %v6349
        %v6351 = vpop.f32.mrb[0].mxu0
        %v6352 = vadd.f32 0.0, %v6351
        %v6353 = vpop.f32.mrb[0].mxu0
        %v6354 = vadd.f32 0.0, %v6353
        %v6355 = vpop.f32.mrb[0].mxu0
        %v6356 = vadd.f32 0.0, %v6355
        %6357 = vmatprep.mubr.bf16.mxu0 0
        %6358 = vmatmul.mubr.bf16.gmra.mrb[0].mxu0 %v6313
        %v6359 = vpop.f32.mrb[0].mxu0
        %v6360 = vadd.f32 0.0, %v6359
        %v6361 = vpop.f32.mrb[0].mxu0
        %v6362 = vadd.f32 0.0, %v6361
        %v6363 = vpop.f32.mrb[0].mxu0
        %v6364 = vadd.f32 0.0, %v6363
        %v6365 = vpop.f32.mrb[0].mxu0
        %v6366 = vadd.f32 0.0, %v6365
        %6367 = vdwg.mxu0
        %v6368 = vpack.c.bf16 %v6354, %v6350
        %v6369 = vpack.c.bf16 %v6356, %v6352
        %v6370 = vpack.c.bf16 %v6364, %v6360
        %v6371 = vpack.c.bf16 %v6366, %v6362
        %s6372 = scalar_lea.vmem [#allocation4], 4032
        %v6373 = vld [vmem:[%s6372] sm:$0xff]
        %v6374 = vld [vmem:[%s6372 + $0x8] sm:$0xff]
        %v6375 = vld [vmem:[%s6372 + $0x10] sm:$0xff]
        %v6376 = vld [vmem:[%s6372 + $0x18] sm:$0xff]
        %v6377 = vld [vmem:[%s6372 + $0x20] sm:$0xff]
        %v6378 = vld [vmem:[%s6372 + $0x28] sm:$0xff]
        %v6379 = vld [vmem:[%s6372 + $0x30] sm:$0xff]
        %v6380 = vld [vmem:[%s6372 + $0x38] sm:$0xff]
        %v6381 = vld [vmem:[%s6372 + $0x40] sm:$0xff]
        %v6382 = vld [vmem:[%s6372 + $0x48] sm:$0xff]
        %v6383 = vld [vmem:[%s6372 + $0x50] sm:$0xff]
        %v6384 = vld [vmem:[%s6372 + $0x58] sm:$0xff]
        %v6385 = vld [vmem:[%s6372 + $0x60] sm:$0xff]
        %v6386 = vld [vmem:[%s6372 + $0x68] sm:$0xff]
        %v6387 = vld [vmem:[%s6372 + $0x70] sm:$0xff]
        %v6388 = vld [vmem:[%s6372 + $0x78] sm:$0xff]
        %v6389 = vld [vmem:[%s6372 + $0x80] sm:$0xff]
        %v6390 = vld [vmem:[%s6372 + $0x88] sm:$0xff]
        %v6391 = vld [vmem:[%s6372 + $0x90] sm:$0xff]
        %v6392 = vld [vmem:[%s6372 + $0x98] sm:$0xff]
        %v6393 = vld [vmem:[%s6372 + $0xa0] sm:$0xff]
        %v6394 = vld [vmem:[%s6372 + $0xa8] sm:$0xff]
        %v6395 = vld [vmem:[%s6372 + $0xb0] sm:$0xff]
        %v6396 = vld [vmem:[%s6372 + $0xb8] sm:$0xff]
        %v6421 = vunpack.c.l.b16 %v6373
        %v6422 = vunpack.c.h.b16 %v6373
        %v6423 = vunpack.c.l.b16 %v6374
        %v6424 = vunpack.c.h.b16 %v6374
        %v6425 = vunpack.c.l.b16 %v6375
        %v6426 = vunpack.c.h.b16 %v6375
        %v6427 = vunpack.c.l.b16 %v6376
        %v6428 = vunpack.c.h.b16 %v6376
        %v6429 = vunpack.c.l.b16 %v6377
        %v6430 = vunpack.c.h.b16 %v6377
        %v6431 = vunpack.c.l.b16 %v6378
        %v6432 = vunpack.c.h.b16 %v6378
        %v6433 = vunpack.c.l.b16 %v6379
        %v6434 = vunpack.c.h.b16 %v6379
        %v6435 = vunpack.c.l.b16 %v6380
        %v6436 = vunpack.c.h.b16 %v6380
        %v6437 = vunpack.c.l.b16 %v6381
        %v6438 = vunpack.c.h.b16 %v6381
        %v6439 = vunpack.c.l.b16 %v6382
        %v6440 = vunpack.c.h.b16 %v6382
        %v6441 = vunpack.c.l.b16 %v6383
        %v6442 = vunpack.c.h.b16 %v6383
        %v6443 = vunpack.c.l.b16 %v6384
        %v6444 = vunpack.c.h.b16 %v6384
        %v6445 = vunpack.c.l.b16 %v6385
        %v6446 = vunpack.c.h.b16 %v6385
        %v6447 = vunpack.c.l.b16 %v6386
        %v6448 = vunpack.c.h.b16 %v6386
        %v6449 = vunpack.c.l.b16 %v6387
        %v6450 = vunpack.c.h.b16 %v6387
        %v6451 = vunpack.c.l.b16 %v6388
        %v6452 = vunpack.c.h.b16 %v6388
        %v6453 = vunpack.c.l.b16 %v6389
        %v6454 = vunpack.c.h.b16 %v6389
        %v6455 = vunpack.c.l.b16 %v6390
        %v6456 = vunpack.c.h.b16 %v6390
        %v6457 = vunpack.c.l.b16 %v6391
        %v6458 = vunpack.c.h.b16 %v6391
        %v6459 = vunpack.c.l.b16 %v6392
        %v6460 = vunpack.c.h.b16 %v6392
        %v6461 = vunpack.c.l.b16 %v6393
        %v6462 = vunpack.c.h.b16 %v6393
        %v6463 = vunpack.c.l.b16 %v6394
        %v6464 = vunpack.c.h.b16 %v6394
        %v6465 = vunpack.c.l.b16 %v6395
        %v6466 = vunpack.c.h.b16 %v6395
        %v6467 = vunpack.c.l.b16 %v6396
        %v6468 = vunpack.c.h.b16 %v6396
        %v6469 = vpack.c.b16 %v6423, %v6421
        %v6470 = vpack.c.b16 %v6424, %v6422
        %v6471 = vpack.c.b16 %v6427, %v6425
        %v6472 = vpack.c.b16 %v6428, %v6426
        %v6473 = vpack.c.b16 %v6431, %v6429
        %v6474 = vpack.c.b16 %v6432, %v6430
        %v6475 = vpack.c.b16 %v6435, %v6433
        %v6476 = vpack.c.b16 %v6436, %v6434
        %v6477 = vpack.c.b16 %v6439, %v6437
        %v6478 = vpack.c.b16 %v6440, %v6438
        %v6479 = vpack.c.b16 %v6443, %v6441
        %v6480 = vpack.c.b16 %v6444, %v6442
        %v6481 = vpack.c.b16 %v6447, %v6445
        %v6482 = vpack.c.b16 %v6448, %v6446
        %v6483 = vpack.c.b16 %v6451, %v6449
        %v6484 = vpack.c.b16 %v6452, %v6450
        %v6485 = vpack.c.b16 %v6455, %v6453
        %v6486 = vpack.c.b16 %v6456, %v6454
        %v6487 = vpack.c.b16 %v6459, %v6457
        %v6488 = vpack.c.b16 %v6460, %v6458
        %v6489 = vpack.c.b16 %v6463, %v6461
        %v6490 = vpack.c.b16 %v6464, %v6462
        %v6491 = vpack.c.b16 %v6467, %v6465
        %v6492 = vpack.c.b16 %v6468, %v6466
        %v6518 = vsel %vm592, %v6369, 0
        %v6521 = vsel %vm592, %v6371, 0
        %6523 = vmatprep.subr.bf16.mxu0 %v6470
        %6524 = vmatpush1.bf16.msra.mxu0 %v6469
        %6525 = vmatprep.subr.bf16.mxu0 %v6472
        %6526 = vmatpush1.bf16.msra.mxu0 %v6471
        %6527 = vmatprep.subr.bf16.mxu0 %v6474
        %6528 = vmatpush1.bf16.msra.mxu0 %v6473
        %6529 = vmatprep.subr.bf16.mxu0 %v6476
        %6530 = vmatpush1.bf16.msra.mxu0 %v6475
        %6531 = vmatprep.subr.bf16.mxu0 %v6478
        %6532 = vmatpush1.bf16.msra.mxu0 %v6477
        %6533 = vmatprep.subr.bf16.mxu0 %v6480
        %6534 = vmatpush1.bf16.msra.mxu0 %v6479
        %6535 = vmatprep.subr.bf16.mxu0 %v6482
        %6536 = vmatpush1.bf16.msra.mxu0 %v6481
        %6537 = vmatprep.subr.bf16.mxu0 %v6484
        %6538 = vmatpush1.bf16.msra.mxu0 %v6483
        %6539 = vmatprep.subr.bf16.mxu0 %v6486
        %6540 = vmatpush1.bf16.msra.mxu0 %v6485
        %6541 = vmatprep.subr.bf16.mxu0 %v6488
        %6542 = vmatpush1.bf16.msra.mxu0 %v6487
        %6543 = vmatprep.subr.bf16.mxu0 %v6490
        %6544 = vmatpush1.bf16.msra.mxu0 %v6489
        %6545 = vmatprep.subr.bf16.mxu0 %v6492
        %6546 = vmatpush1.bf16.msra.mxu0 %v6491
        %6547 = vmatprep.subr.bf16.mxu0 0
        %6548 = vmatpush1.bf16.msra.mxu0 0
        %6549 = vmatprep.subr.bf16.mxu0 0
        %6550 = vmatpush1.bf16.msra.mxu0 0
        %6551 = vmatprep.subr.bf16.mxu0 0
        %6552 = vmatpush1.bf16.msra.mxu0 0
        %6553 = vmatprep.subr.bf16.mxu0 0
        %6554 = vmatpush1.bf16.msra.mxu0 0
        %6555 = vmatprep.mubr.bf16.mxu0 %v6518
        %6556 = vmatmul.mubr.bf16.gmra.mrb[0].mxu0 %v6368
        %v6557 = vpop.f32.mrb[0].mxu0
        %v6558 = vadd.f32 0.0, %v6557
        %v6559 = vpop.f32.mrb[0].mxu0
        %v6560 = vadd.f32 0.0, %v6559
        %v6561 = vpop.f32.mrb[0].mxu0
        %v6562 = vadd.f32 0.0, %v6561
        %v6563 = vpop.f32.mrb[0].mxu0
        %v6564 = vadd.f32 0.0, %v6563
        %6565 = vmatprep.mubr.bf16.mxu0 %v6521
        %6566 = vmatmul.mubr.bf16.gmra.mrb[0].mxu0 %v6370
        %v6567 = vpop.f32.mrb[0].mxu0
        %v6568 = vadd.f32 0.0, %v6567
        %v6569 = vpop.f32.mrb[0].mxu0
        %v6570 = vadd.f32 0.0, %v6569
        %v6571 = vpop.f32.mrb[0].mxu0
        %v6572 = vadd.f32 0.0, %v6571
        %v6573 = vpop.f32.mrb[0].mxu0
        %v6574 = vadd.f32 0.0, %v6573
        %6575 = vdwg.mxu0
        %v6600 = vunpack.c.l.b16 %v6270
        %v6601 = vunpack.c.h.b16 %v6270
        %v6602 = vunpack.c.l.b16 %v6271
        %v6603 = vunpack.c.h.b16 %v6271
        %v6604 = vunpack.c.l.b16 %v6272
        %v6605 = vunpack.c.h.b16 %v6272
        %v6606 = vunpack.c.l.b16 %v6273
        %v6607 = vunpack.c.h.b16 %v6273
        %v6608 = vunpack.c.l.b16 %v6274
        %v6609 = vunpack.c.h.b16 %v6274
        %v6610 = vunpack.c.l.b16 %v6275
        %v6611 = vunpack.c.h.b16 %v6275
        %v6612 = vunpack.c.l.b16 %v6276
        %v6613 = vunpack.c.h.b16 %v6276
        %v6614 = vunpack.c.l.b16 %v6277
        %v6615 = vunpack.c.h.b16 %v6277
        %v6616 = vunpack.c.l.b16 %v6278
        %v6617 = vunpack.c.h.b16 %v6278
        %v6618 = vunpack.c.l.b16 %v6279
        %v6619 = vunpack.c.h.b16 %v6279
        %v6620 = vunpack.c.l.b16 %v6280
        %v6621 = vunpack.c.h.b16 %v6280
        %v6622 = vunpack.c.l.b16 %v6281
        %v6623 = vunpack.c.h.b16 %v6281
        %v6624 = vunpack.c.l.b16 %v6282
        %v6625 = vunpack.c.h.b16 %v6282
        %v6626 = vunpack.c.l.b16 %v6283
        %v6627 = vunpack.c.h.b16 %v6283
        %v6628 = vunpack.c.l.b16 %v6284
        %v6629 = vunpack.c.h.b16 %v6284
        %v6630 = vunpack.c.l.b16 %v6285
        %v6631 = vunpack.c.h.b16 %v6285
        %v6632 = vunpack.c.l.b16 %v6286
        %v6633 = vunpack.c.h.b16 %v6286
        %v6634 = vunpack.c.l.b16 %v6287
        %v6635 = vunpack.c.h.b16 %v6287
        %v6636 = vunpack.c.l.b16 %v6288
        %v6637 = vunpack.c.h.b16 %v6288
        %v6638 = vunpack.c.l.b16 %v6289
        %v6639 = vunpack.c.h.b16 %v6289
        %v6640 = vunpack.c.l.b16 %v6290
        %v6641 = vunpack.c.h.b16 %v6290
        %v6642 = vunpack.c.l.b16 %v6291
        %v6643 = vunpack.c.h.b16 %v6291
        %v6644 = vunpack.c.l.b16 %v6292
        %v6645 = vunpack.c.h.b16 %v6292
        %v6646 = vunpack.c.l.b16 %v6293
        %v6647 = vunpack.c.h.b16 %v6293
        %v6648 = vpack.c.b16 %v6602, %v6600
        %v6649 = vpack.c.b16 %v6603, %v6601
        %v6650 = vpack.c.b16 %v6606, %v6604
        %v6651 = vpack.c.b16 %v6607, %v6605
        %v6652 = vpack.c.b16 %v6610, %v6608
        %v6653 = vpack.c.b16 %v6611, %v6609
        %v6654 = vpack.c.b16 %v6614, %v6612
        %v6655 = vpack.c.b16 %v6615, %v6613
        %v6656 = vpack.c.b16 %v6618, %v6616
        %v6657 = vpack.c.b16 %v6619, %v6617
        %v6658 = vpack.c.b16 %v6622, %v6620
        %v6659 = vpack.c.b16 %v6623, %v6621
        %v6660 = vpack.c.b16 %v6626, %v6624
        %v6661 = vpack.c.b16 %v6627, %v6625
        %v6662 = vpack.c.b16 %v6630, %v6628
        %v6663 = vpack.c.b16 %v6631, %v6629
        %v6664 = vpack.c.b16 %v6634, %v6632
        %v6665 = vpack.c.b16 %v6635, %v6633
        %v6666 = vpack.c.b16 %v6638, %v6636
        %v6667 = vpack.c.b16 %v6639, %v6637
        %v6668 = vpack.c.b16 %v6642, %v6640
        %v6669 = vpack.c.b16 %v6643, %v6641
        %v6670 = vpack.c.b16 %v6646, %v6644
        %v6671 = vpack.c.b16 %v6647, %v6645
        %v6697 = vsel %vm592, %v6266, 0
        %v6700 = vsel %vm592, %v6268, 0
        %6702 = vmatprep.subr.bf16.mxu0 %v6649
        %6703 = vmatpush1.bf16.msra.mxu0 %v6648
        %6704 = vmatprep.subr.bf16.mxu0 %v6651
        %6705 = vmatpush1.bf16.msra.mxu0 %v6650
        %6706 = vmatprep.subr.bf16.mxu0 %v6653
        %6707 = vmatpush1.bf16.msra.mxu0 %v6652
        %6708 = vmatprep.subr.bf16.mxu0 %v6655
        %6709 = vmatpush1.bf16.msra.mxu0 %v6654
        %6710 = vmatprep.subr.bf16.mxu0 %v6657
        %6711 = vmatpush1.bf16.msra.mxu0 %v6656
        %6712 = vmatprep.subr.bf16.mxu0 %v6659
        %6713 = vmatpush1.bf16.msra.mxu0 %v6658
        %6714 = vmatprep.subr.bf16.mxu0 %v6661
        %6715 = vmatpush1.bf16.msra.mxu0 %v6660
        %6716 = vmatprep.subr.bf16.mxu0 %v6663
        %6717 = vmatpush1.bf16.msra.mxu0 %v6662
        %6718 = vmatprep.subr.bf16.mxu0 %v6665
        %6719 = vmatpush1.bf16.msra.mxu0 %v6664
        %6720 = vmatprep.subr.bf16.mxu0 %v6667
        %6721 = vmatpush1.bf16.msra.mxu0 %v6666
        %6722 = vmatprep.subr.bf16.mxu0 %v6669
        %6723 = vmatpush1.bf16.msra.mxu0 %v6668
        %6724 = vmatprep.subr.bf16.mxu0 %v6671
        %6725 = vmatpush1.bf16.msra.mxu0 %v6670
        %6726 = vmatprep.subr.bf16.mxu0 0
        %6727 = vmatpush1.bf16.msra.mxu0 0
        %6728 = vmatprep.subr.bf16.mxu0 0
        %6729 = vmatpush1.bf16.msra.mxu0 0
        %6730 = vmatprep.subr.bf16.mxu0 0
        %6731 = vmatpush1.bf16.msra.mxu0 0
        %6732 = vmatprep.subr.bf16.mxu0 0
        %6733 = vmatpush1.bf16.msra.mxu0 0
        %6734 = vmatprep.mubr.bf16.mxu0 %v6697
        %6735 = vmatmul.mubr.bf16.gmra.mrb[0].mxu0 %v6265
        %v6736 = vpop.f32.mrb[0].mxu0
        %v6737 = vadd.f32 %v6558, %v6736
        %v6738 = vpop.f32.mrb[0].mxu0
        %v6739 = vadd.f32 %v6560, %v6738
        %v6740 = vpop.f32.mrb[0].mxu0
        %v6741 = vadd.f32 %v6562, %v6740
        %v6742 = vpop.f32.mrb[0].mxu0
        %v6743 = vadd.f32 %v6564, %v6742
        %6744 = vmatprep.mubr.bf16.mxu0 %v6700
        %6745 = vmatmul.mubr.bf16.gmra.mrb[0].mxu0 %v6267
        %v6746 = vpop.f32.mrb[0].mxu0
        %v6747 = vadd.f32 %v6568, %v6746
        %v6748 = vpop.f32.mrb[0].mxu0
        %v6749 = vadd.f32 %v6570, %v6748
        %v6750 = vpop.f32.mrb[0].mxu0
        %v6751 = vadd.f32 %v6572, %v6750
        %v6752 = vpop.f32.mrb[0].mxu0
        %v6753 = vadd.f32 %v6574, %v6752
        %6754 = vdwg.mxu0
        %s6755 = scalar_lea.vmem [#allocation2], 352
        %v6756 = vld [vmem:[%s6755] sm:$0xf]
        %v6757 = vld [vmem:[%s6755 + $0x4] sm:$0xf]
        %v6758 = vld [vmem:[%s6755 + $0x8] sm:$0xf]
        %v6759 = vld [vmem:[%s6755 + $0xc] sm:$0xf]
        %v6764 = vunpack.c.l.b16 %v6756
        %v6765 = vunpack.c.l.b16 %v6757
        %v6766 = vunpack.c.l.b16 %v6758
        %v6767 = vunpack.c.l.b16 %v6759
        %v6768 = vpack.c.b16 %v6765, %v6764
        %v6769 = vpack.c.b16 %v6767, %v6766
        %v6771 = vsel %vm281, %v6768, 0
        %v6774 = vsel %vm281, %v6769, 0
        %6776 = vmatprep.subr.bf16.mxu0 %v6188
        %6777 = vmatpush1.bf16.msra.mxu0 %v6187
        %6778 = vmatprep.subr.bf16.mxu0 %v6190
        %6779 = vmatpush1.bf16.msra.mxu0 %v6189
        %6780 = vmatprep.subr.bf16.mxu0 0
        %6781 = vmatpush1.bf16.msra.mxu0 0
        %6782 = vmatprep.subr.bf16.mxu0 0
        %6783 = vmatpush1.bf16.msra.mxu0 0
        %6784 = vmatprep.subr.bf16.mxu0 0
        %6785 = vmatpush1.bf16.msra.mxu0 0
        %6786 = vmatprep.subr.bf16.mxu0 0
        %6787 = vmatpush1.bf16.msra.mxu0 0
        %6788 = vmatprep.subr.bf16.mxu0 0
        %6789 = vmatpush1.bf16.msra.mxu0 0
        %6790 = vmatprep.subr.bf16.mxu0 0
        %6791 = vmatpush1.bf16.msra.mxu0 0
        %6792 = vmatprep.subr.bf16.mxu0 0
        %6793 = vmatpush1.bf16.msra.mxu0 0
        %6794 = vmatprep.subr.bf16.mxu0 0
        %6795 = vmatpush1.bf16.msra.mxu0 0
        %6796 = vmatprep.subr.bf16.mxu0 0
        %6797 = vmatpush1.bf16.msra.mxu0 0
        %6798 = vmatprep.subr.bf16.mxu0 0
        %6799 = vmatpush1.bf16.msra.mxu0 0
        %6800 = vmatprep.subr.bf16.mxu0 0
        %6801 = vmatpush1.bf16.msra.mxu0 0
        %6802 = vmatprep.subr.bf16.mxu0 0
        %6803 = vmatpush1.bf16.msra.mxu0 0
        %6804 = vmatprep.subr.bf16.mxu0 0
        %6805 = vmatpush1.bf16.msra.mxu0 0
        %6806 = vmatprep.subr.bf16.mxu0 0
        %6807 = vmatpush1.bf16.msra.mxu0 0
        %6808 = vmatprep.mubr.bf16.mxu0 0
        %6809 = vmatmul.mubr.bf16.gmra.mrb[0].mxu0 %v6771
        %v6810 = vpop.f32.mrb[0].mxu0
        %v6811 = vadd.f32 0.0, %v6810
        %v6812 = vpop.f32.mrb[0].mxu0
        %v6813 = vadd.f32 0.0, %v6812
        %v6814 = vpop.f32.mrb[0].mxu0
        %v6815 = vadd.f32 0.0, %v6814
        %v6816 = vpop.f32.mrb[0].mxu0
        %v6817 = vadd.f32 0.0, %v6816
        %6818 = vmatprep.mubr.bf16.mxu0 0
        %6819 = vmatmul.mubr.bf16.gmra.mrb[0].mxu0 %v6774
        %v6820 = vpop.f32.mrb[0].mxu0
        %v6821 = vadd.f32 0.0, %v6820
        %v6822 = vpop.f32.mrb[0].mxu0
        %v6823 = vadd.f32 0.0, %v6822
        %v6824 = vpop.f32.mrb[0].mxu0
        %v6825 = vadd.f32 0.0, %v6824
        %v6826 = vpop.f32.mrb[0].mxu0
        %v6827 = vadd.f32 0.0, %v6826
        %6828 = vdwg.mxu0
        %v6829 = vpack.c.bf16 %v6815, %v6811
        %v6830 = vpack.c.bf16 %v6817, %v6813
        %v6831 = vpack.c.bf16 %v6825, %v6821
        %v6832 = vpack.c.bf16 %v6827, %v6823
        %s6833 = scalar_lea.vmem [#allocation4], 4224
        %v6834 = vld [vmem:[%s6833] sm:$0xff]
        %v6835 = vld [vmem:[%s6833 + $0x8] sm:$0xff]
        %v6836 = vld [vmem:[%s6833 + $0x10] sm:$0xff]
        %v6837 = vld [vmem:[%s6833 + $0x18] sm:$0xff]
        %v6838 = vld [vmem:[%s6833 + $0x20] sm:$0xff]
        %v6839 = vld [vmem:[%s6833 + $0x28] sm:$0xff]
        %v6840 = vld [vmem:[%s6833 + $0x30] sm:$0xff]
        %v6841 = vld [vmem:[%s6833 + $0x38] sm:$0xff]
        %v6842 = vld [vmem:[%s6833 + $0x40] sm:$0xff]
        %v6843 = vld [vmem:[%s6833 + $0x48] sm:$0xff]
        %v6844 = vld [vmem:[%s6833 + $0x50] sm:$0xff]
        %v6845 = vld [vmem:[%s6833 + $0x58] sm:$0xff]
        %v6846 = vld [vmem:[%s6833 + $0x60] sm:$0xff]
        %v6847 = vld [vmem:[%s6833 + $0x68] sm:$0xff]
        %v6848 = vld [vmem:[%s6833 + $0x70] sm:$0xff]
        %v6849 = vld [vmem:[%s6833 + $0x78] sm:$0xff]
        %v6850 = vld [vmem:[%s6833 + $0x80] sm:$0xff]
        %v6851 = vld [vmem:[%s6833 + $0x88] sm:$0xff]
        %v6852 = vld [vmem:[%s6833 + $0x90] sm:$0xff]
        %v6853 = vld [vmem:[%s6833 + $0x98] sm:$0xff]
        %v6854 = vld [vmem:[%s6833 + $0xa0] sm:$0xff]
        %v6855 = vld [vmem:[%s6833 + $0xa8] sm:$0xff]
        %v6856 = vld [vmem:[%s6833 + $0xb0] sm:$0xff]
        %v6857 = vld [vmem:[%s6833 + $0xb8] sm:$0xff]
        %v6882 = vunpack.c.l.b16 %v6834
        %v6883 = vunpack.c.h.b16 %v6834
        %v6884 = vunpack.c.l.b16 %v6835
        %v6885 = vunpack.c.h.b16 %v6835
        %v6886 = vunpack.c.l.b16 %v6836
        %v6887 = vunpack.c.h.b16 %v6836
        %v6888 = vunpack.c.l.b16 %v6837
        %v6889 = vunpack.c.h.b16 %v6837
        %v6890 = vunpack.c.l.b16 %v6838
        %v6891 = vunpack.c.h.b16 %v6838
        %v6892 = vunpack.c.l.b16 %v6839
        %v6893 = vunpack.c.h.b16 %v6839
        %v6894 = vunpack.c.l.b16 %v6840
        %v6895 = vunpack.c.h.b16 %v6840
        %v6896 = vunpack.c.l.b16 %v6841
        %v6897 = vunpack.c.h.b16 %v6841
        %v6898 = vunpack.c.l.b16 %v6842
        %v6899 = vunpack.c.h.b16 %v6842
        %v6900 = vunpack.c.l.b16 %v6843
        %v6901 = vunpack.c.h.b16 %v6843
        %v6902 = vunpack.c.l.b16 %v6844
        %v6903 = vunpack.c.h.b16 %v6844
        %v6904 = vunpack.c.l.b16 %v6845
        %v6905 = vunpack.c.h.b16 %v6845
        %v6906 = vunpack.c.l.b16 %v6846
        %v6907 = vunpack.c.h.b16 %v6846
        %v6908 = vunpack.c.l.b16 %v6847
        %v6909 = vunpack.c.h.b16 %v6847
        %v6910 = vunpack.c.l.b16 %v6848
        %v6911 = vunpack.c.h.b16 %v6848
        %v6912 = vunpack.c.l.b16 %v6849
        %v6913 = vunpack.c.h.b16 %v6849
        %v6914 = vunpack.c.l.b16 %v6850
        %v6915 = vunpack.c.h.b16 %v6850
        %v6916 = vunpack.c.l.b16 %v6851
        %v6917 = vunpack.c.h.b16 %v6851
        %v6918 = vunpack.c.l.b16 %v6852
        %v6919 = vunpack.c.h.b16 %v6852
        %v6920 = vunpack.c.l.b16 %v6853
        %v6921 = vunpack.c.h.b16 %v6853
        %v6922 = vunpack.c.l.b16 %v6854
        %v6923 = vunpack.c.h.b16 %v6854
        %v6924 = vunpack.c.l.b16 %v6855
        %v6925 = vunpack.c.h.b16 %v6855
        %v6926 = vunpack.c.l.b16 %v6856
        %v6927 = vunpack.c.h.b16 %v6856
        %v6928 = vunpack.c.l.b16 %v6857
        %v6929 = vunpack.c.h.b16 %v6857
        %v6930 = vpack.c.b16 %v6884, %v6882
        %v6931 = vpack.c.b16 %v6885, %v6883
        %v6932 = vpack.c.b16 %v6888, %v6886
        %v6933 = vpack.c.b16 %v6889, %v6887
        %v6934 = vpack.c.b16 %v6892, %v6890
        %v6935 = vpack.c.b16 %v6893, %v6891
        %v6936 = vpack.c.b16 %v6896, %v6894
        %v6937 = vpack.c.b16 %v6897, %v6895
        %v6938 = vpack.c.b16 %v6900, %v6898
        %v6939 = vpack.c.b16 %v6901, %v6899
        %v6940 = vpack.c.b16 %v6904, %v6902
        %v6941 = vpack.c.b16 %v6905, %v6903
        %v6942 = vpack.c.b16 %v6908, %v6906
        %v6943 = vpack.c.b16 %v6909, %v6907
        %v6944 = vpack.c.b16 %v6912, %v6910
        %v6945 = vpack.c.b16 %v6913, %v6911
        %v6946 = vpack.c.b16 %v6916, %v6914
        %v6947 = vpack.c.b16 %v6917, %v6915
        %v6948 = vpack.c.b16 %v6920, %v6918
        %v6949 = vpack.c.b16 %v6921, %v6919
        %v6950 = vpack.c.b16 %v6924, %v6922
        %v6951 = vpack.c.b16 %v6925, %v6923
        %v6952 = vpack.c.b16 %v6928, %v6926
        %v6953 = vpack.c.b16 %v6929, %v6927
        %v6979 = vsel %vm592, %v6830, 0
        %v6982 = vsel %vm592, %v6832, 0
        %6984 = vmatprep.subr.bf16.mxu0 %v6931
        %6985 = vmatpush1.bf16.msra.mxu0 %v6930
        %6986 = vmatprep.subr.bf16.mxu0 %v6933
        %6987 = vmatpush1.bf16.msra.mxu0 %v6932
        %6988 = vmatprep.subr.bf16.mxu0 %v6935
        %6989 = vmatpush1.bf16.msra.mxu0 %v6934
        %6990 = vmatprep.subr.bf16.mxu0 %v6937
        %6991 = vmatpush1.bf16.msra.mxu0 %v6936
        %6992 = vmatprep.subr.bf16.mxu0 %v6939
        %6993 = vmatpush1.bf16.msra.mxu0 %v6938
        %6994 = vmatprep.subr.bf16.mxu0 %v6941
        %6995 = vmatpush1.bf16.msra.mxu0 %v6940
        %6996 = vmatprep.subr.bf16.mxu0 %v6943
        %6997 = vmatpush1.bf16.msra.mxu0 %v6942
        %6998 = vmatprep.subr.bf16.mxu0 %v6945
        %6999 = vmatpush1.bf16.msra.mxu0 %v6944
        %7000 = vmatprep.subr.bf16.mxu0 %v6947
        %7001 = vmatpush1.bf16.msra.mxu0 %v6946
        %7002 = vmatprep.subr.bf16.mxu0 %v6949
        %7003 = vmatpush1.bf16.msra.mxu0 %v6948
        %7004 = vmatprep.subr.bf16.mxu0 %v6951
        %7005 = vmatpush1.bf16.msra.mxu0 %v6950
        %7006 = vmatprep.subr.bf16.mxu0 %v6953
        %7007 = vmatpush1.bf16.msra.mxu0 %v6952
        %7008 = vmatprep.subr.bf16.mxu0 0
        %7009 = vmatpush1.bf16.msra.mxu0 0
        %7010 = vmatprep.subr.bf16.mxu0 0
        %7011 = vmatpush1.bf16.msra.mxu0 0
        %7012 = vmatprep.subr.bf16.mxu0 0
        %7013 = vmatpush1.bf16.msra.mxu0 0
        %7014 = vmatprep.subr.bf16.mxu0 0
        %7015 = vmatpush1.bf16.msra.mxu0 0
        %7016 = vmatprep.mubr.bf16.mxu0 %v6979
        %7017 = vmatmul.mubr.bf16.gmra.mrb[0].mxu0 %v6829
        %v7018 = vpop.f32.mrb[0].mxu0
        %v7019 = vadd.f32 0.0, %v7018
        %v7020 = vpop.f32.mrb[0].mxu0
        %v7021 = vadd.f32 0.0, %v7020
        %v7022 = vpop.f32.mrb[0].mxu0
        %v7023 = vadd.f32 0.0, %v7022
        %v7024 = vpop.f32.mrb[0].mxu0
        %v7025 = vadd.f32 0.0, %v7024
        %7026 = vmatprep.mubr.bf16.mxu0 %v6982
        %7027 = vmatmul.mubr.bf16.gmra.mrb[0].mxu0 %v6831
        %v7028 = vpop.f32.mrb[0].mxu0
        %v7029 = vadd.f32 0.0, %v7028
        %v7030 = vpop.f32.mrb[0].mxu0
        %v7031 = vadd.f32 0.0, %v7030
        %v7032 = vpop.f32.mrb[0].mxu0
        %v7033 = vadd.f32 0.0, %v7032
        %v7034 = vpop.f32.mrb[0].mxu0
        %v7035 = vadd.f32 0.0, %v7034
        %7036 = vdwg.mxu0
        %v7037 = vadd.f32 %v6737, %v7019
        %v7038 = vadd.f32 %v6739, %v7021
        %v7039 = vadd.f32 %v6741, %v7023
        %v7040 = vadd.f32 %v6743, %v7025
        %v7041 = vadd.f32 %v6747, %v7029
        %v7042 = vadd.f32 %v6749, %v7031
        %v7043 = vadd.f32 %v6751, %v7033
        %v7044 = vadd.f32 %v6753, %v7035
        %s7045 = scalar_lea.vmem [#allocation2], 368
        %v7046 = vld [vmem:[%s7045] sm:$0xf]
        %v7047 = vld [vmem:[%s7045 + $0x4] sm:$0xf]
        %v7048 = vld [vmem:[%s7045 + $0x8] sm:$0xf]
        %v7049 = vld [vmem:[%s7045 + $0xc] sm:$0xf]
        %v7054 = vunpack.c.l.b16 %v7046
        %v7055 = vunpack.c.l.b16 %v7047
        %v7056 = vunpack.c.l.b16 %v7048
        %v7057 = vunpack.c.l.b16 %v7049
        %v7058 = vpack.c.b16 %v7055, %v7054
        %v7059 = vpack.c.b16 %v7057, %v7056
        %v7061 = vsel %vm281, %v7058, 0
        %v7064 = vsel %vm281, %v7059, 0
        %7066 = vmatprep.subr.bf16.mxu0 %v6188
        %7067 = vmatpush1.bf16.msra.mxu0 %v6187
        %7068 = vmatprep.subr.bf16.mxu0 %v6190
        %7069 = vmatpush1.bf16.msra.mxu0 %v6189
        %7070 = vmatprep.subr.bf16.mxu0 0
        %7071 = vmatpush1.bf16.msra.mxu0 0
        %7072 = vmatprep.subr.bf16.mxu0 0
        %7073 = vmatpush1.bf16.msra.mxu0 0
        %7074 = vmatprep.subr.bf16.mxu0 0
        %7075 = vmatpush1.bf16.msra.mxu0 0
        %7076 = vmatprep.subr.bf16.mxu0 0
        %7077 = vmatpush1.bf16.msra.mxu0 0
        %7078 = vmatprep.subr.bf16.mxu0 0
        %7079 = vmatpush1.bf16.msra.mxu0 0
        %7080 = vmatprep.subr.bf16.mxu0 0
        %7081 = vmatpush1.bf16.msra.mxu0 0
        %7082 = vmatprep.subr.bf16.mxu0 0
        %7083 = vmatpush1.bf16.msra.mxu0 0
        %7084 = vmatprep.subr.bf16.mxu0 0
        %7085 = vmatpush1.bf16.msra.mxu0 0
        %7086 = vmatprep.subr.bf16.mxu0 0
        %7087 = vmatpush1.bf16.msra.mxu0 0
        %7088 = vmatprep.subr.bf16.mxu0 0
        %7089 = vmatpush1.bf16.msra.mxu0 0
        %7090 = vmatprep.subr.bf16.mxu0 0
        %7091 = vmatpush1.bf16.msra.mxu0 0
        %7092 = vmatprep.subr.bf16.mxu0 0
        %7093 = vmatpush1.bf16.msra.mxu0 0
        %7094 = vmatprep.subr.bf16.mxu0 0
        %7095 = vmatpush1.bf16.msra.mxu0 0
        %7096 = vmatprep.subr.bf16.mxu0 0
        %7097 = vmatpush1.bf16.msra.mxu0 0
        %7098 = vmatprep.mubr.bf16.mxu0 0
        %7099 = vmatmul.mubr.bf16.gmra.mrb[0].mxu0 %v7061
        %v7100 = vpop.f32.mrb[0].mxu0
        %v7101 = vadd.f32 0.0, %v7100
        %v7102 = vpop.f32.mrb[0].mxu0
        %v7103 = vadd.f32 0.0, %v7102
        %v7104 = vpop.f32.mrb[0].mxu0
        %v7105 = vadd.f32 0.0, %v7104
        %v7106 = vpop.f32.mrb[0].mxu0
        %v7107 = vadd.f32 0.0, %v7106
        %7108 = vmatprep.mubr.bf16.mxu0 0
        %7109 = vmatmul.mubr.bf16.gmra.mrb[0].mxu0 %v7064
        %v7110 = vpop.f32.mrb[0].mxu0
        %v7111 = vadd.f32 0.0, %v7110
        %v7112 = vpop.f32.mrb[0].mxu0
        %v7113 = vadd.f32 0.0, %v7112
        %v7114 = vpop.f32.mrb[0].mxu0
        %v7115 = vadd.f32 0.0, %v7114
        %v7116 = vpop.f32.mrb[0].mxu0
        %v7117 = vadd.f32 0.0, %v7116
        %7118 = vdwg.mxu0
        %v7119 = vpack.c.bf16 %v7105, %v7101
        %v7120 = vpack.c.bf16 %v7107, %v7103
        %v7121 = vpack.c.bf16 %v7115, %v7111
        %v7122 = vpack.c.bf16 %v7117, %v7113
        %s7123 = scalar_lea.vmem [#allocation4], 4416
        %v7124 = vld [vmem:[%s7123] sm:$0xff]
        %v7125 = vld [vmem:[%s7123 + $0x8] sm:$0xff]
        %v7126 = vld [vmem:[%s7123 + $0x10] sm:$0xff]
        %v7127 = vld [vmem:[%s7123 + $0x18] sm:$0xff]
        %v7128 = vld [vmem:[%s7123 + $0x20] sm:$0xff]
        %v7129 = vld [vmem:[%s7123 + $0x28] sm:$0xff]
        %v7130 = vld [vmem:[%s7123 + $0x30] sm:$0xff]
        %v7131 = vld [vmem:[%s7123 + $0x38] sm:$0xff]
        %v7132 = vld [vmem:[%s7123 + $0x40] sm:$0xff]
        %v7133 = vld [vmem:[%s7123 + $0x48] sm:$0xff]
        %v7134 = vld [vmem:[%s7123 + $0x50] sm:$0xff]
        %v7135 = vld [vmem:[%s7123 + $0x58] sm:$0xff]
        %v7136 = vld [vmem:[%s7123 + $0x60] sm:$0xff]
        %v7137 = vld [vmem:[%s7123 + $0x68] sm:$0xff]
        %v7138 = vld [vmem:[%s7123 + $0x70] sm:$0xff]
        %v7139 = vld [vmem:[%s7123 + $0x78] sm:$0xff]
        %v7140 = vld [vmem:[%s7123 + $0x80] sm:$0xff]
        %v7141 = vld [vmem:[%s7123 + $0x88] sm:$0xff]
        %v7142 = vld [vmem:[%s7123 + $0x90] sm:$0xff]
        %v7143 = vld [vmem:[%s7123 + $0x98] sm:$0xff]
        %v7144 = vld [vmem:[%s7123 + $0xa0] sm:$0xff]
        %v7145 = vld [vmem:[%s7123 + $0xa8] sm:$0xff]
        %v7146 = vld [vmem:[%s7123 + $0xb0] sm:$0xff]
        %v7147 = vld [vmem:[%s7123 + $0xb8] sm:$0xff]
        %v7172 = vunpack.c.l.b16 %v7124
        %v7173 = vunpack.c.h.b16 %v7124
        %v7174 = vunpack.c.l.b16 %v7125
        %v7175 = vunpack.c.h.b16 %v7125
        %v7176 = vunpack.c.l.b16 %v7126
        %v7177 = vunpack.c.h.b16 %v7126
        %v7178 = vunpack.c.l.b16 %v7127
        %v7179 = vunpack.c.h.b16 %v7127
        %v7180 = vunpack.c.l.b16 %v7128
        %v7181 = vunpack.c.h.b16 %v7128
        %v7182 = vunpack.c.l.b16 %v7129
        %v7183 = vunpack.c.h.b16 %v7129
        %v7184 = vunpack.c.l.b16 %v7130
        %v7185 = vunpack.c.h.b16 %v7130
        %v7186 = vunpack.c.l.b16 %v7131
        %v7187 = vunpack.c.h.b16 %v7131
        %v7188 = vunpack.c.l.b16 %v7132
        %v7189 = vunpack.c.h.b16 %v7132
        %v7190 = vunpack.c.l.b16 %v7133
        %v7191 = vunpack.c.h.b16 %v7133
        %v7192 = vunpack.c.l.b16 %v7134
        %v7193 = vunpack.c.h.b16 %v7134
        %v7194 = vunpack.c.l.b16 %v7135
        %v7195 = vunpack.c.h.b16 %v7135
        %v7196 = vunpack.c.l.b16 %v7136
        %v7197 = vunpack.c.h.b16 %v7136
        %v7198 = vunpack.c.l.b16 %v7137
        %v7199 = vunpack.c.h.b16 %v7137
        %v7200 = vunpack.c.l.b16 %v7138
        %v7201 = vunpack.c.h.b16 %v7138
        %v7202 = vunpack.c.l.b16 %v7139
        %v7203 = vunpack.c.h.b16 %v7139
        %v7204 = vunpack.c.l.b16 %v7140
        %v7205 = vunpack.c.h.b16 %v7140
        %v7206 = vunpack.c.l.b16 %v7141
        %v7207 = vunpack.c.h.b16 %v7141
        %v7208 = vunpack.c.l.b16 %v7142
        %v7209 = vunpack.c.h.b16 %v7142
        %v7210 = vunpack.c.l.b16 %v7143
        %v7211 = vunpack.c.h.b16 %v7143
        %v7212 = vunpack.c.l.b16 %v7144
        %v7213 = vunpack.c.h.b16 %v7144
        %v7214 = vunpack.c.l.b16 %v7145
        %v7215 = vunpack.c.h.b16 %v7145
        %v7216 = vunpack.c.l.b16 %v7146
        %v7217 = vunpack.c.h.b16 %v7146
        %v7218 = vunpack.c.l.b16 %v7147
        %v7219 = vunpack.c.h.b16 %v7147
        %v7220 = vpack.c.b16 %v7174, %v7172
        %v7221 = vpack.c.b16 %v7175, %v7173
        %v7222 = vpack.c.b16 %v7178, %v7176
        %v7223 = vpack.c.b16 %v7179, %v7177
        %v7224 = vpack.c.b16 %v7182, %v7180
        %v7225 = vpack.c.b16 %v7183, %v7181
        %v7226 = vpack.c.b16 %v7186, %v7184
        %v7227 = vpack.c.b16 %v7187, %v7185
        %v7228 = vpack.c.b16 %v7190, %v7188
        %v7229 = vpack.c.b16 %v7191, %v7189
        %v7230 = vpack.c.b16 %v7194, %v7192
        %v7231 = vpack.c.b16 %v7195, %v7193
        %v7232 = vpack.c.b16 %v7198, %v7196
        %v7233 = vpack.c.b16 %v7199, %v7197
        %v7234 = vpack.c.b16 %v7202, %v7200
        %v7235 = vpack.c.b16 %v7203, %v7201
        %v7236 = vpack.c.b16 %v7206, %v7204
        %v7237 = vpack.c.b16 %v7207, %v7205
        %v7238 = vpack.c.b16 %v7210, %v7208
        %v7239 = vpack.c.b16 %v7211, %v7209
        %v7240 = vpack.c.b16 %v7214, %v7212
        %v7241 = vpack.c.b16 %v7215, %v7213
        %v7242 = vpack.c.b16 %v7218, %v7216
        %v7243 = vpack.c.b16 %v7219, %v7217
        %v7269 = vsel %vm592, %v7120, 0
        %v7272 = vsel %vm592, %v7122, 0
        %7274 = vmatprep.subr.bf16.mxu0 %v7221
        %7275 = vmatpush1.bf16.msra.mxu0 %v7220
        %7276 = vmatprep.subr.bf16.mxu0 %v7223
        %7277 = vmatpush1.bf16.msra.mxu0 %v7222
        %7278 = vmatprep.subr.bf16.mxu0 %v7225
        %7279 = vmatpush1.bf16.msra.mxu0 %v7224
        %7280 = vmatprep.subr.bf16.mxu0 %v7227
        %7281 = vmatpush1.bf16.msra.mxu0 %v7226
        %7282 = vmatprep.subr.bf16.mxu0 %v7229
        %7283 = vmatpush1.bf16.msra.mxu0 %v7228
        %7284 = vmatprep.subr.bf16.mxu0 %v7231
        %7285 = vmatpush1.bf16.msra.mxu0 %v7230
        %7286 = vmatprep.subr.bf16.mxu0 %v7233
        %7287 = vmatpush1.bf16.msra.mxu0 %v7232
        %7288 = vmatprep.subr.bf16.mxu0 %v7235
        %7289 = vmatpush1.bf16.msra.mxu0 %v7234
        %7290 = vmatprep.subr.bf16.mxu0 %v7237
        %7291 = vmatpush1.bf16.msra.mxu0 %v7236
        %7292 = vmatprep.subr.bf16.mxu0 %v7239
        %7293 = vmatpush1.bf16.msra.mxu0 %v7238
        %7294 = vmatprep.subr.bf16.mxu0 %v7241
        %7295 = vmatpush1.bf16.msra.mxu0 %v7240
        %7296 = vmatprep.subr.bf16.mxu0 %v7243
        %7297 = vmatpush1.bf16.msra.mxu0 %v7242
        %7298 = vmatprep.subr.bf16.mxu0 0
        %7299 = vmatpush1.bf16.msra.mxu0 0
        %7300 = vmatprep.subr.bf16.mxu0 0
        %7301 = vmatpush1.bf16.msra.mxu0 0
        %7302 = vmatprep.subr.bf16.mxu0 0
        %7303 = vmatpush1.bf16.msra.mxu0 0
        %7304 = vmatprep.subr.bf16.mxu0 0
        %7305 = vmatpush1.bf16.msra.mxu0 0
        %7306 = vmatprep.mubr.bf16.mxu0 %v7269
        %7307 = vmatmul.mubr.bf16.gmra.mrb[0].mxu0 %v7119
        %v7308 = vpop.f32.mrb[0].mxu0
        %v7309 = vadd.f32 0.0, %v7308
        %v7310 = vpop.f32.mrb[0].mxu0
        %v7311 = vadd.f32 0.0, %v7310
        %v7312 = vpop.f32.mrb[0].mxu0
        %v7313 = vadd.f32 0.0, %v7312
        %v7314 = vpop.f32.mrb[0].mxu0
        %v7315 = vadd.f32 0.0, %v7314
        %7316 = vmatprep.mubr.bf16.mxu0 %v7272
        %7317 = vmatmul.mubr.bf16.gmra.mrb[0].mxu0 %v7121
        %v7318 = vpop.f32.mrb[0].mxu0
        %v7319 = vadd.f32 0.0, %v7318
        %v7320 = vpop.f32.mrb[0].mxu0
        %v7321 = vadd.f32 0.0, %v7320
        %v7322 = vpop.f32.mrb[0].mxu0
        %v7323 = vadd.f32 0.0, %v7322
        %v7324 = vpop.f32.mrb[0].mxu0
        %v7325 = vadd.f32 0.0, %v7324
        %7326 = vdwg.mxu0
        %v7327 = vadd.f32 %v7037, %v7309
        %v7328 = vadd.f32 %v7038, %v7311
        %v7329 = vadd.f32 %v7039, %v7313
        %v7330 = vadd.f32 %v7040, %v7315
        %v7331 = vadd.f32 %v7041, %v7319
        %v7332 = vadd.f32 %v7042, %v7321
        %v7333 = vadd.f32 %v7043, %v7323
        %v7334 = vadd.f32 %v7044, %v7325
        %s7335 = scalar_lea.vmem [#allocation6], 10
        %v7336 = vld [vmem:[%s7335] sm:$0x3]
        %v7338 = vlaneseq
        %v7339 = vshrl.u32 %v7338, 7
        %v7340 = vsub.s32 0, %v7339
        %v7341 = vrot.slane %v7336, %v7340
        %v7342 = vlaneseq
        %v7343 = vshrl.u32 %v7342, 7
        %v7344 = vsub.s32 1, %v7343
        %v7345 = vrot.slane %v7336, %v7344
        %v7348 = vadd.f32 %v7327, %v7341
        %v7349 = vadd.f32 %v7328, %v7345
        %v7350 = vadd.f32 %v7329, %v7341
        %v7351 = vadd.f32 %v7330, %v7345
        %v7352 = vadd.f32 %v7331, %v7341
        %v7353 = vadd.f32 %v7332, %v7345
        %v7354 = vadd.f32 %v7333, %v7341
        %v7355 = vadd.f32 %v7334, %v7345
        %v7356 = vmul.f32 %v7348, 0.1
        %v7357 = vmul.f32 %v7349, 0.1
        %v7358 = vmul.f32 %v7350, 0.1
        %v7359 = vmul.f32 %v7351, 0.1
        %v7360 = vmul.f32 %v7352, 0.1
        %v7361 = vmul.f32 %v7353, 0.1
        %v7362 = vmul.f32 %v7354, 0.1
        %v7363 = vmul.f32 %v7355, 0.1
        %v7364 = vmax.f32 %v7348, %v7356
        %v7365 = vmax.f32 %v7349, %v7357
        %v7366 = vmax.f32 %v7350, %v7358
        %v7367 = vmax.f32 %v7351, %v7359
        %v7368 = vmax.f32 %v7352, %v7360
        %v7369 = vmax.f32 %v7353, %v7361
        %v7370 = vmax.f32 %v7354, %v7362
        %v7371 = vmax.f32 %v7355, %v7363
        %v7372 = vpack.c.bf16 %v7366, %v7364
        %v7373 = vpack.c.bf16 %v7367, %v7365
        %v7374 = vpack.c.bf16 %v7370, %v7368
        %v7375 = vpack.c.bf16 %v7371, %v7369
        %s7376 = scalar_lea.vmem [#allocation2], 384
        %v7377 = vld [vmem:[%s7376] sm:$0xf]
        %v7378 = vld [vmem:[%s7376 + $0x4] sm:$0xf]
        %v7379 = vld [vmem:[%s7376 + $0x8] sm:$0xf]
        %v7380 = vld [vmem:[%s7376 + $0xc] sm:$0xf]
        %v7385 = vunpack.c.l.b16 %v7377
        %v7386 = vunpack.c.l.b16 %v7378
        %v7387 = vunpack.c.l.b16 %v7379
        %v7388 = vunpack.c.l.b16 %v7380
        %v7389 = vpack.c.b16 %v7386, %v7385
        %v7390 = vpack.c.b16 %v7388, %v7387
        %v7392 = vsel %vm281, %v7389, 0
        %v7395 = vsel %vm281, %v7390, 0
        %7397 = vmatprep.subr.bf16.mxu0 %v7373
        %7398 = vmatpush1.bf16.msra.mxu0 %v7372
        %7399 = vmatprep.subr.bf16.mxu0 %v7375
        %7400 = vmatpush1.bf16.msra.mxu0 %v7374
        %7401 = vmatprep.subr.bf16.mxu0 0
        %7402 = vmatpush1.bf16.msra.mxu0 0
        %7403 = vmatprep.subr.bf16.mxu0 0
        %7404 = vmatpush1.bf16.msra.mxu0 0
        %7405 = vmatprep.subr.bf16.mxu0 0
        %7406 = vmatpush1.bf16.msra.mxu0 0
        %7407 = vmatprep.subr.bf16.mxu0 0
        %7408 = vmatpush1.bf16.msra.mxu0 0
        %7409 = vmatprep.subr.bf16.mxu0 0
        %7410 = vmatpush1.bf16.msra.mxu0 0
        %7411 = vmatprep.subr.bf16.mxu0 0
        %7412 = vmatpush1.bf16.msra.mxu0 0
        %7413 = vmatprep.subr.bf16.mxu0 0
        %7414 = vmatpush1.bf16.msra.mxu0 0
        %7415 = vmatprep.subr.bf16.mxu0 0
        %7416 = vmatpush1.bf16.msra.mxu0 0
        %7417 = vmatprep.subr.bf16.mxu0 0
        %7418 = vmatpush1.bf16.msra.mxu0 0
        %7419 = vmatprep.subr.bf16.mxu0 0
        %7420 = vmatpush1.bf16.msra.mxu0 0
        %7421 = vmatprep.subr.bf16.mxu0 0
        %7422 = vmatpush1.bf16.msra.mxu0 0
        %7423 = vmatprep.subr.bf16.mxu0 0
        %7424 = vmatpush1.bf16.msra.mxu0 0
        %7425 = vmatprep.subr.bf16.mxu0 0
        %7426 = vmatpush1.bf16.msra.mxu0 0
        %7427 = vmatprep.subr.bf16.mxu0 0
        %7428 = vmatpush1.bf16.msra.mxu0 0
        %7429 = vmatprep.mubr.bf16.mxu0 0
        %7430 = vmatmul.mubr.bf16.gmra.mrb[0].mxu0 %v7392
        %v7431 = vpop.f32.mrb[0].mxu0
        %v7432 = vadd.f32 0.0, %v7431
        %v7433 = vpop.f32.mrb[0].mxu0
        %v7434 = vadd.f32 0.0, %v7433
        %v7435 = vpop.f32.mrb[0].mxu0
        %v7436 = vadd.f32 0.0, %v7435
        %v7437 = vpop.f32.mrb[0].mxu0
        %v7438 = vadd.f32 0.0, %v7437
        %7439 = vmatprep.mubr.bf16.mxu0 0
        %7440 = vmatmul.mubr.bf16.gmra.mrb[0].mxu0 %v7395
        %v7441 = vpop.f32.mrb[0].mxu0
        %v7442 = vadd.f32 0.0, %v7441
        %v7443 = vpop.f32.mrb[0].mxu0
        %v7444 = vadd.f32 0.0, %v7443
        %v7445 = vpop.f32.mrb[0].mxu0
        %v7446 = vadd.f32 0.0, %v7445
        %v7447 = vpop.f32.mrb[0].mxu0
        %v7448 = vadd.f32 0.0, %v7447
        %7449 = vdwg.mxu0
        %v7450 = vpack.c.bf16 %v7436, %v7432
        %v7451 = vpack.c.bf16 %v7438, %v7434
        %v7452 = vpack.c.bf16 %v7446, %v7442
        %v7453 = vpack.c.bf16 %v7448, %v7444
        %s7454 = scalar_lea.vmem [#allocation4], 4608
        %v7455 = vld [vmem:[%s7454] sm:$0xff]
        %v7456 = vld [vmem:[%s7454 + $0x8] sm:$0xff]
        %v7457 = vld [vmem:[%s7454 + $0x10] sm:$0xff]
        %v7458 = vld [vmem:[%s7454 + $0x18] sm:$0xff]
        %v7459 = vld [vmem:[%s7454 + $0x20] sm:$0xff]
        %v7460 = vld [vmem:[%s7454 + $0x28] sm:$0xff]
        %v7461 = vld [vmem:[%s7454 + $0x30] sm:$0xff]
        %v7462 = vld [vmem:[%s7454 + $0x38] sm:$0xff]
        %v7463 = vld [vmem:[%s7454 + $0x40] sm:$0xff]
        %v7464 = vld [vmem:[%s7454 + $0x48] sm:$0xff]
        %v7465 = vld [vmem:[%s7454 + $0x50] sm:$0xff]
        %v7466 = vld [vmem:[%s7454 + $0x58] sm:$0xff]
        %v7467 = vld [vmem:[%s7454 + $0x60] sm:$0xff]
        %v7468 = vld [vmem:[%s7454 + $0x68] sm:$0xff]
        %v7469 = vld [vmem:[%s7454 + $0x70] sm:$0xff]
        %v7470 = vld [vmem:[%s7454 + $0x78] sm:$0xff]
        %v7471 = vld [vmem:[%s7454 + $0x80] sm:$0xff]
        %v7472 = vld [vmem:[%s7454 + $0x88] sm:$0xff]
        %v7473 = vld [vmem:[%s7454 + $0x90] sm:$0xff]
        %v7474 = vld [vmem:[%s7454 + $0x98] sm:$0xff]
        %v7475 = vld [vmem:[%s7454 + $0xa0] sm:$0xff]
        %v7476 = vld [vmem:[%s7454 + $0xa8] sm:$0xff]
        %v7477 = vld [vmem:[%s7454 + $0xb0] sm:$0xff]
        %v7478 = vld [vmem:[%s7454 + $0xb8] sm:$0xff]
        %s7479 = scalar_lea.vmem [#allocation2], 400
        %v7480 = vld [vmem:[%s7479] sm:$0xf]
        %v7481 = vld [vmem:[%s7479 + $0x4] sm:$0xf]
        %v7482 = vld [vmem:[%s7479 + $0x8] sm:$0xf]
        %v7483 = vld [vmem:[%s7479 + $0xc] sm:$0xf]
        %v7488 = vunpack.c.l.b16 %v7480
        %v7489 = vunpack.c.l.b16 %v7481
        %v7490 = vunpack.c.l.b16 %v7482
        %v7491 = vunpack.c.l.b16 %v7483
        %v7492 = vpack.c.b16 %v7489, %v7488
        %v7493 = vpack.c.b16 %v7491, %v7490
        %v7495 = vsel %vm281, %v7492, 0
        %v7498 = vsel %vm281, %v7493, 0
        %7500 = vmatprep.subr.bf16.mxu0 %v7373
        %7501 = vmatpush1.bf16.msra.mxu0 %v7372
        %7502 = vmatprep.subr.bf16.mxu0 %v7375
        %7503 = vmatpush1.bf16.msra.mxu0 %v7374
        %7504 = vmatprep.subr.bf16.mxu0 0
        %7505 = vmatpush1.bf16.msra.mxu0 0
        %7506 = vmatprep.subr.bf16.mxu0 0
        %7507 = vmatpush1.bf16.msra.mxu0 0
        %7508 = vmatprep.subr.bf16.mxu0 0
        %7509 = vmatpush1.bf16.msra.mxu0 0
        %7510 = vmatprep.subr.bf16.mxu0 0
        %7511 = vmatpush1.bf16.msra.mxu0 0
        %7512 = vmatprep.subr.bf16.mxu0 0
        %7513 = vmatpush1.bf16.msra.mxu0 0
        %7514 = vmatprep.subr.bf16.mxu0 0
        %7515 = vmatpush1.bf16.msra.mxu0 0
        %7516 = vmatprep.subr.bf16.mxu0 0
        %7517 = vmatpush1.bf16.msra.mxu0 0
        %7518 = vmatprep.subr.bf16.mxu0 0
        %7519 = vmatpush1.bf16.msra.mxu0 0
        %7520 = vmatprep.subr.bf16.mxu0 0
        %7521 = vmatpush1.bf16.msra.mxu0 0
        %7522 = vmatprep.subr.bf16.mxu0 0
        %7523 = vmatpush1.bf16.msra.mxu0 0
        %7524 = vmatprep.subr.bf16.mxu0 0
        %7525 = vmatpush1.bf16.msra.mxu0 0
        %7526 = vmatprep.subr.bf16.mxu0 0
        %7527 = vmatpush1.bf16.msra.mxu0 0
        %7528 = vmatprep.subr.bf16.mxu0 0
        %7529 = vmatpush1.bf16.msra.mxu0 0
        %7530 = vmatprep.subr.bf16.mxu0 0
        %7531 = vmatpush1.bf16.msra.mxu0 0
        %7532 = vmatprep.mubr.bf16.mxu0 0
        %7533 = vmatmul.mubr.bf16.gmra.mrb[0].mxu0 %v7495
        %v7534 = vpop.f32.mrb[0].mxu0
        %v7535 = vadd.f32 0.0, %v7534
        %v7536 = vpop.f32.mrb[0].mxu0
        %v7537 = vadd.f32 0.0, %v7536
        %v7538 = vpop.f32.mrb[0].mxu0
        %v7539 = vadd.f32 0.0, %v7538
        %v7540 = vpop.f32.mrb[0].mxu0
        %v7541 = vadd.f32 0.0, %v7540
        %7542 = vmatprep.mubr.bf16.mxu0 0
        %7543 = vmatmul.mubr.bf16.gmra.mrb[0].mxu0 %v7498
        %v7544 = vpop.f32.mrb[0].mxu0
        %v7545 = vadd.f32 0.0, %v7544
        %v7546 = vpop.f32.mrb[0].mxu0
        %v7547 = vadd.f32 0.0, %v7546
        %v7548 = vpop.f32.mrb[0].mxu0
        %v7549 = vadd.f32 0.0, %v7548
        %v7550 = vpop.f32.mrb[0].mxu0
        %v7551 = vadd.f32 0.0, %v7550
        %7552 = vdwg.mxu0
        %v7553 = vpack.c.bf16 %v7539, %v7535
        %v7554 = vpack.c.bf16 %v7541, %v7537
        %v7555 = vpack.c.bf16 %v7549, %v7545
        %v7556 = vpack.c.bf16 %v7551, %v7547
        %s7557 = scalar_lea.vmem [#allocation4], 4800
        %v7558 = vld [vmem:[%s7557] sm:$0xff]
        %v7559 = vld [vmem:[%s7557 + $0x8] sm:$0xff]
        %v7560 = vld [vmem:[%s7557 + $0x10] sm:$0xff]
        %v7561 = vld [vmem:[%s7557 + $0x18] sm:$0xff]
        %v7562 = vld [vmem:[%s7557 + $0x20] sm:$0xff]
        %v7563 = vld [vmem:[%s7557 + $0x28] sm:$0xff]
        %v7564 = vld [vmem:[%s7557 + $0x30] sm:$0xff]
        %v7565 = vld [vmem:[%s7557 + $0x38] sm:$0xff]
        %v7566 = vld [vmem:[%s7557 + $0x40] sm:$0xff]
        %v7567 = vld [vmem:[%s7557 + $0x48] sm:$0xff]
        %v7568 = vld [vmem:[%s7557 + $0x50] sm:$0xff]
        %v7569 = vld [vmem:[%s7557 + $0x58] sm:$0xff]
        %v7570 = vld [vmem:[%s7557 + $0x60] sm:$0xff]
        %v7571 = vld [vmem:[%s7557 + $0x68] sm:$0xff]
        %v7572 = vld [vmem:[%s7557 + $0x70] sm:$0xff]
        %v7573 = vld [vmem:[%s7557 + $0x78] sm:$0xff]
        %v7574 = vld [vmem:[%s7557 + $0x80] sm:$0xff]
        %v7575 = vld [vmem:[%s7557 + $0x88] sm:$0xff]
        %v7576 = vld [vmem:[%s7557 + $0x90] sm:$0xff]
        %v7577 = vld [vmem:[%s7557 + $0x98] sm:$0xff]
        %v7578 = vld [vmem:[%s7557 + $0xa0] sm:$0xff]
        %v7579 = vld [vmem:[%s7557 + $0xa8] sm:$0xff]
        %v7580 = vld [vmem:[%s7557 + $0xb0] sm:$0xff]
        %v7581 = vld [vmem:[%s7557 + $0xb8] sm:$0xff]
        %v7606 = vunpack.c.l.b16 %v7558
        %v7607 = vunpack.c.h.b16 %v7558
        %v7608 = vunpack.c.l.b16 %v7559
        %v7609 = vunpack.c.h.b16 %v7559
        %v7610 = vunpack.c.l.b16 %v7560
        %v7611 = vunpack.c.h.b16 %v7560
        %v7612 = vunpack.c.l.b16 %v7561
        %v7613 = vunpack.c.h.b16 %v7561
        %v7614 = vunpack.c.l.b16 %v7562
        %v7615 = vunpack.c.h.b16 %v7562
        %v7616 = vunpack.c.l.b16 %v7563
        %v7617 = vunpack.c.h.b16 %v7563
        %v7618 = vunpack.c.l.b16 %v7564
        %v7619 = vunpack.c.h.b16 %v7564
        %v7620 = vunpack.c.l.b16 %v7565
        %v7621 = vunpack.c.h.b16 %v7565
        %v7622 = vunpack.c.l.b16 %v7566
        %v7623 = vunpack.c.h.b16 %v7566
        %v7624 = vunpack.c.l.b16 %v7567
        %v7625 = vunpack.c.h.b16 %v7567
        %v7626 = vunpack.c.l.b16 %v7568
        %v7627 = vunpack.c.h.b16 %v7568
        %v7628 = vunpack.c.l.b16 %v7569
        %v7629 = vunpack.c.h.b16 %v7569
        %v7630 = vunpack.c.l.b16 %v7570
        %v7631 = vunpack.c.h.b16 %v7570
        %v7632 = vunpack.c.l.b16 %v7571
        %v7633 = vunpack.c.h.b16 %v7571
        %v7634 = vunpack.c.l.b16 %v7572
        %v7635 = vunpack.c.h.b16 %v7572
        %v7636 = vunpack.c.l.b16 %v7573
        %v7637 = vunpack.c.h.b16 %v7573
        %v7638 = vunpack.c.l.b16 %v7574
        %v7639 = vunpack.c.h.b16 %v7574
        %v7640 = vunpack.c.l.b16 %v7575
        %v7641 = vunpack.c.h.b16 %v7575
        %v7642 = vunpack.c.l.b16 %v7576
        %v7643 = vunpack.c.h.b16 %v7576
        %v7644 = vunpack.c.l.b16 %v7577
        %v7645 = vunpack.c.h.b16 %v7577
        %v7646 = vunpack.c.l.b16 %v7578
        %v7647 = vunpack.c.h.b16 %v7578
        %v7648 = vunpack.c.l.b16 %v7579
        %v7649 = vunpack.c.h.b16 %v7579
        %v7650 = vunpack.c.l.b16 %v7580
        %v7651 = vunpack.c.h.b16 %v7580
        %v7652 = vunpack.c.l.b16 %v7581
        %v7653 = vunpack.c.h.b16 %v7581
        %v7654 = vpack.c.b16 %v7608, %v7606
        %v7655 = vpack.c.b16 %v7609, %v7607
        %v7656 = vpack.c.b16 %v7612, %v7610
        %v7657 = vpack.c.b16 %v7613, %v7611
        %v7658 = vpack.c.b16 %v7616, %v7614
        %v7659 = vpack.c.b16 %v7617, %v7615
        %v7660 = vpack.c.b16 %v7620, %v7618
        %v7661 = vpack.c.b16 %v7621, %v7619
        %v7662 = vpack.c.b16 %v7624, %v7622
        %v7663 = vpack.c.b16 %v7625, %v7623
        %v7664 = vpack.c.b16 %v7628, %v7626
        %v7665 = vpack.c.b16 %v7629, %v7627
        %v7666 = vpack.c.b16 %v7632, %v7630
        %v7667 = vpack.c.b16 %v7633, %v7631
        %v7668 = vpack.c.b16 %v7636, %v7634
        %v7669 = vpack.c.b16 %v7637, %v7635
        %v7670 = vpack.c.b16 %v7640, %v7638
        %v7671 = vpack.c.b16 %v7641, %v7639
        %v7672 = vpack.c.b16 %v7644, %v7642
        %v7673 = vpack.c.b16 %v7645, %v7643
        %v7674 = vpack.c.b16 %v7648, %v7646
        %v7675 = vpack.c.b16 %v7649, %v7647
        %v7676 = vpack.c.b16 %v7652, %v7650
        %v7677 = vpack.c.b16 %v7653, %v7651
        %v7703 = vsel %vm592, %v7554, 0
        %v7706 = vsel %vm592, %v7556, 0
        %7708 = vmatprep.subr.bf16.mxu0 %v7655
        %7709 = vmatpush1.bf16.msra.mxu0 %v7654
        %7710 = vmatprep.subr.bf16.mxu0 %v7657
        %7711 = vmatpush1.bf16.msra.mxu0 %v7656
        %7712 = vmatprep.subr.bf16.mxu0 %v7659
        %7713 = vmatpush1.bf16.msra.mxu0 %v7658
        %7714 = vmatprep.subr.bf16.mxu0 %v7661
        %7715 = vmatpush1.bf16.msra.mxu0 %v7660
        %7716 = vmatprep.subr.bf16.mxu0 %v7663
        %7717 = vmatpush1.bf16.msra.mxu0 %v7662
        %7718 = vmatprep.subr.bf16.mxu0 %v7665
        %7719 = vmatpush1.bf16.msra.mxu0 %v7664
        %7720 = vmatprep.subr.bf16.mxu0 %v7667
        %7721 = vmatpush1.bf16.msra.mxu0 %v7666
        %7722 = vmatprep.subr.bf16.mxu0 %v7669
        %7723 = vmatpush1.bf16.msra.mxu0 %v7668
        %7724 = vmatprep.subr.bf16.mxu0 %v7671
        %7725 = vmatpush1.bf16.msra.mxu0 %v7670
        %7726 = vmatprep.subr.bf16.mxu0 %v7673
        %7727 = vmatpush1.bf16.msra.mxu0 %v7672
        %7728 = vmatprep.subr.bf16.mxu0 %v7675
        %7729 = vmatpush1.bf16.msra.mxu0 %v7674
        %7730 = vmatprep.subr.bf16.mxu0 %v7677
        %7731 = vmatpush1.bf16.msra.mxu0 %v7676
        %7732 = vmatprep.subr.bf16.mxu0 0
        %7733 = vmatpush1.bf16.msra.mxu0 0
        %7734 = vmatprep.subr.bf16.mxu0 0
        %7735 = vmatpush1.bf16.msra.mxu0 0
        %7736 = vmatprep.subr.bf16.mxu0 0
        %7737 = vmatpush1.bf16.msra.mxu0 0
        %7738 = vmatprep.subr.bf16.mxu0 0
        %7739 = vmatpush1.bf16.msra.mxu0 0
        %7740 = vmatprep.mubr.bf16.mxu0 %v7703
        %7741 = vmatmul.mubr.bf16.gmra.mrb[0].mxu0 %v7553
        %v7742 = vpop.f32.mrb[0].mxu0
        %v7743 = vadd.f32 0.0, %v7742
        %v7744 = vpop.f32.mrb[0].mxu0
        %v7745 = vadd.f32 0.0, %v7744
        %v7746 = vpop.f32.mrb[0].mxu0
        %v7747 = vadd.f32 0.0, %v7746
        %v7748 = vpop.f32.mrb[0].mxu0
        %v7749 = vadd.f32 0.0, %v7748
        %7750 = vmatprep.mubr.bf16.mxu0 %v7706
        %7751 = vmatmul.mubr.bf16.gmra.mrb[0].mxu0 %v7555
        %v7752 = vpop.f32.mrb[0].mxu0
        %v7753 = vadd.f32 0.0, %v7752
        %v7754 = vpop.f32.mrb[0].mxu0
        %v7755 = vadd.f32 0.0, %v7754
        %v7756 = vpop.f32.mrb[0].mxu0
        %v7757 = vadd.f32 0.0, %v7756
        %v7758 = vpop.f32.mrb[0].mxu0
        %v7759 = vadd.f32 0.0, %v7758
        %7760 = vdwg.mxu0
        %v7785 = vunpack.c.l.b16 %v7455
        %v7786 = vunpack.c.h.b16 %v7455
        %v7787 = vunpack.c.l.b16 %v7456
        %v7788 = vunpack.c.h.b16 %v7456
        %v7789 = vunpack.c.l.b16 %v7457
        %v7790 = vunpack.c.h.b16 %v7457
        %v7791 = vunpack.c.l.b16 %v7458
        %v7792 = vunpack.c.h.b16 %v7458
        %v7793 = vunpack.c.l.b16 %v7459
        %v7794 = vunpack.c.h.b16 %v7459
        %v7795 = vunpack.c.l.b16 %v7460
        %v7796 = vunpack.c.h.b16 %v7460
        %v7797 = vunpack.c.l.b16 %v7461
        %v7798 = vunpack.c.h.b16 %v7461
        %v7799 = vunpack.c.l.b16 %v7462
        %v7800 = vunpack.c.h.b16 %v7462
        %v7801 = vunpack.c.l.b16 %v7463
        %v7802 = vunpack.c.h.b16 %v7463
        %v7803 = vunpack.c.l.b16 %v7464
        %v7804 = vunpack.c.h.b16 %v7464
        %v7805 = vunpack.c.l.b16 %v7465
        %v7806 = vunpack.c.h.b16 %v7465
        %v7807 = vunpack.c.l.b16 %v7466
        %v7808 = vunpack.c.h.b16 %v7466
        %v7809 = vunpack.c.l.b16 %v7467
        %v7810 = vunpack.c.h.b16 %v7467
        %v7811 = vunpack.c.l.b16 %v7468
        %v7812 = vunpack.c.h.b16 %v7468
        %v7813 = vunpack.c.l.b16 %v7469
        %v7814 = vunpack.c.h.b16 %v7469
        %v7815 = vunpack.c.l.b16 %v7470
        %v7816 = vunpack.c.h.b16 %v7470
        %v7817 = vunpack.c.l.b16 %v7471
        %v7818 = vunpack.c.h.b16 %v7471
        %v7819 = vunpack.c.l.b16 %v7472
        %v7820 = vunpack.c.h.b16 %v7472
        %v7821 = vunpack.c.l.b16 %v7473
        %v7822 = vunpack.c.h.b16 %v7473
        %v7823 = vunpack.c.l.b16 %v7474
        %v7824 = vunpack.c.h.b16 %v7474
        %v7825 = vunpack.c.l.b16 %v7475
        %v7826 = vunpack.c.h.b16 %v7475
        %v7827 = vunpack.c.l.b16 %v7476
        %v7828 = vunpack.c.h.b16 %v7476
        %v7829 = vunpack.c.l.b16 %v7477
        %v7830 = vunpack.c.h.b16 %v7477
        %v7831 = vunpack.c.l.b16 %v7478
        %v7832 = vunpack.c.h.b16 %v7478
        %v7833 = vpack.c.b16 %v7787, %v7785
        %v7834 = vpack.c.b16 %v7788, %v7786
        %v7835 = vpack.c.b16 %v7791, %v7789
        %v7836 = vpack.c.b16 %v7792, %v7790
        %v7837 = vpack.c.b16 %v7795, %v7793
        %v7838 = vpack.c.b16 %v7796, %v7794
        %v7839 = vpack.c.b16 %v7799, %v7797
        %v7840 = vpack.c.b16 %v7800, %v7798
        %v7841 = vpack.c.b16 %v7803, %v7801
        %v7842 = vpack.c.b16 %v7804, %v7802
        %v7843 = vpack.c.b16 %v7807, %v7805
        %v7844 = vpack.c.b16 %v7808, %v7806
        %v7845 = vpack.c.b16 %v7811, %v7809
        %v7846 = vpack.c.b16 %v7812, %v7810
        %v7847 = vpack.c.b16 %v7815, %v7813
        %v7848 = vpack.c.b16 %v7816, %v7814
        %v7849 = vpack.c.b16 %v7819, %v7817
        %v7850 = vpack.c.b16 %v7820, %v7818
        %v7851 = vpack.c.b16 %v7823, %v7821
        %v7852 = vpack.c.b16 %v7824, %v7822
        %v7853 = vpack.c.b16 %v7827, %v7825
        %v7854 = vpack.c.b16 %v7828, %v7826
        %v7855 = vpack.c.b16 %v7831, %v7829
        %v7856 = vpack.c.b16 %v7832, %v7830
        %v7882 = vsel %vm592, %v7451, 0
        %v7885 = vsel %vm592, %v7453, 0
        %7887 = vmatprep.subr.bf16.mxu0 %v7834
        %7888 = vmatpush1.bf16.msra.mxu0 %v7833
        %7889 = vmatprep.subr.bf16.mxu0 %v7836
        %7890 = vmatpush1.bf16.msra.mxu0 %v7835
        %7891 = vmatprep.subr.bf16.mxu0 %v7838
        %7892 = vmatpush1.bf16.msra.mxu0 %v7837
        %7893 = vmatprep.subr.bf16.mxu0 %v7840
        %7894 = vmatpush1.bf16.msra.mxu0 %v7839
        %7895 = vmatprep.subr.bf16.mxu0 %v7842
        %7896 = vmatpush1.bf16.msra.mxu0 %v7841
        %7897 = vmatprep.subr.bf16.mxu0 %v7844
        %7898 = vmatpush1.bf16.msra.mxu0 %v7843
        %7899 = vmatprep.subr.bf16.mxu0 %v7846
        %7900 = vmatpush1.bf16.msra.mxu0 %v7845
        %7901 = vmatprep.subr.bf16.mxu0 %v7848
        %7902 = vmatpush1.bf16.msra.mxu0 %v7847
        %7903 = vmatprep.subr.bf16.mxu0 %v7850
        %7904 = vmatpush1.bf16.msra.mxu0 %v7849
        %7905 = vmatprep.subr.bf16.mxu0 %v7852
        %7906 = vmatpush1.bf16.msra.mxu0 %v7851
        %7907 = vmatprep.subr.bf16.mxu0 %v7854
        %7908 = vmatpush1.bf16.msra.mxu0 %v7853
        %7909 = vmatprep.subr.bf16.mxu0 %v7856
        %7910 = vmatpush1.bf16.msra.mxu0 %v7855
        %7911 = vmatprep.subr.bf16.mxu0 0
        %7912 = vmatpush1.bf16.msra.mxu0 0
        %7913 = vmatprep.subr.bf16.mxu0 0
        %7914 = vmatpush1.bf16.msra.mxu0 0
        %7915 = vmatprep.subr.bf16.mxu0 0
        %7916 = vmatpush1.bf16.msra.mxu0 0
        %7917 = vmatprep.subr.bf16.mxu0 0
        %7918 = vmatpush1.bf16.msra.mxu0 0
        %7919 = vmatprep.mubr.bf16.mxu0 %v7882
        %7920 = vmatmul.mubr.bf16.gmra.mrb[0].mxu0 %v7450
        %v7921 = vpop.f32.mrb[0].mxu0
        %v7922 = vadd.f32 %v7743, %v7921
        %v7923 = vpop.f32.mrb[0].mxu0
        %v7924 = vadd.f32 %v7745, %v7923
        %v7925 = vpop.f32.mrb[0].mxu0
        %v7926 = vadd.f32 %v7747, %v7925
        %v7927 = vpop.f32.mrb[0].mxu0
        %v7928 = vadd.f32 %v7749, %v7927
        %7929 = vmatprep.mubr.bf16.mxu0 %v7885
        %7930 = vmatmul.mubr.bf16.gmra.mrb[0].mxu0 %v7452
        %v7931 = vpop.f32.mrb[0].mxu0
        %v7932 = vadd.f32 %v7753, %v7931
        %v7933 = vpop.f32.mrb[0].mxu0
        %v7934 = vadd.f32 %v7755, %v7933
        %v7935 = vpop.f32.mrb[0].mxu0
        %v7936 = vadd.f32 %v7757, %v7935
        %v7937 = vpop.f32.mrb[0].mxu0
        %v7938 = vadd.f32 %v7759, %v7937
        %7939 = vdwg.mxu0
        %s7940 = scalar_lea.vmem [#allocation2], 416
        %v7941 = vld [vmem:[%s7940] sm:$0xf]
        %v7942 = vld [vmem:[%s7940 + $0x4] sm:$0xf]
        %v7943 = vld [vmem:[%s7940 + $0x8] sm:$0xf]
        %v7944 = vld [vmem:[%s7940 + $0xc] sm:$0xf]
        %v7949 = vunpack.c.l.b16 %v7941
        %v7950 = vunpack.c.l.b16 %v7942
        %v7951 = vunpack.c.l.b16 %v7943
        %v7952 = vunpack.c.l.b16 %v7944
        %v7953 = vpack.c.b16 %v7950, %v7949
        %v7954 = vpack.c.b16 %v7952, %v7951
        %v7956 = vsel %vm281, %v7953, 0
        %v7959 = vsel %vm281, %v7954, 0
        %7961 = vmatprep.subr.bf16.mxu0 %v7373
        %7962 = vmatpush1.bf16.msra.mxu0 %v7372
        %7963 = vmatprep.subr.bf16.mxu0 %v7375
        %7964 = vmatpush1.bf16.msra.mxu0 %v7374
        %7965 = vmatprep.subr.bf16.mxu0 0
        %7966 = vmatpush1.bf16.msra.mxu0 0
        %7967 = vmatprep.subr.bf16.mxu0 0
        %7968 = vmatpush1.bf16.msra.mxu0 0
        %7969 = vmatprep.subr.bf16.mxu0 0
        %7970 = vmatpush1.bf16.msra.mxu0 0
        %7971 = vmatprep.subr.bf16.mxu0 0
        %7972 = vmatpush1.bf16.msra.mxu0 0
        %7973 = vmatprep.subr.bf16.mxu0 0
        %7974 = vmatpush1.bf16.msra.mxu0 0
        %7975 = vmatprep.subr.bf16.mxu0 0
        %7976 = vmatpush1.bf16.msra.mxu0 0
        %7977 = vmatprep.subr.bf16.mxu0 0
        %7978 = vmatpush1.bf16.msra.mxu0 0
        %7979 = vmatprep.subr.bf16.mxu0 0
        %7980 = vmatpush1.bf16.msra.mxu0 0
        %7981 = vmatprep.subr.bf16.mxu0 0
        %7982 = vmatpush1.bf16.msra.mxu0 0
        %7983 = vmatprep.subr.bf16.mxu0 0
        %7984 = vmatpush1.bf16.msra.mxu0 0
        %7985 = vmatprep.subr.bf16.mxu0 0
        %7986 = vmatpush1.bf16.msra.mxu0 0
        %7987 = vmatprep.subr.bf16.mxu0 0
        %7988 = vmatpush1.bf16.msra.mxu0 0
        %7989 = vmatprep.subr.bf16.mxu0 0
        %7990 = vmatpush1.bf16.msra.mxu0 0
        %7991 = vmatprep.subr.bf16.mxu0 0
        %7992 = vmatpush1.bf16.msra.mxu0 0
        %7993 = vmatprep.mubr.bf16.mxu0 0
        %7994 = vmatmul.mubr.bf16.gmra.mrb[0].mxu0 %v7956
        %v7995 = vpop.f32.mrb[0].mxu0
        %v7996 = vadd.f32 0.0, %v7995
        %v7997 = vpop.f32.mrb[0].mxu0
        %v7998 = vadd.f32 0.0, %v7997
        %v7999 = vpop.f32.mrb[0].mxu0
        %v8000 = vadd.f32 0.0, %v7999
        %v8001 = vpop.f32.mrb[0].mxu0
        %v8002 = vadd.f32 0.0, %v8001
        %8003 = vmatprep.mubr.bf16.mxu0 0
        %8004 = vmatmul.mubr.bf16.gmra.mrb[0].mxu0 %v7959
        %v8005 = vpop.f32.mrb[0].mxu0
        %v8006 = vadd.f32 0.0, %v8005
        %v8007 = vpop.f32.mrb[0].mxu0
        %v8008 = vadd.f32 0.0, %v8007
        %v8009 = vpop.f32.mrb[0].mxu0
        %v8010 = vadd.f32 0.0, %v8009
        %v8011 = vpop.f32.mrb[0].mxu0
        %v8012 = vadd.f32 0.0, %v8011
        %8013 = vdwg.mxu0
        %v8014 = vpack.c.bf16 %v8000, %v7996
        %v8015 = vpack.c.bf16 %v8002, %v7998
        %v8016 = vpack.c.bf16 %v8010, %v8006
        %v8017 = vpack.c.bf16 %v8012, %v8008
        %s8018 = scalar_lea.vmem [#allocation4], 4992
        %v8019 = vld [vmem:[%s8018] sm:$0xff]
        %v8020 = vld [vmem:[%s8018 + $0x8] sm:$0xff]
        %v8021 = vld [vmem:[%s8018 + $0x10] sm:$0xff]
        %v8022 = vld [vmem:[%s8018 + $0x18] sm:$0xff]
        %v8023 = vld [vmem:[%s8018 + $0x20] sm:$0xff]
        %v8024 = vld [vmem:[%s8018 + $0x28] sm:$0xff]
        %v8025 = vld [vmem:[%s8018 + $0x30] sm:$0xff]
        %v8026 = vld [vmem:[%s8018 + $0x38] sm:$0xff]
        %v8027 = vld [vmem:[%s8018 + $0x40] sm:$0xff]
        %v8028 = vld [vmem:[%s8018 + $0x48] sm:$0xff]
        %v8029 = vld [vmem:[%s8018 + $0x50] sm:$0xff]
        %v8030 = vld [vmem:[%s8018 + $0x58] sm:$0xff]
        %v8031 = vld [vmem:[%s8018 + $0x60] sm:$0xff]
        %v8032 = vld [vmem:[%s8018 + $0x68] sm:$0xff]
        %v8033 = vld [vmem:[%s8018 + $0x70] sm:$0xff]
        %v8034 = vld [vmem:[%s8018 + $0x78] sm:$0xff]
        %v8035 = vld [vmem:[%s8018 + $0x80] sm:$0xff]
        %v8036 = vld [vmem:[%s8018 + $0x88] sm:$0xff]
        %v8037 = vld [vmem:[%s8018 + $0x90] sm:$0xff]
        %v8038 = vld [vmem:[%s8018 + $0x98] sm:$0xff]
        %v8039 = vld [vmem:[%s8018 + $0xa0] sm:$0xff]
        %v8040 = vld [vmem:[%s8018 + $0xa8] sm:$0xff]
        %v8041 = vld [vmem:[%s8018 + $0xb0] sm:$0xff]
        %v8042 = vld [vmem:[%s8018 + $0xb8] sm:$0xff]
        %v8067 = vunpack.c.l.b16 %v8019
        %v8068 = vunpack.c.h.b16 %v8019
        %v8069 = vunpack.c.l.b16 %v8020
        %v8070 = vunpack.c.h.b16 %v8020
        %v8071 = vunpack.c.l.b16 %v8021
        %v8072 = vunpack.c.h.b16 %v8021
        %v8073 = vunpack.c.l.b16 %v8022
        %v8074 = vunpack.c.h.b16 %v8022
        %v8075 = vunpack.c.l.b16 %v8023
        %v8076 = vunpack.c.h.b16 %v8023
        %v8077 = vunpack.c.l.b16 %v8024
        %v8078 = vunpack.c.h.b16 %v8024
        %v8079 = vunpack.c.l.b16 %v8025
        %v8080 = vunpack.c.h.b16 %v8025
        %v8081 = vunpack.c.l.b16 %v8026
        %v8082 = vunpack.c.h.b16 %v8026
        %v8083 = vunpack.c.l.b16 %v8027
        %v8084 = vunpack.c.h.b16 %v8027
        %v8085 = vunpack.c.l.b16 %v8028
        %v8086 = vunpack.c.h.b16 %v8028
        %v8087 = vunpack.c.l.b16 %v8029
        %v8088 = vunpack.c.h.b16 %v8029
        %v8089 = vunpack.c.l.b16 %v8030
        %v8090 = vunpack.c.h.b16 %v8030
        %v8091 = vunpack.c.l.b16 %v8031
        %v8092 = vunpack.c.h.b16 %v8031
        %v8093 = vunpack.c.l.b16 %v8032
        %v8094 = vunpack.c.h.b16 %v8032
        %v8095 = vunpack.c.l.b16 %v8033
        %v8096 = vunpack.c.h.b16 %v8033
        %v8097 = vunpack.c.l.b16 %v8034
        %v8098 = vunpack.c.h.b16 %v8034
        %v8099 = vunpack.c.l.b16 %v8035
        %v8100 = vunpack.c.h.b16 %v8035
        %v8101 = vunpack.c.l.b16 %v8036
        %v8102 = vunpack.c.h.b16 %v8036
        %v8103 = vunpack.c.l.b16 %v8037
        %v8104 = vunpack.c.h.b16 %v8037
        %v8105 = vunpack.c.l.b16 %v8038
        %v8106 = vunpack.c.h.b16 %v8038
        %v8107 = vunpack.c.l.b16 %v8039
        %v8108 = vunpack.c.h.b16 %v8039
        %v8109 = vunpack.c.l.b16 %v8040
        %v8110 = vunpack.c.h.b16 %v8040
        %v8111 = vunpack.c.l.b16 %v8041
        %v8112 = vunpack.c.h.b16 %v8041
        %v8113 = vunpack.c.l.b16 %v8042
        %v8114 = vunpack.c.h.b16 %v8042
        %v8115 = vpack.c.b16 %v8069, %v8067
        %v8116 = vpack.c.b16 %v8070, %v8068
        %v8117 = vpack.c.b16 %v8073, %v8071
        %v8118 = vpack.c.b16 %v8074, %v8072
        %v8119 = vpack.c.b16 %v8077, %v8075
        %v8120 = vpack.c.b16 %v8078, %v8076
        %v8121 = vpack.c.b16 %v8081, %v8079
        %v8122 = vpack.c.b16 %v8082, %v8080
        %v8123 = vpack.c.b16 %v8085, %v8083
        %v8124 = vpack.c.b16 %v8086, %v8084
        %v8125 = vpack.c.b16 %v8089, %v8087
        %v8126 = vpack.c.b16 %v8090, %v8088
        %v8127 = vpack.c.b16 %v8093, %v8091
        %v8128 = vpack.c.b16 %v8094, %v8092
        %v8129 = vpack.c.b16 %v8097, %v8095
        %v8130 = vpack.c.b16 %v8098, %v8096
        %v8131 = vpack.c.b16 %v8101, %v8099
        %v8132 = vpack.c.b16 %v8102, %v8100
        %v8133 = vpack.c.b16 %v8105, %v8103
        %v8134 = vpack.c.b16 %v8106, %v8104
        %v8135 = vpack.c.b16 %v8109, %v8107
        %v8136 = vpack.c.b16 %v8110, %v8108
        %v8137 = vpack.c.b16 %v8113, %v8111
        %v8138 = vpack.c.b16 %v8114, %v8112
        %v8164 = vsel %vm592, %v8015, 0
        %v8167 = vsel %vm592, %v8017, 0
        %8169 = vmatprep.subr.bf16.mxu0 %v8116
        %8170 = vmatpush1.bf16.msra.mxu0 %v8115
        %8171 = vmatprep.subr.bf16.mxu0 %v8118
        %8172 = vmatpush1.bf16.msra.mxu0 %v8117
        %8173 = vmatprep.subr.bf16.mxu0 %v8120
        %8174 = vmatpush1.bf16.msra.mxu0 %v8119
        %8175 = vmatprep.subr.bf16.mxu0 %v8122
        %8176 = vmatpush1.bf16.msra.mxu0 %v8121
        %8177 = vmatprep.subr.bf16.mxu0 %v8124
        %8178 = vmatpush1.bf16.msra.mxu0 %v8123
        %8179 = vmatprep.subr.bf16.mxu0 %v8126
        %8180 = vmatpush1.bf16.msra.mxu0 %v8125
        %8181 = vmatprep.subr.bf16.mxu0 %v8128
        %8182 = vmatpush1.bf16.msra.mxu0 %v8127
        %8183 = vmatprep.subr.bf16.mxu0 %v8130
        %8184 = vmatpush1.bf16.msra.mxu0 %v8129
        %8185 = vmatprep.subr.bf16.mxu0 %v8132
        %8186 = vmatpush1.bf16.msra.mxu0 %v8131
        %8187 = vmatprep.subr.bf16.mxu0 %v8134
        %8188 = vmatpush1.bf16.msra.mxu0 %v8133
        %8189 = vmatprep.subr.bf16.mxu0 %v8136
        %8190 = vmatpush1.bf16.msra.mxu0 %v8135
        %8191 = vmatprep.subr.bf16.mxu0 %v8138
        %8192 = vmatpush1.bf16.msra.mxu0 %v8137
        %8193 = vmatprep.subr.bf16.mxu0 0
        %8194 = vmatpush1.bf16.msra.mxu0 0
        %8195 = vmatprep.subr.bf16.mxu0 0
        %8196 = vmatpush1.bf16.msra.mxu0 0
        %8197 = vmatprep.subr.bf16.mxu0 0
        %8198 = vmatpush1.bf16.msra.mxu0 0
        %8199 = vmatprep.subr.bf16.mxu0 0
        %8200 = vmatpush1.bf16.msra.mxu0 0
        %8201 = vmatprep.mubr.bf16.mxu0 %v8164
        %8202 = vmatmul.mubr.bf16.gmra.mrb[0].mxu0 %v8014
        %v8203 = vpop.f32.mrb[0].mxu0
        %v8204 = vadd.f32 0.0, %v8203
        %v8205 = vpop.f32.mrb[0].mxu0
        %v8206 = vadd.f32 0.0, %v8205
        %v8207 = vpop.f32.mrb[0].mxu0
        %v8208 = vadd.f32 0.0, %v8207
        %v8209 = vpop.f32.mrb[0].mxu0
        %v8210 = vadd.f32 0.0, %v8209
        %8211 = vmatprep.mubr.bf16.mxu0 %v8167
        %8212 = vmatmul.mubr.bf16.gmra.mrb[0].mxu0 %v8016
        %v8213 = vpop.f32.mrb[0].mxu0
        %v8214 = vadd.f32 0.0, %v8213
        %v8215 = vpop.f32.mrb[0].mxu0
        %v8216 = vadd.f32 0.0, %v8215
        %v8217 = vpop.f32.mrb[0].mxu0
        %v8218 = vadd.f32 0.0, %v8217
        %v8219 = vpop.f32.mrb[0].mxu0
        %v8220 = vadd.f32 0.0, %v8219
        %8221 = vdwg.mxu0
        %v8222 = vadd.f32 %v7922, %v8204
        %v8223 = vadd.f32 %v7924, %v8206
        %v8224 = vadd.f32 %v7926, %v8208
        %v8225 = vadd.f32 %v7928, %v8210
        %v8226 = vadd.f32 %v7932, %v8214
        %v8227 = vadd.f32 %v7934, %v8216
        %v8228 = vadd.f32 %v7936, %v8218
        %v8229 = vadd.f32 %v7938, %v8220
        %s8230 = scalar_lea.vmem [#allocation2], 432
        %v8231 = vld [vmem:[%s8230] sm:$0xf]
        %v8232 = vld [vmem:[%s8230 + $0x4] sm:$0xf]
        %v8233 = vld [vmem:[%s8230 + $0x8] sm:$0xf]
        %v8234 = vld [vmem:[%s8230 + $0xc] sm:$0xf]
        %v8239 = vunpack.c.l.b16 %v8231
        %v8240 = vunpack.c.l.b16 %v8232
        %v8241 = vunpack.c.l.b16 %v8233
        %v8242 = vunpack.c.l.b16 %v8234
        %v8243 = vpack.c.b16 %v8240, %v8239
        %v8244 = vpack.c.b16 %v8242, %v8241
        %v8246 = vsel %vm281, %v8243, 0
        %v8249 = vsel %vm281, %v8244, 0
        %8251 = vmatprep.subr.bf16.mxu0 %v7373
        %8252 = vmatpush1.bf16.msra.mxu0 %v7372
        %8253 = vmatprep.subr.bf16.mxu0 %v7375
        %8254 = vmatpush1.bf16.msra.mxu0 %v7374
        %8255 = vmatprep.subr.bf16.mxu0 0
        %8256 = vmatpush1.bf16.msra.mxu0 0
        %8257 = vmatprep.subr.bf16.mxu0 0
        %8258 = vmatpush1.bf16.msra.mxu0 0
        %8259 = vmatprep.subr.bf16.mxu0 0
        %8260 = vmatpush1.bf16.msra.mxu0 0
        %8261 = vmatprep.subr.bf16.mxu0 0
        %8262 = vmatpush1.bf16.msra.mxu0 0
        %8263 = vmatprep.subr.bf16.mxu0 0
        %8264 = vmatpush1.bf16.msra.mxu0 0
        %8265 = vmatprep.subr.bf16.mxu0 0
        %8266 = vmatpush1.bf16.msra.mxu0 0
        %8267 = vmatprep.subr.bf16.mxu0 0
        %8268 = vmatpush1.bf16.msra.mxu0 0
        %8269 = vmatprep.subr.bf16.mxu0 0
        %8270 = vmatpush1.bf16.msra.mxu0 0
        %8271 = vmatprep.subr.bf16.mxu0 0
        %8272 = vmatpush1.bf16.msra.mxu0 0
        %8273 = vmatprep.subr.bf16.mxu0 0
        %8274 = vmatpush1.bf16.msra.mxu0 0
        %8275 = vmatprep.subr.bf16.mxu0 0
        %8276 = vmatpush1.bf16.msra.mxu0 0
        %8277 = vmatprep.subr.bf16.mxu0 0
        %8278 = vmatpush1.bf16.msra.mxu0 0
        %8279 = vmatprep.subr.bf16.mxu0 0
        %8280 = vmatpush1.bf16.msra.mxu0 0
        %8281 = vmatprep.subr.bf16.mxu0 0
        %8282 = vmatpush1.bf16.msra.mxu0 0
        %8283 = vmatprep.mubr.bf16.mxu0 0
        %8284 = vmatmul.mubr.bf16.gmra.mrb[0].mxu0 %v8246
        %v8285 = vpop.f32.mrb[0].mxu0
        %v8286 = vadd.f32 0.0, %v8285
        %v8287 = vpop.f32.mrb[0].mxu0
        %v8288 = vadd.f32 0.0, %v8287
        %v8289 = vpop.f32.mrb[0].mxu0
        %v8290 = vadd.f32 0.0, %v8289
        %v8291 = vpop.f32.mrb[0].mxu0
        %v8292 = vadd.f32 0.0, %v8291
        %8293 = vmatprep.mubr.bf16.mxu0 0
        %8294 = vmatmul.mubr.bf16.gmra.mrb[0].mxu0 %v8249
        %v8295 = vpop.f32.mrb[0].mxu0
        %v8296 = vadd.f32 0.0, %v8295
        %v8297 = vpop.f32.mrb[0].mxu0
        %v8298 = vadd.f32 0.0, %v8297
        %v8299 = vpop.f32.mrb[0].mxu0
        %v8300 = vadd.f32 0.0, %v8299
        %v8301 = vpop.f32.mrb[0].mxu0
        %v8302 = vadd.f32 0.0, %v8301
        %8303 = vdwg.mxu0
        %v8304 = vpack.c.bf16 %v8290, %v8286
        %v8305 = vpack.c.bf16 %v8292, %v8288
        %v8306 = vpack.c.bf16 %v8300, %v8296
        %v8307 = vpack.c.bf16 %v8302, %v8298
        %s8308 = scalar_lea.vmem [#allocation4], 5184
        %v8309 = vld [vmem:[%s8308] sm:$0xff]
        %v8310 = vld [vmem:[%s8308 + $0x8] sm:$0xff]
        %v8311 = vld [vmem:[%s8308 + $0x10] sm:$0xff]
        %v8312 = vld [vmem:[%s8308 + $0x18] sm:$0xff]
        %v8313 = vld [vmem:[%s8308 + $0x20] sm:$0xff]
        %v8314 = vld [vmem:[%s8308 + $0x28] sm:$0xff]
        %v8315 = vld [vmem:[%s8308 + $0x30] sm:$0xff]
        %v8316 = vld [vmem:[%s8308 + $0x38] sm:$0xff]
        %v8317 = vld [vmem:[%s8308 + $0x40] sm:$0xff]
        %v8318 = vld [vmem:[%s8308 + $0x48] sm:$0xff]
        %v8319 = vld [vmem:[%s8308 + $0x50] sm:$0xff]
        %v8320 = vld [vmem:[%s8308 + $0x58] sm:$0xff]
        %v8321 = vld [vmem:[%s8308 + $0x60] sm:$0xff]
        %v8322 = vld [vmem:[%s8308 + $0x68] sm:$0xff]
        %v8323 = vld [vmem:[%s8308 + $0x70] sm:$0xff]
        %v8324 = vld [vmem:[%s8308 + $0x78] sm:$0xff]
        %v8325 = vld [vmem:[%s8308 + $0x80] sm:$0xff]
        %v8326 = vld [vmem:[%s8308 + $0x88] sm:$0xff]
        %v8327 = vld [vmem:[%s8308 + $0x90] sm:$0xff]
        %v8328 = vld [vmem:[%s8308 + $0x98] sm:$0xff]
        %v8329 = vld [vmem:[%s8308 + $0xa0] sm:$0xff]
        %v8330 = vld [vmem:[%s8308 + $0xa8] sm:$0xff]
        %v8331 = vld [vmem:[%s8308 + $0xb0] sm:$0xff]
        %v8332 = vld [vmem:[%s8308 + $0xb8] sm:$0xff]
        %v8357 = vunpack.c.l.b16 %v8309
        %v8358 = vunpack.c.h.b16 %v8309
        %v8359 = vunpack.c.l.b16 %v8310
        %v8360 = vunpack.c.h.b16 %v8310
        %v8361 = vunpack.c.l.b16 %v8311
        %v8362 = vunpack.c.h.b16 %v8311
        %v8363 = vunpack.c.l.b16 %v8312
        %v8364 = vunpack.c.h.b16 %v8312
        %v8365 = vunpack.c.l.b16 %v8313
        %v8366 = vunpack.c.h.b16 %v8313
        %v8367 = vunpack.c.l.b16 %v8314
        %v8368 = vunpack.c.h.b16 %v8314
        %v8369 = vunpack.c.l.b16 %v8315
        %v8370 = vunpack.c.h.b16 %v8315
        %v8371 = vunpack.c.l.b16 %v8316
        %v8372 = vunpack.c.h.b16 %v8316
        %v8373 = vunpack.c.l.b16 %v8317
        %v8374 = vunpack.c.h.b16 %v8317
        %v8375 = vunpack.c.l.b16 %v8318
        %v8376 = vunpack.c.h.b16 %v8318
        %v8377 = vunpack.c.l.b16 %v8319
        %v8378 = vunpack.c.h.b16 %v8319
        %v8379 = vunpack.c.l.b16 %v8320
        %v8380 = vunpack.c.h.b16 %v8320
        %v8381 = vunpack.c.l.b16 %v8321
        %v8382 = vunpack.c.h.b16 %v8321
        %v8383 = vunpack.c.l.b16 %v8322
        %v8384 = vunpack.c.h.b16 %v8322
        %v8385 = vunpack.c.l.b16 %v8323
        %v8386 = vunpack.c.h.b16 %v8323
        %v8387 = vunpack.c.l.b16 %v8324
        %v8388 = vunpack.c.h.b16 %v8324
        %v8389 = vunpack.c.l.b16 %v8325
        %v8390 = vunpack.c.h.b16 %v8325
        %v8391 = vunpack.c.l.b16 %v8326
        %v8392 = vunpack.c.h.b16 %v8326
        %v8393 = vunpack.c.l.b16 %v8327
        %v8394 = vunpack.c.h.b16 %v8327
        %v8395 = vunpack.c.l.b16 %v8328
        %v8396 = vunpack.c.h.b16 %v8328
        %v8397 = vunpack.c.l.b16 %v8329
        %v8398 = vunpack.c.h.b16 %v8329
        %v8399 = vunpack.c.l.b16 %v8330
        %v8400 = vunpack.c.h.b16 %v8330
        %v8401 = vunpack.c.l.b16 %v8331
        %v8402 = vunpack.c.h.b16 %v8331
        %v8403 = vunpack.c.l.b16 %v8332
        %v8404 = vunpack.c.h.b16 %v8332
        %v8405 = vpack.c.b16 %v8359, %v8357
        %v8406 = vpack.c.b16 %v8360, %v8358
        %v8407 = vpack.c.b16 %v8363, %v8361
        %v8408 = vpack.c.b16 %v8364, %v8362
        %v8409 = vpack.c.b16 %v8367, %v8365
        %v8410 = vpack.c.b16 %v8368, %v8366
        %v8411 = vpack.c.b16 %v8371, %v8369
        %v8412 = vpack.c.b16 %v8372, %v8370
        %v8413 = vpack.c.b16 %v8375, %v8373
        %v8414 = vpack.c.b16 %v8376, %v8374
        %v8415 = vpack.c.b16 %v8379, %v8377
        %v8416 = vpack.c.b16 %v8380, %v8378
        %v8417 = vpack.c.b16 %v8383, %v8381
        %v8418 = vpack.c.b16 %v8384, %v8382
        %v8419 = vpack.c.b16 %v8387, %v8385
        %v8420 = vpack.c.b16 %v8388, %v8386
        %v8421 = vpack.c.b16 %v8391, %v8389
        %v8422 = vpack.c.b16 %v8392, %v8390
        %v8423 = vpack.c.b16 %v8395, %v8393
        %v8424 = vpack.c.b16 %v8396, %v8394
        %v8425 = vpack.c.b16 %v8399, %v8397
        %v8426 = vpack.c.b16 %v8400, %v8398
        %v8427 = vpack.c.b16 %v8403, %v8401
        %v8428 = vpack.c.b16 %v8404, %v8402
        %v8454 = vsel %vm592, %v8305, 0
        %v8457 = vsel %vm592, %v8307, 0
        %8459 = vmatprep.subr.bf16.mxu0 %v8406
        %8460 = vmatpush1.bf16.msra.mxu0 %v8405
        %8461 = vmatprep.subr.bf16.mxu0 %v8408
        %8462 = vmatpush1.bf16.msra.mxu0 %v8407
        %8463 = vmatprep.subr.bf16.mxu0 %v8410
        %8464 = vmatpush1.bf16.msra.mxu0 %v8409
        %8465 = vmatprep.subr.bf16.mxu0 %v8412
        %8466 = vmatpush1.bf16.msra.mxu0 %v8411
        %8467 = vmatprep.subr.bf16.mxu0 %v8414
        %8468 = vmatpush1.bf16.msra.mxu0 %v8413
        %8469 = vmatprep.subr.bf16.mxu0 %v8416
        %8470 = vmatpush1.bf16.msra.mxu0 %v8415
        %8471 = vmatprep.subr.bf16.mxu0 %v8418
        %8472 = vmatpush1.bf16.msra.mxu0 %v8417
        %8473 = vmatprep.subr.bf16.mxu0 %v8420
        %8474 = vmatpush1.bf16.msra.mxu0 %v8419
        %8475 = vmatprep.subr.bf16.mxu0 %v8422
        %8476 = vmatpush1.bf16.msra.mxu0 %v8421
        %8477 = vmatprep.subr.bf16.mxu0 %v8424
        %8478 = vmatpush1.bf16.msra.mxu0 %v8423
        %8479 = vmatprep.subr.bf16.mxu0 %v8426
        %8480 = vmatpush1.bf16.msra.mxu0 %v8425
        %8481 = vmatprep.subr.bf16.mxu0 %v8428
        %8482 = vmatpush1.bf16.msra.mxu0 %v8427
        %8483 = vmatprep.subr.bf16.mxu0 0
        %8484 = vmatpush1.bf16.msra.mxu0 0
        %8485 = vmatprep.subr.bf16.mxu0 0
        %8486 = vmatpush1.bf16.msra.mxu0 0
        %8487 = vmatprep.subr.bf16.mxu0 0
        %8488 = vmatpush1.bf16.msra.mxu0 0
        %8489 = vmatprep.subr.bf16.mxu0 0
        %8490 = vmatpush1.bf16.msra.mxu0 0
        %8491 = vmatprep.mubr.bf16.mxu0 %v8454
        %8492 = vmatmul.mubr.bf16.gmra.mrb[0].mxu0 %v8304
        %v8493 = vpop.f32.mrb[0].mxu0
        %v8494 = vadd.f32 0.0, %v8493
        %v8495 = vpop.f32.mrb[0].mxu0
        %v8496 = vadd.f32 0.0, %v8495
        %v8497 = vpop.f32.mrb[0].mxu0
        %v8498 = vadd.f32 0.0, %v8497
        %v8499 = vpop.f32.mrb[0].mxu0
        %v8500 = vadd.f32 0.0, %v8499
        %8501 = vmatprep.mubr.bf16.mxu0 %v8457
        %8502 = vmatmul.mubr.bf16.gmra.mrb[0].mxu0 %v8306
        %v8503 = vpop.f32.mrb[0].mxu0
        %v8504 = vadd.f32 0.0, %v8503
        %v8505 = vpop.f32.mrb[0].mxu0
        %v8506 = vadd.f32 0.0, %v8505
        %v8507 = vpop.f32.mrb[0].mxu0
        %v8508 = vadd.f32 0.0, %v8507
        %v8509 = vpop.f32.mrb[0].mxu0
        %v8510 = vadd.f32 0.0, %v8509
        %8511 = vdwg.mxu0
        %v8512 = vadd.f32 %v8222, %v8494
        %v8513 = vadd.f32 %v8223, %v8496
        %v8514 = vadd.f32 %v8224, %v8498
        %v8515 = vadd.f32 %v8225, %v8500
        %v8516 = vadd.f32 %v8226, %v8504
        %v8517 = vadd.f32 %v8227, %v8506
        %v8518 = vadd.f32 %v8228, %v8508
        %v8519 = vadd.f32 %v8229, %v8510
        %s8520 = scalar_lea.vmem [#allocation6], 12
        %v8521 = vld [vmem:[%s8520] sm:$0x3]
        %v8523 = vlaneseq
        %v8524 = vshrl.u32 %v8523, 7
        %v8525 = vsub.s32 0, %v8524
        %v8526 = vrot.slane %v8521, %v8525
        %v8527 = vlaneseq
        %v8528 = vshrl.u32 %v8527, 7
        %v8529 = vsub.s32 1, %v8528
        %v8530 = vrot.slane %v8521, %v8529
        %v8533 = vadd.f32 %v8512, %v8526
        %v8534 = vadd.f32 %v8513, %v8530
        %v8535 = vadd.f32 %v8514, %v8526
        %v8536 = vadd.f32 %v8515, %v8530
        %v8537 = vadd.f32 %v8516, %v8526
        %v8538 = vadd.f32 %v8517, %v8530
        %v8539 = vadd.f32 %v8518, %v8526
        %v8540 = vadd.f32 %v8519, %v8530
        %v8541 = vmul.f32 %v8533, 0.1
        %v8542 = vmul.f32 %v8534, 0.1
        %v8543 = vmul.f32 %v8535, 0.1
        %v8544 = vmul.f32 %v8536, 0.1
        %v8545 = vmul.f32 %v8537, 0.1
        %v8546 = vmul.f32 %v8538, 0.1
        %v8547 = vmul.f32 %v8539, 0.1
        %v8548 = vmul.f32 %v8540, 0.1
        %v8549 = vmax.f32 %v8533, %v8541
        %v8550 = vmax.f32 %v8534, %v8542
        %v8551 = vmax.f32 %v8535, %v8543
        %v8552 = vmax.f32 %v8536, %v8544
        %v8553 = vmax.f32 %v8537, %v8545
        %v8554 = vmax.f32 %v8538, %v8546
        %v8555 = vmax.f32 %v8539, %v8547
        %v8556 = vmax.f32 %v8540, %v8548
        %v8557 = vpack.c.bf16 %v8551, %v8549
        %v8558 = vpack.c.bf16 %v8552, %v8550
        %v8559 = vpack.c.bf16 %v8555, %v8553
        %v8560 = vpack.c.bf16 %v8556, %v8554
        %s8561 = scalar_lea.vmem [#allocation2], 448
        %v8562 = vld [vmem:[%s8561] sm:$0xf]
        %v8563 = vld [vmem:[%s8561 + $0x4] sm:$0xf]
        %v8564 = vld [vmem:[%s8561 + $0x8] sm:$0xf]
        %v8565 = vld [vmem:[%s8561 + $0xc] sm:$0xf]
        %v8570 = vunpack.c.l.b16 %v8562
        %v8571 = vunpack.c.l.b16 %v8563
        %v8572 = vunpack.c.l.b16 %v8564
        %v8573 = vunpack.c.l.b16 %v8565
        %v8574 = vpack.c.b16 %v8571, %v8570
        %v8575 = vpack.c.b16 %v8573, %v8572
        %v8577 = vsel %vm281, %v8574, 0
        %v8580 = vsel %vm281, %v8575, 0
        %8582 = vmatprep.subr.bf16.mxu0 %v8558
        %8583 = vmatpush1.bf16.msra.mxu0 %v8557
        %8584 = vmatprep.subr.bf16.mxu0 %v8560
        %8585 = vmatpush1.bf16.msra.mxu0 %v8559
        %8586 = vmatprep.subr.bf16.mxu0 0
        %8587 = vmatpush1.bf16.msra.mxu0 0
        %8588 = vmatprep.subr.bf16.mxu0 0
        %8589 = vmatpush1.bf16.msra.mxu0 0
        %8590 = vmatprep.subr.bf16.mxu0 0
        %8591 = vmatpush1.bf16.msra.mxu0 0
        %8592 = vmatprep.subr.bf16.mxu0 0
        %8593 = vmatpush1.bf16.msra.mxu0 0
        %8594 = vmatprep.subr.bf16.mxu0 0
        %8595 = vmatpush1.bf16.msra.mxu0 0
        %8596 = vmatprep.subr.bf16.mxu0 0
        %8597 = vmatpush1.bf16.msra.mxu0 0
        %8598 = vmatprep.subr.bf16.mxu0 0
        %8599 = vmatpush1.bf16.msra.mxu0 0
        %8600 = vmatprep.subr.bf16.mxu0 0
        %8601 = vmatpush1.bf16.msra.mxu0 0
        %8602 = vmatprep.subr.bf16.mxu0 0
        %8603 = vmatpush1.bf16.msra.mxu0 0
        %8604 = vmatprep.subr.bf16.mxu0 0
        %8605 = vmatpush1.bf16.msra.mxu0 0
        %8606 = vmatprep.subr.bf16.mxu0 0
        %8607 = vmatpush1.bf16.msra.mxu0 0
        %8608 = vmatprep.subr.bf16.mxu0 0
        %8609 = vmatpush1.bf16.msra.mxu0 0
        %8610 = vmatprep.subr.bf16.mxu0 0
        %8611 = vmatpush1.bf16.msra.mxu0 0
        %8612 = vmatprep.subr.bf16.mxu0 0
        %8613 = vmatpush1.bf16.msra.mxu0 0
        %8614 = vmatprep.mubr.bf16.mxu0 0
        %8615 = vmatmul.mubr.bf16.gmra.mrb[0].mxu0 %v8577
        %v8616 = vpop.f32.mrb[0].mxu0
        %v8617 = vadd.f32 0.0, %v8616
        %v8618 = vpop.f32.mrb[0].mxu0
        %v8619 = vadd.f32 0.0, %v8618
        %v8620 = vpop.f32.mrb[0].mxu0
        %v8621 = vadd.f32 0.0, %v8620
        %v8622 = vpop.f32.mrb[0].mxu0
        %v8623 = vadd.f32 0.0, %v8622
        %8624 = vmatprep.mubr.bf16.mxu0 0
        %8625 = vmatmul.mubr.bf16.gmra.mrb[0].mxu0 %v8580
        %v8626 = vpop.f32.mrb[0].mxu0
        %v8627 = vadd.f32 0.0, %v8626
        %v8628 = vpop.f32.mrb[0].mxu0
        %v8629 = vadd.f32 0.0, %v8628
        %v8630 = vpop.f32.mrb[0].mxu0
        %v8631 = vadd.f32 0.0, %v8630
        %v8632 = vpop.f32.mrb[0].mxu0
        %v8633 = vadd.f32 0.0, %v8632
        %8634 = vdwg.mxu0
        %v8635 = vpack.c.bf16 %v8621, %v8617
        %v8636 = vpack.c.bf16 %v8623, %v8619
        %v8637 = vpack.c.bf16 %v8631, %v8627
        %v8638 = vpack.c.bf16 %v8633, %v8629
        %s8639 = scalar_lea.vmem [#allocation4], 5376
        %v8640 = vld [vmem:[%s8639] sm:$0xff]
        %v8641 = vld [vmem:[%s8639 + $0x8] sm:$0xff]
        %v8642 = vld [vmem:[%s8639 + $0x10] sm:$0xff]
        %v8643 = vld [vmem:[%s8639 + $0x18] sm:$0xff]
        %v8644 = vld [vmem:[%s8639 + $0x20] sm:$0xff]
        %v8645 = vld [vmem:[%s8639 + $0x28] sm:$0xff]
        %v8646 = vld [vmem:[%s8639 + $0x30] sm:$0xff]
        %v8647 = vld [vmem:[%s8639 + $0x38] sm:$0xff]
        %v8648 = vld [vmem:[%s8639 + $0x40] sm:$0xff]
        %v8649 = vld [vmem:[%s8639 + $0x48] sm:$0xff]
        %v8650 = vld [vmem:[%s8639 + $0x50] sm:$0xff]
        %v8651 = vld [vmem:[%s8639 + $0x58] sm:$0xff]
        %v8652 = vld [vmem:[%s8639 + $0x60] sm:$0xff]
        %v8653 = vld [vmem:[%s8639 + $0x68] sm:$0xff]
        %v8654 = vld [vmem:[%s8639 + $0x70] sm:$0xff]
        %v8655 = vld [vmem:[%s8639 + $0x78] sm:$0xff]
        %v8656 = vld [vmem:[%s8639 + $0x80] sm:$0xff]
        %v8657 = vld [vmem:[%s8639 + $0x88] sm:$0xff]
        %v8658 = vld [vmem:[%s8639 + $0x90] sm:$0xff]
        %v8659 = vld [vmem:[%s8639 + $0x98] sm:$0xff]
        %v8660 = vld [vmem:[%s8639 + $0xa0] sm:$0xff]
        %v8661 = vld [vmem:[%s8639 + $0xa8] sm:$0xff]
        %v8662 = vld [vmem:[%s8639 + $0xb0] sm:$0xff]
        %v8663 = vld [vmem:[%s8639 + $0xb8] sm:$0xff]
        %s8664 = scalar_lea.vmem [#allocation2], 464
        %v8665 = vld [vmem:[%s8664] sm:$0xf]
        %v8666 = vld [vmem:[%s8664 + $0x4] sm:$0xf]
        %v8667 = vld [vmem:[%s8664 + $0x8] sm:$0xf]
        %v8668 = vld [vmem:[%s8664 + $0xc] sm:$0xf]
        %v8673 = vunpack.c.l.b16 %v8665
        %v8674 = vunpack.c.l.b16 %v8666
        %v8675 = vunpack.c.l.b16 %v8667
        %v8676 = vunpack.c.l.b16 %v8668
        %v8677 = vpack.c.b16 %v8674, %v8673
        %v8678 = vpack.c.b16 %v8676, %v8675
        %v8680 = vsel %vm281, %v8677, 0
        %v8683 = vsel %vm281, %v8678, 0
        %8685 = vmatprep.subr.bf16.mxu0 %v8558
        %8686 = vmatpush1.bf16.msra.mxu0 %v8557
        %8687 = vmatprep.subr.bf16.mxu0 %v8560
        %8688 = vmatpush1.bf16.msra.mxu0 %v8559
        %8689 = vmatprep.subr.bf16.mxu0 0
        %8690 = vmatpush1.bf16.msra.mxu0 0
        %8691 = vmatprep.subr.bf16.mxu0 0
        %8692 = vmatpush1.bf16.msra.mxu0 0
        %8693 = vmatprep.subr.bf16.mxu0 0
        %8694 = vmatpush1.bf16.msra.mxu0 0
        %8695 = vmatprep.subr.bf16.mxu0 0
        %8696 = vmatpush1.bf16.msra.mxu0 0
        %8697 = vmatprep.subr.bf16.mxu0 0
        %8698 = vmatpush1.bf16.msra.mxu0 0
        %8699 = vmatprep.subr.bf16.mxu0 0
        %8700 = vmatpush1.bf16.msra.mxu0 0
        %8701 = vmatprep.subr.bf16.mxu0 0
        %8702 = vmatpush1.bf16.msra.mxu0 0
        %8703 = vmatprep.subr.bf16.mxu0 0
        %8704 = vmatpush1.bf16.msra.mxu0 0
        %8705 = vmatprep.subr.bf16.mxu0 0
        %8706 = vmatpush1.bf16.msra.mxu0 0
        %8707 = vmatprep.subr.bf16.mxu0 0
        %8708 = vmatpush1.bf16.msra.mxu0 0
        %8709 = vmatprep.subr.bf16.mxu0 0
        %8710 = vmatpush1.bf16.msra.mxu0 0
        %8711 = vmatprep.subr.bf16.mxu0 0
        %8712 = vmatpush1.bf16.msra.mxu0 0
        %8713 = vmatprep.subr.bf16.mxu0 0
        %8714 = vmatpush1.bf16.msra.mxu0 0
        %8715 = vmatprep.subr.bf16.mxu0 0
        %8716 = vmatpush1.bf16.msra.mxu0 0
        %8717 = vmatprep.mubr.bf16.mxu0 0
        %8718 = vmatmul.mubr.bf16.gmra.mrb[0].mxu0 %v8680
        %v8719 = vpop.f32.mrb[0].mxu0
        %v8720 = vadd.f32 0.0, %v8719
        %v8721 = vpop.f32.mrb[0].mxu0
        %v8722 = vadd.f32 0.0, %v8721
        %v8723 = vpop.f32.mrb[0].mxu0
        %v8724 = vadd.f32 0.0, %v8723
        %v8725 = vpop.f32.mrb[0].mxu0
        %v8726 = vadd.f32 0.0, %v8725
        %8727 = vmatprep.mubr.bf16.mxu0 0
        %8728 = vmatmul.mubr.bf16.gmra.mrb[0].mxu0 %v8683
        %v8729 = vpop.f32.mrb[0].mxu0
        %v8730 = vadd.f32 0.0, %v8729
        %v8731 = vpop.f32.mrb[0].mxu0
        %v8732 = vadd.f32 0.0, %v8731
        %v8733 = vpop.f32.mrb[0].mxu0
        %v8734 = vadd.f32 0.0, %v8733
        %v8735 = vpop.f32.mrb[0].mxu0
        %v8736 = vadd.f32 0.0, %v8735
        %8737 = vdwg.mxu0
        %v8738 = vpack.c.bf16 %v8724, %v8720
        %v8739 = vpack.c.bf16 %v8726, %v8722
        %v8740 = vpack.c.bf16 %v8734, %v8730
        %v8741 = vpack.c.bf16 %v8736, %v8732
        %s8742 = scalar_lea.vmem [#allocation4], 5568
        %v8743 = vld [vmem:[%s8742] sm:$0xff]
        %v8744 = vld [vmem:[%s8742 + $0x8] sm:$0xff]
        %v8745 = vld [vmem:[%s8742 + $0x10] sm:$0xff]
        %v8746 = vld [vmem:[%s8742 + $0x18] sm:$0xff]
        %v8747 = vld [vmem:[%s8742 + $0x20] sm:$0xff]
        %v8748 = vld [vmem:[%s8742 + $0x28] sm:$0xff]
        %v8749 = vld [vmem:[%s8742 + $0x30] sm:$0xff]
        %v8750 = vld [vmem:[%s8742 + $0x38] sm:$0xff]
        %v8751 = vld [vmem:[%s8742 + $0x40] sm:$0xff]
        %v8752 = vld [vmem:[%s8742 + $0x48] sm:$0xff]
        %v8753 = vld [vmem:[%s8742 + $0x50] sm:$0xff]
        %v8754 = vld [vmem:[%s8742 + $0x58] sm:$0xff]
        %v8755 = vld [vmem:[%s8742 + $0x60] sm:$0xff]
        %v8756 = vld [vmem:[%s8742 + $0x68] sm:$0xff]
        %v8757 = vld [vmem:[%s8742 + $0x70] sm:$0xff]
        %v8758 = vld [vmem:[%s8742 + $0x78] sm:$0xff]
        %v8759 = vld [vmem:[%s8742 + $0x80] sm:$0xff]
        %v8760 = vld [vmem:[%s8742 + $0x88] sm:$0xff]
        %v8761 = vld [vmem:[%s8742 + $0x90] sm:$0xff]
        %v8762 = vld [vmem:[%s8742 + $0x98] sm:$0xff]
        %v8763 = vld [vmem:[%s8742 + $0xa0] sm:$0xff]
        %v8764 = vld [vmem:[%s8742 + $0xa8] sm:$0xff]
        %v8765 = vld [vmem:[%s8742 + $0xb0] sm:$0xff]
        %v8766 = vld [vmem:[%s8742 + $0xb8] sm:$0xff]
        %v8791 = vunpack.c.l.b16 %v8743
        %v8792 = vunpack.c.h.b16 %v8743
        %v8793 = vunpack.c.l.b16 %v8744
        %v8794 = vunpack.c.h.b16 %v8744
        %v8795 = vunpack.c.l.b16 %v8745
        %v8796 = vunpack.c.h.b16 %v8745
        %v8797 = vunpack.c.l.b16 %v8746
        %v8798 = vunpack.c.h.b16 %v8746
        %v8799 = vunpack.c.l.b16 %v8747
        %v8800 = vunpack.c.h.b16 %v8747
        %v8801 = vunpack.c.l.b16 %v8748
        %v8802 = vunpack.c.h.b16 %v8748
        %v8803 = vunpack.c.l.b16 %v8749
        %v8804 = vunpack.c.h.b16 %v8749
        %v8805 = vunpack.c.l.b16 %v8750
        %v8806 = vunpack.c.h.b16 %v8750
        %v8807 = vunpack.c.l.b16 %v8751
        %v8808 = vunpack.c.h.b16 %v8751
        %v8809 = vunpack.c.l.b16 %v8752
        %v8810 = vunpack.c.h.b16 %v8752
        %v8811 = vunpack.c.l.b16 %v8753
        %v8812 = vunpack.c.h.b16 %v8753
        %v8813 = vunpack.c.l.b16 %v8754
        %v8814 = vunpack.c.h.b16 %v8754
        %v8815 = vunpack.c.l.b16 %v8755
        %v8816 = vunpack.c.h.b16 %v8755
        %v8817 = vunpack.c.l.b16 %v8756
        %v8818 = vunpack.c.h.b16 %v8756
        %v8819 = vunpack.c.l.b16 %v8757
        %v8820 = vunpack.c.h.b16 %v8757
        %v8821 = vunpack.c.l.b16 %v8758
        %v8822 = vunpack.c.h.b16 %v8758
        %v8823 = vunpack.c.l.b16 %v8759
        %v8824 = vunpack.c.h.b16 %v8759
        %v8825 = vunpack.c.l.b16 %v8760
        %v8826 = vunpack.c.h.b16 %v8760
        %v8827 = vunpack.c.l.b16 %v8761
        %v8828 = vunpack.c.h.b16 %v8761
        %v8829 = vunpack.c.l.b16 %v8762
        %v8830 = vunpack.c.h.b16 %v8762
        %v8831 = vunpack.c.l.b16 %v8763
        %v8832 = vunpack.c.h.b16 %v8763
        %v8833 = vunpack.c.l.b16 %v8764
        %v8834 = vunpack.c.h.b16 %v8764
        %v8835 = vunpack.c.l.b16 %v8765
        %v8836 = vunpack.c.h.b16 %v8765
        %v8837 = vunpack.c.l.b16 %v8766
        %v8838 = vunpack.c.h.b16 %v8766
        %v8839 = vpack.c.b16 %v8793, %v8791
        %v8840 = vpack.c.b16 %v8794, %v8792
        %v8841 = vpack.c.b16 %v8797, %v8795
        %v8842 = vpack.c.b16 %v8798, %v8796
        %v8843 = vpack.c.b16 %v8801, %v8799
        %v8844 = vpack.c.b16 %v8802, %v8800
        %v8845 = vpack.c.b16 %v8805, %v8803
        %v8846 = vpack.c.b16 %v8806, %v8804
        %v8847 = vpack.c.b16 %v8809, %v8807
        %v8848 = vpack.c.b16 %v8810, %v8808
        %v8849 = vpack.c.b16 %v8813, %v8811
        %v8850 = vpack.c.b16 %v8814, %v8812
        %v8851 = vpack.c.b16 %v8817, %v8815
        %v8852 = vpack.c.b16 %v8818, %v8816
        %v8853 = vpack.c.b16 %v8821, %v8819
        %v8854 = vpack.c.b16 %v8822, %v8820
        %v8855 = vpack.c.b16 %v8825, %v8823
        %v8856 = vpack.c.b16 %v8826, %v8824
        %v8857 = vpack.c.b16 %v8829, %v8827
        %v8858 = vpack.c.b16 %v8830, %v8828
        %v8859 = vpack.c.b16 %v8833, %v8831
        %v8860 = vpack.c.b16 %v8834, %v8832
        %v8861 = vpack.c.b16 %v8837, %v8835
        %v8862 = vpack.c.b16 %v8838, %v8836
        %v8888 = vsel %vm592, %v8739, 0
        %v8891 = vsel %vm592, %v8741, 0
        %8893 = vmatprep.subr.bf16.mxu0 %v8840
        %8894 = vmatpush1.bf16.msra.mxu0 %v8839
        %8895 = vmatprep.subr.bf16.mxu0 %v8842
        %8896 = vmatpush1.bf16.msra.mxu0 %v8841
        %8897 = vmatprep.subr.bf16.mxu0 %v8844
        %8898 = vmatpush1.bf16.msra.mxu0 %v8843
        %8899 = vmatprep.subr.bf16.mxu0 %v8846
        %8900 = vmatpush1.bf16.msra.mxu0 %v8845
        %8901 = vmatprep.subr.bf16.mxu0 %v8848
        %8902 = vmatpush1.bf16.msra.mxu0 %v8847
        %8903 = vmatprep.subr.bf16.mxu0 %v8850
        %8904 = vmatpush1.bf16.msra.mxu0 %v8849
        %8905 = vmatprep.subr.bf16.mxu0 %v8852
        %8906 = vmatpush1.bf16.msra.mxu0 %v8851
        %8907 = vmatprep.subr.bf16.mxu0 %v8854
        %8908 = vmatpush1.bf16.msra.mxu0 %v8853
        %8909 = vmatprep.subr.bf16.mxu0 %v8856
        %8910 = vmatpush1.bf16.msra.mxu0 %v8855
        %8911 = vmatprep.subr.bf16.mxu0 %v8858
        %8912 = vmatpush1.bf16.msra.mxu0 %v8857
        %8913 = vmatprep.subr.bf16.mxu0 %v8860
        %8914 = vmatpush1.bf16.msra.mxu0 %v8859
        %8915 = vmatprep.subr.bf16.mxu0 %v8862
        %8916 = vmatpush1.bf16.msra.mxu0 %v8861
        %8917 = vmatprep.subr.bf16.mxu0 0
        %8918 = vmatpush1.bf16.msra.mxu0 0
        %8919 = vmatprep.subr.bf16.mxu0 0
        %8920 = vmatpush1.bf16.msra.mxu0 0
        %8921 = vmatprep.subr.bf16.mxu0 0
        %8922 = vmatpush1.bf16.msra.mxu0 0
        %8923 = vmatprep.subr.bf16.mxu0 0
        %8924 = vmatpush1.bf16.msra.mxu0 0
        %8925 = vmatprep.mubr.bf16.mxu0 %v8888
        %8926 = vmatmul.mubr.bf16.gmra.mrb[0].mxu0 %v8738
        %v8927 = vpop.f32.mrb[0].mxu0
        %v8928 = vadd.f32 0.0, %v8927
        %v8929 = vpop.f32.mrb[0].mxu0
        %v8930 = vadd.f32 0.0, %v8929
        %v8931 = vpop.f32.mrb[0].mxu0
        %v8932 = vadd.f32 0.0, %v8931
        %v8933 = vpop.f32.mrb[0].mxu0
        %v8934 = vadd.f32 0.0, %v8933
        %8935 = vmatprep.mubr.bf16.mxu0 %v8891
        %8936 = vmatmul.mubr.bf16.gmra.mrb[0].mxu0 %v8740
        %v8937 = vpop.f32.mrb[0].mxu0
        %v8938 = vadd.f32 0.0, %v8937
        %v8939 = vpop.f32.mrb[0].mxu0
        %v8940 = vadd.f32 0.0, %v8939
        %v8941 = vpop.f32.mrb[0].mxu0
        %v8942 = vadd.f32 0.0, %v8941
        %v8943 = vpop.f32.mrb[0].mxu0
        %v8944 = vadd.f32 0.0, %v8943
        %8945 = vdwg.mxu0
        %v8970 = vunpack.c.l.b16 %v8640
        %v8971 = vunpack.c.h.b16 %v8640
        %v8972 = vunpack.c.l.b16 %v8641
        %v8973 = vunpack.c.h.b16 %v8641
        %v8974 = vunpack.c.l.b16 %v8642
        %v8975 = vunpack.c.h.b16 %v8642
        %v8976 = vunpack.c.l.b16 %v8643
        %v8977 = vunpack.c.h.b16 %v8643
        %v8978 = vunpack.c.l.b16 %v8644
        %v8979 = vunpack.c.h.b16 %v8644
        %v8980 = vunpack.c.l.b16 %v8645
        %v8981 = vunpack.c.h.b16 %v8645
        %v8982 = vunpack.c.l.b16 %v8646
        %v8983 = vunpack.c.h.b16 %v8646
        %v8984 = vunpack.c.l.b16 %v8647
        %v8985 = vunpack.c.h.b16 %v8647
        %v8986 = vunpack.c.l.b16 %v8648
        %v8987 = vunpack.c.h.b16 %v8648
        %v8988 = vunpack.c.l.b16 %v8649
        %v8989 = vunpack.c.h.b16 %v8649
        %v8990 = vunpack.c.l.b16 %v8650
        %v8991 = vunpack.c.h.b16 %v8650
        %v8992 = vunpack.c.l.b16 %v8651
        %v8993 = vunpack.c.h.b16 %v8651
        %v8994 = vunpack.c.l.b16 %v8652
        %v8995 = vunpack.c.h.b16 %v8652
        %v8996 = vunpack.c.l.b16 %v8653
        %v8997 = vunpack.c.h.b16 %v8653
        %v8998 = vunpack.c.l.b16 %v8654
        %v8999 = vunpack.c.h.b16 %v8654
        %v9000 = vunpack.c.l.b16 %v8655
        %v9001 = vunpack.c.h.b16 %v8655
        %v9002 = vunpack.c.l.b16 %v8656
        %v9003 = vunpack.c.h.b16 %v8656
        %v9004 = vunpack.c.l.b16 %v8657
        %v9005 = vunpack.c.h.b16 %v8657
        %v9006 = vunpack.c.l.b16 %v8658
        %v9007 = vunpack.c.h.b16 %v8658
        %v9008 = vunpack.c.l.b16 %v8659
        %v9009 = vunpack.c.h.b16 %v8659
        %v9010 = vunpack.c.l.b16 %v8660
        %v9011 = vunpack.c.h.b16 %v8660
        %v9012 = vunpack.c.l.b16 %v8661
        %v9013 = vunpack.c.h.b16 %v8661
        %v9014 = vunpack.c.l.b16 %v8662
        %v9015 = vunpack.c.h.b16 %v8662
        %v9016 = vunpack.c.l.b16 %v8663
        %v9017 = vunpack.c.h.b16 %v8663
        %v9018 = vpack.c.b16 %v8972, %v8970
        %v9019 = vpack.c.b16 %v8973, %v8971
        %v9020 = vpack.c.b16 %v8976, %v8974
        %v9021 = vpack.c.b16 %v8977, %v8975
        %v9022 = vpack.c.b16 %v8980, %v8978
        %v9023 = vpack.c.b16 %v8981, %v8979
        %v9024 = vpack.c.b16 %v8984, %v8982
        %v9025 = vpack.c.b16 %v8985, %v8983
        %v9026 = vpack.c.b16 %v8988, %v8986
        %v9027 = vpack.c.b16 %v8989, %v8987
        %v9028 = vpack.c.b16 %v8992, %v8990
        %v9029 = vpack.c.b16 %v8993, %v8991
        %v9030 = vpack.c.b16 %v8996, %v8994
        %v9031 = vpack.c.b16 %v8997, %v8995
        %v9032 = vpack.c.b16 %v9000, %v8998
        %v9033 = vpack.c.b16 %v9001, %v8999
        %v9034 = vpack.c.b16 %v9004, %v9002
        %v9035 = vpack.c.b16 %v9005, %v9003
        %v9036 = vpack.c.b16 %v9008, %v9006
        %v9037 = vpack.c.b16 %v9009, %v9007
        %v9038 = vpack.c.b16 %v9012, %v9010
        %v9039 = vpack.c.b16 %v9013, %v9011
        %v9040 = vpack.c.b16 %v9016, %v9014
        %v9041 = vpack.c.b16 %v9017, %v9015
        %v9067 = vsel %vm592, %v8636, 0
        %v9070 = vsel %vm592, %v8638, 0
        %9072 = vmatprep.subr.bf16.mxu0 %v9019
        %9073 = vmatpush1.bf16.msra.mxu0 %v9018
        %9074 = vmatprep.subr.bf16.mxu0 %v9021
        %9075 = vmatpush1.bf16.msra.mxu0 %v9020
        %9076 = vmatprep.subr.bf16.mxu0 %v9023
        %9077 = vmatpush1.bf16.msra.mxu0 %v9022
        %9078 = vmatprep.subr.bf16.mxu0 %v9025
        %9079 = vmatpush1.bf16.msra.mxu0 %v9024
        %9080 = vmatprep.subr.bf16.mxu0 %v9027
        %9081 = vmatpush1.bf16.msra.mxu0 %v9026
        %9082 = vmatprep.subr.bf16.mxu0 %v9029
        %9083 = vmatpush1.bf16.msra.mxu0 %v9028
        %9084 = vmatprep.subr.bf16.mxu0 %v9031
        %9085 = vmatpush1.bf16.msra.mxu0 %v9030
        %9086 = vmatprep.subr.bf16.mxu0 %v9033
        %9087 = vmatpush1.bf16.msra.mxu0 %v9032
        %9088 = vmatprep.subr.bf16.mxu0 %v9035
        %9089 = vmatpush1.bf16.msra.mxu0 %v9034
        %9090 = vmatprep.subr.bf16.mxu0 %v9037
        %9091 = vmatpush1.bf16.msra.mxu0 %v9036
        %9092 = vmatprep.subr.bf16.mxu0 %v9039
        %9093 = vmatpush1.bf16.msra.mxu0 %v9038
        %9094 = vmatprep.subr.bf16.mxu0 %v9041
        %9095 = vmatpush1.bf16.msra.mxu0 %v9040
        %9096 = vmatprep.subr.bf16.mxu0 0
        %9097 = vmatpush1.bf16.msra.mxu0 0
        %9098 = vmatprep.subr.bf16.mxu0 0
        %9099 = vmatpush1.bf16.msra.mxu0 0
        %9100 = vmatprep.subr.bf16.mxu0 0
        %9101 = vmatpush1.bf16.msra.mxu0 0
        %9102 = vmatprep.subr.bf16.mxu0 0
        %9103 = vmatpush1.bf16.msra.mxu0 0
        %9104 = vmatprep.mubr.bf16.mxu0 %v9067
        %9105 = vmatmul.mubr.bf16.gmra.mrb[0].mxu0 %v8635
        %v9106 = vpop.f32.mrb[0].mxu0
        %v9107 = vadd.f32 %v8928, %v9106
        %v9108 = vpop.f32.mrb[0].mxu0
        %v9109 = vadd.f32 %v8930, %v9108
        %v9110 = vpop.f32.mrb[0].mxu0
        %v9111 = vadd.f32 %v8932, %v9110
        %v9112 = vpop.f32.mrb[0].mxu0
        %v9113 = vadd.f32 %v8934, %v9112
        %9114 = vmatprep.mubr.bf16.mxu0 %v9070
        %9115 = vmatmul.mubr.bf16.gmra.mrb[0].mxu0 %v8637
        %v9116 = vpop.f32.mrb[0].mxu0
        %v9117 = vadd.f32 %v8938, %v9116
        %v9118 = vpop.f32.mrb[0].mxu0
        %v9119 = vadd.f32 %v8940, %v9118
        %v9120 = vpop.f32.mrb[0].mxu0
        %v9121 = vadd.f32 %v8942, %v9120
        %v9122 = vpop.f32.mrb[0].mxu0
        %v9123 = vadd.f32 %v8944, %v9122
        %9124 = vdwg.mxu0
        %s9125 = scalar_lea.vmem [#allocation2], 480
        %v9126 = vld [vmem:[%s9125] sm:$0xf]
        %v9127 = vld [vmem:[%s9125 + $0x4] sm:$0xf]
        %v9128 = vld [vmem:[%s9125 + $0x8] sm:$0xf]
        %v9129 = vld [vmem:[%s9125 + $0xc] sm:$0xf]
        %v9134 = vunpack.c.l.b16 %v9126
        %v9135 = vunpack.c.l.b16 %v9127
        %v9136 = vunpack.c.l.b16 %v9128
        %v9137 = vunpack.c.l.b16 %v9129
        %v9138 = vpack.c.b16 %v9135, %v9134
        %v9139 = vpack.c.b16 %v9137, %v9136
        %v9141 = vsel %vm281, %v9138, 0
        %v9144 = vsel %vm281, %v9139, 0
        %9146 = vmatprep.subr.bf16.mxu0 %v8558
        %9147 = vmatpush1.bf16.msra.mxu0 %v8557
        %9148 = vmatprep.subr.bf16.mxu0 %v8560
        %9149 = vmatpush1.bf16.msra.mxu0 %v8559
        %9150 = vmatprep.subr.bf16.mxu0 0
        %9151 = vmatpush1.bf16.msra.mxu0 0
        %9152 = vmatprep.subr.bf16.mxu0 0
        %9153 = vmatpush1.bf16.msra.mxu0 0
        %9154 = vmatprep.subr.bf16.mxu0 0
        %9155 = vmatpush1.bf16.msra.mxu0 0
        %9156 = vmatprep.subr.bf16.mxu0 0
        %9157 = vmatpush1.bf16.msra.mxu0 0
        %9158 = vmatprep.subr.bf16.mxu0 0
        %9159 = vmatpush1.bf16.msra.mxu0 0
        %9160 = vmatprep.subr.bf16.mxu0 0
        %9161 = vmatpush1.bf16.msra.mxu0 0
        %9162 = vmatprep.subr.bf16.mxu0 0
        %9163 = vmatpush1.bf16.msra.mxu0 0
        %9164 = vmatprep.subr.bf16.mxu0 0
        %9165 = vmatpush1.bf16.msra.mxu0 0
        %9166 = vmatprep.subr.bf16.mxu0 0
        %9167 = vmatpush1.bf16.msra.mxu0 0
        %9168 = vmatprep.subr.bf16.mxu0 0
        %9169 = vmatpush1.bf16.msra.mxu0 0
        %9170 = vmatprep.subr.bf16.mxu0 0
        %9171 = vmatpush1.bf16.msra.mxu0 0
        %9172 = vmatprep.subr.bf16.mxu0 0
        %9173 = vmatpush1.bf16.msra.mxu0 0
        %9174 = vmatprep.subr.bf16.mxu0 0
        %9175 = vmatpush1.bf16.msra.mxu0 0
        %9176 = vmatprep.subr.bf16.mxu0 0
        %9177 = vmatpush1.bf16.msra.mxu0 0
        %9178 = vmatprep.mubr.bf16.mxu0 0
        %9179 = vmatmul.mubr.bf16.gmra.mrb[0].mxu0 %v9141
        %v9180 = vpop.f32.mrb[0].mxu0
        %v9181 = vadd.f32 0.0, %v9180
        %v9182 = vpop.f32.mrb[0].mxu0
        %v9183 = vadd.f32 0.0, %v9182
        %v9184 = vpop.f32.mrb[0].mxu0
        %v9185 = vadd.f32 0.0, %v9184
        %v9186 = vpop.f32.mrb[0].mxu0
        %v9187 = vadd.f32 0.0, %v9186
        %9188 = vmatprep.mubr.bf16.mxu0 0
        %9189 = vmatmul.mubr.bf16.gmra.mrb[0].mxu0 %v9144
        %v9190 = vpop.f32.mrb[0].mxu0
        %v9191 = vadd.f32 0.0, %v9190
        %v9192 = vpop.f32.mrb[0].mxu0
        %v9193 = vadd.f32 0.0, %v9192
        %v9194 = vpop.f32.mrb[0].mxu0
        %v9195 = vadd.f32 0.0, %v9194
        %v9196 = vpop.f32.mrb[0].mxu0
        %v9197 = vadd.f32 0.0, %v9196
        %9198 = vdwg.mxu0
        %v9199 = vpack.c.bf16 %v9185, %v9181
        %v9200 = vpack.c.bf16 %v9187, %v9183
        %v9201 = vpack.c.bf16 %v9195, %v9191
        %v9202 = vpack.c.bf16 %v9197, %v9193
        %s9203 = scalar_lea.vmem [#allocation4], 5760
        %v9204 = vld [vmem:[%s9203] sm:$0xff]
        %v9205 = vld [vmem:[%s9203 + $0x8] sm:$0xff]
        %v9206 = vld [vmem:[%s9203 + $0x10] sm:$0xff]
        %v9207 = vld [vmem:[%s9203 + $0x18] sm:$0xff]
        %v9208 = vld [vmem:[%s9203 + $0x20] sm:$0xff]
        %v9209 = vld [vmem:[%s9203 + $0x28] sm:$0xff]
        %v9210 = vld [vmem:[%s9203 + $0x30] sm:$0xff]
        %v9211 = vld [vmem:[%s9203 + $0x38] sm:$0xff]
        %v9212 = vld [vmem:[%s9203 + $0x40] sm:$0xff]
        %v9213 = vld [vmem:[%s9203 + $0x48] sm:$0xff]
        %v9214 = vld [vmem:[%s9203 + $0x50] sm:$0xff]
        %v9215 = vld [vmem:[%s9203 + $0x58] sm:$0xff]
        %v9216 = vld [vmem:[%s9203 + $0x60] sm:$0xff]
        %v9217 = vld [vmem:[%s9203 + $0x68] sm:$0xff]
        %v9218 = vld [vmem:[%s9203 + $0x70] sm:$0xff]
        %v9219 = vld [vmem:[%s9203 + $0x78] sm:$0xff]
        %v9220 = vld [vmem:[%s9203 + $0x80] sm:$0xff]
        %v9221 = vld [vmem:[%s9203 + $0x88] sm:$0xff]
        %v9222 = vld [vmem:[%s9203 + $0x90] sm:$0xff]
        %v9223 = vld [vmem:[%s9203 + $0x98] sm:$0xff]
        %v9224 = vld [vmem:[%s9203 + $0xa0] sm:$0xff]
        %v9225 = vld [vmem:[%s9203 + $0xa8] sm:$0xff]
        %v9226 = vld [vmem:[%s9203 + $0xb0] sm:$0xff]
        %v9227 = vld [vmem:[%s9203 + $0xb8] sm:$0xff]
        %v9252 = vunpack.c.l.b16 %v9204
        %v9253 = vunpack.c.h.b16 %v9204
        %v9254 = vunpack.c.l.b16 %v9205
        %v9255 = vunpack.c.h.b16 %v9205
        %v9256 = vunpack.c.l.b16 %v9206
        %v9257 = vunpack.c.h.b16 %v9206
        %v9258 = vunpack.c.l.b16 %v9207
        %v9259 = vunpack.c.h.b16 %v9207
        %v9260 = vunpack.c.l.b16 %v9208
        %v9261 = vunpack.c.h.b16 %v9208
        %v9262 = vunpack.c.l.b16 %v9209
        %v9263 = vunpack.c.h.b16 %v9209
        %v9264 = vunpack.c.l.b16 %v9210
        %v9265 = vunpack.c.h.b16 %v9210
        %v9266 = vunpack.c.l.b16 %v9211
        %v9267 = vunpack.c.h.b16 %v9211
        %v9268 = vunpack.c.l.b16 %v9212
        %v9269 = vunpack.c.h.b16 %v9212
        %v9270 = vunpack.c.l.b16 %v9213
        %v9271 = vunpack.c.h.b16 %v9213
        %v9272 = vunpack.c.l.b16 %v9214
        %v9273 = vunpack.c.h.b16 %v9214
        %v9274 = vunpack.c.l.b16 %v9215
        %v9275 = vunpack.c.h.b16 %v9215
        %v9276 = vunpack.c.l.b16 %v9216
        %v9277 = vunpack.c.h.b16 %v9216
        %v9278 = vunpack.c.l.b16 %v9217
        %v9279 = vunpack.c.h.b16 %v9217
        %v9280 = vunpack.c.l.b16 %v9218
        %v9281 = vunpack.c.h.b16 %v9218
        %v9282 = vunpack.c.l.b16 %v9219
        %v9283 = vunpack.c.h.b16 %v9219
        %v9284 = vunpack.c.l.b16 %v9220
        %v9285 = vunpack.c.h.b16 %v9220
        %v9286 = vunpack.c.l.b16 %v9221
        %v9287 = vunpack.c.h.b16 %v9221
        %v9288 = vunpack.c.l.b16 %v9222
        %v9289 = vunpack.c.h.b16 %v9222
        %v9290 = vunpack.c.l.b16 %v9223
        %v9291 = vunpack.c.h.b16 %v9223
        %v9292 = vunpack.c.l.b16 %v9224
        %v9293 = vunpack.c.h.b16 %v9224
        %v9294 = vunpack.c.l.b16 %v9225
        %v9295 = vunpack.c.h.b16 %v9225
        %v9296 = vunpack.c.l.b16 %v9226
        %v9297 = vunpack.c.h.b16 %v9226
        %v9298 = vunpack.c.l.b16 %v9227
        %v9299 = vunpack.c.h.b16 %v9227
        %v9300 = vpack.c.b16 %v9254, %v9252
        %v9301 = vpack.c.b16 %v9255, %v9253
        %v9302 = vpack.c.b16 %v9258, %v9256
        %v9303 = vpack.c.b16 %v9259, %v9257
        %v9304 = vpack.c.b16 %v9262, %v9260
        %v9305 = vpack.c.b16 %v9263, %v9261
        %v9306 = vpack.c.b16 %v9266, %v9264
        %v9307 = vpack.c.b16 %v9267, %v9265
        %v9308 = vpack.c.b16 %v9270, %v9268
        %v9309 = vpack.c.b16 %v9271, %v9269
        %v9310 = vpack.c.b16 %v9274, %v9272
        %v9311 = vpack.c.b16 %v9275, %v9273
        %v9312 = vpack.c.b16 %v9278, %v9276
        %v9313 = vpack.c.b16 %v9279, %v9277
        %v9314 = vpack.c.b16 %v9282, %v9280
        %v9315 = vpack.c.b16 %v9283, %v9281
        %v9316 = vpack.c.b16 %v9286, %v9284
        %v9317 = vpack.c.b16 %v9287, %v9285
        %v9318 = vpack.c.b16 %v9290, %v9288
        %v9319 = vpack.c.b16 %v9291, %v9289
        %v9320 = vpack.c.b16 %v9294, %v9292
        %v9321 = vpack.c.b16 %v9295, %v9293
        %v9322 = vpack.c.b16 %v9298, %v9296
        %v9323 = vpack.c.b16 %v9299, %v9297
        %v9349 = vsel %vm592, %v9200, 0
        %v9352 = vsel %vm592, %v9202, 0
        %9354 = vmatprep.subr.bf16.mxu0 %v9301
        %9355 = vmatpush1.bf16.msra.mxu0 %v9300
        %9356 = vmatprep.subr.bf16.mxu0 %v9303
        %9357 = vmatpush1.bf16.msra.mxu0 %v9302
        %9358 = vmatprep.subr.bf16.mxu0 %v9305
        %9359 = vmatpush1.bf16.msra.mxu0 %v9304
        %9360 = vmatprep.subr.bf16.mxu0 %v9307
        %9361 = vmatpush1.bf16.msra.mxu0 %v9306
        %9362 = vmatprep.subr.bf16.mxu0 %v9309
        %9363 = vmatpush1.bf16.msra.mxu0 %v9308
        %9364 = vmatprep.subr.bf16.mxu0 %v9311
        %9365 = vmatpush1.bf16.msra.mxu0 %v9310
        %9366 = vmatprep.subr.bf16.mxu0 %v9313
        %9367 = vmatpush1.bf16.msra.mxu0 %v9312
        %9368 = vmatprep.subr.bf16.mxu0 %v9315
        %9369 = vmatpush1.bf16.msra.mxu0 %v9314
        %9370 = vmatprep.subr.bf16.mxu0 %v9317
        %9371 = vmatpush1.bf16.msra.mxu0 %v9316
        %9372 = vmatprep.subr.bf16.mxu0 %v9319
        %9373 = vmatpush1.bf16.msra.mxu0 %v9318
        %9374 = vmatprep.subr.bf16.mxu0 %v9321
        %9375 = vmatpush1.bf16.msra.mxu0 %v9320
        %9376 = vmatprep.subr.bf16.mxu0 %v9323
        %9377 = vmatpush1.bf16.msra.mxu0 %v9322
        %9378 = vmatprep.subr.bf16.mxu0 0
        %9379 = vmatpush1.bf16.msra.mxu0 0
        %9380 = vmatprep.subr.bf16.mxu0 0
        %9381 = vmatpush1.bf16.msra.mxu0 0
        %9382 = vmatprep.subr.bf16.mxu0 0
        %9383 = vmatpush1.bf16.msra.mxu0 0
        %9384 = vmatprep.subr.bf16.mxu0 0
        %9385 = vmatpush1.bf16.msra.mxu0 0
        %9386 = vmatprep.mubr.bf16.mxu0 %v9349
        %9387 = vmatmul.mubr.bf16.gmra.mrb[0].mxu0 %v9199
        %v9388 = vpop.f32.mrb[0].mxu0
        %v9389 = vadd.f32 0.0, %v9388
        %v9390 = vpop.f32.mrb[0].mxu0
        %v9391 = vadd.f32 0.0, %v9390
        %v9392 = vpop.f32.mrb[0].mxu0
        %v9393 = vadd.f32 0.0, %v9392
        %v9394 = vpop.f32.mrb[0].mxu0
        %v9395 = vadd.f32 0.0, %v9394
        %9396 = vmatprep.mubr.bf16.mxu0 %v9352
        %9397 = vmatmul.mubr.bf16.gmra.mrb[0].mxu0 %v9201
        %v9398 = vpop.f32.mrb[0].mxu0
        %v9399 = vadd.f32 0.0, %v9398
        %v9400 = vpop.f32.mrb[0].mxu0
        %v9401 = vadd.f32 0.0, %v9400
        %v9402 = vpop.f32.mrb[0].mxu0
        %v9403 = vadd.f32 0.0, %v9402
        %v9404 = vpop.f32.mrb[0].mxu0
        %v9405 = vadd.f32 0.0, %v9404
        %9406 = vdwg.mxu0
        %v9407 = vadd.f32 %v9107, %v9389
        %v9408 = vadd.f32 %v9109, %v9391
        %v9409 = vadd.f32 %v9111, %v9393
        %v9410 = vadd.f32 %v9113, %v9395
        %v9411 = vadd.f32 %v9117, %v9399
        %v9412 = vadd.f32 %v9119, %v9401
        %v9413 = vadd.f32 %v9121, %v9403
        %v9414 = vadd.f32 %v9123, %v9405
        %s9415 = scalar_lea.vmem [#allocation2], 496
        %v9416 = vld [vmem:[%s9415] sm:$0xf]
        %v9417 = vld [vmem:[%s9415 + $0x4] sm:$0xf]
        %v9418 = vld [vmem:[%s9415 + $0x8] sm:$0xf]
        %v9419 = vld [vmem:[%s9415 + $0xc] sm:$0xf]
        %v9424 = vunpack.c.l.b16 %v9416
        %v9425 = vunpack.c.l.b16 %v9417
        %v9426 = vunpack.c.l.b16 %v9418
        %v9427 = vunpack.c.l.b16 %v9419
        %v9428 = vpack.c.b16 %v9425, %v9424
        %v9429 = vpack.c.b16 %v9427, %v9426
        %v9431 = vsel %vm281, %v9428, 0
        %v9434 = vsel %vm281, %v9429, 0
        %9436 = vmatprep.subr.bf16.mxu0 %v8558
        %9437 = vmatpush1.bf16.msra.mxu0 %v8557
        %9438 = vmatprep.subr.bf16.mxu0 %v8560
        %9439 = vmatpush1.bf16.msra.mxu0 %v8559
        %9440 = vmatprep.subr.bf16.mxu0 0
        %9441 = vmatpush1.bf16.msra.mxu0 0
        %9442 = vmatprep.subr.bf16.mxu0 0
        %9443 = vmatpush1.bf16.msra.mxu0 0
        %9444 = vmatprep.subr.bf16.mxu0 0
        %9445 = vmatpush1.bf16.msra.mxu0 0
        %9446 = vmatprep.subr.bf16.mxu0 0
        %9447 = vmatpush1.bf16.msra.mxu0 0
        %9448 = vmatprep.subr.bf16.mxu0 0
        %9449 = vmatpush1.bf16.msra.mxu0 0
        %9450 = vmatprep.subr.bf16.mxu0 0
        %9451 = vmatpush1.bf16.msra.mxu0 0
        %9452 = vmatprep.subr.bf16.mxu0 0
        %9453 = vmatpush1.bf16.msra.mxu0 0
        %9454 = vmatprep.subr.bf16.mxu0 0
        %9455 = vmatpush1.bf16.msra.mxu0 0
        %9456 = vmatprep.subr.bf16.mxu0 0
        %9457 = vmatpush1.bf16.msra.mxu0 0
        %9458 = vmatprep.subr.bf16.mxu0 0
        %9459 = vmatpush1.bf16.msra.mxu0 0
        %9460 = vmatprep.subr.bf16.mxu0 0
        %9461 = vmatpush1.bf16.msra.mxu0 0
        %9462 = vmatprep.subr.bf16.mxu0 0
        %9463 = vmatpush1.bf16.msra.mxu0 0
        %9464 = vmatprep.subr.bf16.mxu0 0
        %9465 = vmatpush1.bf16.msra.mxu0 0
        %9466 = vmatprep.subr.bf16.mxu0 0
        %9467 = vmatpush1.bf16.msra.mxu0 0
        %9468 = vmatprep.mubr.bf16.mxu0 0
        %9469 = vmatmul.mubr.bf16.gmra.mrb[0].mxu0 %v9431
        %v9470 = vpop.f32.mrb[0].mxu0
        %v9471 = vadd.f32 0.0, %v9470
        %v9472 = vpop.f32.mrb[0].mxu0
        %v9473 = vadd.f32 0.0, %v9472
        %v9474 = vpop.f32.mrb[0].mxu0
        %v9475 = vadd.f32 0.0, %v9474
        %v9476 = vpop.f32.mrb[0].mxu0
        %v9477 = vadd.f32 0.0, %v9476
        %9478 = vmatprep.mubr.bf16.mxu0 0
        %9479 = vmatmul.mubr.bf16.gmra.mrb[0].mxu0 %v9434
        %v9480 = vpop.f32.mrb[0].mxu0
        %v9481 = vadd.f32 0.0, %v9480
        %v9482 = vpop.f32.mrb[0].mxu0
        %v9483 = vadd.f32 0.0, %v9482
        %v9484 = vpop.f32.mrb[0].mxu0
        %v9485 = vadd.f32 0.0, %v9484
        %v9486 = vpop.f32.mrb[0].mxu0
        %v9487 = vadd.f32 0.0, %v9486
        %9488 = vdwg.mxu0
        %v9489 = vpack.c.bf16 %v9475, %v9471
        %v9490 = vpack.c.bf16 %v9477, %v9473
        %v9491 = vpack.c.bf16 %v9485, %v9481
        %v9492 = vpack.c.bf16 %v9487, %v9483
        %s9493 = scalar_lea.vmem [#allocation4], 5952
        %v9494 = vld [vmem:[%s9493] sm:$0xff]
        %v9495 = vld [vmem:[%s9493 + $0x8] sm:$0xff]
        %v9496 = vld [vmem:[%s9493 + $0x10] sm:$0xff]
        %v9497 = vld [vmem:[%s9493 + $0x18] sm:$0xff]
        %v9498 = vld [vmem:[%s9493 + $0x20] sm:$0xff]
        %v9499 = vld [vmem:[%s9493 + $0x28] sm:$0xff]
        %v9500 = vld [vmem:[%s9493 + $0x30] sm:$0xff]
        %v9501 = vld [vmem:[%s9493 + $0x38] sm:$0xff]
        %v9502 = vld [vmem:[%s9493 + $0x40] sm:$0xff]
        %v9503 = vld [vmem:[%s9493 + $0x48] sm:$0xff]
        %v9504 = vld [vmem:[%s9493 + $0x50] sm:$0xff]
        %v9505 = vld [vmem:[%s9493 + $0x58] sm:$0xff]
        %v9506 = vld [vmem:[%s9493 + $0x60] sm:$0xff]
        %v9507 = vld [vmem:[%s9493 + $0x68] sm:$0xff]
        %v9508 = vld [vmem:[%s9493 + $0x70] sm:$0xff]
        %v9509 = vld [vmem:[%s9493 + $0x78] sm:$0xff]
        %v9510 = vld [vmem:[%s9493 + $0x80] sm:$0xff]
        %v9511 = vld [vmem:[%s9493 + $0x88] sm:$0xff]
        %v9512 = vld [vmem:[%s9493 + $0x90] sm:$0xff]
        %v9513 = vld [vmem:[%s9493 + $0x98] sm:$0xff]
        %v9514 = vld [vmem:[%s9493 + $0xa0] sm:$0xff]
        %v9515 = vld [vmem:[%s9493 + $0xa8] sm:$0xff]
        %v9516 = vld [vmem:[%s9493 + $0xb0] sm:$0xff]
        %v9517 = vld [vmem:[%s9493 + $0xb8] sm:$0xff]
        %v9542 = vunpack.c.l.b16 %v9494
        %v9543 = vunpack.c.h.b16 %v9494
        %v9544 = vunpack.c.l.b16 %v9495
        %v9545 = vunpack.c.h.b16 %v9495
        %v9546 = vunpack.c.l.b16 %v9496
        %v9547 = vunpack.c.h.b16 %v9496
        %v9548 = vunpack.c.l.b16 %v9497
        %v9549 = vunpack.c.h.b16 %v9497
        %v9550 = vunpack.c.l.b16 %v9498
        %v9551 = vunpack.c.h.b16 %v9498
        %v9552 = vunpack.c.l.b16 %v9499
        %v9553 = vunpack.c.h.b16 %v9499
        %v9554 = vunpack.c.l.b16 %v9500
        %v9555 = vunpack.c.h.b16 %v9500
        %v9556 = vunpack.c.l.b16 %v9501
        %v9557 = vunpack.c.h.b16 %v9501
        %v9558 = vunpack.c.l.b16 %v9502
        %v9559 = vunpack.c.h.b16 %v9502
        %v9560 = vunpack.c.l.b16 %v9503
        %v9561 = vunpack.c.h.b16 %v9503
        %v9562 = vunpack.c.l.b16 %v9504
        %v9563 = vunpack.c.h.b16 %v9504
        %v9564 = vunpack.c.l.b16 %v9505
        %v9565 = vunpack.c.h.b16 %v9505
        %v9566 = vunpack.c.l.b16 %v9506
        %v9567 = vunpack.c.h.b16 %v9506
        %v9568 = vunpack.c.l.b16 %v9507
        %v9569 = vunpack.c.h.b16 %v9507
        %v9570 = vunpack.c.l.b16 %v9508
        %v9571 = vunpack.c.h.b16 %v9508
        %v9572 = vunpack.c.l.b16 %v9509
        %v9573 = vunpack.c.h.b16 %v9509
        %v9574 = vunpack.c.l.b16 %v9510
        %v9575 = vunpack.c.h.b16 %v9510
        %v9576 = vunpack.c.l.b16 %v9511
        %v9577 = vunpack.c.h.b16 %v9511
        %v9578 = vunpack.c.l.b16 %v9512
        %v9579 = vunpack.c.h.b16 %v9512
        %v9580 = vunpack.c.l.b16 %v9513
        %v9581 = vunpack.c.h.b16 %v9513
        %v9582 = vunpack.c.l.b16 %v9514
        %v9583 = vunpack.c.h.b16 %v9514
        %v9584 = vunpack.c.l.b16 %v9515
        %v9585 = vunpack.c.h.b16 %v9515
        %v9586 = vunpack.c.l.b16 %v9516
        %v9587 = vunpack.c.h.b16 %v9516
        %v9588 = vunpack.c.l.b16 %v9517
        %v9589 = vunpack.c.h.b16 %v9517
        %v9590 = vpack.c.b16 %v9544, %v9542
        %v9591 = vpack.c.b16 %v9545, %v9543
        %v9592 = vpack.c.b16 %v9548, %v9546
        %v9593 = vpack.c.b16 %v9549, %v9547
        %v9594 = vpack.c.b16 %v9552, %v9550
        %v9595 = vpack.c.b16 %v9553, %v9551
        %v9596 = vpack.c.b16 %v9556, %v9554
        %v9597 = vpack.c.b16 %v9557, %v9555
        %v9598 = vpack.c.b16 %v9560, %v9558
        %v9599 = vpack.c.b16 %v9561, %v9559
        %v9600 = vpack.c.b16 %v9564, %v9562
        %v9601 = vpack.c.b16 %v9565, %v9563
        %v9602 = vpack.c.b16 %v9568, %v9566
        %v9603 = vpack.c.b16 %v9569, %v9567
        %v9604 = vpack.c.b16 %v9572, %v9570
        %v9605 = vpack.c.b16 %v9573, %v9571
        %v9606 = vpack.c.b16 %v9576, %v9574
        %v9607 = vpack.c.b16 %v9577, %v9575
        %v9608 = vpack.c.b16 %v9580, %v9578
        %v9609 = vpack.c.b16 %v9581, %v9579
        %v9610 = vpack.c.b16 %v9584, %v9582
        %v9611 = vpack.c.b16 %v9585, %v9583
        %v9612 = vpack.c.b16 %v9588, %v9586
        %v9613 = vpack.c.b16 %v9589, %v9587
        %v9639 = vsel %vm592, %v9490, 0
        %v9642 = vsel %vm592, %v9492, 0
        %9644 = vmatprep.subr.bf16.mxu0 %v9591
        %9645 = vmatpush1.bf16.msra.mxu0 %v9590
        %9646 = vmatprep.subr.bf16.mxu0 %v9593
        %9647 = vmatpush1.bf16.msra.mxu0 %v9592
        %9648 = vmatprep.subr.bf16.mxu0 %v9595
        %9649 = vmatpush1.bf16.msra.mxu0 %v9594
        %9650 = vmatprep.subr.bf16.mxu0 %v9597
        %9651 = vmatpush1.bf16.msra.mxu0 %v9596
        %9652 = vmatprep.subr.bf16.mxu0 %v9599
        %9653 = vmatpush1.bf16.msra.mxu0 %v9598
        %9654 = vmatprep.subr.bf16.mxu0 %v9601
        %9655 = vmatpush1.bf16.msra.mxu0 %v9600
        %9656 = vmatprep.subr.bf16.mxu0 %v9603
        %9657 = vmatpush1.bf16.msra.mxu0 %v9602
        %9658 = vmatprep.subr.bf16.mxu0 %v9605
        %9659 = vmatpush1.bf16.msra.mxu0 %v9604
        %9660 = vmatprep.subr.bf16.mxu0 %v9607
        %9661 = vmatpush1.bf16.msra.mxu0 %v9606
        %9662 = vmatprep.subr.bf16.mxu0 %v9609
        %9663 = vmatpush1.bf16.msra.mxu0 %v9608
        %9664 = vmatprep.subr.bf16.mxu0 %v9611
        %9665 = vmatpush1.bf16.msra.mxu0 %v9610
        %9666 = vmatprep.subr.bf16.mxu0 %v9613
        %9667 = vmatpush1.bf16.msra.mxu0 %v9612
        %9668 = vmatprep.subr.bf16.mxu0 0
        %9669 = vmatpush1.bf16.msra.mxu0 0
        %9670 = vmatprep.subr.bf16.mxu0 0
        %9671 = vmatpush1.bf16.msra.mxu0 0
        %9672 = vmatprep.subr.bf16.mxu0 0
        %9673 = vmatpush1.bf16.msra.mxu0 0
        %9674 = vmatprep.subr.bf16.mxu0 0
        %9675 = vmatpush1.bf16.msra.mxu0 0
        %9676 = vmatprep.mubr.bf16.mxu0 %v9639
        %9677 = vmatmul.mubr.bf16.gmra.mrb[0].mxu0 %v9489
        %v9678 = vpop.f32.mrb[0].mxu0
        %v9679 = vadd.f32 0.0, %v9678
        %v9680 = vpop.f32.mrb[0].mxu0
        %v9681 = vadd.f32 0.0, %v9680
        %v9682 = vpop.f32.mrb[0].mxu0
        %v9683 = vadd.f32 0.0, %v9682
        %v9684 = vpop.f32.mrb[0].mxu0
        %v9685 = vadd.f32 0.0, %v9684
        %9686 = vmatprep.mubr.bf16.mxu0 %v9642
        %9687 = vmatmul.mubr.bf16.gmra.mrb[0].mxu0 %v9491
        %v9688 = vpop.f32.mrb[0].mxu0
        %v9689 = vadd.f32 0.0, %v9688
        %v9690 = vpop.f32.mrb[0].mxu0
        %v9691 = vadd.f32 0.0, %v9690
        %v9692 = vpop.f32.mrb[0].mxu0
        %v9693 = vadd.f32 0.0, %v9692
        %v9694 = vpop.f32.mrb[0].mxu0
        %v9695 = vadd.f32 0.0, %v9694
        %9696 = vdwg.mxu0
        %v9697 = vadd.f32 %v9407, %v9679
        %v9698 = vadd.f32 %v9408, %v9681
        %v9699 = vadd.f32 %v9409, %v9683
        %v9700 = vadd.f32 %v9410, %v9685
        %v9701 = vadd.f32 %v9411, %v9689
        %v9702 = vadd.f32 %v9412, %v9691
        %v9703 = vadd.f32 %v9413, %v9693
        %v9704 = vadd.f32 %v9414, %v9695
        %s9705 = scalar_lea.vmem [#allocation6], 14
        %v9706 = vld [vmem:[%s9705] sm:$0x3]
        %v9708 = vlaneseq
        %v9709 = vshrl.u32 %v9708, 7
        %v9710 = vsub.s32 0, %v9709
        %v9711 = vrot.slane %v9706, %v9710
        %v9712 = vlaneseq
        %v9713 = vshrl.u32 %v9712, 7
        %v9714 = vsub.s32 1, %v9713
        %v9715 = vrot.slane %v9706, %v9714
        %v9718 = vadd.f32 %v9697, %v9711
        %v9719 = vadd.f32 %v9698, %v9715
        %v9720 = vadd.f32 %v9699, %v9711
        %v9721 = vadd.f32 %v9700, %v9715
        %v9722 = vadd.f32 %v9701, %v9711
        %v9723 = vadd.f32 %v9702, %v9715
        %v9724 = vadd.f32 %v9703, %v9711
        %v9725 = vadd.f32 %v9704, %v9715
        %v9726 = vtanh.pop %v9718
        %v9727 = vtanh.pop %v9719
        %v9728 = vtanh.pop %v9720
        %v9729 = vtanh.pop %v9721
        %v9730 = vtanh.pop %v9722
        %v9731 = vtanh.pop %v9723
        %v9732 = vtanh.pop %v9724
        %v9733 = vtanh.pop %v9725
        %9734 = vst [vmem:[%s241] sm:$0xff] %v9726
        %9735 = vst.msk [vmem:[%s241 + $0x8] sm:$0xff] %vm592, %v9727
        %9736 = vst [vmem:[%s241 + $0x10] sm:$0xff] %v9728
        %9737 = vst.msk [vmem:[%s241 + $0x18] sm:$0xff] %vm592, %v9729
        %9738 = vst [vmem:[%s241 + $0x20] sm:$0xff] %v9730
        %9739 = vst.msk [vmem:[%s241 + $0x28] sm:$0xff] %vm592, %v9731
        %9740 = vst [vmem:[%s241 + $0x30] sm:$0xff] %v9732
        %9741 = vst.msk [vmem:[%s241 + $0x38] sm:$0xff] %vm592, %v9733
        %p9742 = scmp.lt.s32.totalorder %s17, 1
        %s9743 = scalar_select %p9742, %s17, 1
        %s9744 = smul.addr %s9743, 8
        %s9745 = smul.addr %s9744, 8
        %s9746 = scalar_lea.vmem %s4, %s9745
        // Predicated region
        $region49: #{conv_ae_forward.1} parent=35 // pred_check
          %p9747 = pneg %p124
        $region50: #{conv_ae_forward.1} parent=35 // pred_check_branch
          %9749 = sbr.rel (%p9747) target = $region52
        $region51: #{conv_ae_forward.1} parent=35 // pred_region
          _
        $region52: #{conv_ae_forward.1} parent=35 // pred_fallthru
          _
      $region36: #{conv_ae_forward.1} parent=5 // pred_fallthru
        _
      %p9750 = scmp.le.s32.totalorder 2, %s12
      // Predicated region
      $region53: #{conv_ae_forward.1} parent=5 // pred_check
        %p9751 = pneg %p9750
      $region54: #{conv_ae_forward.1} parent=5 // pred_check_branch
        %9753 = sbr.rel (%p9751) target = $region56
      $region55: #{conv_ae_forward.1} parent=5 // pred_region
        %s9754 = ssub.s32 %s12, 2
        // Predicated region
        $region57: #{conv_ae_forward.1} parent=55 // pred_check
          %p9755 = pneg %p130
        $region58: #{conv_ae_forward.1} parent=55 // pred_check_branch
          %9757 = sbr.rel (%p9755) target = $region60
        $region59: #{conv_ae_forward.1} parent=55 // pred_region
          %p9758 = scmp.lt.s32.totalorder %s18, 1
          %s9759 = scalar_select %p9758, %s18, 1
          %s9760 = smul.addr %s9759, 8
          %s9761 = smul.addr %s9760, 8
          %s9762 = scalar_lea.vmem %s4, %s9761
        $region60: #{conv_ae_forward.1} parent=55 // pred_fallthru
          _
      $region56: #{conv_ae_forward.1} parent=5 // pred_fallthru
        _
    $region6: #{conv_ae_forward.1} parent=1 // loop_footer
      %s16 = sadd.s32 1, %s12
    $region7: #{conv_ae_forward.1} parent=1 // loop_footer_branch
      %11 = sbr.rel target = $region3
    $region8: #{conv_ae_forward.1} parent=1 // loop_exit
      _
    %9763 = vsyncpa [#allocation3], 1
    %s9764 = scalar_lea.sflag [#allocation3], 1
    %9765 = vsyncpa %s9764, 1
    %9766 = vsyncpa [#allocation5], 1

</llo_original>
